<compile_context>
chip_gen: v7x
topology: tpu7x:2x2x1
jax: 0.10.0
libtpu: 0.0.40
codegen_flags: <defaults>
</compile_context>

<pallas_src>
import jax
import jax.numpy as jnp
from jax.experimental import pallas as pl
from jax.experimental.pallas import tpu as pltpu


def _round_up(x, m):
    return (x + m - 1) // m * m


# ----------------------------- Pallas kernel --------------------------------
def _fused_matmul_kernel(p_ref, w_ref, meta_ref, o_ref):
    """o = prelu((patches @ weight) * scale + shift, alpha), K-tiled.

    Grid is (M_blocks, K_blocks) with K innermost; the output block index is
    constant along K, so o_ref stays resident in VMEM and doubles as the f32
    accumulator (no scratch).  meta rows: 0=scale, 1=shift, 2=alpha.
    """
    k = pl.program_id(1)

    @pl.when(k == 0)
    def _():
        o_ref[...] = jnp.zeros_like(o_ref)

    o_ref[...] += jnp.dot(p_ref[...], w_ref[...],
                          preferred_element_type=jnp.float32)

    @pl.when(k == pl.num_programs(1) - 1)
    def _():
        scale = meta_ref[0:1, :]
        shift = meta_ref[1:2, :]
        alpha = meta_ref[2:3, :]
        z = o_ref[...] * scale + shift
        o_ref[...] = jnp.where(z >= 0, z, alpha * z)


def fused_conv_matmul(patches, weight, scale, shift, alpha,
                      *, max_tk=4096, max_tm=256):
    """patches:(M,K), weight:(K,Cout), scale/shift/alpha:(Cout,) -> (M,Cout) f32."""
    M, K = patches.shape
    _, Cout = weight.shape

    Np = _round_up(Cout, 128)
    tm = max_tm if M > max_tm else _round_up(M, 8)      # sublane-aligned M tile
    Mp = _round_up(M, tm)
    tk = max_tk if K > max_tk else _round_up(K, 128)    # per-layer K tile
    Kp = _round_up(K, tk)

    # bf16 operands (f32 accumulation in-kernel); jnp.pad -> single fused pad.
    p = jnp.pad(patches.astype(jnp.bfloat16), ((0, Mp - M), (0, Kp - K)))
    w = jnp.pad(weight.astype(jnp.bfloat16), ((0, Kp - K), (0, Np - Cout)))
    # Pack the three epilogue vectors into one (8, Np) operand (one DMA).
    meta = jnp.zeros((8, Np), jnp.float32)
    meta = (meta.at[0, :Cout].set(scale)
                .at[1, :Cout].set(shift)
                .at[2, :Cout].set(alpha))

    out = pl.pallas_call(
        _fused_matmul_kernel,
        out_shape=jax.ShapeDtypeStruct((Mp, Np), jnp.float32),
        grid_spec=pltpu.PrefetchScalarGridSpec(
            num_scalar_prefetch=0,
            grid=(Mp // tm, Kp // tk),                  # reduction axis last
            in_specs=[
                pl.BlockSpec((tm, tk), lambda m, k: (m, k)),   # patches tile
                pl.BlockSpec((tk, Np), lambda m, k: (k, 0)),   # weight tile
                pl.BlockSpec((8, Np), lambda m, k: (0, 0)),    # scale/shift/alpha
            ],
            out_specs=pl.BlockSpec((tm, Np), lambda m, k: (m, 0)),
        ),
        compiler_params=pltpu.CompilerParams(
            dimension_semantics=("parallel", "arbitrary")),
    )(p, w, meta)
    return out[:M, :Cout]


# ------------------------------ JAX glue -------------------------------------
def extract_patches_nhwc(x, kh, kw):
    """x:(N,H,W,C) -> (N*OH*OW, C*kh*kw); feature order (c, kh, kw) matches
    PyTorch weight.reshape(Cout, -1)."""
    N, H, W, C = x.shape
    OH, OW = H - kh + 1, W - kw + 1
    p = jax.lax.conv_general_dilated_patches(
        x, filter_shape=(kh, kw), window_strides=(1, 1), padding="VALID",
        dimension_numbers=("NHWC", "HWIO", "NHWC"))
    return p.reshape(N * OH * OW, C * kh * kw), OH, OW


def conv_bn_prelu_layer(x_nhwc, params):
    """Conv(valid) + eval-mode BN + PReLU.  NHWC in / NHWC out."""
    w = params["w"]                                    # (Cout, Cin, KH, KW)
    Cout, Cin, KH, KW = w.shape
    patches, OH, OW = extract_patches_nhwc(x_nhwc.astype(jnp.bfloat16), KH, KW)
    wmat = w.reshape(Cout, Cin * KH * KW).T            # (K, Cout)

    eps = 1e-5
    bn_scale = params["gamma"] / jnp.sqrt(params["rvar"] + eps)
    bn_shift = params["beta"] - params["rmean"] * bn_scale
    scale = bn_scale
    shift = params["b"] * bn_scale + bn_shift
    alpha = params["alpha"]

    out = fused_conv_matmul(patches, wmat, scale, shift, alpha)
    N = x_nhwc.shape[0]
    return out.reshape(N, OH, OW, Cout)                # stay NHWC


def conv_layer_small(x_nhwc, params):
    """Layer4: tiny (Mx384x3) conv -> plain XLA dot (Pallas tile padding would
    waste >97% of the MXU work; per performance review)."""
    w = params["w"]
    Cout, Cin, KH, KW = w.shape
    patches, OH, OW = extract_patches_nhwc(x_nhwc, KH, KW)
    out = jnp.dot(patches.astype(jnp.float32),
                  w.reshape(Cout, Cin * KH * KW).T) + params["b"]
    N = x_nhwc.shape[0]
    return out.reshape(N, OH, OW, Cout)


def init_params(key):
    def conv_params(key, cout, cin, k, bn_prelu):
        kw_, kb_ = jax.random.split(key)
        p = {
            "w": 0.02 * jax.random.normal(kw_, (cout, cin, k, k), jnp.float32),
            "b": 0.01 * jax.random.normal(kb_, (cout,), jnp.float32),
        }
        if bn_prelu:
            # PyTorch defaults: gamma=1, beta=0, running_mean=0, running_var=1,
            # PReLU alpha=0.25 (per-channel).
            p.update({
                "gamma": jnp.ones((cout,), jnp.float32),
                "beta": jnp.zeros((cout,), jnp.float32),
                "rmean": jnp.zeros((cout,), jnp.float32),
                "rvar": jnp.ones((cout,), jnp.float32),
                "alpha": jnp.full((cout,), 0.25, jnp.float32),
            })
        return p

    k1, k3, k4 = jax.random.split(key, 3)
    return {
        "layer1": conv_params(k1, 196, 5, 16, True),
        "layer3": conv_params(k3, 24, 196, 12, True),
        "layer4": conv_params(k4, 3, 24, 4, False),
    }


@jax.jit
def convnet_nin_forward(x, params):
    """x: (N, C, H, W) NCHW like the PyTorch module; returns NCHW."""
    h = jnp.transpose(x, (0, 2, 3, 1))                 # NCHW -> NHWC (once)
    h = conv_bn_prelu_layer(h, params["layer1"])       # (N, H-15, W-15, 196)
    h = conv_bn_prelu_layer(h, params["layer3"])       # (N, H-26, W-26,  24)
    h = conv_layer_small(h, params["layer4"])          # (N, H-29, W-29,   3)
    return jnp.transpose(h, (0, 3, 1, 2))              # back to NCHW (once)


if __name__ == "__main__":
    key = jax.random.PRNGKey(0)
    kx, kp = jax.random.split(key)
    # Smallest input the stack of kernel sizes (16, 12, 4) supports: 30x30.
    x = jax.random.normal(kx, (2, 5, 30, 30), jnp.float32)
    params = init_params(kp)

    out = convnet_nin_forward(x, params)
    out = jax.block_until_ready(out)
    assert out.shape == (2, 3, 1, 1), out.shape
    print("KERNEL_OK")
</pallas_src>

<mosaic_0001>
module attributes {stable_mosaic.version = 11 : i64} {
  func.func @_fused_matmul_kernel(%arg0: i32, %arg1: i32, %arg2: memref<256x1280xbf16, #tpu.memory_space<vmem>>, %arg3: memref<1280x256xbf16, #tpu.memory_space<vmem>>, %arg4: memref<8x256xf32, #tpu.memory_space<vmem>>, %arg5: memref<256x256xf32, #tpu.memory_space<vmem>>) attributes {dimension_semantics = [#tpu.dimension_semantics<parallel>, #tpu.dimension_semantics<arbitrary>], iteration_bounds = array<i64: 2, 1>, scalar_prefetch = 0 : i64, scratch_operands = 0 : i64, tpu.core_type = #tpu.core_type<tc>, window_params = [{transform_indices = @transform_0, window_bounds = array<i64: 256, 1280>}, {transform_indices = @transform_1, window_bounds = array<i64: 1280, 256>}, {pipeline_mode = #tpu.pipeline_mode<synchronous>, transform_indices = @transform_2, window_bounds = array<i64: 8, 256>}, {transform_indices = @transform_3, window_bounds = array<i64: 256, 256>}]} {
    %c0_i32 = arith.constant 0 : i32
    %0 = arith.cmpi eq, %arg1, %c0_i32 : i32
    %1 = arith.extui %0 : i1 to i32
    %c0_i32_0 = arith.constant 0 : i32
    %2 = arith.cmpi ne, %1, %c0_i32_0 : i32
    scf.if %2 {
      %cst_10 = arith.constant 0.000000e+00 : f32
      %12 = vector.broadcast %cst_10 : f32 to vector<256x256xf32>
      %c0_11 = arith.constant 0 : index
      %c0_12 = arith.constant 0 : index
      %13 = vector.load %arg5[%c0_11, %c0_12] : memref<256x256xf32, #tpu.memory_space<vmem>>, vector<256x256xf32>
      tpu.vector_store %arg5[%c0_11, %c0_12], %12 {strides = array<i32>} : memref<256x256xf32, #tpu.memory_space<vmem>>, vector<256x256xf32>,
    } else {
    }
    %c0 = arith.constant 0 : index
    %c0_1 = arith.constant 0 : index
    %3 = vector.load %arg5[%c0, %c0_1] : memref<256x256xf32, #tpu.memory_space<vmem>>, vector<256x256xf32>
    %c0_2 = arith.constant 0 : index
    %c0_3 = arith.constant 0 : index
    %4 = vector.load %arg2[%c0_2, %c0_3] : memref<256x1280xbf16, #tpu.memory_space<vmem>>, vector<256x1280xbf16>
    %c0_4 = arith.constant 0 : index
    %c0_5 = arith.constant 0 : index
    %5 = vector.load %arg3[%c0_4, %c0_5] : memref<1280x256xbf16, #tpu.memory_space<vmem>>, vector<1280x256xbf16>
    %cst = arith.constant dense<0.000000e+00> : vector<256x256xf32>
    %6 = tpu.matmul %4, %5, %cst {dimension_numbers = #tpu.dot_dimension_numbers<[1], [0], [0], [1], [0, 0, 1, 1], [], []>} : vector<256x1280xbf16>, vector<1280x256xbf16>, vector<256x256xf32> -> vector<256x256xf32>
    %7 = arith.addf %3, %6 : vector<256x256xf32>
    %c0_6 = arith.constant 0 : index
    %c0_7 = arith.constant 0 : index
    %8 = vector.load %arg5[%c0_6, %c0_7] : memref<256x256xf32, #tpu.memory_space<vmem>>, vector<256x256xf32>
    tpu.vector_store %arg5[%c0_6, %c0_7], %7 {strides = array<i32>} : memref<256x256xf32, #tpu.memory_space<vmem>>, vector<256x256xf32>,
    %c0_i32_8 = arith.constant 0 : i32
    %9 = arith.cmpi eq, %arg1, %c0_i32_8 : i32
    %10 = arith.extui %9 : i1 to i32
    %c0_i32_9 = arith.constant 0 : i32
    %11 = arith.cmpi ne, %10, %c0_i32_9 : i32
    scf.if %11 {
      %c0_10 = arith.constant 0 : index
      %c0_11 = arith.constant 0 : index
      %12 = vector.load %arg4[%c0_10, %c0_11] : memref<8x256xf32, #tpu.memory_space<vmem>>, vector<1x256xf32>
      %c1 = arith.constant 1 : index
      %c0_12 = arith.constant 0 : index
      %13 = vector.load %arg4[%c1, %c0_12] : memref<8x256xf32, #tpu.memory_space<vmem>>, vector<1x256xf32>
      %c2 = arith.constant 2 : index
      %c0_13 = arith.constant 0 : index
      %14 = vector.load %arg4[%c2, %c0_13] : memref<8x256xf32, #tpu.memory_space<vmem>>, vector<1x256xf32>
      %c0_14 = arith.constant 0 : index
      %c0_15 = arith.constant 0 : index
      %15 = vector.load %arg5[%c0_14, %c0_15] : memref<256x256xf32, #tpu.memory_space<vmem>>, vector<256x256xf32>
      %16 = vector.broadcast %12 : vector<1x256xf32> to vector<256x256xf32>
      %17 = arith.mulf %15, %16 : vector<256x256xf32>
      %18 = vector.broadcast %13 : vector<1x256xf32> to vector<256x256xf32>
      %19 = arith.addf %17, %18 : vector<256x256xf32>
      %cst_16 = arith.constant 0.000000e+00 : f32
      %20 = vector.broadcast %cst_16 : f32 to vector<256x256xf32>
      %21 = arith.cmpf oge, %19, %20 : vector<256x256xf32>
      %22 = vector.broadcast %14 : vector<1x256xf32> to vector<256x256xf32>
      %23 = arith.mulf %22, %19 : vector<256x256xf32>
      %24 = arith.select %21, %19, %23 : vector<256x256xi1>, vector<256x256xf32>
      %c0_17 = arith.constant 0 : index
      %c0_18 = arith.constant 0 : index
      %25 = vector.load %arg5[%c0_17, %c0_18] : memref<256x256xf32, #tpu.memory_space<vmem>>, vector<256x256xf32>
      tpu.vector_store %arg5[%c0_17, %c0_18], %24 {strides = array<i32>} : memref<256x256xf32, #tpu.memory_space<vmem>>, vector<256x256xf32>,
    } else {
    }
    return
  }
  func.func @transform_0(%arg0: i32, %arg1: i32) -> (i32, i32) {
    %c0_i32 = arith.constant 0 : i32
    return %arg0, %arg1 : i32, i32
  }
  func.func @transform_1(%arg0: i32, %arg1: i32) -> (i32, i32) {
    %c0_i32 = arith.constant 0 : i32
    %c0_i32_0 = arith.constant 0 : i32
    return %arg1, %c0_i32 : i32, i32
  }
  func.func @transform_2(%arg0: i32, %arg1: i32) -> (i32, i32) {
    %c0_i32 = arith.constant 0 : i32
    %c0_i32_0 = arith.constant 0 : i32
    %c0_i32_1 = arith.constant 0 : i32
    return %c0_i32, %c0_i32_0 : i32, i32
  }
  func.func @transform_3(%arg0: i32, %arg1: i32) -> (i32, i32) {
    %c0_i32 = arith.constant 0 : i32
    %c0_i32_0 = arith.constant 0 : i32
    return %arg0, %c0_i32 : i32, i32
  }
}

module attributes {stable_mosaic.version = 11 : i64} {
  func.func @_fused_matmul_kernel(%arg0: i32, %arg1: i32, %arg2: memref<32x4096xbf16, #tpu.memory_space<vmem>>, %arg3: memref<4096x128xbf16, #tpu.memory_space<vmem>>, %arg4: memref<8x128xf32, #tpu.memory_space<vmem>>, %arg5: memref<32x128xf32, #tpu.memory_space<vmem>>) attributes {dimension_semantics = [#tpu.dimension_semantics<parallel>, #tpu.dimension_semantics<arbitrary>], iteration_bounds = array<i64: 1, 7>, scalar_prefetch = 0 : i64, scratch_operands = 0 : i64, tpu.core_type = #tpu.core_type<tc>, window_params = [{transform_indices = @transform_0, window_bounds = array<i64: 32, 4096>}, {transform_indices = @transform_1, window_bounds = array<i64: 4096, 128>}, {pipeline_mode = #tpu.pipeline_mode<synchronous>, transform_indices = @transform_2, window_bounds = array<i64: 8, 128>}, {transform_indices = @transform_3, window_bounds = array<i64: 32, 128>}]} {
    %c0_i32 = arith.constant 0 : i32
    %0 = arith.cmpi eq, %arg1, %c0_i32 : i32
    %1 = arith.extui %0 : i1 to i32
    %c0_i32_0 = arith.constant 0 : i32
    %2 = arith.cmpi ne, %1, %c0_i32_0 : i32
    scf.if %2 {
      %cst_9 = arith.constant 0.000000e+00 : f32
      %12 = vector.broadcast %cst_9 : f32 to vector<32x128xf32>
      %c0_10 = arith.constant 0 : index
      %c0_11 = arith.constant 0 : index
      %13 = vector.load %arg5[%c0_10, %c0_11] : memref<32x128xf32, #tpu.memory_space<vmem>>, vector<32x128xf32>
      tpu.vector_store %arg5[%c0_10, %c0_11], %12 {strides = array<i32>} : memref<32x128xf32, #tpu.memory_space<vmem>>, vector<32x128xf32>,
    } else {
    }
    %c0 = arith.constant 0 : index
    %c0_1 = arith.constant 0 : index
    %3 = vector.load %arg5[%c0, %c0_1] : memref<32x128xf32, #tpu.memory_space<vmem>>, vector<32x128xf32>
    %c0_2 = arith.constant 0 : index
    %c0_3 = arith.constant 0 : index
    %4 = vector.load %arg2[%c0_2, %c0_3] : memref<32x4096xbf16, #tpu.memory_space<vmem>>, vector<32x4096xbf16>
    %c0_4 = arith.constant 0 : index
    %c0_5 = arith.constant 0 : index
    %5 = vector.load %arg3[%c0_4, %c0_5] : memref<4096x128xbf16, #tpu.memory_space<vmem>>, vector<4096x128xbf16>
    %cst = arith.constant dense<0.000000e+00> : vector<32x128xf32>
    %6 = tpu.matmul %4, %5, %cst {dimension_numbers = #tpu.dot_dimension_numbers<[1], [0], [0], [1], [0, 0, 1, 1], [], []>} : vector<32x4096xbf16>, vector<4096x128xbf16>, vector<32x128xf32> -> vector<32x128xf32>
    %7 = arith.addf %3, %6 : vector<32x128xf32>
    %c0_6 = arith.constant 0 : index
    %c0_7 = arith.constant 0 : index
    %8 = vector.load %arg5[%c0_6, %c0_7] : memref<32x128xf32, #tpu.memory_space<vmem>>, vector<32x128xf32>
    tpu.vector_store %arg5[%c0_6, %c0_7], %7 {strides = array<i32>} : memref<32x128xf32, #tpu.memory_space<vmem>>, vector<32x128xf32>,
    %c6_i32 = arith.constant 6 : i32
    %9 = arith.cmpi eq, %arg1, %c6_i32 : i32
    %10 = arith.extui %9 : i1 to i32
    %c0_i32_8 = arith.constant 0 : i32
    %11 = arith.cmpi ne, %10, %c0_i32_8 : i32
    scf.if %11 {
      %c0_9 = arith.constant 0 : index
      %c0_10 = arith.constant 0 : index
      %12 = vector.load %arg4[%c0_9, %c0_10] : memref<8x128xf32, #tpu.memory_space<vmem>>, vector<1x128xf32>
      %c1 = arith.constant 1 : index
      %c0_11 = arith.constant 0 : index
      %13 = vector.load %arg4[%c1, %c0_11] : memref<8x128xf32, #tpu.memory_space<vmem>>, vector<1x128xf32>
      %c2 = arith.constant 2 : index
      %c0_12 = arith.constant 0 : index
      %14 = vector.load %arg4[%c2, %c0_12] : memref<8x128xf32, #tpu.memory_space<vmem>>, vector<1x128xf32>
      %c0_13 = arith.constant 0 : index
      %c0_14 = arith.constant 0 : index
      %15 = vector.load %arg5[%c0_13, %c0_14] : memref<32x128xf32, #tpu.memory_space<vmem>>, vector<32x128xf32>
      %16 = vector.broadcast %12 : vector<1x128xf32> to vector<32x128xf32>
      %17 = arith.mulf %15, %16 : vector<32x128xf32>
      %18 = vector.broadcast %13 : vector<1x128xf32> to vector<32x128xf32>
      %19 = arith.addf %17, %18 : vector<32x128xf32>
      %cst_15 = arith.constant 0.000000e+00 : f32
      %20 = vector.broadcast %cst_15 : f32 to vector<32x128xf32>
      %21 = arith.cmpf oge, %19, %20 : vector<32x128xf32>
      %22 = vector.broadcast %14 : vector<1x128xf32> to vector<32x128xf32>
      %23 = arith.mulf %22, %19 : vector<32x128xf32>
      %24 = arith.select %21, %19, %23 : vector<32x128xi1>, vector<32x128xf32>
      %c0_16 = arith.constant 0 : index
      %c0_17 = arith.constant 0 : index
      %25 = vector.load %arg5[%c0_16, %c0_17] : memref<32x128xf32, #tpu.memory_space<vmem>>, vector<32x128xf32>
      tpu.vector_store %arg5[%c0_16, %c0_17], %24 {strides = array<i32>} : memref<32x128xf32, #tpu.memory_space<vmem>>, vector<32x128xf32>,
    } else {
    }
    return
  }
  func.func @transform_0(%arg0: i32, %arg1: i32) -> (i32, i32) {
    %c0_i32 = arith.constant 0 : i32
    return %arg0, %arg1 : i32, i32
  }
  func.func @transform_1(%arg0: i32, %arg1: i32) -> (i32, i32) {
    %c0_i32 = arith.constant 0 : i32
    %c0_i32_0 = arith.constant 0 : i32
    return %arg1, %c0_i32 : i32, i32
  }
  func.func @transform_2(%arg0: i32, %arg1: i32) -> (i32, i32) {
    %c0_i32 = arith.constant 0 : i32
    %c0_i32_0 = arith.constant 0 : i32
    %c0_i32_1 = arith.constant 0 : i32
    return %c0_i32, %c0_i32_0 : i32, i32
  }
  func.func @transform_3(%arg0: i32, %arg1: i32) -> (i32, i32) {
    %c0_i32 = arith.constant 0 : i32
    %c0_i32_0 = arith.constant 0 : i32
    return %arg0, %c0_i32 : i32, i32
  }
}

</mosaic_0001>

<llo_original>
// kernel: convnet_nin_forward.2
$region0: #{convnet_nin_forward.2}
  #allocation0 [shape = 'u32[]', space=smem, size = 0x4, offset = 0x4, fixed_abs, tag = 'smem constant byte address 0x4 - core index']
  #allocation1 [shape = 'u32[144,128]{1,0:T(1,128)}', space=vmem, size = 0x12000, scoped, tag = 'internal scratch']
  %s0 = inlined_call_operand.vmem [shape: bf16[512,1280], index: 0, kind: input, shape index: {}]
  %s1 = inlined_call_operand.vmem [shape: bf16[1280,256], index: 1, kind: input, shape index: {}]
  %s2 = inlined_call_operand.vmem [shape: f32[8,256], index: 2, kind: input, shape index: {}]
  %s3 = inlined_call_operand.vmem [shape: f32[512,256], index: 3, kind: output, shape index: {}]
  %s4 = sld [smem:[#allocation0]]
  $region53: #{convnet_nin_forward.2} parent=0
    _
  %s6 = ssub.s32 1, %s4
  %s7 = scalar_select 0, %s6, %s4
  loop: start=0, step=1, limit=4
  $region2: #{convnet_nin_forward.2} parent=0 // loop_pre_header
    _
  $region3: #{convnet_nin_forward.2} parent=0 // loop_header
    %s9 = sphi 0, %s13
    %p10 = scmp.ge.s32.totalorder %s9, 4
    %s16 = sphi 0, %s28
    %s17 = sphi 0, %s24
    %s18 = sphi 0, %s16
    %s19 = sphi 0, %s17
    %s20 = sphi 0, %s18
    %s21 = sphi 0, %s19
    %s33 = sphi 0, %s35
    %s36 = sphi 0, %s33
    %s37 = sphi 0, %s36
    %s53 = sphi 0, %s37
    %s59 = sphi 0, %s61
    %s62 = sphi 0, %s59
    %s63 = sphi 0, %s62
    %s79 = sphi 0, %s63
    %s83 = sphi 0, %s83
    %s85 = sphi 0, %s83
    %s86 = sphi 0, %s85
    %s100 = sphi 0, %s86
    %s106 = sphi 0, %s108
    %s109 = sphi 0, %s106
    %s110 = sphi 0, %s109
    %s126 = sphi 0, %s110
  $region4: #{convnet_nin_forward.2} parent=0 // loop_header_branch
    %12 = sbr.rel (%p10) target = $region8
  $region5: #{convnet_nin_forward.2} parent=0 // loop_body
    %s14 = ssub.s32 %s9, 1
    %s15 = ssub.s32 %s9, 2
    %s22 = sadd.s32 1, %s17
    %p23 = scmp.ge.s32.totalorder %s22, 1
    %s24 = scalar_select %p23, 0, %s22
    %s25 = sadd.s32 1, %s16
    %s26 = scalar_select %p23, %s25, %s16
    %p27 = scmp.ge.s32.totalorder %s26, 2
    %s28 = scalar_select %p27, 0, %s26
    %s29 = ssub.s32 %s16, %s28
    %s30 = ssub.s32 %s17, %s24
    %s31 = sor.u32 %s29, %s30
    %p32 = scmp.eq.s32.totalorder %s31, 0
    %s34 = sadd.s32 %s33, 1
    %s35 = scalar_select %p32, %s33, %s34
    %p38 = pneg %p32
    %p39 = scmp.eq.s32.totalorder %s9, 1
    %p40 = por %p38, %p39
    %p41 = scmp.ne.s32.totalorder %s33, %s36
    %p42 = scmp.eq.s32.totalorder %s9, 0
    %p43 = por %p41, %p42
    %p44 = scmp.ne.s32.totalorder %s33, %s36
    %p45 = scmp.eq.s32.totalorder %s14, 1
    %p46 = por %p44, %p45
    %p47 = scmp.ne.s32.totalorder %s36, %s37
    %p48 = scmp.eq.s32.totalorder %s14, 0
    %p49 = por %p47, %p48
    %p50 = scmp.ne.s32.totalorder %s36, %s37
    %p51 = scmp.eq.s32.totalorder %s15, 1
    %p52 = por %p50, %p51
    %p54 = scmp.ne.s32.totalorder %s37, %s53
    %p55 = scmp.eq.s32.totalorder %s15, 0
    %p56 = por %p54, %p55
    %s57 = ssub.s32 %s17, %s24
    %p58 = scmp.eq.s32.totalorder %s57, 0
    %s60 = sadd.s32 %s59, 1
    %s61 = scalar_select %p58, %s59, %s60
    %p64 = pneg %p58
    %p65 = scmp.eq.s32.totalorder %s9, 1
    %p66 = por %p64, %p65
    %p67 = scmp.ne.s32.totalorder %s59, %s62
    %p68 = scmp.eq.s32.totalorder %s9, 0
    %p69 = por %p67, %p68
    %p70 = scmp.ne.s32.totalorder %s59, %s62
    %p71 = scmp.eq.s32.totalorder %s14, 1
    %p72 = por %p70, %p71
    %p73 = scmp.ne.s32.totalorder %s62, %s63
    %p74 = scmp.eq.s32.totalorder %s14, 0
    %p75 = por %p73, %p74
    %p76 = scmp.ne.s32.totalorder %s62, %s63
    %p77 = scmp.eq.s32.totalorder %s15, 1
    %p78 = por %p76, %p77
    %p80 = scmp.ne.s32.totalorder %s63, %s79
    %p81 = scmp.eq.s32.totalorder %s15, 0
    %p82 = por %p80, %p81
    %s84 = sadd.s32 %s83, 1
    %p87 = scmp.eq.s32.totalorder %s9, 1
    %p88 = scmp.ne.s32.totalorder %s83, %s85
    %p89 = scmp.eq.s32.totalorder %s9, 0
    %p90 = por %p88, %p89
    %p91 = scmp.ne.s32.totalorder %s83, %s85
    %p92 = scmp.eq.s32.totalorder %s14, 1
    %p93 = por %p91, %p92
    %p94 = scmp.ne.s32.totalorder %s85, %s86
    %p95 = scmp.eq.s32.totalorder %s14, 0
    %p96 = por %p94, %p95
    %p97 = scmp.ne.s32.totalorder %s85, %s86
    %p98 = scmp.eq.s32.totalorder %s15, 1
    %p99 = por %p97, %p98
    %p101 = scmp.ne.s32.totalorder %s86, %s100
    %p102 = scmp.eq.s32.totalorder %s15, 0
    %p103 = por %p101, %p102
    %s104 = ssub.s32 %s16, %s28
    %p105 = scmp.eq.s32.totalorder %s104, 0
    %s107 = sadd.s32 %s106, 1
    %s108 = scalar_select %p105, %s106, %s107
    %p111 = pneg %p105
    %p112 = scmp.eq.s32.totalorder %s9, 1
    %p113 = por %p111, %p112
    %p114 = scmp.ne.s32.totalorder %s106, %s109
    %p115 = scmp.eq.s32.totalorder %s9, 0
    %p116 = por %p114, %p115
    %p117 = scmp.ne.s32.totalorder %s106, %s109
    %p118 = scmp.eq.s32.totalorder %s14, 1
    %p119 = por %p117, %p118
    %p120 = scmp.ne.s32.totalorder %s109, %s110
    %p121 = scmp.eq.s32.totalorder %s14, 0
    %p122 = por %p120, %p121
    %p123 = scmp.ne.s32.totalorder %s109, %s110
    %p124 = scmp.eq.s32.totalorder %s15, 1
    %p125 = por %p123, %p124
    %p127 = scmp.ne.s32.totalorder %s110, %s126
    %p128 = scmp.eq.s32.totalorder %s15, 0
    %p129 = por %p127, %p128
    %p130 = scmp.le.s32.totalorder 1, %s9
    %p131 = scmp.lt.s32.totalorder %s9, 3
    %p132 = pnand %p130, %p131
    %p133 = pneg %p132
    // Predicated region
    $region9: #{convnet_nin_forward.2} parent=5 // pred_check
      _
    $region10: #{convnet_nin_forward.2} parent=5 // pred_check_branch
      %135 = sbr.rel (%p132) target = $region12
    $region11: #{convnet_nin_forward.2} parent=5 // pred_region
      %s136 = ssub.s32 %s9, 1
      // Predicated region
      $region13: #{convnet_nin_forward.2} parent=11 // pred_check
        %p137 = pneg %p75
      $region14: #{convnet_nin_forward.2} parent=11 // pred_check_branch
        %139 = sbr.rel (%p137) target = $region16
      $region15: #{convnet_nin_forward.2} parent=11 // pred_region
        %s140 = smul.u32 160, %s19
        %p141 = scmp.lt.s32.totalorder %s140, 159
        %s142 = scalar_select %p141, %s140, 159
        %s143 = smul.addr %s142, 2
        %s144 = smul.addr %s143, 4
        %s145 = scalar_lea.vmem %s1, %s144
        %s146 = smul.u32 160, %s19
      $region16: #{convnet_nin_forward.2} parent=11 // pred_fallthru
        _
      // Predicated region
      $region17: #{convnet_nin_forward.2} parent=11 // pred_check
        %p147 = pneg %p96
      $region18: #{convnet_nin_forward.2} parent=11 // pred_check_branch
        %149 = sbr.rel (%p147) target = $region20
      $region19: #{convnet_nin_forward.2} parent=11 // pred_region
        _
      $region20: #{convnet_nin_forward.2} parent=11 // pred_fallthru
        _
    $region12: #{convnet_nin_forward.2} parent=5 // pred_fallthru
      _
    %p150 = scmp.lt.s32.totalorder %s9, 2
    // Predicated region
    $region21: #{convnet_nin_forward.2} parent=5 // pred_check
      %p151 = pneg %p150
    $region22: #{convnet_nin_forward.2} parent=5 // pred_check_branch
      %153 = sbr.rel (%p151) target = $region24
    $region23: #{convnet_nin_forward.2} parent=5 // pred_region
      // Predicated region
      $region25: #{convnet_nin_forward.2} parent=23 // pred_check
        %p154 = pneg %p43
      $region26: #{convnet_nin_forward.2} parent=23 // pred_check_branch
        %156 = sbr.rel (%p154) target = $region28
      $region27: #{convnet_nin_forward.2} parent=23 // pred_region
        %s157 = smul.u32 32, %s16
        %s158 = smul.u32 10, %s17
        %p159 = scmp.lt.s32.totalorder %s157, 63
        %s160 = scalar_select %p159, %s157, 63
        %p161 = scmp.lt.s32.totalorder %s158, 9
        %s162 = scalar_select %p161, %s158, 9
        %s163 = smul.addr %s160, 10
        %s164 = sadd.s32 %s162, %s163
        %s165 = smul.addr %s164, 4
        %s166 = scalar_lea.vmem %s0, %s165
        %s167 = smul.u32 32, %s16
        %s168 = smul.u32 10, %s17
      $region28: #{convnet_nin_forward.2} parent=23 // pred_fallthru
        _
    $region24: #{convnet_nin_forward.2} parent=5 // pred_fallthru
      _
    %p169 = scmp.le.s32.totalorder 1, %s9
    %p170 = scmp.lt.s32.totalorder %s9, 3
    %p171 = pnand %p169, %p170
    %p172 = pneg %p171
    // Predicated region
    $region29: #{convnet_nin_forward.2} parent=5 // pred_check
      _
    $region30: #{convnet_nin_forward.2} parent=5 // pred_check_branch
      %174 = sbr.rel (%p171) target = $region32
    $region31: #{convnet_nin_forward.2} parent=5 // pred_region
      %s175 = ssub.s32 %s9, 1
      %s176 = smul.u32 32, %s18
      %s177 = smul.u32 10, %s19
      %p178 = scmp.lt.s32.totalorder %s176, 63
      %s179 = scalar_select %p178, %s176, 63
      %p180 = scmp.lt.s32.totalorder %s177, 9
      %s181 = scalar_select %p180, %s177, 9
      %s182 = smul.addr %s179, 10
      %s183 = sadd.s32 %s181, %s182
      %s184 = smul.addr %s183, 4
      %s185 = scalar_lea.vmem %s0, %s184
      %p186 = pneg %p49
      %p187 = pneg %p46
      %s188 = smul.u32 160, %s19
      %p189 = scmp.lt.s32.totalorder %s188, 159
      %s190 = scalar_select %p189, %s188, 159
      %s191 = smul.addr %s190, 2
      %s192 = smul.addr %s191, 4
      %s193 = scalar_lea.vmem %s1, %s192
      %p194 = pneg %p75
      %p195 = pneg %p72
      %p196 = pneg %p96
      %p197 = pneg %p93
      %p198 = pneg %p122
      %p199 = pneg %p119
      %s200 = smul.u32 32, %s18
      %p201 = scmp.lt.s32.totalorder %s200, 63
      %s202 = scalar_select %p201, %s200, 63
      %s203 = smul.addr %s202, 2
      %s204 = smul.addr %s203, 8
      %s205 = scalar_lea.vmem %s3, %s204
      %s206 = smul.u32 32, %s18
      %s207 = smul.u32 10, %s19
      %p208 = scmp.lt.s32.totalorder %s206, 63
      %s209 = scalar_select %p208, %s206, 63
      %p210 = scmp.lt.s32.totalorder %s207, 9
      %s211 = scalar_select %p210, %s207, 9
      %s212 = smul.addr %s209, 10
      %s213 = sadd.s32 %s211, %s212
      %s214 = smul.addr %s213, 4
      %s215 = scalar_lea.vmem %s0, %s214
      %s216 = smul.u32 32, %s18
      %s217 = smul.u32 10, %s19
      %s218 = smul.u32 160, %s19
      %p219 = scmp.lt.s32.totalorder %s218, 159
      %s220 = scalar_select %p219, %s218, 159
      %s221 = smul.addr %s220, 2
      %s222 = smul.addr %s221, 4
      %s223 = scalar_lea.vmem %s1, %s222
      %s224 = smul.u32 160, %s19
      %s225 = smul.u32 32, %s18
      %p226 = scmp.lt.s32.totalorder %s225, 63
      %s227 = scalar_select %p226, %s225, 63
      %s228 = smul.addr %s227, 2
      %s229 = smul.addr %s228, 8
      %s230 = scalar_lea.vmem %s3, %s229
      %s231 = smul.u32 32, %s18
      %p232 = scmp.eq.s32.totalorder %s19, 0
      // Predicated region
      $region33: #{convnet_nin_forward.2} parent=31 // pred_check
        %p233 = pneg %p232
      $region34: #{convnet_nin_forward.2} parent=31 // pred_check_branch
        %235 = sbr.rel (%p233) target = $region36
      $region35: #{convnet_nin_forward.2} parent=31 // pred_region
        %236 = vst [vmem:[%s230] sm:$0xff] 0.0
        %237 = vst [vmem:[%s230 + $0x8] sm:$0xff] 0.0
        %238 = vst [vmem:[%s230 + $0x10] sm:$0xff] 0.0
        %239 = vst [vmem:[%s230 + $0x18] sm:$0xff] 0.0
        %240 = vst [vmem:[%s230 + $0x20] sm:$0xff] 0.0
        %241 = vst [vmem:[%s230 + $0x28] sm:$0xff] 0.0
        %242 = vst [vmem:[%s230 + $0x30] sm:$0xff] 0.0
        %243 = vst [vmem:[%s230 + $0x38] sm:$0xff] 0.0
        %244 = vst [vmem:[%s230 + $0x40] sm:$0xff] 0.0
        %245 = vst [vmem:[%s230 + $0x48] sm:$0xff] 0.0
        %246 = vst [vmem:[%s230 + $0x50] sm:$0xff] 0.0
        %247 = vst [vmem:[%s230 + $0x58] sm:$0xff] 0.0
        %248 = vst [vmem:[%s230 + $0x60] sm:$0xff] 0.0
        %249 = vst [vmem:[%s230 + $0x68] sm:$0xff] 0.0
        %250 = vst [vmem:[%s230 + $0x70] sm:$0xff] 0.0
        %251 = vst [vmem:[%s230 + $0x78] sm:$0xff] 0.0
        %252 = vst [vmem:[%s230 + $0x80] sm:$0xff] 0.0
        %253 = vst [vmem:[%s230 + $0x88] sm:$0xff] 0.0
        %254 = vst [vmem:[%s230 + $0x90] sm:$0xff] 0.0
        %255 = vst [vmem:[%s230 + $0x98] sm:$0xff] 0.0
        %256 = vst [vmem:[%s230 + $0xa0] sm:$0xff] 0.0
        %257 = vst [vmem:[%s230 + $0xa8] sm:$0xff] 0.0
        %258 = vst [vmem:[%s230 + $0xb0] sm:$0xff] 0.0
        %259 = vst [vmem:[%s230 + $0xb8] sm:$0xff] 0.0
        %260 = vst [vmem:[%s230 + $0xc0] sm:$0xff] 0.0
        %261 = vst [vmem:[%s230 + $0xc8] sm:$0xff] 0.0
        %262 = vst [vmem:[%s230 + $0xd0] sm:$0xff] 0.0
        %263 = vst [vmem:[%s230 + $0xd8] sm:$0xff] 0.0
        %264 = vst [vmem:[%s230 + $0xe0] sm:$0xff] 0.0
        %265 = vst [vmem:[%s230 + $0xe8] sm:$0xff] 0.0
        %266 = vst [vmem:[%s230 + $0xf0] sm:$0xff] 0.0
        %267 = vst [vmem:[%s230 + $0xf8] sm:$0xff] 0.0
        %268 = vst [vmem:[%s230 + $0x100] sm:$0xff] 0.0
        %269 = vst [vmem:[%s230 + $0x108] sm:$0xff] 0.0
        %270 = vst [vmem:[%s230 + $0x110] sm:$0xff] 0.0
        %271 = vst [vmem:[%s230 + $0x118] sm:$0xff] 0.0
        %272 = vst [vmem:[%s230 + $0x120] sm:$0xff] 0.0
        %273 = vst [vmem:[%s230 + $0x128] sm:$0xff] 0.0
        %274 = vst [vmem:[%s230 + $0x130] sm:$0xff] 0.0
        %275 = vst [vmem:[%s230 + $0x138] sm:$0xff] 0.0
        %276 = vst [vmem:[%s230 + $0x140] sm:$0xff] 0.0
        %277 = vst [vmem:[%s230 + $0x148] sm:$0xff] 0.0
        %278 = vst [vmem:[%s230 + $0x150] sm:$0xff] 0.0
        %279 = vst [vmem:[%s230 + $0x158] sm:$0xff] 0.0
        %280 = vst [vmem:[%s230 + $0x160] sm:$0xff] 0.0
        %281 = vst [vmem:[%s230 + $0x168] sm:$0xff] 0.0
        %282 = vst [vmem:[%s230 + $0x170] sm:$0xff] 0.0
        %283 = vst [vmem:[%s230 + $0x178] sm:$0xff] 0.0
        %284 = vst [vmem:[%s230 + $0x180] sm:$0xff] 0.0
        %285 = vst [vmem:[%s230 + $0x188] sm:$0xff] 0.0
        %286 = vst [vmem:[%s230 + $0x190] sm:$0xff] 0.0
        %287 = vst [vmem:[%s230 + $0x198] sm:$0xff] 0.0
        %288 = vst [vmem:[%s230 + $0x1a0] sm:$0xff] 0.0
        %289 = vst [vmem:[%s230 + $0x1a8] sm:$0xff] 0.0
        %290 = vst [vmem:[%s230 + $0x1b0] sm:$0xff] 0.0
        %291 = vst [vmem:[%s230 + $0x1b8] sm:$0xff] 0.0
        %292 = vst [vmem:[%s230 + $0x1c0] sm:$0xff] 0.0
        %293 = vst [vmem:[%s230 + $0x1c8] sm:$0xff] 0.0
        %294 = vst [vmem:[%s230 + $0x1d0] sm:$0xff] 0.0
        %295 = vst [vmem:[%s230 + $0x1d8] sm:$0xff] 0.0
        %296 = vst [vmem:[%s230 + $0x1e0] sm:$0xff] 0.0
        %297 = vst [vmem:[%s230 + $0x1e8] sm:$0xff] 0.0
        %298 = vst [vmem:[%s230 + $0x1f0] sm:$0xff] 0.0
        %299 = vst [vmem:[%s230 + $0x1f8] sm:$0xff] 0.0
      $region36: #{convnet_nin_forward.2} parent=31 // pred_fallthru
        _
      %v300 = vld [vmem:[%s230] sm:$0xff]
      %v301 = vld [vmem:[%s230 + $0x8] sm:$0xff]
      %v302 = vld [vmem:[%s230 + $0x10] sm:$0xff]
      %v303 = vld [vmem:[%s230 + $0x18] sm:$0xff]
      %v304 = vld [vmem:[%s230 + $0x20] sm:$0xff]
      %v305 = vld [vmem:[%s230 + $0x28] sm:$0xff]
      %v306 = vld [vmem:[%s230 + $0x30] sm:$0xff]
      %v307 = vld [vmem:[%s230 + $0x38] sm:$0xff]
      %v308 = vld [vmem:[%s230 + $0x40] sm:$0xff]
      %v309 = vld [vmem:[%s230 + $0x48] sm:$0xff]
      %v310 = vld [vmem:[%s230 + $0x50] sm:$0xff]
      %v311 = vld [vmem:[%s230 + $0x58] sm:$0xff]
      %v312 = vld [vmem:[%s230 + $0x60] sm:$0xff]
      %v313 = vld [vmem:[%s230 + $0x68] sm:$0xff]
      %v314 = vld [vmem:[%s230 + $0x70] sm:$0xff]
      %v315 = vld [vmem:[%s230 + $0x78] sm:$0xff]
      %v316 = vld [vmem:[%s230 + $0x80] sm:$0xff]
      %v317 = vld [vmem:[%s230 + $0x88] sm:$0xff]
      %v318 = vld [vmem:[%s230 + $0x90] sm:$0xff]
      %v319 = vld [vmem:[%s230 + $0x98] sm:$0xff]
      %v320 = vld [vmem:[%s230 + $0xa0] sm:$0xff]
      %v321 = vld [vmem:[%s230 + $0xa8] sm:$0xff]
      %v322 = vld [vmem:[%s230 + $0xb0] sm:$0xff]
      %v323 = vld [vmem:[%s230 + $0xb8] sm:$0xff]
      %v324 = vld [vmem:[%s230 + $0xc0] sm:$0xff]
      %v325 = vld [vmem:[%s230 + $0xc8] sm:$0xff]
      %v326 = vld [vmem:[%s230 + $0xd0] sm:$0xff]
      %v327 = vld [vmem:[%s230 + $0xd8] sm:$0xff]
      %v328 = vld [vmem:[%s230 + $0xe0] sm:$0xff]
      %v329 = vld [vmem:[%s230 + $0xe8] sm:$0xff]
      %v330 = vld [vmem:[%s230 + $0xf0] sm:$0xff]
      %v331 = vld [vmem:[%s230 + $0xf8] sm:$0xff]
      %v332 = vld [vmem:[%s230 + $0x100] sm:$0xff]
      %v333 = vld [vmem:[%s230 + $0x108] sm:$0xff]
      %v334 = vld [vmem:[%s230 + $0x110] sm:$0xff]
      %v335 = vld [vmem:[%s230 + $0x118] sm:$0xff]
      %v336 = vld [vmem:[%s230 + $0x120] sm:$0xff]
      %v337 = vld [vmem:[%s230 + $0x128] sm:$0xff]
      %v338 = vld [vmem:[%s230 + $0x130] sm:$0xff]
      %v339 = vld [vmem:[%s230 + $0x138] sm:$0xff]
      %v340 = vld [vmem:[%s230 + $0x140] sm:$0xff]
      %v341 = vld [vmem:[%s230 + $0x148] sm:$0xff]
      %v342 = vld [vmem:[%s230 + $0x150] sm:$0xff]
      %v343 = vld [vmem:[%s230 + $0x158] sm:$0xff]
      %v344 = vld [vmem:[%s230 + $0x160] sm:$0xff]
      %v345 = vld [vmem:[%s230 + $0x168] sm:$0xff]
      %v346 = vld [vmem:[%s230 + $0x170] sm:$0xff]
      %v347 = vld [vmem:[%s230 + $0x178] sm:$0xff]
      %v348 = vld [vmem:[%s230 + $0x180] sm:$0xff]
      %v349 = vld [vmem:[%s230 + $0x188] sm:$0xff]
      %v350 = vld [vmem:[%s230 + $0x190] sm:$0xff]
      %v351 = vld [vmem:[%s230 + $0x198] sm:$0xff]
      %v352 = vld [vmem:[%s230 + $0x1a0] sm:$0xff]
      %v353 = vld [vmem:[%s230 + $0x1a8] sm:$0xff]
      %v354 = vld [vmem:[%s230 + $0x1b0] sm:$0xff]
      %v355 = vld [vmem:[%s230 + $0x1b8] sm:$0xff]
      %v356 = vld [vmem:[%s230 + $0x1c0] sm:$0xff]
      %v357 = vld [vmem:[%s230 + $0x1c8] sm:$0xff]
      %v358 = vld [vmem:[%s230 + $0x1d0] sm:$0xff]
      %v359 = vld [vmem:[%s230 + $0x1d8] sm:$0xff]
      %v360 = vld [vmem:[%s230 + $0x1e0] sm:$0xff]
      %v361 = vld [vmem:[%s230 + $0x1e8] sm:$0xff]
      %v362 = vld [vmem:[%s230 + $0x1f0] sm:$0xff]
      %v363 = vld [vmem:[%s230 + $0x1f8] sm:$0xff]
      %v364 = vld [vmem:[%s215] sm:$0xff]
      %v365 = vld [vmem:[%s215 + $0x8] sm:$0xff]
      %v366 = vld [vmem:[%s215 + $0x10] sm:$0xff]
      %v367 = vld [vmem:[%s215 + $0x18] sm:$0xff]
      %v368 = vld [vmem:[%s215 + $0x20] sm:$0xff]
      %v369 = vld [vmem:[%s215 + $0x28] sm:$0xff]
      %v370 = vld [vmem:[%s215 + $0x30] sm:$0xff]
      %v371 = vld [vmem:[%s215 + $0x38] sm:$0xff]
      %v372 = vld [vmem:[%s215 + $0x40] sm:$0xff]
      %v373 = vld [vmem:[%s215 + $0x48] sm:$0xff]
      %v374 = vld [vmem:[%s215 + $0x50] sm:$0xff]
      %v375 = vld [vmem:[%s215 + $0x58] sm:$0xff]
      %v376 = vld [vmem:[%s215 + $0x60] sm:$0xff]
      %v377 = vld [vmem:[%s215 + $0x68] sm:$0xff]
      %v378 = vld [vmem:[%s215 + $0x70] sm:$0xff]
      %v379 = vld [vmem:[%s215 + $0x78] sm:$0xff]
      %v380 = vld [vmem:[%s215 + $0x80] sm:$0xff]
      %v381 = vld [vmem:[%s215 + $0x88] sm:$0xff]
      %v382 = vld [vmem:[%s215 + $0x90] sm:$0xff]
      %v383 = vld [vmem:[%s215 + $0x98] sm:$0xff]
      %v384 = vld [vmem:[%s215 + $0xa0] sm:$0xff]
      %v385 = vld [vmem:[%s215 + $0xa8] sm:$0xff]
      %v386 = vld [vmem:[%s215 + $0xb0] sm:$0xff]
      %v387 = vld [vmem:[%s215 + $0xb8] sm:$0xff]
      %v388 = vld [vmem:[%s215 + $0xc0] sm:$0xff]
      %v389 = vld [vmem:[%s215 + $0xc8] sm:$0xff]
      %v390 = vld [vmem:[%s215 + $0xd0] sm:$0xff]
      %v391 = vld [vmem:[%s215 + $0xd8] sm:$0xff]
      %v392 = vld [vmem:[%s215 + $0xe0] sm:$0xff]
      %v393 = vld [vmem:[%s215 + $0xe8] sm:$0xff]
      %v394 = vld [vmem:[%s215 + $0xf0] sm:$0xff]
      %v395 = vld [vmem:[%s215 + $0xf8] sm:$0xff]
      %v396 = vld [vmem:[%s215 + $0x100] sm:$0xff]
      %v397 = vld [vmem:[%s215 + $0x108] sm:$0xff]
      %v398 = vld [vmem:[%s215 + $0x110] sm:$0xff]
      %v399 = vld [vmem:[%s215 + $0x118] sm:$0xff]
      %v400 = vld [vmem:[%s215 + $0x120] sm:$0xff]
      %v401 = vld [vmem:[%s215 + $0x128] sm:$0xff]
      %v402 = vld [vmem:[%s215 + $0x130] sm:$0xff]
      %v403 = vld [vmem:[%s215 + $0x138] sm:$0xff]
      %v404 = vld [vmem:[%s215 + $0x140] sm:$0xff]
      %v405 = vld [vmem:[%s215 + $0x148] sm:$0xff]
      %v406 = vld [vmem:[%s215 + $0x150] sm:$0xff]
      %v407 = vld [vmem:[%s215 + $0x158] sm:$0xff]
      %v408 = vld [vmem:[%s215 + $0x160] sm:$0xff]
      %v409 = vld [vmem:[%s215 + $0x168] sm:$0xff]
      %v410 = vld [vmem:[%s215 + $0x170] sm:$0xff]
      %v411 = vld [vmem:[%s215 + $0x178] sm:$0xff]
      %v412 = vld [vmem:[%s215 + $0x180] sm:$0xff]
      %v413 = vld [vmem:[%s215 + $0x188] sm:$0xff]
      %v414 = vld [vmem:[%s215 + $0x190] sm:$0xff]
      %v415 = vld [vmem:[%s215 + $0x198] sm:$0xff]
      %v416 = vld [vmem:[%s215 + $0x1a0] sm:$0xff]
      %v417 = vld [vmem:[%s215 + $0x1a8] sm:$0xff]
      %v418 = vld [vmem:[%s215 + $0x1b0] sm:$0xff]
      %v419 = vld [vmem:[%s215 + $0x1b8] sm:$0xff]
      %v420 = vld [vmem:[%s215 + $0x1c0] sm:$0xff]
      %v421 = vld [vmem:[%s215 + $0x1c8] sm:$0xff]
      %v422 = vld [vmem:[%s215 + $0x1d0] sm:$0xff]
      %v423 = vld [vmem:[%s215 + $0x1d8] sm:$0xff]
      %v424 = vld [vmem:[%s215 + $0x1e0] sm:$0xff]
      %v425 = vld [vmem:[%s215 + $0x1e8] sm:$0xff]
      %v426 = vld [vmem:[%s215 + $0x1f0] sm:$0xff]
      %v427 = vld [vmem:[%s215 + $0x1f8] sm:$0xff]
      %v428 = vld [vmem:[%s215 + $0x200] sm:$0xff]
      %v429 = vld [vmem:[%s215 + $0x208] sm:$0xff]
      %v430 = vld [vmem:[%s215 + $0x210] sm:$0xff]
      %v431 = vld [vmem:[%s215 + $0x218] sm:$0xff]
      %v432 = vld [vmem:[%s215 + $0x220] sm:$0xff]
      %v433 = vld [vmem:[%s215 + $0x228] sm:$0xff]
      %v434 = vld [vmem:[%s215 + $0x230] sm:$0xff]
      %v435 = vld [vmem:[%s215 + $0x238] sm:$0xff]
      %v436 = vld [vmem:[%s215 + $0x240] sm:$0xff]
      %v437 = vld [vmem:[%s215 + $0x248] sm:$0xff]
      %v438 = vld [vmem:[%s215 + $0x250] sm:$0xff]
      %v439 = vld [vmem:[%s215 + $0x258] sm:$0xff]
      %v440 = vld [vmem:[%s215 + $0x260] sm:$0xff]
      %v441 = vld [vmem:[%s215 + $0x268] sm:$0xff]
      %v442 = vld [vmem:[%s215 + $0x270] sm:$0xff]
      %v443 = vld [vmem:[%s215 + $0x278] sm:$0xff]
      %v444 = vld [vmem:[%s215 + $0x280] sm:$0xff]
      %v445 = vld [vmem:[%s215 + $0x288] sm:$0xff]
      %v446 = vld [vmem:[%s215 + $0x290] sm:$0xff]
      %v447 = vld [vmem:[%s215 + $0x298] sm:$0xff]
      %v448 = vld [vmem:[%s215 + $0x2a0] sm:$0xff]
      %v449 = vld [vmem:[%s215 + $0x2a8] sm:$0xff]
      %v450 = vld [vmem:[%s215 + $0x2b0] sm:$0xff]
      %v451 = vld [vmem:[%s215 + $0x2b8] sm:$0xff]
      %v452 = vld [vmem:[%s215 + $0x2c0] sm:$0xff]
      %v453 = vld [vmem:[%s215 + $0x2c8] sm:$0xff]
      %v454 = vld [vmem:[%s215 + $0x2d0] sm:$0xff]
      %v455 = vld [vmem:[%s215 + $0x2d8] sm:$0xff]
      %v456 = vld [vmem:[%s215 + $0x2e0] sm:$0xff]
      %v457 = vld [vmem:[%s215 + $0x2e8] sm:$0xff]
      %v458 = vld [vmem:[%s215 + $0x2f0] sm:$0xff]
      %v459 = vld [vmem:[%s215 + $0x2f8] sm:$0xff]
      %v460 = vld [vmem:[%s215 + $0x300] sm:$0xff]
      %v461 = vld [vmem:[%s215 + $0x308] sm:$0xff]
      %v462 = vld [vmem:[%s215 + $0x310] sm:$0xff]
      %v463 = vld [vmem:[%s215 + $0x318] sm:$0xff]
      %v464 = vld [vmem:[%s215 + $0x320] sm:$0xff]
      %v465 = vld [vmem:[%s215 + $0x328] sm:$0xff]
      %v466 = vld [vmem:[%s215 + $0x330] sm:$0xff]
      %v467 = vld [vmem:[%s215 + $0x338] sm:$0xff]
      %v468 = vld [vmem:[%s215 + $0x340] sm:$0xff]
      %v469 = vld [vmem:[%s215 + $0x348] sm:$0xff]
      %v470 = vld [vmem:[%s215 + $0x350] sm:$0xff]
      %v471 = vld [vmem:[%s215 + $0x358] sm:$0xff]
      %v472 = vld [vmem:[%s215 + $0x360] sm:$0xff]
      %v473 = vld [vmem:[%s215 + $0x368] sm:$0xff]
      %v474 = vld [vmem:[%s215 + $0x370] sm:$0xff]
      %v475 = vld [vmem:[%s215 + $0x378] sm:$0xff]
      %v476 = vld [vmem:[%s215 + $0x380] sm:$0xff]
      %v477 = vld [vmem:[%s215 + $0x388] sm:$0xff]
      %v478 = vld [vmem:[%s215 + $0x390] sm:$0xff]
      %v479 = vld [vmem:[%s215 + $0x398] sm:$0xff]
      %v480 = vld [vmem:[%s215 + $0x3a0] sm:$0xff]
      %v481 = vld [vmem:[%s215 + $0x3a8] sm:$0xff]
      %v482 = vld [vmem:[%s215 + $0x3b0] sm:$0xff]
      %v483 = vld [vmem:[%s215 + $0x3b8] sm:$0xff]
      %v484 = vld [vmem:[%s215 + $0x3c0] sm:$0xff]
      %v485 = vld [vmem:[%s215 + $0x3c8] sm:$0xff]
      %v486 = vld [vmem:[%s215 + $0x3d0] sm:$0xff]
      %v487 = vld [vmem:[%s215 + $0x3d8] sm:$0xff]
      %v488 = vld [vmem:[%s215 + $0x3e0] sm:$0xff]
      %v489 = vld [vmem:[%s215 + $0x3e8] sm:$0xff]
      %v490 = vld [vmem:[%s215 + $0x3f0] sm:$0xff]
      %v491 = vld [vmem:[%s215 + $0x3f8] sm:$0xff]
      %v492 = vld [vmem:[%s215 + $0x400] sm:$0xff]
      %v493 = vld [vmem:[%s215 + $0x408] sm:$0xff]
      %v494 = vld [vmem:[%s215 + $0x410] sm:$0xff]
      %v495 = vld [vmem:[%s215 + $0x418] sm:$0xff]
      %v496 = vld [vmem:[%s215 + $0x420] sm:$0xff]
      %v497 = vld [vmem:[%s215 + $0x428] sm:$0xff]
      %v498 = vld [vmem:[%s215 + $0x430] sm:$0xff]
      %v499 = vld [vmem:[%s215 + $0x438] sm:$0xff]
      %v500 = vld [vmem:[%s215 + $0x440] sm:$0xff]
      %v501 = vld [vmem:[%s215 + $0x448] sm:$0xff]
      %v502 = vld [vmem:[%s215 + $0x450] sm:$0xff]
      %v503 = vld [vmem:[%s215 + $0x458] sm:$0xff]
      %v504 = vld [vmem:[%s215 + $0x460] sm:$0xff]
      %v505 = vld [vmem:[%s215 + $0x468] sm:$0xff]
      %v506 = vld [vmem:[%s215 + $0x470] sm:$0xff]
      %v507 = vld [vmem:[%s215 + $0x478] sm:$0xff]
      %v508 = vld [vmem:[%s215 + $0x480] sm:$0xff]
      %v509 = vld [vmem:[%s215 + $0x488] sm:$0xff]
      %v510 = vld [vmem:[%s215 + $0x490] sm:$0xff]
      %v511 = vld [vmem:[%s215 + $0x498] sm:$0xff]
      %v512 = vld [vmem:[%s215 + $0x4a0] sm:$0xff]
      %v513 = vld [vmem:[%s215 + $0x4a8] sm:$0xff]
      %v514 = vld [vmem:[%s215 + $0x4b0] sm:$0xff]
      %v515 = vld [vmem:[%s215 + $0x4b8] sm:$0xff]
      %v516 = vld [vmem:[%s215 + $0x4c0] sm:$0xff]
      %v517 = vld [vmem:[%s215 + $0x4c8] sm:$0xff]
      %v518 = vld [vmem:[%s215 + $0x4d0] sm:$0xff]
      %v519 = vld [vmem:[%s215 + $0x4d8] sm:$0xff]
      %v520 = vld [vmem:[%s215 + $0x4e0] sm:$0xff]
      %v521 = vld [vmem:[%s215 + $0x4e8] sm:$0xff]
      %v522 = vld [vmem:[%s215 + $0x4f0] sm:$0xff]
      %v523 = vld [vmem:[%s215 + $0x4f8] sm:$0xff]
      %v524 = vld [vmem:[%s223] sm:$0xff]
      %v525 = vld [vmem:[%s223 + $0x8] sm:$0xff]
      %v526 = vld [vmem:[%s223 + $0x10] sm:$0xff]
      %v527 = vld [vmem:[%s223 + $0x18] sm:$0xff]
      %v528 = vld [vmem:[%s223 + $0x20] sm:$0xff]
      %v529 = vld [vmem:[%s223 + $0x28] sm:$0xff]
      %v530 = vld [vmem:[%s223 + $0x30] sm:$0xff]
      %v531 = vld [vmem:[%s223 + $0x38] sm:$0xff]
      %v532 = vld [vmem:[%s223 + $0x40] sm:$0xff]
      %v533 = vld [vmem:[%s223 + $0x48] sm:$0xff]
      %v534 = vld [vmem:[%s223 + $0x50] sm:$0xff]
      %v535 = vld [vmem:[%s223 + $0x58] sm:$0xff]
      %v536 = vld [vmem:[%s223 + $0x60] sm:$0xff]
      %v537 = vld [vmem:[%s223 + $0x68] sm:$0xff]
      %v538 = vld [vmem:[%s223 + $0x70] sm:$0xff]
      %v539 = vld [vmem:[%s223 + $0x78] sm:$0xff]
      %v540 = vld [vmem:[%s223 + $0x80] sm:$0xff]
      %v541 = vld [vmem:[%s223 + $0x88] sm:$0xff]
      %v542 = vld [vmem:[%s223 + $0x90] sm:$0xff]
      %v543 = vld [vmem:[%s223 + $0x98] sm:$0xff]
      %v544 = vld [vmem:[%s223 + $0xa0] sm:$0xff]
      %v545 = vld [vmem:[%s223 + $0xa8] sm:$0xff]
      %v546 = vld [vmem:[%s223 + $0xb0] sm:$0xff]
      %v547 = vld [vmem:[%s223 + $0xb8] sm:$0xff]
      %v548 = vld [vmem:[%s223 + $0xc0] sm:$0xff]
      %v549 = vld [vmem:[%s223 + $0xc8] sm:$0xff]
      %v550 = vld [vmem:[%s223 + $0xd0] sm:$0xff]
      %v551 = vld [vmem:[%s223 + $0xd8] sm:$0xff]
      %v552 = vld [vmem:[%s223 + $0xe0] sm:$0xff]
      %v553 = vld [vmem:[%s223 + $0xe8] sm:$0xff]
      %v554 = vld [vmem:[%s223 + $0xf0] sm:$0xff]
      %v555 = vld [vmem:[%s223 + $0xf8] sm:$0xff]
      %v556 = vld [vmem:[%s223 + $0x100] sm:$0xff]
      %v557 = vld [vmem:[%s223 + $0x108] sm:$0xff]
      %v558 = vld [vmem:[%s223 + $0x110] sm:$0xff]
      %v559 = vld [vmem:[%s223 + $0x118] sm:$0xff]
      %v560 = vld [vmem:[%s223 + $0x120] sm:$0xff]
      %v561 = vld [vmem:[%s223 + $0x128] sm:$0xff]
      %v562 = vld [vmem:[%s223 + $0x130] sm:$0xff]
      %v563 = vld [vmem:[%s223 + $0x138] sm:$0xff]
      %v564 = vld [vmem:[%s223 + $0x140] sm:$0xff]
      %v565 = vld [vmem:[%s223 + $0x148] sm:$0xff]
      %v566 = vld [vmem:[%s223 + $0x150] sm:$0xff]
      %v567 = vld [vmem:[%s223 + $0x158] sm:$0xff]
      %v568 = vld [vmem:[%s223 + $0x160] sm:$0xff]
      %v569 = vld [vmem:[%s223 + $0x168] sm:$0xff]
      %v570 = vld [vmem:[%s223 + $0x170] sm:$0xff]
      %v571 = vld [vmem:[%s223 + $0x178] sm:$0xff]
      %v572 = vld [vmem:[%s223 + $0x180] sm:$0xff]
      %v573 = vld [vmem:[%s223 + $0x188] sm:$0xff]
      %v574 = vld [vmem:[%s223 + $0x190] sm:$0xff]
      %v575 = vld [vmem:[%s223 + $0x198] sm:$0xff]
      %v576 = vld [vmem:[%s223 + $0x1a0] sm:$0xff]
      %v577 = vld [vmem:[%s223 + $0x1a8] sm:$0xff]
      %v578 = vld [vmem:[%s223 + $0x1b0] sm:$0xff]
      %v579 = vld [vmem:[%s223 + $0x1b8] sm:$0xff]
      %v580 = vld [vmem:[%s223 + $0x1c0] sm:$0xff]
      %v581 = vld [vmem:[%s223 + $0x1c8] sm:$0xff]
      %v582 = vld [vmem:[%s223 + $0x1d0] sm:$0xff]
      %v583 = vld [vmem:[%s223 + $0x1d8] sm:$0xff]
      %v584 = vld [vmem:[%s223 + $0x1e0] sm:$0xff]
      %v585 = vld [vmem:[%s223 + $0x1e8] sm:$0xff]
      %v586 = vld [vmem:[%s223 + $0x1f0] sm:$0xff]
      %v587 = vld [vmem:[%s223 + $0x1f8] sm:$0xff]
      %v588 = vld [vmem:[%s223 + $0x200] sm:$0xff]
      %v589 = vld [vmem:[%s223 + $0x208] sm:$0xff]
      %v590 = vld [vmem:[%s223 + $0x210] sm:$0xff]
      %v591 = vld [vmem:[%s223 + $0x218] sm:$0xff]
      %v592 = vld [vmem:[%s223 + $0x220] sm:$0xff]
      %v593 = vld [vmem:[%s223 + $0x228] sm:$0xff]
      %v594 = vld [vmem:[%s223 + $0x230] sm:$0xff]
      %v595 = vld [vmem:[%s223 + $0x238] sm:$0xff]
      %v596 = vld [vmem:[%s223 + $0x240] sm:$0xff]
      %v597 = vld [vmem:[%s223 + $0x248] sm:$0xff]
      %v598 = vld [vmem:[%s223 + $0x250] sm:$0xff]
      %v599 = vld [vmem:[%s223 + $0x258] sm:$0xff]
      %v600 = vld [vmem:[%s223 + $0x260] sm:$0xff]
      %v601 = vld [vmem:[%s223 + $0x268] sm:$0xff]
      %v602 = vld [vmem:[%s223 + $0x270] sm:$0xff]
      %v603 = vld [vmem:[%s223 + $0x278] sm:$0xff]
      %v604 = vld [vmem:[%s223 + $0x280] sm:$0xff]
      %v605 = vld [vmem:[%s223 + $0x288] sm:$0xff]
      %v606 = vld [vmem:[%s223 + $0x290] sm:$0xff]
      %v607 = vld [vmem:[%s223 + $0x298] sm:$0xff]
      %v608 = vld [vmem:[%s223 + $0x2a0] sm:$0xff]
      %v609 = vld [vmem:[%s223 + $0x2a8] sm:$0xff]
      %v610 = vld [vmem:[%s223 + $0x2b0] sm:$0xff]
      %v611 = vld [vmem:[%s223 + $0x2b8] sm:$0xff]
      %v612 = vld [vmem:[%s223 + $0x2c0] sm:$0xff]
      %v613 = vld [vmem:[%s223 + $0x2c8] sm:$0xff]
      %v614 = vld [vmem:[%s223 + $0x2d0] sm:$0xff]
      %v615 = vld [vmem:[%s223 + $0x2d8] sm:$0xff]
      %v616 = vld [vmem:[%s223 + $0x2e0] sm:$0xff]
      %v617 = vld [vmem:[%s223 + $0x2e8] sm:$0xff]
      %v618 = vld [vmem:[%s223 + $0x2f0] sm:$0xff]
      %v619 = vld [vmem:[%s223 + $0x2f8] sm:$0xff]
      %v620 = vld [vmem:[%s223 + $0x300] sm:$0xff]
      %v621 = vld [vmem:[%s223 + $0x308] sm:$0xff]
      %v622 = vld [vmem:[%s223 + $0x310] sm:$0xff]
      %v623 = vld [vmem:[%s223 + $0x318] sm:$0xff]
      %v624 = vld [vmem:[%s223 + $0x320] sm:$0xff]
      %v625 = vld [vmem:[%s223 + $0x328] sm:$0xff]
      %v626 = vld [vmem:[%s223 + $0x330] sm:$0xff]
      %v627 = vld [vmem:[%s223 + $0x338] sm:$0xff]
      %v628 = vld [vmem:[%s223 + $0x340] sm:$0xff]
      %v629 = vld [vmem:[%s223 + $0x348] sm:$0xff]
      %v630 = vld [vmem:[%s223 + $0x350] sm:$0xff]
      %v631 = vld [vmem:[%s223 + $0x358] sm:$0xff]
      %v632 = vld [vmem:[%s223 + $0x360] sm:$0xff]
      %v633 = vld [vmem:[%s223 + $0x368] sm:$0xff]
      %v634 = vld [vmem:[%s223 + $0x370] sm:$0xff]
      %v635 = vld [vmem:[%s223 + $0x378] sm:$0xff]
      %v636 = vld [vmem:[%s223 + $0x380] sm:$0xff]
      %v637 = vld [vmem:[%s223 + $0x388] sm:$0xff]
      %v638 = vld [vmem:[%s223 + $0x390] sm:$0xff]
      %v639 = vld [vmem:[%s223 + $0x398] sm:$0xff]
      %v640 = vld [vmem:[%s223 + $0x3a0] sm:$0xff]
      %v641 = vld [vmem:[%s223 + $0x3a8] sm:$0xff]
      %v642 = vld [vmem:[%s223 + $0x3b0] sm:$0xff]
      %v643 = vld [vmem:[%s223 + $0x3b8] sm:$0xff]
      %v644 = vld [vmem:[%s223 + $0x3c0] sm:$0xff]
      %v645 = vld [vmem:[%s223 + $0x3c8] sm:$0xff]
      %v646 = vld [vmem:[%s223 + $0x3d0] sm:$0xff]
      %v647 = vld [vmem:[%s223 + $0x3d8] sm:$0xff]
      %v648 = vld [vmem:[%s223 + $0x3e0] sm:$0xff]
      %v649 = vld [vmem:[%s223 + $0x3e8] sm:$0xff]
      %v650 = vld [vmem:[%s223 + $0x3f0] sm:$0xff]
      %v651 = vld [vmem:[%s223 + $0x3f8] sm:$0xff]
      %v652 = vld [vmem:[%s223 + $0x400] sm:$0xff]
      %v653 = vld [vmem:[%s223 + $0x408] sm:$0xff]
      %v654 = vld [vmem:[%s223 + $0x410] sm:$0xff]
      %v655 = vld [vmem:[%s223 + $0x418] sm:$0xff]
      %v656 = vld [vmem:[%s223 + $0x420] sm:$0xff]
      %v657 = vld [vmem:[%s223 + $0x428] sm:$0xff]
      %v658 = vld [vmem:[%s223 + $0x430] sm:$0xff]
      %v659 = vld [vmem:[%s223 + $0x438] sm:$0xff]
      %v660 = vld [vmem:[%s223 + $0x440] sm:$0xff]
      %v661 = vld [vmem:[%s223 + $0x448] sm:$0xff]
      %v662 = vld [vmem:[%s223 + $0x450] sm:$0xff]
      %v663 = vld [vmem:[%s223 + $0x458] sm:$0xff]
      %v664 = vld [vmem:[%s223 + $0x460] sm:$0xff]
      %v665 = vld [vmem:[%s223 + $0x468] sm:$0xff]
      %v666 = vld [vmem:[%s223 + $0x470] sm:$0xff]
      %v667 = vld [vmem:[%s223 + $0x478] sm:$0xff]
      %v668 = vld [vmem:[%s223 + $0x480] sm:$0xff]
      %v669 = vld [vmem:[%s223 + $0x488] sm:$0xff]
      %v670 = vld [vmem:[%s223 + $0x490] sm:$0xff]
      %v671 = vld [vmem:[%s223 + $0x498] sm:$0xff]
      %v672 = vld [vmem:[%s223 + $0x4a0] sm:$0xff]
      %v673 = vld [vmem:[%s223 + $0x4a8] sm:$0xff]
      %v674 = vld [vmem:[%s223 + $0x4b0] sm:$0xff]
      %v675 = vld [vmem:[%s223 + $0x4b8] sm:$0xff]
      %v676 = vld [vmem:[%s223 + $0x4c0] sm:$0xff]
      %v677 = vld [vmem:[%s223 + $0x4c8] sm:$0xff]
      %v678 = vld [vmem:[%s223 + $0x4d0] sm:$0xff]
      %v679 = vld [vmem:[%s223 + $0x4d8] sm:$0xff]
      %v680 = vld [vmem:[%s223 + $0x4e0] sm:$0xff]
      %v681 = vld [vmem:[%s223 + $0x4e8] sm:$0xff]
      %v682 = vld [vmem:[%s223 + $0x4f0] sm:$0xff]
      %v683 = vld [vmem:[%s223 + $0x4f8] sm:$0xff]
      %v844 = vunpack.c.l.b16 %v364
      %v845 = vunpack.c.h.b16 %v364
      %v846 = vunpack.c.l.b16 %v365
      %v847 = vunpack.c.h.b16 %v365
      %v848 = vunpack.c.l.b16 %v366
      %v849 = vunpack.c.h.b16 %v366
      %v850 = vunpack.c.l.b16 %v367
      %v851 = vunpack.c.h.b16 %v367
      %v852 = vunpack.c.l.b16 %v368
      %v853 = vunpack.c.h.b16 %v368
      %v854 = vunpack.c.l.b16 %v369
      %v855 = vunpack.c.h.b16 %v369
      %v856 = vunpack.c.l.b16 %v370
      %v857 = vunpack.c.h.b16 %v370
      %v858 = vunpack.c.l.b16 %v371
      %v859 = vunpack.c.h.b16 %v371
      %v860 = vunpack.c.l.b16 %v372
      %v861 = vunpack.c.h.b16 %v372
      %v862 = vunpack.c.l.b16 %v373
      %v863 = vunpack.c.h.b16 %v373
      %v864 = vunpack.c.l.b16 %v374
      %v865 = vunpack.c.h.b16 %v374
      %v866 = vunpack.c.l.b16 %v375
      %v867 = vunpack.c.h.b16 %v375
      %v868 = vunpack.c.l.b16 %v376
      %v869 = vunpack.c.h.b16 %v376
      %v870 = vunpack.c.l.b16 %v377
      %v871 = vunpack.c.h.b16 %v377
      %v872 = vunpack.c.l.b16 %v378
      %v873 = vunpack.c.h.b16 %v378
      %v874 = vunpack.c.l.b16 %v379
      %v875 = vunpack.c.h.b16 %v379
      %v876 = vunpack.c.l.b16 %v380
      %v877 = vunpack.c.h.b16 %v380
      %v878 = vunpack.c.l.b16 %v381
      %v879 = vunpack.c.h.b16 %v381
      %v880 = vunpack.c.l.b16 %v382
      %v881 = vunpack.c.h.b16 %v382
      %v882 = vunpack.c.l.b16 %v383
      %v883 = vunpack.c.h.b16 %v383
      %v884 = vunpack.c.l.b16 %v384
      %v885 = vunpack.c.h.b16 %v384
      %v886 = vunpack.c.l.b16 %v385
      %v887 = vunpack.c.h.b16 %v385
      %v888 = vunpack.c.l.b16 %v386
      %v889 = vunpack.c.h.b16 %v386
      %v890 = vunpack.c.l.b16 %v387
      %v891 = vunpack.c.h.b16 %v387
      %v892 = vunpack.c.l.b16 %v388
      %v893 = vunpack.c.h.b16 %v388
      %v894 = vunpack.c.l.b16 %v389
      %v895 = vunpack.c.h.b16 %v389
      %v896 = vunpack.c.l.b16 %v390
      %v897 = vunpack.c.h.b16 %v390
      %v898 = vunpack.c.l.b16 %v391
      %v899 = vunpack.c.h.b16 %v391
      %v900 = vunpack.c.l.b16 %v392
      %v901 = vunpack.c.h.b16 %v392
      %v902 = vunpack.c.l.b16 %v393
      %v903 = vunpack.c.h.b16 %v393
      %v904 = vunpack.c.l.b16 %v394
      %v905 = vunpack.c.h.b16 %v394
      %v906 = vunpack.c.l.b16 %v395
      %v907 = vunpack.c.h.b16 %v395
      %v908 = vunpack.c.l.b16 %v396
      %v909 = vunpack.c.h.b16 %v396
      %v910 = vunpack.c.l.b16 %v397
      %v911 = vunpack.c.h.b16 %v397
      %v912 = vunpack.c.l.b16 %v398
      %v913 = vunpack.c.h.b16 %v398
      %v914 = vunpack.c.l.b16 %v399
      %v915 = vunpack.c.h.b16 %v399
      %v916 = vunpack.c.l.b16 %v400
      %v917 = vunpack.c.h.b16 %v400
      %v918 = vunpack.c.l.b16 %v401
      %v919 = vunpack.c.h.b16 %v401
      %v920 = vunpack.c.l.b16 %v402
      %v921 = vunpack.c.h.b16 %v402
      %v922 = vunpack.c.l.b16 %v403
      %v923 = vunpack.c.h.b16 %v403
      %v924 = vunpack.c.l.b16 %v404
      %v925 = vunpack.c.h.b16 %v404
      %v926 = vunpack.c.l.b16 %v405
      %v927 = vunpack.c.h.b16 %v405
      %v928 = vunpack.c.l.b16 %v406
      %v929 = vunpack.c.h.b16 %v406
      %v930 = vunpack.c.l.b16 %v407
      %v931 = vunpack.c.h.b16 %v407
      %v932 = vunpack.c.l.b16 %v408
      %v933 = vunpack.c.h.b16 %v408
      %v934 = vunpack.c.l.b16 %v409
      %v935 = vunpack.c.h.b16 %v409
      %v936 = vunpack.c.l.b16 %v410
      %v937 = vunpack.c.h.b16 %v410
      %v938 = vunpack.c.l.b16 %v411
      %v939 = vunpack.c.h.b16 %v411
      %v940 = vunpack.c.l.b16 %v412
      %v941 = vunpack.c.h.b16 %v412
      %v942 = vunpack.c.l.b16 %v413
      %v943 = vunpack.c.h.b16 %v413
      %v944 = vunpack.c.l.b16 %v414
      %v945 = vunpack.c.h.b16 %v414
      %v946 = vunpack.c.l.b16 %v415
      %v947 = vunpack.c.h.b16 %v415
      %v948 = vunpack.c.l.b16 %v416
      %v949 = vunpack.c.h.b16 %v416
      %v950 = vunpack.c.l.b16 %v417
      %v951 = vunpack.c.h.b16 %v417
      %v952 = vunpack.c.l.b16 %v418
      %v953 = vunpack.c.h.b16 %v418
      %v954 = vunpack.c.l.b16 %v419
      %v955 = vunpack.c.h.b16 %v419
      %v956 = vunpack.c.l.b16 %v420
      %v957 = vunpack.c.h.b16 %v420
      %v958 = vunpack.c.l.b16 %v421
      %v959 = vunpack.c.h.b16 %v421
      %v960 = vunpack.c.l.b16 %v422
      %v961 = vunpack.c.h.b16 %v422
      %v962 = vunpack.c.l.b16 %v423
      %v963 = vunpack.c.h.b16 %v423
      %v964 = vunpack.c.l.b16 %v424
      %v965 = vunpack.c.h.b16 %v424
      %v966 = vunpack.c.l.b16 %v425
      %v967 = vunpack.c.h.b16 %v425
      %v968 = vunpack.c.l.b16 %v426
      %v969 = vunpack.c.h.b16 %v426
      %v970 = vunpack.c.l.b16 %v427
      %v971 = vunpack.c.h.b16 %v427
      %v972 = vunpack.c.l.b16 %v428
      %v973 = vunpack.c.h.b16 %v428
      %v974 = vunpack.c.l.b16 %v429
      %v975 = vunpack.c.h.b16 %v429
      %v976 = vunpack.c.l.b16 %v430
      %v977 = vunpack.c.h.b16 %v430
      %v978 = vunpack.c.l.b16 %v431
      %v979 = vunpack.c.h.b16 %v431
      %v980 = vunpack.c.l.b16 %v432
      %v981 = vunpack.c.h.b16 %v432
      %v982 = vunpack.c.l.b16 %v433
      %v983 = vunpack.c.h.b16 %v433
      %v984 = vunpack.c.l.b16 %v434
      %v985 = vunpack.c.h.b16 %v434
      %v986 = vunpack.c.l.b16 %v435
      %v987 = vunpack.c.h.b16 %v435
      %v988 = vunpack.c.l.b16 %v436
      %v989 = vunpack.c.h.b16 %v436
      %v990 = vunpack.c.l.b16 %v437
      %v991 = vunpack.c.h.b16 %v437
      %v992 = vunpack.c.l.b16 %v438
      %v993 = vunpack.c.h.b16 %v438
      %v994 = vunpack.c.l.b16 %v439
      %v995 = vunpack.c.h.b16 %v439
      %v996 = vunpack.c.l.b16 %v440
      %v997 = vunpack.c.h.b16 %v440
      %v998 = vunpack.c.l.b16 %v441
      %v999 = vunpack.c.h.b16 %v441
      %v1000 = vunpack.c.l.b16 %v442
      %v1001 = vunpack.c.h.b16 %v442
      %v1002 = vunpack.c.l.b16 %v443
      %v1003 = vunpack.c.h.b16 %v443
      %v1004 = vunpack.c.l.b16 %v444
      %v1005 = vunpack.c.h.b16 %v444
      %v1006 = vunpack.c.l.b16 %v445
      %v1007 = vunpack.c.h.b16 %v445
      %v1008 = vunpack.c.l.b16 %v446
      %v1009 = vunpack.c.h.b16 %v446
      %v1010 = vunpack.c.l.b16 %v447
      %v1011 = vunpack.c.h.b16 %v447
      %v1012 = vunpack.c.l.b16 %v448
      %v1013 = vunpack.c.h.b16 %v448
      %v1014 = vunpack.c.l.b16 %v449
      %v1015 = vunpack.c.h.b16 %v449
      %v1016 = vunpack.c.l.b16 %v450
      %v1017 = vunpack.c.h.b16 %v450
      %v1018 = vunpack.c.l.b16 %v451
      %v1019 = vunpack.c.h.b16 %v451
      %v1020 = vunpack.c.l.b16 %v452
      %v1021 = vunpack.c.h.b16 %v452
      %v1022 = vunpack.c.l.b16 %v453
      %v1023 = vunpack.c.h.b16 %v453
      %v1024 = vunpack.c.l.b16 %v454
      %v1025 = vunpack.c.h.b16 %v454
      %v1026 = vunpack.c.l.b16 %v455
      %v1027 = vunpack.c.h.b16 %v455
      %v1028 = vunpack.c.l.b16 %v456
      %v1029 = vunpack.c.h.b16 %v456
      %v1030 = vunpack.c.l.b16 %v457
      %v1031 = vunpack.c.h.b16 %v457
      %v1032 = vunpack.c.l.b16 %v458
      %v1033 = vunpack.c.h.b16 %v458
      %v1034 = vunpack.c.l.b16 %v459
      %v1035 = vunpack.c.h.b16 %v459
      %v1036 = vunpack.c.l.b16 %v460
      %v1037 = vunpack.c.h.b16 %v460
      %v1038 = vunpack.c.l.b16 %v461
      %v1039 = vunpack.c.h.b16 %v461
      %v1040 = vunpack.c.l.b16 %v462
      %v1041 = vunpack.c.h.b16 %v462
      %v1042 = vunpack.c.l.b16 %v463
      %v1043 = vunpack.c.h.b16 %v463
      %v1044 = vunpack.c.l.b16 %v464
      %v1045 = vunpack.c.h.b16 %v464
      %v1046 = vunpack.c.l.b16 %v465
      %v1047 = vunpack.c.h.b16 %v465
      %v1048 = vunpack.c.l.b16 %v466
      %v1049 = vunpack.c.h.b16 %v466
      %v1050 = vunpack.c.l.b16 %v467
      %v1051 = vunpack.c.h.b16 %v467
      %v1052 = vunpack.c.l.b16 %v468
      %v1053 = vunpack.c.h.b16 %v468
      %v1054 = vunpack.c.l.b16 %v469
      %v1055 = vunpack.c.h.b16 %v469
      %v1056 = vunpack.c.l.b16 %v470
      %v1057 = vunpack.c.h.b16 %v470
      %v1058 = vunpack.c.l.b16 %v471
      %v1059 = vunpack.c.h.b16 %v471
      %v1060 = vunpack.c.l.b16 %v472
      %v1061 = vunpack.c.h.b16 %v472
      %v1062 = vunpack.c.l.b16 %v473
      %v1063 = vunpack.c.h.b16 %v473
      %v1064 = vunpack.c.l.b16 %v474
      %v1065 = vunpack.c.h.b16 %v474
      %v1066 = vunpack.c.l.b16 %v475
      %v1067 = vunpack.c.h.b16 %v475
      %v1068 = vunpack.c.l.b16 %v476
      %v1069 = vunpack.c.h.b16 %v476
      %v1070 = vunpack.c.l.b16 %v477
      %v1071 = vunpack.c.h.b16 %v477
      %v1072 = vunpack.c.l.b16 %v478
      %v1073 = vunpack.c.h.b16 %v478
      %v1074 = vunpack.c.l.b16 %v479
      %v1075 = vunpack.c.h.b16 %v479
      %v1076 = vunpack.c.l.b16 %v480
      %v1077 = vunpack.c.h.b16 %v480
      %v1078 = vunpack.c.l.b16 %v481
      %v1079 = vunpack.c.h.b16 %v481
      %v1080 = vunpack.c.l.b16 %v482
      %v1081 = vunpack.c.h.b16 %v482
      %v1082 = vunpack.c.l.b16 %v483
      %v1083 = vunpack.c.h.b16 %v483
      %v1084 = vunpack.c.l.b16 %v484
      %v1085 = vunpack.c.h.b16 %v484
      %v1086 = vunpack.c.l.b16 %v485
      %v1087 = vunpack.c.h.b16 %v485
      %v1088 = vunpack.c.l.b16 %v486
      %v1089 = vunpack.c.h.b16 %v486
      %v1090 = vunpack.c.l.b16 %v487
      %v1091 = vunpack.c.h.b16 %v487
      %v1092 = vunpack.c.l.b16 %v488
      %v1093 = vunpack.c.h.b16 %v488
      %v1094 = vunpack.c.l.b16 %v489
      %v1095 = vunpack.c.h.b16 %v489
      %v1096 = vunpack.c.l.b16 %v490
      %v1097 = vunpack.c.h.b16 %v490
      %v1098 = vunpack.c.l.b16 %v491
      %v1099 = vunpack.c.h.b16 %v491
      %v1100 = vunpack.c.l.b16 %v492
      %v1101 = vunpack.c.h.b16 %v492
      %v1102 = vunpack.c.l.b16 %v493
      %v1103 = vunpack.c.h.b16 %v493
      %v1104 = vunpack.c.l.b16 %v494
      %v1105 = vunpack.c.h.b16 %v494
      %v1106 = vunpack.c.l.b16 %v495
      %v1107 = vunpack.c.h.b16 %v495
      %v1108 = vunpack.c.l.b16 %v496
      %v1109 = vunpack.c.h.b16 %v496
      %v1110 = vunpack.c.l.b16 %v497
      %v1111 = vunpack.c.h.b16 %v497
      %v1112 = vunpack.c.l.b16 %v498
      %v1113 = vunpack.c.h.b16 %v498
      %v1114 = vunpack.c.l.b16 %v499
      %v1115 = vunpack.c.h.b16 %v499
      %v1116 = vunpack.c.l.b16 %v500
      %v1117 = vunpack.c.h.b16 %v500
      %v1118 = vunpack.c.l.b16 %v501
      %v1119 = vunpack.c.h.b16 %v501
      %v1120 = vunpack.c.l.b16 %v502
      %v1121 = vunpack.c.h.b16 %v502
      %v1122 = vunpack.c.l.b16 %v503
      %v1123 = vunpack.c.h.b16 %v503
      %v1124 = vunpack.c.l.b16 %v504
      %v1125 = vunpack.c.h.b16 %v504
      %v1126 = vunpack.c.l.b16 %v505
      %v1127 = vunpack.c.h.b16 %v505
      %v1128 = vunpack.c.l.b16 %v506
      %v1129 = vunpack.c.h.b16 %v506
      %v1130 = vunpack.c.l.b16 %v507
      %v1131 = vunpack.c.h.b16 %v507
      %v1132 = vunpack.c.l.b16 %v508
      %v1133 = vunpack.c.h.b16 %v508
      %v1134 = vunpack.c.l.b16 %v509
      %v1135 = vunpack.c.h.b16 %v509
      %v1136 = vunpack.c.l.b16 %v510
      %v1137 = vunpack.c.h.b16 %v510
      %v1138 = vunpack.c.l.b16 %v511
      %v1139 = vunpack.c.h.b16 %v511
      %v1140 = vunpack.c.l.b16 %v512
      %v1141 = vunpack.c.h.b16 %v512
      %v1142 = vunpack.c.l.b16 %v513
      %v1143 = vunpack.c.h.b16 %v513
      %v1144 = vunpack.c.l.b16 %v514
      %v1145 = vunpack.c.h.b16 %v514
      %v1146 = vunpack.c.l.b16 %v515
      %v1147 = vunpack.c.h.b16 %v515
      %v1148 = vunpack.c.l.b16 %v516
      %v1149 = vunpack.c.h.b16 %v516
      %v1150 = vunpack.c.l.b16 %v517
      %v1151 = vunpack.c.h.b16 %v517
      %v1152 = vunpack.c.l.b16 %v518
      %v1153 = vunpack.c.h.b16 %v518
      %v1154 = vunpack.c.l.b16 %v519
      %v1155 = vunpack.c.h.b16 %v519
      %v1156 = vunpack.c.l.b16 %v520
      %v1157 = vunpack.c.h.b16 %v520
      %v1158 = vunpack.c.l.b16 %v521
      %v1159 = vunpack.c.h.b16 %v521
      %v1160 = vunpack.c.l.b16 %v522
      %v1161 = vunpack.c.h.b16 %v522
      %v1162 = vunpack.c.l.b16 %v523
      %v1163 = vunpack.c.h.b16 %v523
      %v1164 = vpack.c.b16 %v854, %v844
      %v1165 = vpack.c.b16 %v855, %v845
      %v1166 = vpack.c.b16 %v856, %v846
      %v1167 = vpack.c.b16 %v857, %v847
      %v1168 = vpack.c.b16 %v858, %v848
      %v1169 = vpack.c.b16 %v859, %v849
      %v1170 = vpack.c.b16 %v860, %v850
      %v1171 = vpack.c.b16 %v861, %v851
      %v1172 = vpack.c.b16 %v862, %v852
      %v1173 = vpack.c.b16 %v863, %v853
      %v1174 = vpack.c.b16 %v874, %v864
      %v1175 = vpack.c.b16 %v875, %v865
      %v1176 = vpack.c.b16 %v876, %v866
      %v1177 = vpack.c.b16 %v877, %v867
      %v1178 = vpack.c.b16 %v878, %v868
      %v1179 = vpack.c.b16 %v879, %v869
      %v1180 = vpack.c.b16 %v880, %v870
      %v1181 = vpack.c.b16 %v881, %v871
      %v1182 = vpack.c.b16 %v882, %v872
      %v1183 = vpack.c.b16 %v883, %v873
      %v1184 = vpack.c.b16 %v894, %v884
      %v1185 = vpack.c.b16 %v895, %v885
      %v1186 = vpack.c.b16 %v896, %v886
      %v1187 = vpack.c.b16 %v897, %v887
      %v1188 = vpack.c.b16 %v898, %v888
      %v1189 = vpack.c.b16 %v899, %v889
      %v1190 = vpack.c.b16 %v900, %v890
      %v1191 = vpack.c.b16 %v901, %v891
      %v1192 = vpack.c.b16 %v902, %v892
      %v1193 = vpack.c.b16 %v903, %v893
      %v1194 = vpack.c.b16 %v914, %v904
      %v1195 = vpack.c.b16 %v915, %v905
      %v1196 = vpack.c.b16 %v916, %v906
      %v1197 = vpack.c.b16 %v917, %v907
      %v1198 = vpack.c.b16 %v918, %v908
      %v1199 = vpack.c.b16 %v919, %v909
      %v1200 = vpack.c.b16 %v920, %v910
      %v1201 = vpack.c.b16 %v921, %v911
      %v1202 = vpack.c.b16 %v922, %v912
      %v1203 = vpack.c.b16 %v923, %v913
      %v1204 = vpack.c.b16 %v934, %v924
      %v1205 = vpack.c.b16 %v935, %v925
      %v1206 = vpack.c.b16 %v936, %v926
      %v1207 = vpack.c.b16 %v937, %v927
      %v1208 = vpack.c.b16 %v938, %v928
      %v1209 = vpack.c.b16 %v939, %v929
      %v1210 = vpack.c.b16 %v940, %v930
      %v1211 = vpack.c.b16 %v941, %v931
      %v1212 = vpack.c.b16 %v942, %v932
      %v1213 = vpack.c.b16 %v943, %v933
      %v1214 = vpack.c.b16 %v954, %v944
      %v1215 = vpack.c.b16 %v955, %v945
      %v1216 = vpack.c.b16 %v956, %v946
      %v1217 = vpack.c.b16 %v957, %v947
      %v1218 = vpack.c.b16 %v958, %v948
      %v1219 = vpack.c.b16 %v959, %v949
      %v1220 = vpack.c.b16 %v960, %v950
      %v1221 = vpack.c.b16 %v961, %v951
      %v1222 = vpack.c.b16 %v962, %v952
      %v1223 = vpack.c.b16 %v963, %v953
      %v1224 = vpack.c.b16 %v974, %v964
      %v1225 = vpack.c.b16 %v975, %v965
      %v1226 = vpack.c.b16 %v976, %v966
      %v1227 = vpack.c.b16 %v977, %v967
      %v1228 = vpack.c.b16 %v978, %v968
      %v1229 = vpack.c.b16 %v979, %v969
      %v1230 = vpack.c.b16 %v980, %v970
      %v1231 = vpack.c.b16 %v981, %v971
      %v1232 = vpack.c.b16 %v982, %v972
      %v1233 = vpack.c.b16 %v983, %v973
      %v1234 = vpack.c.b16 %v994, %v984
      %v1235 = vpack.c.b16 %v995, %v985
      %v1236 = vpack.c.b16 %v996, %v986
      %v1237 = vpack.c.b16 %v997, %v987
      %v1238 = vpack.c.b16 %v998, %v988
      %v1239 = vpack.c.b16 %v999, %v989
      %v1240 = vpack.c.b16 %v1000, %v990
      %v1241 = vpack.c.b16 %v1001, %v991
      %v1242 = vpack.c.b16 %v1002, %v992
      %v1243 = vpack.c.b16 %v1003, %v993
      %v1244 = vpack.c.b16 %v1014, %v1004
      %v1245 = vpack.c.b16 %v1015, %v1005
      %v1246 = vpack.c.b16 %v1016, %v1006
      %v1247 = vpack.c.b16 %v1017, %v1007
      %v1248 = vpack.c.b16 %v1018, %v1008
      %v1249 = vpack.c.b16 %v1019, %v1009
      %v1250 = vpack.c.b16 %v1020, %v1010
      %v1251 = vpack.c.b16 %v1021, %v1011
      %v1252 = vpack.c.b16 %v1022, %v1012
      %v1253 = vpack.c.b16 %v1023, %v1013
      %v1254 = vpack.c.b16 %v1034, %v1024
      %v1255 = vpack.c.b16 %v1035, %v1025
      %v1256 = vpack.c.b16 %v1036, %v1026
      %v1257 = vpack.c.b16 %v1037, %v1027
      %v1258 = vpack.c.b16 %v1038, %v1028
      %v1259 = vpack.c.b16 %v1039, %v1029
      %v1260 = vpack.c.b16 %v1040, %v1030
      %v1261 = vpack.c.b16 %v1041, %v1031
      %v1262 = vpack.c.b16 %v1042, %v1032
      %v1263 = vpack.c.b16 %v1043, %v1033
      %v1264 = vpack.c.b16 %v1054, %v1044
      %v1265 = vpack.c.b16 %v1055, %v1045
      %v1266 = vpack.c.b16 %v1056, %v1046
      %v1267 = vpack.c.b16 %v1057, %v1047
      %v1268 = vpack.c.b16 %v1058, %v1048
      %v1269 = vpack.c.b16 %v1059, %v1049
      %v1270 = vpack.c.b16 %v1060, %v1050
      %v1271 = vpack.c.b16 %v1061, %v1051
      %v1272 = vpack.c.b16 %v1062, %v1052
      %v1273 = vpack.c.b16 %v1063, %v1053
      %v1274 = vpack.c.b16 %v1074, %v1064
      %v1275 = vpack.c.b16 %v1075, %v1065
      %v1276 = vpack.c.b16 %v1076, %v1066
      %v1277 = vpack.c.b16 %v1077, %v1067
      %v1278 = vpack.c.b16 %v1078, %v1068
      %v1279 = vpack.c.b16 %v1079, %v1069
      %v1280 = vpack.c.b16 %v1080, %v1070
      %v1281 = vpack.c.b16 %v1081, %v1071
      %v1282 = vpack.c.b16 %v1082, %v1072
      %v1283 = vpack.c.b16 %v1083, %v1073
      %v1284 = vpack.c.b16 %v1094, %v1084
      %v1285 = vpack.c.b16 %v1095, %v1085
      %v1286 = vpack.c.b16 %v1096, %v1086
      %v1287 = vpack.c.b16 %v1097, %v1087
      %v1288 = vpack.c.b16 %v1098, %v1088
      %v1289 = vpack.c.b16 %v1099, %v1089
      %v1290 = vpack.c.b16 %v1100, %v1090
      %v1291 = vpack.c.b16 %v1101, %v1091
      %v1292 = vpack.c.b16 %v1102, %v1092
      %v1293 = vpack.c.b16 %v1103, %v1093
      %v1294 = vpack.c.b16 %v1114, %v1104
      %v1295 = vpack.c.b16 %v1115, %v1105
      %v1296 = vpack.c.b16 %v1116, %v1106
      %v1297 = vpack.c.b16 %v1117, %v1107
      %v1298 = vpack.c.b16 %v1118, %v1108
      %v1299 = vpack.c.b16 %v1119, %v1109
      %v1300 = vpack.c.b16 %v1120, %v1110
      %v1301 = vpack.c.b16 %v1121, %v1111
      %v1302 = vpack.c.b16 %v1122, %v1112
      %v1303 = vpack.c.b16 %v1123, %v1113
      %v1304 = vpack.c.b16 %v1134, %v1124
      %v1305 = vpack.c.b16 %v1135, %v1125
      %v1306 = vpack.c.b16 %v1136, %v1126
      %v1307 = vpack.c.b16 %v1137, %v1127
      %v1308 = vpack.c.b16 %v1138, %v1128
      %v1309 = vpack.c.b16 %v1139, %v1129
      %v1310 = vpack.c.b16 %v1140, %v1130
      %v1311 = vpack.c.b16 %v1141, %v1131
      %v1312 = vpack.c.b16 %v1142, %v1132
      %v1313 = vpack.c.b16 %v1143, %v1133
      %v1314 = vpack.c.b16 %v1154, %v1144
      %v1315 = vpack.c.b16 %v1155, %v1145
      %v1316 = vpack.c.b16 %v1156, %v1146
      %v1317 = vpack.c.b16 %v1157, %v1147
      %v1318 = vpack.c.b16 %v1158, %v1148
      %v1319 = vpack.c.b16 %v1159, %v1149
      %v1320 = vpack.c.b16 %v1160, %v1150
      %v1321 = vpack.c.b16 %v1161, %v1151
      %v1322 = vpack.c.b16 %v1162, %v1152
      %v1323 = vpack.c.b16 %v1163, %v1153
      %v1644 = vunpack.c.l.b16 %v524
      %v1645 = vunpack.c.h.b16 %v524
      %v1646 = vunpack.c.l.b16 %v525
      %v1647 = vunpack.c.h.b16 %v525
      %v1648 = vunpack.c.l.b16 %v526
      %v1649 = vunpack.c.h.b16 %v526
      %v1650 = vunpack.c.l.b16 %v527
      %v1651 = vunpack.c.h.b16 %v527
      %v1652 = vunpack.c.l.b16 %v528
      %v1653 = vunpack.c.h.b16 %v528
      %v1654 = vunpack.c.l.b16 %v529
      %v1655 = vunpack.c.h.b16 %v529
      %v1656 = vunpack.c.l.b16 %v530
      %v1657 = vunpack.c.h.b16 %v530
      %v1658 = vunpack.c.l.b16 %v531
      %v1659 = vunpack.c.h.b16 %v531
      %v1660 = vunpack.c.l.b16 %v532
      %v1661 = vunpack.c.h.b16 %v532
      %v1662 = vunpack.c.l.b16 %v533
      %v1663 = vunpack.c.h.b16 %v533
      %v1664 = vunpack.c.l.b16 %v534
      %v1665 = vunpack.c.h.b16 %v534
      %v1666 = vunpack.c.l.b16 %v535
      %v1667 = vunpack.c.h.b16 %v535
      %v1668 = vunpack.c.l.b16 %v536
      %v1669 = vunpack.c.h.b16 %v536
      %v1670 = vunpack.c.l.b16 %v537
      %v1671 = vunpack.c.h.b16 %v537
      %v1672 = vunpack.c.l.b16 %v538
      %v1673 = vunpack.c.h.b16 %v538
      %v1674 = vunpack.c.l.b16 %v539
      %v1675 = vunpack.c.h.b16 %v539
      %v1676 = vunpack.c.l.b16 %v540
      %v1677 = vunpack.c.h.b16 %v540
      %v1678 = vunpack.c.l.b16 %v541
      %v1679 = vunpack.c.h.b16 %v541
      %v1680 = vunpack.c.l.b16 %v542
      %v1681 = vunpack.c.h.b16 %v542
      %v1682 = vunpack.c.l.b16 %v543
      %v1683 = vunpack.c.h.b16 %v543
      %v1684 = vunpack.c.l.b16 %v544
      %v1685 = vunpack.c.h.b16 %v544
      %v1686 = vunpack.c.l.b16 %v545
      %v1687 = vunpack.c.h.b16 %v545
      %v1688 = vunpack.c.l.b16 %v546
      %v1689 = vunpack.c.h.b16 %v546
      %v1690 = vunpack.c.l.b16 %v547
      %v1691 = vunpack.c.h.b16 %v547
      %v1692 = vunpack.c.l.b16 %v548
      %v1693 = vunpack.c.h.b16 %v548
      %v1694 = vunpack.c.l.b16 %v549
      %v1695 = vunpack.c.h.b16 %v549
      %v1696 = vunpack.c.l.b16 %v550
      %v1697 = vunpack.c.h.b16 %v550
      %v1698 = vunpack.c.l.b16 %v551
      %v1699 = vunpack.c.h.b16 %v551
      %v1700 = vunpack.c.l.b16 %v552
      %v1701 = vunpack.c.h.b16 %v552
      %v1702 = vunpack.c.l.b16 %v553
      %v1703 = vunpack.c.h.b16 %v553
      %v1704 = vunpack.c.l.b16 %v554
      %v1705 = vunpack.c.h.b16 %v554
      %v1706 = vunpack.c.l.b16 %v555
      %v1707 = vunpack.c.h.b16 %v555
      %v1708 = vunpack.c.l.b16 %v556
      %v1709 = vunpack.c.h.b16 %v556
      %v1710 = vunpack.c.l.b16 %v557
      %v1711 = vunpack.c.h.b16 %v557
      %v1712 = vunpack.c.l.b16 %v558
      %v1713 = vunpack.c.h.b16 %v558
      %v1714 = vunpack.c.l.b16 %v559
      %v1715 = vunpack.c.h.b16 %v559
      %v1716 = vunpack.c.l.b16 %v560
      %v1717 = vunpack.c.h.b16 %v560
      %v1718 = vunpack.c.l.b16 %v561
      %v1719 = vunpack.c.h.b16 %v561
      %v1720 = vunpack.c.l.b16 %v562
      %v1721 = vunpack.c.h.b16 %v562
      %v1722 = vunpack.c.l.b16 %v563
      %v1723 = vunpack.c.h.b16 %v563
      %v1724 = vunpack.c.l.b16 %v564
      %v1725 = vunpack.c.h.b16 %v564
      %v1726 = vunpack.c.l.b16 %v565
      %v1727 = vunpack.c.h.b16 %v565
      %v1728 = vunpack.c.l.b16 %v566
      %v1729 = vunpack.c.h.b16 %v566
      %v1730 = vunpack.c.l.b16 %v567
      %v1731 = vunpack.c.h.b16 %v567
      %v1732 = vunpack.c.l.b16 %v568
      %v1733 = vunpack.c.h.b16 %v568
      %v1734 = vunpack.c.l.b16 %v569
      %v1735 = vunpack.c.h.b16 %v569
      %v1736 = vunpack.c.l.b16 %v570
      %v1737 = vunpack.c.h.b16 %v570
      %v1738 = vunpack.c.l.b16 %v571
      %v1739 = vunpack.c.h.b16 %v571
      %v1740 = vunpack.c.l.b16 %v572
      %v1741 = vunpack.c.h.b16 %v572
      %v1742 = vunpack.c.l.b16 %v573
      %v1743 = vunpack.c.h.b16 %v573
      %v1744 = vunpack.c.l.b16 %v574
      %v1745 = vunpack.c.h.b16 %v574
      %v1746 = vunpack.c.l.b16 %v575
      %v1747 = vunpack.c.h.b16 %v575
      %v1748 = vunpack.c.l.b16 %v576
      %v1749 = vunpack.c.h.b16 %v576
      %v1750 = vunpack.c.l.b16 %v577
      %v1751 = vunpack.c.h.b16 %v577
      %v1752 = vunpack.c.l.b16 %v578
      %v1753 = vunpack.c.h.b16 %v578
      %v1754 = vunpack.c.l.b16 %v579
      %v1755 = vunpack.c.h.b16 %v579
      %v1756 = vunpack.c.l.b16 %v580
      %v1757 = vunpack.c.h.b16 %v580
      %v1758 = vunpack.c.l.b16 %v581
      %v1759 = vunpack.c.h.b16 %v581
      %v1760 = vunpack.c.l.b16 %v582
      %v1761 = vunpack.c.h.b16 %v582
      %v1762 = vunpack.c.l.b16 %v583
      %v1763 = vunpack.c.h.b16 %v583
      %v1764 = vunpack.c.l.b16 %v584
      %v1765 = vunpack.c.h.b16 %v584
      %v1766 = vunpack.c.l.b16 %v585
      %v1767 = vunpack.c.h.b16 %v585
      %v1768 = vunpack.c.l.b16 %v586
      %v1769 = vunpack.c.h.b16 %v586
      %v1770 = vunpack.c.l.b16 %v587
      %v1771 = vunpack.c.h.b16 %v587
      %v1772 = vunpack.c.l.b16 %v588
      %v1773 = vunpack.c.h.b16 %v588
      %v1774 = vunpack.c.l.b16 %v589
      %v1775 = vunpack.c.h.b16 %v589
      %v1776 = vunpack.c.l.b16 %v590
      %v1777 = vunpack.c.h.b16 %v590
      %v1778 = vunpack.c.l.b16 %v591
      %v1779 = vunpack.c.h.b16 %v591
      %v1780 = vunpack.c.l.b16 %v592
      %v1781 = vunpack.c.h.b16 %v592
      %v1782 = vunpack.c.l.b16 %v593
      %v1783 = vunpack.c.h.b16 %v593
      %v1784 = vunpack.c.l.b16 %v594
      %v1785 = vunpack.c.h.b16 %v594
      %v1786 = vunpack.c.l.b16 %v595
      %v1787 = vunpack.c.h.b16 %v595
      %v1788 = vunpack.c.l.b16 %v596
      %v1789 = vunpack.c.h.b16 %v596
      %v1790 = vunpack.c.l.b16 %v597
      %v1791 = vunpack.c.h.b16 %v597
      %v1792 = vunpack.c.l.b16 %v598
      %v1793 = vunpack.c.h.b16 %v598
      %v1794 = vunpack.c.l.b16 %v599
      %v1795 = vunpack.c.h.b16 %v599
      %v1796 = vunpack.c.l.b16 %v600
      %v1797 = vunpack.c.h.b16 %v600
      %v1798 = vunpack.c.l.b16 %v601
      %v1799 = vunpack.c.h.b16 %v601
      %v1800 = vunpack.c.l.b16 %v602
      %v1801 = vunpack.c.h.b16 %v602
      %v1802 = vunpack.c.l.b16 %v603
      %v1803 = vunpack.c.h.b16 %v603
      %v1804 = vunpack.c.l.b16 %v604
      %v1805 = vunpack.c.h.b16 %v604
      %v1806 = vunpack.c.l.b16 %v605
      %v1807 = vunpack.c.h.b16 %v605
      %v1808 = vunpack.c.l.b16 %v606
      %v1809 = vunpack.c.h.b16 %v606
      %v1810 = vunpack.c.l.b16 %v607
      %v1811 = vunpack.c.h.b16 %v607
      %v1812 = vunpack.c.l.b16 %v608
      %v1813 = vunpack.c.h.b16 %v608
      %v1814 = vunpack.c.l.b16 %v609
      %v1815 = vunpack.c.h.b16 %v609
      %v1816 = vunpack.c.l.b16 %v610
      %v1817 = vunpack.c.h.b16 %v610
      %v1818 = vunpack.c.l.b16 %v611
      %v1819 = vunpack.c.h.b16 %v611
      %v1820 = vunpack.c.l.b16 %v612
      %v1821 = vunpack.c.h.b16 %v612
      %v1822 = vunpack.c.l.b16 %v613
      %v1823 = vunpack.c.h.b16 %v613
      %v1824 = vunpack.c.l.b16 %v614
      %v1825 = vunpack.c.h.b16 %v614
      %v1826 = vunpack.c.l.b16 %v615
      %v1827 = vunpack.c.h.b16 %v615
      %v1828 = vunpack.c.l.b16 %v616
      %v1829 = vunpack.c.h.b16 %v616
      %v1830 = vunpack.c.l.b16 %v617
      %v1831 = vunpack.c.h.b16 %v617
      %v1832 = vunpack.c.l.b16 %v618
      %v1833 = vunpack.c.h.b16 %v618
      %v1834 = vunpack.c.l.b16 %v619
      %v1835 = vunpack.c.h.b16 %v619
      %v1836 = vunpack.c.l.b16 %v620
      %v1837 = vunpack.c.h.b16 %v620
      %v1838 = vunpack.c.l.b16 %v621
      %v1839 = vunpack.c.h.b16 %v621
      %v1840 = vunpack.c.l.b16 %v622
      %v1841 = vunpack.c.h.b16 %v622
      %v1842 = vunpack.c.l.b16 %v623
      %v1843 = vunpack.c.h.b16 %v623
      %v1844 = vunpack.c.l.b16 %v624
      %v1845 = vunpack.c.h.b16 %v624
      %v1846 = vunpack.c.l.b16 %v625
      %v1847 = vunpack.c.h.b16 %v625
      %v1848 = vunpack.c.l.b16 %v626
      %v1849 = vunpack.c.h.b16 %v626
      %v1850 = vunpack.c.l.b16 %v627
      %v1851 = vunpack.c.h.b16 %v627
      %v1852 = vunpack.c.l.b16 %v628
      %v1853 = vunpack.c.h.b16 %v628
      %v1854 = vunpack.c.l.b16 %v629
      %v1855 = vunpack.c.h.b16 %v629
      %v1856 = vunpack.c.l.b16 %v630
      %v1857 = vunpack.c.h.b16 %v630
      %v1858 = vunpack.c.l.b16 %v631
      %v1859 = vunpack.c.h.b16 %v631
      %v1860 = vunpack.c.l.b16 %v632
      %v1861 = vunpack.c.h.b16 %v632
      %v1862 = vunpack.c.l.b16 %v633
      %v1863 = vunpack.c.h.b16 %v633
      %v1864 = vunpack.c.l.b16 %v634
      %v1865 = vunpack.c.h.b16 %v634
      %v1866 = vunpack.c.l.b16 %v635
      %v1867 = vunpack.c.h.b16 %v635
      %v1868 = vunpack.c.l.b16 %v636
      %v1869 = vunpack.c.h.b16 %v636
      %v1870 = vunpack.c.l.b16 %v637
      %v1871 = vunpack.c.h.b16 %v637
      %v1872 = vunpack.c.l.b16 %v638
      %v1873 = vunpack.c.h.b16 %v638
      %v1874 = vunpack.c.l.b16 %v639
      %v1875 = vunpack.c.h.b16 %v639
      %v1876 = vunpack.c.l.b16 %v640
      %v1877 = vunpack.c.h.b16 %v640
      %v1878 = vunpack.c.l.b16 %v641
      %v1879 = vunpack.c.h.b16 %v641
      %v1880 = vunpack.c.l.b16 %v642
      %v1881 = vunpack.c.h.b16 %v642
      %v1882 = vunpack.c.l.b16 %v643
      %v1883 = vunpack.c.h.b16 %v643
      %v1884 = vunpack.c.l.b16 %v644
      %v1885 = vunpack.c.h.b16 %v644
      %v1886 = vunpack.c.l.b16 %v645
      %v1887 = vunpack.c.h.b16 %v645
      %v1888 = vunpack.c.l.b16 %v646
      %v1889 = vunpack.c.h.b16 %v646
      %v1890 = vunpack.c.l.b16 %v647
      %v1891 = vunpack.c.h.b16 %v647
      %v1892 = vunpack.c.l.b16 %v648
      %v1893 = vunpack.c.h.b16 %v648
      %v1894 = vunpack.c.l.b16 %v649
      %v1895 = vunpack.c.h.b16 %v649
      %v1896 = vunpack.c.l.b16 %v650
      %v1897 = vunpack.c.h.b16 %v650
      %v1898 = vunpack.c.l.b16 %v651
      %v1899 = vunpack.c.h.b16 %v651
      %v1900 = vunpack.c.l.b16 %v652
      %v1901 = vunpack.c.h.b16 %v652
      %v1902 = vunpack.c.l.b16 %v653
      %v1903 = vunpack.c.h.b16 %v653
      %v1904 = vunpack.c.l.b16 %v654
      %v1905 = vunpack.c.h.b16 %v654
      %v1906 = vunpack.c.l.b16 %v655
      %v1907 = vunpack.c.h.b16 %v655
      %v1908 = vunpack.c.l.b16 %v656
      %v1909 = vunpack.c.h.b16 %v656
      %v1910 = vunpack.c.l.b16 %v657
      %v1911 = vunpack.c.h.b16 %v657
      %v1912 = vunpack.c.l.b16 %v658
      %v1913 = vunpack.c.h.b16 %v658
      %v1914 = vunpack.c.l.b16 %v659
      %v1915 = vunpack.c.h.b16 %v659
      %v1916 = vunpack.c.l.b16 %v660
      %v1917 = vunpack.c.h.b16 %v660
      %v1918 = vunpack.c.l.b16 %v661
      %v1919 = vunpack.c.h.b16 %v661
      %v1920 = vunpack.c.l.b16 %v662
      %v1921 = vunpack.c.h.b16 %v662
      %v1922 = vunpack.c.l.b16 %v663
      %v1923 = vunpack.c.h.b16 %v663
      %v1924 = vunpack.c.l.b16 %v664
      %v1925 = vunpack.c.h.b16 %v664
      %v1926 = vunpack.c.l.b16 %v665
      %v1927 = vunpack.c.h.b16 %v665
      %v1928 = vunpack.c.l.b16 %v666
      %v1929 = vunpack.c.h.b16 %v666
      %v1930 = vunpack.c.l.b16 %v667
      %v1931 = vunpack.c.h.b16 %v667
      %v1932 = vunpack.c.l.b16 %v668
      %v1933 = vunpack.c.h.b16 %v668
      %v1934 = vunpack.c.l.b16 %v669
      %v1935 = vunpack.c.h.b16 %v669
      %v1936 = vunpack.c.l.b16 %v670
      %v1937 = vunpack.c.h.b16 %v670
      %v1938 = vunpack.c.l.b16 %v671
      %v1939 = vunpack.c.h.b16 %v671
      %v1940 = vunpack.c.l.b16 %v672
      %v1941 = vunpack.c.h.b16 %v672
      %v1942 = vunpack.c.l.b16 %v673
      %v1943 = vunpack.c.h.b16 %v673
      %v1944 = vunpack.c.l.b16 %v674
      %v1945 = vunpack.c.h.b16 %v674
      %v1946 = vunpack.c.l.b16 %v675
      %v1947 = vunpack.c.h.b16 %v675
      %v1948 = vunpack.c.l.b16 %v676
      %v1949 = vunpack.c.h.b16 %v676
      %v1950 = vunpack.c.l.b16 %v677
      %v1951 = vunpack.c.h.b16 %v677
      %v1952 = vunpack.c.l.b16 %v678
      %v1953 = vunpack.c.h.b16 %v678
      %v1954 = vunpack.c.l.b16 %v679
      %v1955 = vunpack.c.h.b16 %v679
      %v1956 = vunpack.c.l.b16 %v680
      %v1957 = vunpack.c.h.b16 %v680
      %v1958 = vunpack.c.l.b16 %v681
      %v1959 = vunpack.c.h.b16 %v681
      %v1960 = vunpack.c.l.b16 %v682
      %v1961 = vunpack.c.h.b16 %v682
      %v1962 = vunpack.c.l.b16 %v683
      %v1963 = vunpack.c.h.b16 %v683
      %v1964 = vpack.c.b16 %v1646, %v1644
      %v1965 = vpack.c.b16 %v1647, %v1645
      %v1966 = vpack.c.b16 %v1650, %v1648
      %v1967 = vpack.c.b16 %v1651, %v1649
      %v1968 = vpack.c.b16 %v1654, %v1652
      %v1969 = vpack.c.b16 %v1655, %v1653
      %v1970 = vpack.c.b16 %v1658, %v1656
      %v1971 = vpack.c.b16 %v1659, %v1657
      %v1972 = vpack.c.b16 %v1662, %v1660
      %v1973 = vpack.c.b16 %v1663, %v1661
      %v1974 = vpack.c.b16 %v1666, %v1664
      %v1975 = vpack.c.b16 %v1667, %v1665
      %v1976 = vpack.c.b16 %v1670, %v1668
      %v1977 = vpack.c.b16 %v1671, %v1669
      %v1978 = vpack.c.b16 %v1674, %v1672
      %v1979 = vpack.c.b16 %v1675, %v1673
      %v1980 = vpack.c.b16 %v1678, %v1676
      %v1981 = vpack.c.b16 %v1679, %v1677
      %v1982 = vpack.c.b16 %v1682, %v1680
      %v1983 = vpack.c.b16 %v1683, %v1681
      %v1984 = vpack.c.b16 %v1686, %v1684
      %v1985 = vpack.c.b16 %v1687, %v1685
      %v1986 = vpack.c.b16 %v1690, %v1688
      %v1987 = vpack.c.b16 %v1691, %v1689
      %v1988 = vpack.c.b16 %v1694, %v1692
      %v1989 = vpack.c.b16 %v1695, %v1693
      %v1990 = vpack.c.b16 %v1698, %v1696
      %v1991 = vpack.c.b16 %v1699, %v1697
      %v1992 = vpack.c.b16 %v1702, %v1700
      %v1993 = vpack.c.b16 %v1703, %v1701
      %v1994 = vpack.c.b16 %v1706, %v1704
      %v1995 = vpack.c.b16 %v1707, %v1705
      %v1996 = vpack.c.b16 %v1710, %v1708
      %v1997 = vpack.c.b16 %v1711, %v1709
      %v1998 = vpack.c.b16 %v1714, %v1712
      %v1999 = vpack.c.b16 %v1715, %v1713
      %v2000 = vpack.c.b16 %v1718, %v1716
      %v2001 = vpack.c.b16 %v1719, %v1717
      %v2002 = vpack.c.b16 %v1722, %v1720
      %v2003 = vpack.c.b16 %v1723, %v1721
      %v2004 = vpack.c.b16 %v1726, %v1724
      %v2005 = vpack.c.b16 %v1727, %v1725
      %v2006 = vpack.c.b16 %v1730, %v1728
      %v2007 = vpack.c.b16 %v1731, %v1729
      %v2008 = vpack.c.b16 %v1734, %v1732
      %v2009 = vpack.c.b16 %v1735, %v1733
      %v2010 = vpack.c.b16 %v1738, %v1736
      %v2011 = vpack.c.b16 %v1739, %v1737
      %v2012 = vpack.c.b16 %v1742, %v1740
      %v2013 = vpack.c.b16 %v1743, %v1741
      %v2014 = vpack.c.b16 %v1746, %v1744
      %v2015 = vpack.c.b16 %v1747, %v1745
      %v2016 = vpack.c.b16 %v1750, %v1748
      %v2017 = vpack.c.b16 %v1751, %v1749
      %v2018 = vpack.c.b16 %v1754, %v1752
      %v2019 = vpack.c.b16 %v1755, %v1753
      %v2020 = vpack.c.b16 %v1758, %v1756
      %v2021 = vpack.c.b16 %v1759, %v1757
      %v2022 = vpack.c.b16 %v1762, %v1760
      %v2023 = vpack.c.b16 %v1763, %v1761
      %v2024 = vpack.c.b16 %v1766, %v1764
      %v2025 = vpack.c.b16 %v1767, %v1765
      %v2026 = vpack.c.b16 %v1770, %v1768
      %v2027 = vpack.c.b16 %v1771, %v1769
      %v2028 = vpack.c.b16 %v1774, %v1772
      %v2029 = vpack.c.b16 %v1775, %v1773
      %v2030 = vpack.c.b16 %v1778, %v1776
      %v2031 = vpack.c.b16 %v1779, %v1777
      %v2032 = vpack.c.b16 %v1782, %v1780
      %v2033 = vpack.c.b16 %v1783, %v1781
      %v2034 = vpack.c.b16 %v1786, %v1784
      %v2035 = vpack.c.b16 %v1787, %v1785
      %v2036 = vpack.c.b16 %v1790, %v1788
      %v2037 = vpack.c.b16 %v1791, %v1789
      %v2038 = vpack.c.b16 %v1794, %v1792
      %v2039 = vpack.c.b16 %v1795, %v1793
      %v2040 = vpack.c.b16 %v1798, %v1796
      %v2041 = vpack.c.b16 %v1799, %v1797
      %v2042 = vpack.c.b16 %v1802, %v1800
      %v2043 = vpack.c.b16 %v1803, %v1801
      %v2044 = vpack.c.b16 %v1806, %v1804
      %v2045 = vpack.c.b16 %v1807, %v1805
      %v2046 = vpack.c.b16 %v1810, %v1808
      %v2047 = vpack.c.b16 %v1811, %v1809
      %v2048 = vpack.c.b16 %v1814, %v1812
      %v2049 = vpack.c.b16 %v1815, %v1813
      %v2050 = vpack.c.b16 %v1818, %v1816
      %v2051 = vpack.c.b16 %v1819, %v1817
      %v2052 = vpack.c.b16 %v1822, %v1820
      %v2053 = vpack.c.b16 %v1823, %v1821
      %v2054 = vpack.c.b16 %v1826, %v1824
      %v2055 = vpack.c.b16 %v1827, %v1825
      %v2056 = vpack.c.b16 %v1830, %v1828
      %v2057 = vpack.c.b16 %v1831, %v1829
      %v2058 = vpack.c.b16 %v1834, %v1832
      %v2059 = vpack.c.b16 %v1835, %v1833
      %v2060 = vpack.c.b16 %v1838, %v1836
      %v2061 = vpack.c.b16 %v1839, %v1837
      %v2062 = vpack.c.b16 %v1842, %v1840
      %v2063 = vpack.c.b16 %v1843, %v1841
      %v2064 = vpack.c.b16 %v1846, %v1844
      %v2065 = vpack.c.b16 %v1847, %v1845
      %v2066 = vpack.c.b16 %v1850, %v1848
      %v2067 = vpack.c.b16 %v1851, %v1849
      %v2068 = vpack.c.b16 %v1854, %v1852
      %v2069 = vpack.c.b16 %v1855, %v1853
      %v2070 = vpack.c.b16 %v1858, %v1856
      %v2071 = vpack.c.b16 %v1859, %v1857
      %v2072 = vpack.c.b16 %v1862, %v1860
      %v2073 = vpack.c.b16 %v1863, %v1861
      %v2074 = vpack.c.b16 %v1866, %v1864
      %v2075 = vpack.c.b16 %v1867, %v1865
      %v2076 = vpack.c.b16 %v1870, %v1868
      %v2077 = vpack.c.b16 %v1871, %v1869
      %v2078 = vpack.c.b16 %v1874, %v1872
      %v2079 = vpack.c.b16 %v1875, %v1873
      %v2080 = vpack.c.b16 %v1878, %v1876
      %v2081 = vpack.c.b16 %v1879, %v1877
      %v2082 = vpack.c.b16 %v1882, %v1880
      %v2083 = vpack.c.b16 %v1883, %v1881
      %v2084 = vpack.c.b16 %v1886, %v1884
      %v2085 = vpack.c.b16 %v1887, %v1885
      %v2086 = vpack.c.b16 %v1890, %v1888
      %v2087 = vpack.c.b16 %v1891, %v1889
      %v2088 = vpack.c.b16 %v1894, %v1892
      %v2089 = vpack.c.b16 %v1895, %v1893
      %v2090 = vpack.c.b16 %v1898, %v1896
      %v2091 = vpack.c.b16 %v1899, %v1897
      %v2092 = vpack.c.b16 %v1902, %v1900
      %v2093 = vpack.c.b16 %v1903, %v1901
      %v2094 = vpack.c.b16 %v1906, %v1904
      %v2095 = vpack.c.b16 %v1907, %v1905
      %v2096 = vpack.c.b16 %v1910, %v1908
      %v2097 = vpack.c.b16 %v1911, %v1909
      %v2098 = vpack.c.b16 %v1914, %v1912
      %v2099 = vpack.c.b16 %v1915, %v1913
      %v2100 = vpack.c.b16 %v1918, %v1916
      %v2101 = vpack.c.b16 %v1919, %v1917
      %v2102 = vpack.c.b16 %v1922, %v1920
      %v2103 = vpack.c.b16 %v1923, %v1921
      %v2104 = vpack.c.b16 %v1926, %v1924
      %v2105 = vpack.c.b16 %v1927, %v1925
      %v2106 = vpack.c.b16 %v1930, %v1928
      %v2107 = vpack.c.b16 %v1931, %v1929
      %v2108 = vpack.c.b16 %v1934, %v1932
      %v2109 = vpack.c.b16 %v1935, %v1933
      %v2110 = vpack.c.b16 %v1938, %v1936
      %v2111 = vpack.c.b16 %v1939, %v1937
      %v2112 = vpack.c.b16 %v1942, %v1940
      %v2113 = vpack.c.b16 %v1943, %v1941
      %v2114 = vpack.c.b16 %v1946, %v1944
      %v2115 = vpack.c.b16 %v1947, %v1945
      %v2116 = vpack.c.b16 %v1950, %v1948
      %v2117 = vpack.c.b16 %v1951, %v1949
      %v2118 = vpack.c.b16 %v1954, %v1952
      %v2119 = vpack.c.b16 %v1955, %v1953
      %v2120 = vpack.c.b16 %v1958, %v1956
      %v2121 = vpack.c.b16 %v1959, %v1957
      %v2122 = vpack.c.b16 %v1962, %v1960
      %v2123 = vpack.c.b16 %v1963, %v1961
      %2284 = vmatprep.subr.bf16.mxu0 %v1965
      %2285 = vmatpush1.bf16.msra.mxu0 %v1964
      %2286 = vmatprep.subr.bf16.mxu0 %v1967
      %2287 = vmatpush1.bf16.msra.mxu0 %v1966
      %2288 = vmatprep.subr.bf16.mxu0 %v1969
      %2289 = vmatpush1.bf16.msra.mxu0 %v1968
      %2290 = vmatprep.subr.bf16.mxu0 %v1971
      %2291 = vmatpush1.bf16.msra.mxu0 %v1970
      %2292 = vmatprep.subr.bf16.mxu0 %v1973
      %2293 = vmatpush1.bf16.msra.mxu0 %v1972
      %2294 = vmatprep.subr.bf16.mxu0 %v1975
      %2295 = vmatpush1.bf16.msra.mxu0 %v1974
      %2296 = vmatprep.subr.bf16.mxu0 %v1977
      %2297 = vmatpush1.bf16.msra.mxu0 %v1976
      %2298 = vmatprep.subr.bf16.mxu0 %v1979
      %2299 = vmatpush1.bf16.msra.mxu0 %v1978
      %2300 = vmatprep.subr.bf16.mxu0 %v1981
      %2301 = vmatpush1.bf16.msra.mxu0 %v1980
      %2302 = vmatprep.subr.bf16.mxu0 %v1983
      %2303 = vmatpush1.bf16.msra.mxu0 %v1982
      %2304 = vmatprep.subr.bf16.mxu0 %v1985
      %2305 = vmatpush1.bf16.msra.mxu0 %v1984
      %2306 = vmatprep.subr.bf16.mxu0 %v1987
      %2307 = vmatpush1.bf16.msra.mxu0 %v1986
      %2308 = vmatprep.subr.bf16.mxu0 %v1989
      %2309 = vmatpush1.bf16.msra.mxu0 %v1988
      %2310 = vmatprep.subr.bf16.mxu0 %v1991
      %2311 = vmatpush1.bf16.msra.mxu0 %v1990
      %2312 = vmatprep.subr.bf16.mxu0 %v1993
      %2313 = vmatpush1.bf16.msra.mxu0 %v1992
      %2314 = vmatprep.subr.bf16.mxu0 %v1995
      %2315 = vmatpush1.bf16.msra.mxu0 %v1994
      %2316 = vmatprep.mubr.bf16.mxu0 %v1165
      %2317 = vmatmul.mubr.bf16.gmra.mrb[0].mxu0 %v1164
      %v2318 = vpop.f32.mrb[0].mxu0
      %v2319 = vadd.f32 0.0, %v2318
      %v2320 = vpop.f32.mrb[0].mxu0
      %v2321 = vadd.f32 0.0, %v2320
      %v2322 = vpop.f32.mrb[0].mxu0
      %v2323 = vadd.f32 0.0, %v2322
      %v2324 = vpop.f32.mrb[0].mxu0
      %v2325 = vadd.f32 0.0, %v2324
      %2326 = vmatprep.mubr.bf16.mxu0 %v1175
      %2327 = vmatmul.mubr.bf16.gmra.mrb[0].mxu0 %v1174
      %v2328 = vpop.f32.mrb[0].mxu0
      %v2329 = vadd.f32 0.0, %v2328
      %v2330 = vpop.f32.mrb[0].mxu0
      %v2331 = vadd.f32 0.0, %v2330
      %v2332 = vpop.f32.mrb[0].mxu0
      %v2333 = vadd.f32 0.0, %v2332
      %v2334 = vpop.f32.mrb[0].mxu0
      %v2335 = vadd.f32 0.0, %v2334
      %2336 = vmatprep.mubr.bf16.mxu0 %v1185
      %2337 = vmatmul.mubr.bf16.gmra.mrb[0].mxu0 %v1184
      %v2338 = vpop.f32.mrb[0].mxu0
      %v2339 = vadd.f32 0.0, %v2338
      %v2340 = vpop.f32.mrb[0].mxu0
      %v2341 = vadd.f32 0.0, %v2340
      %v2342 = vpop.f32.mrb[0].mxu0
      %v2343 = vadd.f32 0.0, %v2342
      %v2344 = vpop.f32.mrb[0].mxu0
      %v2345 = vadd.f32 0.0, %v2344
      %2346 = vmatprep.mubr.bf16.mxu0 %v1195
      %2347 = vmatmul.mubr.bf16.gmra.mrb[0].mxu0 %v1194
      %v2348 = vpop.f32.mrb[0].mxu0
      %v2349 = vadd.f32 0.0, %v2348
      %v2350 = vpop.f32.mrb[0].mxu0
      %v2351 = vadd.f32 0.0, %v2350
      %v2352 = vpop.f32.mrb[0].mxu0
      %v2353 = vadd.f32 0.0, %v2352
      %v2354 = vpop.f32.mrb[0].mxu0
      %v2355 = vadd.f32 0.0, %v2354
      %2356 = vmatprep.mubr.bf16.mxu0 %v1205
      %2357 = vmatmul.mubr.bf16.gmra.mrb[0].mxu0 %v1204
      %v2358 = vpop.f32.mrb[0].mxu0
      %v2359 = vadd.f32 0.0, %v2358
      %v2360 = vpop.f32.mrb[0].mxu0
      %v2361 = vadd.f32 0.0, %v2360
      %v2362 = vpop.f32.mrb[0].mxu0
      %v2363 = vadd.f32 0.0, %v2362
      %v2364 = vpop.f32.mrb[0].mxu0
      %v2365 = vadd.f32 0.0, %v2364
      %2366 = vmatprep.mubr.bf16.mxu0 %v1215
      %2367 = vmatmul.mubr.bf16.gmra.mrb[0].mxu0 %v1214
      %v2368 = vpop.f32.mrb[0].mxu0
      %v2369 = vadd.f32 0.0, %v2368
      %v2370 = vpop.f32.mrb[0].mxu0
      %v2371 = vadd.f32 0.0, %v2370
      %v2372 = vpop.f32.mrb[0].mxu0
      %v2373 = vadd.f32 0.0, %v2372
      %v2374 = vpop.f32.mrb[0].mxu0
      %v2375 = vadd.f32 0.0, %v2374
      %2376 = vmatprep.mubr.bf16.mxu0 %v1225
      %2377 = vmatmul.mubr.bf16.gmra.mrb[0].mxu0 %v1224
      %v2378 = vpop.f32.mrb[0].mxu0
      %v2379 = vadd.f32 0.0, %v2378
      %v2380 = vpop.f32.mrb[0].mxu0
      %v2381 = vadd.f32 0.0, %v2380
      %v2382 = vpop.f32.mrb[0].mxu0
      %v2383 = vadd.f32 0.0, %v2382
      %v2384 = vpop.f32.mrb[0].mxu0
      %v2385 = vadd.f32 0.0, %v2384
      %2386 = vmatprep.mubr.bf16.mxu0 %v1235
      %2387 = vmatmul.mubr.bf16.gmra.mrb[0].mxu0 %v1234
      %v2388 = vpop.f32.mrb[0].mxu0
      %v2389 = vadd.f32 0.0, %v2388
      %v2390 = vpop.f32.mrb[0].mxu0
      %v2391 = vadd.f32 0.0, %v2390
      %v2392 = vpop.f32.mrb[0].mxu0
      %v2393 = vadd.f32 0.0, %v2392
      %v2394 = vpop.f32.mrb[0].mxu0
      %v2395 = vadd.f32 0.0, %v2394
      %2396 = vmatprep.mubr.bf16.mxu0 %v1245
      %2397 = vmatmul.mubr.bf16.gmra.mrb[0].mxu0 %v1244
      %v2398 = vpop.f32.mrb[0].mxu0
      %v2399 = vadd.f32 0.0, %v2398
      %v2400 = vpop.f32.mrb[0].mxu0
      %v2401 = vadd.f32 0.0, %v2400
      %v2402 = vpop.f32.mrb[0].mxu0
      %v2403 = vadd.f32 0.0, %v2402
      %v2404 = vpop.f32.mrb[0].mxu0
      %v2405 = vadd.f32 0.0, %v2404
      %2406 = vmatprep.mubr.bf16.mxu0 %v1255
      %2407 = vmatmul.mubr.bf16.gmra.mrb[0].mxu0 %v1254
      %v2408 = vpop.f32.mrb[0].mxu0
      %v2409 = vadd.f32 0.0, %v2408
      %v2410 = vpop.f32.mrb[0].mxu0
      %v2411 = vadd.f32 0.0, %v2410
      %v2412 = vpop.f32.mrb[0].mxu0
      %v2413 = vadd.f32 0.0, %v2412
      %v2414 = vpop.f32.mrb[0].mxu0
      %v2415 = vadd.f32 0.0, %v2414
      %2416 = vmatprep.mubr.bf16.mxu0 %v1265
      %2417 = vmatmul.mubr.bf16.gmra.mrb[0].mxu0 %v1264
      %v2418 = vpop.f32.mrb[0].mxu0
      %v2419 = vadd.f32 0.0, %v2418
      %v2420 = vpop.f32.mrb[0].mxu0
      %v2421 = vadd.f32 0.0, %v2420
      %v2422 = vpop.f32.mrb[0].mxu0
      %v2423 = vadd.f32 0.0, %v2422
      %v2424 = vpop.f32.mrb[0].mxu0
      %v2425 = vadd.f32 0.0, %v2424
      %2426 = vmatprep.mubr.bf16.mxu0 %v1275
      %2427 = vmatmul.mubr.bf16.gmra.mrb[0].mxu0 %v1274
      %v2428 = vpop.f32.mrb[0].mxu0
      %v2429 = vadd.f32 0.0, %v2428
      %v2430 = vpop.f32.mrb[0].mxu0
      %v2431 = vadd.f32 0.0, %v2430
      %v2432 = vpop.f32.mrb[0].mxu0
      %v2433 = vadd.f32 0.0, %v2432
      %v2434 = vpop.f32.mrb[0].mxu0
      %v2435 = vadd.f32 0.0, %v2434
      %2436 = vmatprep.mubr.bf16.mxu0 %v1285
      %2437 = vmatmul.mubr.bf16.gmra.mrb[0].mxu0 %v1284
      %v2438 = vpop.f32.mrb[0].mxu0
      %v2439 = vadd.f32 0.0, %v2438
      %v2440 = vpop.f32.mrb[0].mxu0
      %v2441 = vadd.f32 0.0, %v2440
      %v2442 = vpop.f32.mrb[0].mxu0
      %v2443 = vadd.f32 0.0, %v2442
      %v2444 = vpop.f32.mrb[0].mxu0
      %v2445 = vadd.f32 0.0, %v2444
      %2446 = vmatprep.mubr.bf16.mxu0 %v1295
      %2447 = vmatmul.mubr.bf16.gmra.mrb[0].mxu0 %v1294
      %v2448 = vpop.f32.mrb[0].mxu0
      %v2449 = vadd.f32 0.0, %v2448
      %v2450 = vpop.f32.mrb[0].mxu0
      %v2451 = vadd.f32 0.0, %v2450
      %v2452 = vpop.f32.mrb[0].mxu0
      %v2453 = vadd.f32 0.0, %v2452
      %v2454 = vpop.f32.mrb[0].mxu0
      %v2455 = vadd.f32 0.0, %v2454
      %2456 = vmatprep.mubr.bf16.mxu0 %v1305
      %2457 = vmatmul.mubr.bf16.gmra.mrb[0].mxu0 %v1304
      %v2458 = vpop.f32.mrb[0].mxu0
      %v2459 = vadd.f32 0.0, %v2458
      %v2460 = vpop.f32.mrb[0].mxu0
      %v2461 = vadd.f32 0.0, %v2460
      %v2462 = vpop.f32.mrb[0].mxu0
      %v2463 = vadd.f32 0.0, %v2462
      %v2464 = vpop.f32.mrb[0].mxu0
      %v2465 = vadd.f32 0.0, %v2464
      %2466 = vmatprep.mubr.bf16.mxu0 %v1315
      %2467 = vmatmul.mubr.bf16.gmra.mrb[0].mxu0 %v1314
      %v2468 = vpop.f32.mrb[0].mxu0
      %v2469 = vadd.f32 0.0, %v2468
      %v2470 = vpop.f32.mrb[0].mxu0
      %v2471 = vadd.f32 0.0, %v2470
      %v2472 = vpop.f32.mrb[0].mxu0
      %v2473 = vadd.f32 0.0, %v2472
      %v2474 = vpop.f32.mrb[0].mxu0
      %v2475 = vadd.f32 0.0, %v2474
      %2476 = vdwg.mxu0
      %2477 = vmatprep.subr.bf16.mxu0 %v1997
      %2478 = vmatpush1.bf16.msra.mxu0 %v1996
      %2479 = vmatprep.subr.bf16.mxu0 %v1999
      %2480 = vmatpush1.bf16.msra.mxu0 %v1998
      %2481 = vmatprep.subr.bf16.mxu0 %v2001
      %2482 = vmatpush1.bf16.msra.mxu0 %v2000
      %2483 = vmatprep.subr.bf16.mxu0 %v2003
      %2484 = vmatpush1.bf16.msra.mxu0 %v2002
      %2485 = vmatprep.subr.bf16.mxu0 %v2005
      %2486 = vmatpush1.bf16.msra.mxu0 %v2004
      %2487 = vmatprep.subr.bf16.mxu0 %v2007
      %2488 = vmatpush1.bf16.msra.mxu0 %v2006
      %2489 = vmatprep.subr.bf16.mxu0 %v2009
      %2490 = vmatpush1.bf16.msra.mxu0 %v2008
      %2491 = vmatprep.subr.bf16.mxu0 %v2011
      %2492 = vmatpush1.bf16.msra.mxu0 %v2010
      %2493 = vmatprep.subr.bf16.mxu0 %v2013
      %2494 = vmatpush1.bf16.msra.mxu0 %v2012
      %2495 = vmatprep.subr.bf16.mxu0 %v2015
      %2496 = vmatpush1.bf16.msra.mxu0 %v2014
      %2497 = vmatprep.subr.bf16.mxu0 %v2017
      %2498 = vmatpush1.bf16.msra.mxu0 %v2016
      %2499 = vmatprep.subr.bf16.mxu0 %v2019
      %2500 = vmatpush1.bf16.msra.mxu0 %v2018
      %2501 = vmatprep.subr.bf16.mxu0 %v2021
      %2502 = vmatpush1.bf16.msra.mxu0 %v2020
      %2503 = vmatprep.subr.bf16.mxu0 %v2023
      %2504 = vmatpush1.bf16.msra.mxu0 %v2022
      %2505 = vmatprep.subr.bf16.mxu0 %v2025
      %2506 = vmatpush1.bf16.msra.mxu0 %v2024
      %2507 = vmatprep.subr.bf16.mxu0 %v2027
      %2508 = vmatpush1.bf16.msra.mxu0 %v2026
      %2509 = vmatprep.mubr.bf16.mxu0 %v1167
      %2510 = vmatmul.mubr.bf16.gmra.mrb[0].mxu0 %v1166
      %v2511 = vpop.f32.mrb[0].mxu0
      %v2512 = vadd.f32 %v2319, %v2511
      %v2513 = vpop.f32.mrb[0].mxu0
      %v2514 = vadd.f32 %v2321, %v2513
      %v2515 = vpop.f32.mrb[0].mxu0
      %v2516 = vadd.f32 %v2323, %v2515
      %v2517 = vpop.f32.mrb[0].mxu0
      %v2518 = vadd.f32 %v2325, %v2517
      %2519 = vmatprep.mubr.bf16.mxu0 %v1177
      %2520 = vmatmul.mubr.bf16.gmra.mrb[0].mxu0 %v1176
      %v2521 = vpop.f32.mrb[0].mxu0
      %v2522 = vadd.f32 %v2329, %v2521
      %v2523 = vpop.f32.mrb[0].mxu0
      %v2524 = vadd.f32 %v2331, %v2523
      %v2525 = vpop.f32.mrb[0].mxu0
      %v2526 = vadd.f32 %v2333, %v2525
      %v2527 = vpop.f32.mrb[0].mxu0
      %v2528 = vadd.f32 %v2335, %v2527
      %2529 = vmatprep.mubr.bf16.mxu0 %v1187
      %2530 = vmatmul.mubr.bf16.gmra.mrb[0].mxu0 %v1186
      %v2531 = vpop.f32.mrb[0].mxu0
      %v2532 = vadd.f32 %v2339, %v2531
      %v2533 = vpop.f32.mrb[0].mxu0
      %v2534 = vadd.f32 %v2341, %v2533
      %v2535 = vpop.f32.mrb[0].mxu0
      %v2536 = vadd.f32 %v2343, %v2535
      %v2537 = vpop.f32.mrb[0].mxu0
      %v2538 = vadd.f32 %v2345, %v2537
      %2539 = vmatprep.mubr.bf16.mxu0 %v1197
      %2540 = vmatmul.mubr.bf16.gmra.mrb[0].mxu0 %v1196
      %v2541 = vpop.f32.mrb[0].mxu0
      %v2542 = vadd.f32 %v2349, %v2541
      %v2543 = vpop.f32.mrb[0].mxu0
      %v2544 = vadd.f32 %v2351, %v2543
      %v2545 = vpop.f32.mrb[0].mxu0
      %v2546 = vadd.f32 %v2353, %v2545
      %v2547 = vpop.f32.mrb[0].mxu0
      %v2548 = vadd.f32 %v2355, %v2547
      %2549 = vmatprep.mubr.bf16.mxu0 %v1207
      %2550 = vmatmul.mubr.bf16.gmra.mrb[0].mxu0 %v1206
      %v2551 = vpop.f32.mrb[0].mxu0
      %v2552 = vadd.f32 %v2359, %v2551
      %v2553 = vpop.f32.mrb[0].mxu0
      %v2554 = vadd.f32 %v2361, %v2553
      %v2555 = vpop.f32.mrb[0].mxu0
      %v2556 = vadd.f32 %v2363, %v2555
      %v2557 = vpop.f32.mrb[0].mxu0
      %v2558 = vadd.f32 %v2365, %v2557
      %2559 = vmatprep.mubr.bf16.mxu0 %v1217
      %2560 = vmatmul.mubr.bf16.gmra.mrb[0].mxu0 %v1216
      %v2561 = vpop.f32.mrb[0].mxu0
      %v2562 = vadd.f32 %v2369, %v2561
      %v2563 = vpop.f32.mrb[0].mxu0
      %v2564 = vadd.f32 %v2371, %v2563
      %v2565 = vpop.f32.mrb[0].mxu0
      %v2566 = vadd.f32 %v2373, %v2565
      %v2567 = vpop.f32.mrb[0].mxu0
      %v2568 = vadd.f32 %v2375, %v2567
      %2569 = vmatprep.mubr.bf16.mxu0 %v1227
      %2570 = vmatmul.mubr.bf16.gmra.mrb[0].mxu0 %v1226
      %v2571 = vpop.f32.mrb[0].mxu0
      %v2572 = vadd.f32 %v2379, %v2571
      %v2573 = vpop.f32.mrb[0].mxu0
      %v2574 = vadd.f32 %v2381, %v2573
      %v2575 = vpop.f32.mrb[0].mxu0
      %v2576 = vadd.f32 %v2383, %v2575
      %v2577 = vpop.f32.mrb[0].mxu0
      %v2578 = vadd.f32 %v2385, %v2577
      %2579 = vmatprep.mubr.bf16.mxu0 %v1237
      %2580 = vmatmul.mubr.bf16.gmra.mrb[0].mxu0 %v1236
      %v2581 = vpop.f32.mrb[0].mxu0
      %v2582 = vadd.f32 %v2389, %v2581
      %v2583 = vpop.f32.mrb[0].mxu0
      %v2584 = vadd.f32 %v2391, %v2583
      %v2585 = vpop.f32.mrb[0].mxu0
      %v2586 = vadd.f32 %v2393, %v2585
      %v2587 = vpop.f32.mrb[0].mxu0
      %v2588 = vadd.f32 %v2395, %v2587
      %2589 = vmatprep.mubr.bf16.mxu0 %v1247
      %2590 = vmatmul.mubr.bf16.gmra.mrb[0].mxu0 %v1246
      %v2591 = vpop.f32.mrb[0].mxu0
      %v2592 = vadd.f32 %v2399, %v2591
      %v2593 = vpop.f32.mrb[0].mxu0
      %v2594 = vadd.f32 %v2401, %v2593
      %v2595 = vpop.f32.mrb[0].mxu0
      %v2596 = vadd.f32 %v2403, %v2595
      %v2597 = vpop.f32.mrb[0].mxu0
      %v2598 = vadd.f32 %v2405, %v2597
      %2599 = vmatprep.mubr.bf16.mxu0 %v1257
      %2600 = vmatmul.mubr.bf16.gmra.mrb[0].mxu0 %v1256
      %v2601 = vpop.f32.mrb[0].mxu0
      %v2602 = vadd.f32 %v2409, %v2601
      %v2603 = vpop.f32.mrb[0].mxu0
      %v2604 = vadd.f32 %v2411, %v2603
      %v2605 = vpop.f32.mrb[0].mxu0
      %v2606 = vadd.f32 %v2413, %v2605
      %v2607 = vpop.f32.mrb[0].mxu0
      %v2608 = vadd.f32 %v2415, %v2607
      %2609 = vmatprep.mubr.bf16.mxu0 %v1267
      %2610 = vmatmul.mubr.bf16.gmra.mrb[0].mxu0 %v1266
      %v2611 = vpop.f32.mrb[0].mxu0
      %v2612 = vadd.f32 %v2419, %v2611
      %v2613 = vpop.f32.mrb[0].mxu0
      %v2614 = vadd.f32 %v2421, %v2613
      %v2615 = vpop.f32.mrb[0].mxu0
      %v2616 = vadd.f32 %v2423, %v2615
      %v2617 = vpop.f32.mrb[0].mxu0
      %v2618 = vadd.f32 %v2425, %v2617
      %2619 = vmatprep.mubr.bf16.mxu0 %v1277
      %2620 = vmatmul.mubr.bf16.gmra.mrb[0].mxu0 %v1276
      %v2621 = vpop.f32.mrb[0].mxu0
      %v2622 = vadd.f32 %v2429, %v2621
      %v2623 = vpop.f32.mrb[0].mxu0
      %v2624 = vadd.f32 %v2431, %v2623
      %v2625 = vpop.f32.mrb[0].mxu0
      %v2626 = vadd.f32 %v2433, %v2625
      %v2627 = vpop.f32.mrb[0].mxu0
      %v2628 = vadd.f32 %v2435, %v2627
      %2629 = vmatprep.mubr.bf16.mxu0 %v1287
      %2630 = vmatmul.mubr.bf16.gmra.mrb[0].mxu0 %v1286
      %v2631 = vpop.f32.mrb[0].mxu0
      %v2632 = vadd.f32 %v2439, %v2631
      %v2633 = vpop.f32.mrb[0].mxu0
      %v2634 = vadd.f32 %v2441, %v2633
      %v2635 = vpop.f32.mrb[0].mxu0
      %v2636 = vadd.f32 %v2443, %v2635
      %v2637 = vpop.f32.mrb[0].mxu0
      %v2638 = vadd.f32 %v2445, %v2637
      %2639 = vmatprep.mubr.bf16.mxu0 %v1297
      %2640 = vmatmul.mubr.bf16.gmra.mrb[0].mxu0 %v1296
      %v2641 = vpop.f32.mrb[0].mxu0
      %v2642 = vadd.f32 %v2449, %v2641
      %v2643 = vpop.f32.mrb[0].mxu0
      %v2644 = vadd.f32 %v2451, %v2643
      %v2645 = vpop.f32.mrb[0].mxu0
      %v2646 = vadd.f32 %v2453, %v2645
      %v2647 = vpop.f32.mrb[0].mxu0
      %v2648 = vadd.f32 %v2455, %v2647
      %2649 = vmatprep.mubr.bf16.mxu0 %v1307
      %2650 = vmatmul.mubr.bf16.gmra.mrb[0].mxu0 %v1306
      %v2651 = vpop.f32.mrb[0].mxu0
      %v2652 = vadd.f32 %v2459, %v2651
      %v2653 = vpop.f32.mrb[0].mxu0
      %v2654 = vadd.f32 %v2461, %v2653
      %v2655 = vpop.f32.mrb[0].mxu0
      %v2656 = vadd.f32 %v2463, %v2655
      %v2657 = vpop.f32.mrb[0].mxu0
      %v2658 = vadd.f32 %v2465, %v2657
      %2659 = vmatprep.mubr.bf16.mxu0 %v1317
      %2660 = vmatmul.mubr.bf16.gmra.mrb[0].mxu0 %v1316
      %v2661 = vpop.f32.mrb[0].mxu0
      %v2662 = vadd.f32 %v2469, %v2661
      %v2663 = vpop.f32.mrb[0].mxu0
      %v2664 = vadd.f32 %v2471, %v2663
      %v2665 = vpop.f32.mrb[0].mxu0
      %v2666 = vadd.f32 %v2473, %v2665
      %v2667 = vpop.f32.mrb[0].mxu0
      %v2668 = vadd.f32 %v2475, %v2667
      %2669 = vdwg.mxu0
      %2670 = vmatprep.subr.bf16.mxu0 %v2029
      %2671 = vmatpush1.bf16.msra.mxu0 %v2028
      %2672 = vmatprep.subr.bf16.mxu0 %v2031
      %2673 = vmatpush1.bf16.msra.mxu0 %v2030
      %2674 = vmatprep.subr.bf16.mxu0 %v2033
      %2675 = vmatpush1.bf16.msra.mxu0 %v2032
      %2676 = vmatprep.subr.bf16.mxu0 %v2035
      %2677 = vmatpush1.bf16.msra.mxu0 %v2034
      %2678 = vmatprep.subr.bf16.mxu0 %v2037
      %2679 = vmatpush1.bf16.msra.mxu0 %v2036
      %2680 = vmatprep.subr.bf16.mxu0 %v2039
      %2681 = vmatpush1.bf16.msra.mxu0 %v2038
      %2682 = vmatprep.subr.bf16.mxu0 %v2041
      %2683 = vmatpush1.bf16.msra.mxu0 %v2040
      %2684 = vmatprep.subr.bf16.mxu0 %v2043
      %2685 = vmatpush1.bf16.msra.mxu0 %v2042
      %2686 = vmatprep.subr.bf16.mxu0 %v2045
      %2687 = vmatpush1.bf16.msra.mxu0 %v2044
      %2688 = vmatprep.subr.bf16.mxu0 %v2047
      %2689 = vmatpush1.bf16.msra.mxu0 %v2046
      %2690 = vmatprep.subr.bf16.mxu0 %v2049
      %2691 = vmatpush1.bf16.msra.mxu0 %v2048
      %2692 = vmatprep.subr.bf16.mxu0 %v2051
      %2693 = vmatpush1.bf16.msra.mxu0 %v2050
      %2694 = vmatprep.subr.bf16.mxu0 %v2053
      %2695 = vmatpush1.bf16.msra.mxu0 %v2052
      %2696 = vmatprep.subr.bf16.mxu0 %v2055
      %2697 = vmatpush1.bf16.msra.mxu0 %v2054
      %2698 = vmatprep.subr.bf16.mxu0 %v2057
      %2699 = vmatpush1.bf16.msra.mxu0 %v2056
      %2700 = vmatprep.subr.bf16.mxu0 %v2059
      %2701 = vmatpush1.bf16.msra.mxu0 %v2058
      %2702 = vmatprep.mubr.bf16.mxu0 %v1169
      %2703 = vmatmul.mubr.bf16.gmra.mrb[0].mxu0 %v1168
      %v2704 = vpop.f32.mrb[0].mxu0
      %v2705 = vadd.f32 %v2512, %v2704
      %v2706 = vpop.f32.mrb[0].mxu0
      %v2707 = vadd.f32 %v2514, %v2706
      %v2708 = vpop.f32.mrb[0].mxu0
      %v2709 = vadd.f32 %v2516, %v2708
      %v2710 = vpop.f32.mrb[0].mxu0
      %v2711 = vadd.f32 %v2518, %v2710
      %2712 = vmatprep.mubr.bf16.mxu0 %v1179
      %2713 = vmatmul.mubr.bf16.gmra.mrb[0].mxu0 %v1178
      %v2714 = vpop.f32.mrb[0].mxu0
      %v2715 = vadd.f32 %v2522, %v2714
      %v2716 = vpop.f32.mrb[0].mxu0
      %v2717 = vadd.f32 %v2524, %v2716
      %v2718 = vpop.f32.mrb[0].mxu0
      %v2719 = vadd.f32 %v2526, %v2718
      %v2720 = vpop.f32.mrb[0].mxu0
      %v2721 = vadd.f32 %v2528, %v2720
      %2722 = vmatprep.mubr.bf16.mxu0 %v1189
      %2723 = vmatmul.mubr.bf16.gmra.mrb[0].mxu0 %v1188
      %v2724 = vpop.f32.mrb[0].mxu0
      %v2725 = vadd.f32 %v2532, %v2724
      %v2726 = vpop.f32.mrb[0].mxu0
      %v2727 = vadd.f32 %v2534, %v2726
      %v2728 = vpop.f32.mrb[0].mxu0
      %v2729 = vadd.f32 %v2536, %v2728
      %v2730 = vpop.f32.mrb[0].mxu0
      %v2731 = vadd.f32 %v2538, %v2730
      %2732 = vmatprep.mubr.bf16.mxu0 %v1199
      %2733 = vmatmul.mubr.bf16.gmra.mrb[0].mxu0 %v1198
      %v2734 = vpop.f32.mrb[0].mxu0
      %v2735 = vadd.f32 %v2542, %v2734
      %v2736 = vpop.f32.mrb[0].mxu0
      %v2737 = vadd.f32 %v2544, %v2736
      %v2738 = vpop.f32.mrb[0].mxu0
      %v2739 = vadd.f32 %v2546, %v2738
      %v2740 = vpop.f32.mrb[0].mxu0
      %v2741 = vadd.f32 %v2548, %v2740
      %2742 = vmatprep.mubr.bf16.mxu0 %v1209
      %2743 = vmatmul.mubr.bf16.gmra.mrb[0].mxu0 %v1208
      %v2744 = vpop.f32.mrb[0].mxu0
      %v2745 = vadd.f32 %v2552, %v2744
      %v2746 = vpop.f32.mrb[0].mxu0
      %v2747 = vadd.f32 %v2554, %v2746
      %v2748 = vpop.f32.mrb[0].mxu0
      %v2749 = vadd.f32 %v2556, %v2748
      %v2750 = vpop.f32.mrb[0].mxu0
      %v2751 = vadd.f32 %v2558, %v2750
      %2752 = vmatprep.mubr.bf16.mxu0 %v1219
      %2753 = vmatmul.mubr.bf16.gmra.mrb[0].mxu0 %v1218
      %v2754 = vpop.f32.mrb[0].mxu0
      %v2755 = vadd.f32 %v2562, %v2754
      %v2756 = vpop.f32.mrb[0].mxu0
      %v2757 = vadd.f32 %v2564, %v2756
      %v2758 = vpop.f32.mrb[0].mxu0
      %v2759 = vadd.f32 %v2566, %v2758
      %v2760 = vpop.f32.mrb[0].mxu0
      %v2761 = vadd.f32 %v2568, %v2760
      %2762 = vmatprep.mubr.bf16.mxu0 %v1229
      %2763 = vmatmul.mubr.bf16.gmra.mrb[0].mxu0 %v1228
      %v2764 = vpop.f32.mrb[0].mxu0
      %v2765 = vadd.f32 %v2572, %v2764
      %v2766 = vpop.f32.mrb[0].mxu0
      %v2767 = vadd.f32 %v2574, %v2766
      %v2768 = vpop.f32.mrb[0].mxu0
      %v2769 = vadd.f32 %v2576, %v2768
      %v2770 = vpop.f32.mrb[0].mxu0
      %v2771 = vadd.f32 %v2578, %v2770
      %2772 = vmatprep.mubr.bf16.mxu0 %v1239
      %2773 = vmatmul.mubr.bf16.gmra.mrb[0].mxu0 %v1238
      %v2774 = vpop.f32.mrb[0].mxu0
      %v2775 = vadd.f32 %v2582, %v2774
      %v2776 = vpop.f32.mrb[0].mxu0
      %v2777 = vadd.f32 %v2584, %v2776
      %v2778 = vpop.f32.mrb[0].mxu0
      %v2779 = vadd.f32 %v2586, %v2778
      %v2780 = vpop.f32.mrb[0].mxu0
      %v2781 = vadd.f32 %v2588, %v2780
      %2782 = vmatprep.mubr.bf16.mxu0 %v1249
      %2783 = vmatmul.mubr.bf16.gmra.mrb[0].mxu0 %v1248
      %v2784 = vpop.f32.mrb[0].mxu0
      %v2785 = vadd.f32 %v2592, %v2784
      %v2786 = vpop.f32.mrb[0].mxu0
      %v2787 = vadd.f32 %v2594, %v2786
      %v2788 = vpop.f32.mrb[0].mxu0
      %v2789 = vadd.f32 %v2596, %v2788
      %v2790 = vpop.f32.mrb[0].mxu0
      %v2791 = vadd.f32 %v2598, %v2790
      %2792 = vmatprep.mubr.bf16.mxu0 %v1259
      %2793 = vmatmul.mubr.bf16.gmra.mrb[0].mxu0 %v1258
      %v2794 = vpop.f32.mrb[0].mxu0
      %v2795 = vadd.f32 %v2602, %v2794
      %v2796 = vpop.f32.mrb[0].mxu0
      %v2797 = vadd.f32 %v2604, %v2796
      %v2798 = vpop.f32.mrb[0].mxu0
      %v2799 = vadd.f32 %v2606, %v2798
      %v2800 = vpop.f32.mrb[0].mxu0
      %v2801 = vadd.f32 %v2608, %v2800
      %2802 = vmatprep.mubr.bf16.mxu0 %v1269
      %2803 = vmatmul.mubr.bf16.gmra.mrb[0].mxu0 %v1268
      %v2804 = vpop.f32.mrb[0].mxu0
      %v2805 = vadd.f32 %v2612, %v2804
      %v2806 = vpop.f32.mrb[0].mxu0
      %v2807 = vadd.f32 %v2614, %v2806
      %v2808 = vpop.f32.mrb[0].mxu0
      %v2809 = vadd.f32 %v2616, %v2808
      %v2810 = vpop.f32.mrb[0].mxu0
      %v2811 = vadd.f32 %v2618, %v2810
      %2812 = vmatprep.mubr.bf16.mxu0 %v1279
      %2813 = vmatmul.mubr.bf16.gmra.mrb[0].mxu0 %v1278
      %v2814 = vpop.f32.mrb[0].mxu0
      %v2815 = vadd.f32 %v2622, %v2814
      %v2816 = vpop.f32.mrb[0].mxu0
      %v2817 = vadd.f32 %v2624, %v2816
      %v2818 = vpop.f32.mrb[0].mxu0
      %v2819 = vadd.f32 %v2626, %v2818
      %v2820 = vpop.f32.mrb[0].mxu0
      %v2821 = vadd.f32 %v2628, %v2820
      %2822 = vmatprep.mubr.bf16.mxu0 %v1289
      %2823 = vmatmul.mubr.bf16.gmra.mrb[0].mxu0 %v1288
      %v2824 = vpop.f32.mrb[0].mxu0
      %v2825 = vadd.f32 %v2632, %v2824
      %v2826 = vpop.f32.mrb[0].mxu0
      %v2827 = vadd.f32 %v2634, %v2826
      %v2828 = vpop.f32.mrb[0].mxu0
      %v2829 = vadd.f32 %v2636, %v2828
      %v2830 = vpop.f32.mrb[0].mxu0
      %v2831 = vadd.f32 %v2638, %v2830
      %2832 = vmatprep.mubr.bf16.mxu0 %v1299
      %2833 = vmatmul.mubr.bf16.gmra.mrb[0].mxu0 %v1298
      %v2834 = vpop.f32.mrb[0].mxu0
      %v2835 = vadd.f32 %v2642, %v2834
      %v2836 = vpop.f32.mrb[0].mxu0
      %v2837 = vadd.f32 %v2644, %v2836
      %v2838 = vpop.f32.mrb[0].mxu0
      %v2839 = vadd.f32 %v2646, %v2838
      %v2840 = vpop.f32.mrb[0].mxu0
      %v2841 = vadd.f32 %v2648, %v2840
      %2842 = vmatprep.mubr.bf16.mxu0 %v1309
      %2843 = vmatmul.mubr.bf16.gmra.mrb[0].mxu0 %v1308
      %v2844 = vpop.f32.mrb[0].mxu0
      %v2845 = vadd.f32 %v2652, %v2844
      %v2846 = vpop.f32.mrb[0].mxu0
      %v2847 = vadd.f32 %v2654, %v2846
      %v2848 = vpop.f32.mrb[0].mxu0
      %v2849 = vadd.f32 %v2656, %v2848
      %v2850 = vpop.f32.mrb[0].mxu0
      %v2851 = vadd.f32 %v2658, %v2850
      %2852 = vmatprep.mubr.bf16.mxu0 %v1319
      %2853 = vmatmul.mubr.bf16.gmra.mrb[0].mxu0 %v1318
      %v2854 = vpop.f32.mrb[0].mxu0
      %v2855 = vadd.f32 %v2662, %v2854
      %v2856 = vpop.f32.mrb[0].mxu0
      %v2857 = vadd.f32 %v2664, %v2856
      %v2858 = vpop.f32.mrb[0].mxu0
      %v2859 = vadd.f32 %v2666, %v2858
      %v2860 = vpop.f32.mrb[0].mxu0
      %v2861 = vadd.f32 %v2668, %v2860
      %2862 = vdwg.mxu0
      %2863 = vmatprep.subr.bf16.mxu0 %v2061
      %2864 = vmatpush1.bf16.msra.mxu0 %v2060
      %2865 = vmatprep.subr.bf16.mxu0 %v2063
      %2866 = vmatpush1.bf16.msra.mxu0 %v2062
      %2867 = vmatprep.subr.bf16.mxu0 %v2065
      %2868 = vmatpush1.bf16.msra.mxu0 %v2064
      %2869 = vmatprep.subr.bf16.mxu0 %v2067
      %2870 = vmatpush1.bf16.msra.mxu0 %v2066
      %2871 = vmatprep.subr.bf16.mxu0 %v2069
      %2872 = vmatpush1.bf16.msra.mxu0 %v2068
      %2873 = vmatprep.subr.bf16.mxu0 %v2071
      %2874 = vmatpush1.bf16.msra.mxu0 %v2070
      %2875 = vmatprep.subr.bf16.mxu0 %v2073
      %2876 = vmatpush1.bf16.msra.mxu0 %v2072
      %2877 = vmatprep.subr.bf16.mxu0 %v2075
      %2878 = vmatpush1.bf16.msra.mxu0 %v2074
      %2879 = vmatprep.subr.bf16.mxu0 %v2077
      %2880 = vmatpush1.bf16.msra.mxu0 %v2076
      %2881 = vmatprep.subr.bf16.mxu0 %v2079
      %2882 = vmatpush1.bf16.msra.mxu0 %v2078
      %2883 = vmatprep.subr.bf16.mxu0 %v2081
      %2884 = vmatpush1.bf16.msra.mxu0 %v2080
      %2885 = vmatprep.subr.bf16.mxu0 %v2083
      %2886 = vmatpush1.bf16.msra.mxu0 %v2082
      %2887 = vmatprep.subr.bf16.mxu0 %v2085
      %2888 = vmatpush1.bf16.msra.mxu0 %v2084
      %2889 = vmatprep.subr.bf16.mxu0 %v2087
      %2890 = vmatpush1.bf16.msra.mxu0 %v2086
      %2891 = vmatprep.subr.bf16.mxu0 %v2089
      %2892 = vmatpush1.bf16.msra.mxu0 %v2088
      %2893 = vmatprep.subr.bf16.mxu0 %v2091
      %2894 = vmatpush1.bf16.msra.mxu0 %v2090
      %2895 = vmatprep.mubr.bf16.mxu0 %v1171
      %2896 = vmatmul.mubr.bf16.gmra.mrb[0].mxu0 %v1170
      %v2897 = vpop.f32.mrb[0].mxu0
      %v2898 = vadd.f32 %v2705, %v2897
      %v2899 = vpop.f32.mrb[0].mxu0
      %v2900 = vadd.f32 %v2707, %v2899
      %v2901 = vpop.f32.mrb[0].mxu0
      %v2902 = vadd.f32 %v2709, %v2901
      %v2903 = vpop.f32.mrb[0].mxu0
      %v2904 = vadd.f32 %v2711, %v2903
      %2905 = vmatprep.mubr.bf16.mxu0 %v1181
      %2906 = vmatmul.mubr.bf16.gmra.mrb[0].mxu0 %v1180
      %v2907 = vpop.f32.mrb[0].mxu0
      %v2908 = vadd.f32 %v2715, %v2907
      %v2909 = vpop.f32.mrb[0].mxu0
      %v2910 = vadd.f32 %v2717, %v2909
      %v2911 = vpop.f32.mrb[0].mxu0
      %v2912 = vadd.f32 %v2719, %v2911
      %v2913 = vpop.f32.mrb[0].mxu0
      %v2914 = vadd.f32 %v2721, %v2913
      %2915 = vmatprep.mubr.bf16.mxu0 %v1191
      %2916 = vmatmul.mubr.bf16.gmra.mrb[0].mxu0 %v1190
      %v2917 = vpop.f32.mrb[0].mxu0
      %v2918 = vadd.f32 %v2725, %v2917
      %v2919 = vpop.f32.mrb[0].mxu0
      %v2920 = vadd.f32 %v2727, %v2919
      %v2921 = vpop.f32.mrb[0].mxu0
      %v2922 = vadd.f32 %v2729, %v2921
      %v2923 = vpop.f32.mrb[0].mxu0
      %v2924 = vadd.f32 %v2731, %v2923
      %2925 = vmatprep.mubr.bf16.mxu0 %v1201
      %2926 = vmatmul.mubr.bf16.gmra.mrb[0].mxu0 %v1200
      %v2927 = vpop.f32.mrb[0].mxu0
      %v2928 = vadd.f32 %v2735, %v2927
      %v2929 = vpop.f32.mrb[0].mxu0
      %v2930 = vadd.f32 %v2737, %v2929
      %v2931 = vpop.f32.mrb[0].mxu0
      %v2932 = vadd.f32 %v2739, %v2931
      %v2933 = vpop.f32.mrb[0].mxu0
      %v2934 = vadd.f32 %v2741, %v2933
      %2935 = vmatprep.mubr.bf16.mxu0 %v1211
      %2936 = vmatmul.mubr.bf16.gmra.mrb[0].mxu0 %v1210
      %v2937 = vpop.f32.mrb[0].mxu0
      %v2938 = vadd.f32 %v2745, %v2937
      %v2939 = vpop.f32.mrb[0].mxu0
      %v2940 = vadd.f32 %v2747, %v2939
      %v2941 = vpop.f32.mrb[0].mxu0
      %v2942 = vadd.f32 %v2749, %v2941
      %v2943 = vpop.f32.mrb[0].mxu0
      %v2944 = vadd.f32 %v2751, %v2943
      %2945 = vmatprep.mubr.bf16.mxu0 %v1221
      %2946 = vmatmul.mubr.bf16.gmra.mrb[0].mxu0 %v1220
      %v2947 = vpop.f32.mrb[0].mxu0
      %v2948 = vadd.f32 %v2755, %v2947
      %v2949 = vpop.f32.mrb[0].mxu0
      %v2950 = vadd.f32 %v2757, %v2949
      %v2951 = vpop.f32.mrb[0].mxu0
      %v2952 = vadd.f32 %v2759, %v2951
      %v2953 = vpop.f32.mrb[0].mxu0
      %v2954 = vadd.f32 %v2761, %v2953
      %2955 = vmatprep.mubr.bf16.mxu0 %v1231
      %2956 = vmatmul.mubr.bf16.gmra.mrb[0].mxu0 %v1230
      %v2957 = vpop.f32.mrb[0].mxu0
      %v2958 = vadd.f32 %v2765, %v2957
      %v2959 = vpop.f32.mrb[0].mxu0
      %v2960 = vadd.f32 %v2767, %v2959
      %v2961 = vpop.f32.mrb[0].mxu0
      %v2962 = vadd.f32 %v2769, %v2961
      %v2963 = vpop.f32.mrb[0].mxu0
      %v2964 = vadd.f32 %v2771, %v2963
      %2965 = vmatprep.mubr.bf16.mxu0 %v1241
      %2966 = vmatmul.mubr.bf16.gmra.mrb[0].mxu0 %v1240
      %v2967 = vpop.f32.mrb[0].mxu0
      %v2968 = vadd.f32 %v2775, %v2967
      %v2969 = vpop.f32.mrb[0].mxu0
      %v2970 = vadd.f32 %v2777, %v2969
      %v2971 = vpop.f32.mrb[0].mxu0
      %v2972 = vadd.f32 %v2779, %v2971
      %v2973 = vpop.f32.mrb[0].mxu0
      %v2974 = vadd.f32 %v2781, %v2973
      %2975 = vmatprep.mubr.bf16.mxu0 %v1251
      %2976 = vmatmul.mubr.bf16.gmra.mrb[0].mxu0 %v1250
      %v2977 = vpop.f32.mrb[0].mxu0
      %v2978 = vadd.f32 %v2785, %v2977
      %v2979 = vpop.f32.mrb[0].mxu0
      %v2980 = vadd.f32 %v2787, %v2979
      %v2981 = vpop.f32.mrb[0].mxu0
      %v2982 = vadd.f32 %v2789, %v2981
      %v2983 = vpop.f32.mrb[0].mxu0
      %v2984 = vadd.f32 %v2791, %v2983
      %2985 = vmatprep.mubr.bf16.mxu0 %v1261
      %2986 = vmatmul.mubr.bf16.gmra.mrb[0].mxu0 %v1260
      %v2987 = vpop.f32.mrb[0].mxu0
      %v2988 = vadd.f32 %v2795, %v2987
      %v2989 = vpop.f32.mrb[0].mxu0
      %v2990 = vadd.f32 %v2797, %v2989
      %v2991 = vpop.f32.mrb[0].mxu0
      %v2992 = vadd.f32 %v2799, %v2991
      %v2993 = vpop.f32.mrb[0].mxu0
      %v2994 = vadd.f32 %v2801, %v2993
      %2995 = vmatprep.mubr.bf16.mxu0 %v1271
      %2996 = vmatmul.mubr.bf16.gmra.mrb[0].mxu0 %v1270
      %v2997 = vpop.f32.mrb[0].mxu0
      %v2998 = vadd.f32 %v2805, %v2997
      %v2999 = vpop.f32.mrb[0].mxu0
      %v3000 = vadd.f32 %v2807, %v2999
      %v3001 = vpop.f32.mrb[0].mxu0
      %v3002 = vadd.f32 %v2809, %v3001
      %v3003 = vpop.f32.mrb[0].mxu0
      %v3004 = vadd.f32 %v2811, %v3003
      %3005 = vmatprep.mubr.bf16.mxu0 %v1281
      %3006 = vmatmul.mubr.bf16.gmra.mrb[0].mxu0 %v1280
      %v3007 = vpop.f32.mrb[0].mxu0
      %v3008 = vadd.f32 %v2815, %v3007
      %v3009 = vpop.f32.mrb[0].mxu0
      %v3010 = vadd.f32 %v2817, %v3009
      %v3011 = vpop.f32.mrb[0].mxu0
      %v3012 = vadd.f32 %v2819, %v3011
      %v3013 = vpop.f32.mrb[0].mxu0
      %v3014 = vadd.f32 %v2821, %v3013
      %3015 = vmatprep.mubr.bf16.mxu0 %v1291
      %3016 = vmatmul.mubr.bf16.gmra.mrb[0].mxu0 %v1290
      %v3017 = vpop.f32.mrb[0].mxu0
      %v3018 = vadd.f32 %v2825, %v3017
      %v3019 = vpop.f32.mrb[0].mxu0
      %v3020 = vadd.f32 %v2827, %v3019
      %v3021 = vpop.f32.mrb[0].mxu0
      %v3022 = vadd.f32 %v2829, %v3021
      %v3023 = vpop.f32.mrb[0].mxu0
      %v3024 = vadd.f32 %v2831, %v3023
      %3025 = vmatprep.mubr.bf16.mxu0 %v1301
      %3026 = vmatmul.mubr.bf16.gmra.mrb[0].mxu0 %v1300
      %v3027 = vpop.f32.mrb[0].mxu0
      %v3028 = vadd.f32 %v2835, %v3027
      %v3029 = vpop.f32.mrb[0].mxu0
      %v3030 = vadd.f32 %v2837, %v3029
      %v3031 = vpop.f32.mrb[0].mxu0
      %v3032 = vadd.f32 %v2839, %v3031
      %v3033 = vpop.f32.mrb[0].mxu0
      %v3034 = vadd.f32 %v2841, %v3033
      %3035 = vmatprep.mubr.bf16.mxu0 %v1311
      %3036 = vmatmul.mubr.bf16.gmra.mrb[0].mxu0 %v1310
      %v3037 = vpop.f32.mrb[0].mxu0
      %v3038 = vadd.f32 %v2845, %v3037
      %v3039 = vpop.f32.mrb[0].mxu0
      %v3040 = vadd.f32 %v2847, %v3039
      %v3041 = vpop.f32.mrb[0].mxu0
      %v3042 = vadd.f32 %v2849, %v3041
      %v3043 = vpop.f32.mrb[0].mxu0
      %v3044 = vadd.f32 %v2851, %v3043
      %3045 = vmatprep.mubr.bf16.mxu0 %v1321
      %3046 = vmatmul.mubr.bf16.gmra.mrb[0].mxu0 %v1320
      %v3047 = vpop.f32.mrb[0].mxu0
      %v3048 = vadd.f32 %v2855, %v3047
      %v3049 = vpop.f32.mrb[0].mxu0
      %v3050 = vadd.f32 %v2857, %v3049
      %v3051 = vpop.f32.mrb[0].mxu0
      %v3052 = vadd.f32 %v2859, %v3051
      %v3053 = vpop.f32.mrb[0].mxu0
      %v3054 = vadd.f32 %v2861, %v3053
      %3055 = vdwg.mxu0
      %3056 = vmatprep.subr.bf16.mxu0 %v2093
      %3057 = vmatpush1.bf16.msra.mxu0 %v2092
      %3058 = vmatprep.subr.bf16.mxu0 %v2095
      %3059 = vmatpush1.bf16.msra.mxu0 %v2094
      %3060 = vmatprep.subr.bf16.mxu0 %v2097
      %3061 = vmatpush1.bf16.msra.mxu0 %v2096
      %3062 = vmatprep.subr.bf16.mxu0 %v2099
      %3063 = vmatpush1.bf16.msra.mxu0 %v2098
      %3064 = vmatprep.subr.bf16.mxu0 %v2101
      %3065 = vmatpush1.bf16.msra.mxu0 %v2100
      %3066 = vmatprep.subr.bf16.mxu0 %v2103
      %3067 = vmatpush1.bf16.msra.mxu0 %v2102
      %3068 = vmatprep.subr.bf16.mxu0 %v2105
      %3069 = vmatpush1.bf16.msra.mxu0 %v2104
      %3070 = vmatprep.subr.bf16.mxu0 %v2107
      %3071 = vmatpush1.bf16.msra.mxu0 %v2106
      %3072 = vmatprep.subr.bf16.mxu0 %v2109
      %3073 = vmatpush1.bf16.msra.mxu0 %v2108
      %3074 = vmatprep.subr.bf16.mxu0 %v2111
      %3075 = vmatpush1.bf16.msra.mxu0 %v2110
      %3076 = vmatprep.subr.bf16.mxu0 %v2113
      %3077 = vmatpush1.bf16.msra.mxu0 %v2112
      %3078 = vmatprep.subr.bf16.mxu0 %v2115
      %3079 = vmatpush1.bf16.msra.mxu0 %v2114
      %3080 = vmatprep.subr.bf16.mxu0 %v2117
      %3081 = vmatpush1.bf16.msra.mxu0 %v2116
      %3082 = vmatprep.subr.bf16.mxu0 %v2119
      %3083 = vmatpush1.bf16.msra.mxu0 %v2118
      %3084 = vmatprep.subr.bf16.mxu0 %v2121
      %3085 = vmatpush1.bf16.msra.mxu0 %v2120
      %3086 = vmatprep.subr.bf16.mxu0 %v2123
      %3087 = vmatpush1.bf16.msra.mxu0 %v2122
      %3088 = vmatprep.mubr.bf16.mxu0 %v1173
      %3089 = vmatmul.mubr.bf16.gmra.mrb[0].mxu0 %v1172
      %v3090 = vpop.f32.mrb[0].mxu0
      %v3091 = vadd.f32 %v2898, %v3090
      %v3092 = vpop.f32.mrb[0].mxu0
      %v3093 = vadd.f32 %v2900, %v3092
      %v3094 = vpop.f32.mrb[0].mxu0
      %v3095 = vadd.f32 %v2902, %v3094
      %v3096 = vpop.f32.mrb[0].mxu0
      %v3097 = vadd.f32 %v2904, %v3096
      %3098 = vmatprep.mubr.bf16.mxu0 %v1183
      %3099 = vmatmul.mubr.bf16.gmra.mrb[0].mxu0 %v1182
      %v3100 = vpop.f32.mrb[0].mxu0
      %v3101 = vadd.f32 %v2908, %v3100
      %v3102 = vpop.f32.mrb[0].mxu0
      %v3103 = vadd.f32 %v2910, %v3102
      %v3104 = vpop.f32.mrb[0].mxu0
      %v3105 = vadd.f32 %v2912, %v3104
      %v3106 = vpop.f32.mrb[0].mxu0
      %v3107 = vadd.f32 %v2914, %v3106
      %3108 = vmatprep.mubr.bf16.mxu0 %v1193
      %3109 = vmatmul.mubr.bf16.gmra.mrb[0].mxu0 %v1192
      %v3110 = vpop.f32.mrb[0].mxu0
      %v3111 = vadd.f32 %v2918, %v3110
      %v3112 = vpop.f32.mrb[0].mxu0
      %v3113 = vadd.f32 %v2920, %v3112
      %v3114 = vpop.f32.mrb[0].mxu0
      %v3115 = vadd.f32 %v2922, %v3114
      %v3116 = vpop.f32.mrb[0].mxu0
      %v3117 = vadd.f32 %v2924, %v3116
      %3118 = vmatprep.mubr.bf16.mxu0 %v1203
      %3119 = vmatmul.mubr.bf16.gmra.mrb[0].mxu0 %v1202
      %v3120 = vpop.f32.mrb[0].mxu0
      %v3121 = vadd.f32 %v2928, %v3120
      %v3122 = vpop.f32.mrb[0].mxu0
      %v3123 = vadd.f32 %v2930, %v3122
      %v3124 = vpop.f32.mrb[0].mxu0
      %v3125 = vadd.f32 %v2932, %v3124
      %v3126 = vpop.f32.mrb[0].mxu0
      %v3127 = vadd.f32 %v2934, %v3126
      %3128 = vmatprep.mubr.bf16.mxu0 %v1213
      %3129 = vmatmul.mubr.bf16.gmra.mrb[0].mxu0 %v1212
      %v3130 = vpop.f32.mrb[0].mxu0
      %v3131 = vadd.f32 %v2938, %v3130
      %v3132 = vpop.f32.mrb[0].mxu0
      %v3133 = vadd.f32 %v2940, %v3132
      %v3134 = vpop.f32.mrb[0].mxu0
      %v3135 = vadd.f32 %v2942, %v3134
      %v3136 = vpop.f32.mrb[0].mxu0
      %v3137 = vadd.f32 %v2944, %v3136
      %3138 = vmatprep.mubr.bf16.mxu0 %v1223
      %3139 = vmatmul.mubr.bf16.gmra.mrb[0].mxu0 %v1222
      %v3140 = vpop.f32.mrb[0].mxu0
      %v3141 = vadd.f32 %v2948, %v3140
      %v3142 = vpop.f32.mrb[0].mxu0
      %v3143 = vadd.f32 %v2950, %v3142
      %v3144 = vpop.f32.mrb[0].mxu0
      %v3145 = vadd.f32 %v2952, %v3144
      %v3146 = vpop.f32.mrb[0].mxu0
      %v3147 = vadd.f32 %v2954, %v3146
      %3148 = vmatprep.mubr.bf16.mxu0 %v1233
      %3149 = vmatmul.mubr.bf16.gmra.mrb[0].mxu0 %v1232
      %v3150 = vpop.f32.mrb[0].mxu0
      %v3151 = vadd.f32 %v2958, %v3150
      %v3152 = vpop.f32.mrb[0].mxu0
      %v3153 = vadd.f32 %v2960, %v3152
      %v3154 = vpop.f32.mrb[0].mxu0
      %v3155 = vadd.f32 %v2962, %v3154
      %v3156 = vpop.f32.mrb[0].mxu0
      %v3157 = vadd.f32 %v2964, %v3156
      %3158 = vmatprep.mubr.bf16.mxu0 %v1243
      %3159 = vmatmul.mubr.bf16.gmra.mrb[0].mxu0 %v1242
      %v3160 = vpop.f32.mrb[0].mxu0
      %v3161 = vadd.f32 %v2968, %v3160
      %v3162 = vpop.f32.mrb[0].mxu0
      %v3163 = vadd.f32 %v2970, %v3162
      %v3164 = vpop.f32.mrb[0].mxu0
      %v3165 = vadd.f32 %v2972, %v3164
      %v3166 = vpop.f32.mrb[0].mxu0
      %v3167 = vadd.f32 %v2974, %v3166
      %3168 = vmatprep.mubr.bf16.mxu0 %v1253
      %3169 = vmatmul.mubr.bf16.gmra.mrb[0].mxu0 %v1252
      %v3170 = vpop.f32.mrb[0].mxu0
      %v3171 = vadd.f32 %v2978, %v3170
      %v3172 = vpop.f32.mrb[0].mxu0
      %v3173 = vadd.f32 %v2980, %v3172
      %v3174 = vpop.f32.mrb[0].mxu0
      %v3175 = vadd.f32 %v2982, %v3174
      %v3176 = vpop.f32.mrb[0].mxu0
      %v3177 = vadd.f32 %v2984, %v3176
      %3178 = vmatprep.mubr.bf16.mxu0 %v1263
      %3179 = vmatmul.mubr.bf16.gmra.mrb[0].mxu0 %v1262
      %v3180 = vpop.f32.mrb[0].mxu0
      %v3181 = vadd.f32 %v2988, %v3180
      %v3182 = vpop.f32.mrb[0].mxu0
      %v3183 = vadd.f32 %v2990, %v3182
      %v3184 = vpop.f32.mrb[0].mxu0
      %v3185 = vadd.f32 %v2992, %v3184
      %v3186 = vpop.f32.mrb[0].mxu0
      %v3187 = vadd.f32 %v2994, %v3186
      %3188 = vmatprep.mubr.bf16.mxu0 %v1273
      %3189 = vmatmul.mubr.bf16.gmra.mrb[0].mxu0 %v1272
      %v3190 = vpop.f32.mrb[0].mxu0
      %v3191 = vadd.f32 %v2998, %v3190
      %v3192 = vpop.f32.mrb[0].mxu0
      %v3193 = vadd.f32 %v3000, %v3192
      %v3194 = vpop.f32.mrb[0].mxu0
      %v3195 = vadd.f32 %v3002, %v3194
      %v3196 = vpop.f32.mrb[0].mxu0
      %v3197 = vadd.f32 %v3004, %v3196
      %3198 = vmatprep.mubr.bf16.mxu0 %v1283
      %3199 = vmatmul.mubr.bf16.gmra.mrb[0].mxu0 %v1282
      %v3200 = vpop.f32.mrb[0].mxu0
      %v3201 = vadd.f32 %v3008, %v3200
      %v3202 = vpop.f32.mrb[0].mxu0
      %v3203 = vadd.f32 %v3010, %v3202
      %v3204 = vpop.f32.mrb[0].mxu0
      %v3205 = vadd.f32 %v3012, %v3204
      %v3206 = vpop.f32.mrb[0].mxu0
      %v3207 = vadd.f32 %v3014, %v3206
      %3208 = vmatprep.mubr.bf16.mxu0 %v1293
      %3209 = vmatmul.mubr.bf16.gmra.mrb[0].mxu0 %v1292
      %v3210 = vpop.f32.mrb[0].mxu0
      %v3211 = vadd.f32 %v3018, %v3210
      %v3212 = vpop.f32.mrb[0].mxu0
      %v3213 = vadd.f32 %v3020, %v3212
      %v3214 = vpop.f32.mrb[0].mxu0
      %v3215 = vadd.f32 %v3022, %v3214
      %v3216 = vpop.f32.mrb[0].mxu0
      %v3217 = vadd.f32 %v3024, %v3216
      %3218 = vmatprep.mubr.bf16.mxu0 %v1303
      %3219 = vmatmul.mubr.bf16.gmra.mrb[0].mxu0 %v1302
      %v3220 = vpop.f32.mrb[0].mxu0
      %v3221 = vadd.f32 %v3028, %v3220
      %v3222 = vpop.f32.mrb[0].mxu0
      %v3223 = vadd.f32 %v3030, %v3222
      %v3224 = vpop.f32.mrb[0].mxu0
      %v3225 = vadd.f32 %v3032, %v3224
      %v3226 = vpop.f32.mrb[0].mxu0
      %v3227 = vadd.f32 %v3034, %v3226
      %3228 = vmatprep.mubr.bf16.mxu0 %v1313
      %3229 = vmatmul.mubr.bf16.gmra.mrb[0].mxu0 %v1312
      %v3230 = vpop.f32.mrb[0].mxu0
      %v3231 = vadd.f32 %v3038, %v3230
      %v3232 = vpop.f32.mrb[0].mxu0
      %v3233 = vadd.f32 %v3040, %v3232
      %v3234 = vpop.f32.mrb[0].mxu0
      %v3235 = vadd.f32 %v3042, %v3234
      %v3236 = vpop.f32.mrb[0].mxu0
      %v3237 = vadd.f32 %v3044, %v3236
      %3238 = vmatprep.mubr.bf16.mxu0 %v1323
      %3239 = vmatmul.mubr.bf16.gmra.mrb[0].mxu0 %v1322
      %v3240 = vpop.f32.mrb[0].mxu0
      %v3241 = vadd.f32 %v3048, %v3240
      %v3242 = vpop.f32.mrb[0].mxu0
      %v3243 = vadd.f32 %v3050, %v3242
      %v3244 = vpop.f32.mrb[0].mxu0
      %v3245 = vadd.f32 %v3052, %v3244
      %v3246 = vpop.f32.mrb[0].mxu0
      %v3247 = vadd.f32 %v3054, %v3246
      %3248 = vdwg.mxu0
      %v3249 = vadd.f32 %v300, %v3091
      %v3250 = vadd.f32 %v301, %v3093
      %v3251 = vadd.f32 %v302, %v3095
      %v3252 = vadd.f32 %v303, %v3097
      %v3253 = vadd.f32 %v304, %v3101
      %v3254 = vadd.f32 %v305, %v3103
      %v3255 = vadd.f32 %v306, %v3105
      %v3256 = vadd.f32 %v307, %v3107
      %v3257 = vadd.f32 %v308, %v3111
      %v3258 = vadd.f32 %v309, %v3113
      %v3259 = vadd.f32 %v310, %v3115
      %v3260 = vadd.f32 %v311, %v3117
      %v3261 = vadd.f32 %v312, %v3121
      %v3262 = vadd.f32 %v313, %v3123
      %v3263 = vadd.f32 %v314, %v3125
      %v3264 = vadd.f32 %v315, %v3127
      %v3265 = vadd.f32 %v316, %v3131
      %v3266 = vadd.f32 %v317, %v3133
      %v3267 = vadd.f32 %v318, %v3135
      %v3268 = vadd.f32 %v319, %v3137
      %v3269 = vadd.f32 %v320, %v3141
      %v3270 = vadd.f32 %v321, %v3143
      %v3271 = vadd.f32 %v322, %v3145
      %v3272 = vadd.f32 %v323, %v3147
      %v3273 = vadd.f32 %v324, %v3151
      %v3274 = vadd.f32 %v325, %v3153
      %v3275 = vadd.f32 %v326, %v3155
      %v3276 = vadd.f32 %v327, %v3157
      %v3277 = vadd.f32 %v328, %v3161
      %v3278 = vadd.f32 %v329, %v3163
      %v3279 = vadd.f32 %v330, %v3165
      %v3280 = vadd.f32 %v331, %v3167
      %v3281 = vadd.f32 %v332, %v3171
      %v3282 = vadd.f32 %v333, %v3173
      %v3283 = vadd.f32 %v334, %v3175
      %v3284 = vadd.f32 %v335, %v3177
      %v3285 = vadd.f32 %v336, %v3181
      %v3286 = vadd.f32 %v337, %v3183
      %v3287 = vadd.f32 %v338, %v3185
      %v3288 = vadd.f32 %v339, %v3187
      %v3289 = vadd.f32 %v340, %v3191
      %v3290 = vadd.f32 %v341, %v3193
      %v3291 = vadd.f32 %v342, %v3195
      %v3292 = vadd.f32 %v343, %v3197
      %v3293 = vadd.f32 %v344, %v3201
      %v3294 = vadd.f32 %v345, %v3203
      %v3295 = vadd.f32 %v346, %v3205
      %v3296 = vadd.f32 %v347, %v3207
      %v3297 = vadd.f32 %v348, %v3211
      %v3298 = vadd.f32 %v349, %v3213
      %v3299 = vadd.f32 %v350, %v3215
      %v3300 = vadd.f32 %v351, %v3217
      %v3301 = vadd.f32 %v352, %v3221
      %v3302 = vadd.f32 %v353, %v3223
      %v3303 = vadd.f32 %v354, %v3225
      %v3304 = vadd.f32 %v355, %v3227
      %v3305 = vadd.f32 %v356, %v3231
      %v3306 = vadd.f32 %v357, %v3233
      %v3307 = vadd.f32 %v358, %v3235
      %v3308 = vadd.f32 %v359, %v3237
      %v3309 = vadd.f32 %v360, %v3241
      %v3310 = vadd.f32 %v361, %v3243
      %v3311 = vadd.f32 %v362, %v3245
      %v3312 = vadd.f32 %v363, %v3247
      %3313 = vst [vmem:[%s230] sm:$0xff] %v3249
      %3314 = vst [vmem:[%s230 + $0x8] sm:$0xff] %v3250
      %3315 = vst [vmem:[%s230 + $0x10] sm:$0xff] %v3251
      %3316 = vst [vmem:[%s230 + $0x18] sm:$0xff] %v3252
      %3317 = vst [vmem:[%s230 + $0x20] sm:$0xff] %v3253
      %3318 = vst [vmem:[%s230 + $0x28] sm:$0xff] %v3254
      %3319 = vst [vmem:[%s230 + $0x30] sm:$0xff] %v3255
      %3320 = vst [vmem:[%s230 + $0x38] sm:$0xff] %v3256
      %3321 = vst [vmem:[%s230 + $0x40] sm:$0xff] %v3257
      %3322 = vst [vmem:[%s230 + $0x48] sm:$0xff] %v3258
      %3323 = vst [vmem:[%s230 + $0x50] sm:$0xff] %v3259
      %3324 = vst [vmem:[%s230 + $0x58] sm:$0xff] %v3260
      %3325 = vst [vmem:[%s230 + $0x60] sm:$0xff] %v3261
      %3326 = vst [vmem:[%s230 + $0x68] sm:$0xff] %v3262
      %3327 = vst [vmem:[%s230 + $0x70] sm:$0xff] %v3263
      %3328 = vst [vmem:[%s230 + $0x78] sm:$0xff] %v3264
      %3329 = vst [vmem:[%s230 + $0x80] sm:$0xff] %v3265
      %3330 = vst [vmem:[%s230 + $0x88] sm:$0xff] %v3266
      %3331 = vst [vmem:[%s230 + $0x90] sm:$0xff] %v3267
      %3332 = vst [vmem:[%s230 + $0x98] sm:$0xff] %v3268
      %3333 = vst [vmem:[%s230 + $0xa0] sm:$0xff] %v3269
      %3334 = vst [vmem:[%s230 + $0xa8] sm:$0xff] %v3270
      %3335 = vst [vmem:[%s230 + $0xb0] sm:$0xff] %v3271
      %3336 = vst [vmem:[%s230 + $0xb8] sm:$0xff] %v3272
      %3337 = vst [vmem:[%s230 + $0xc0] sm:$0xff] %v3273
      %3338 = vst [vmem:[%s230 + $0xc8] sm:$0xff] %v3274
      %3339 = vst [vmem:[%s230 + $0xd0] sm:$0xff] %v3275
      %3340 = vst [vmem:[%s230 + $0xd8] sm:$0xff] %v3276
      %3341 = vst [vmem:[%s230 + $0xe0] sm:$0xff] %v3277
      %3342 = vst [vmem:[%s230 + $0xe8] sm:$0xff] %v3278
      %3343 = vst [vmem:[%s230 + $0xf0] sm:$0xff] %v3279
      %3344 = vst [vmem:[%s230 + $0xf8] sm:$0xff] %v3280
      %3345 = vst [vmem:[%s230 + $0x100] sm:$0xff] %v3281
      %3346 = vst [vmem:[%s230 + $0x108] sm:$0xff] %v3282
      %3347 = vst [vmem:[%s230 + $0x110] sm:$0xff] %v3283
      %3348 = vst [vmem:[%s230 + $0x118] sm:$0xff] %v3284
      %3349 = vst [vmem:[%s230 + $0x120] sm:$0xff] %v3285
      %3350 = vst [vmem:[%s230 + $0x128] sm:$0xff] %v3286
      %3351 = vst [vmem:[%s230 + $0x130] sm:$0xff] %v3287
      %3352 = vst [vmem:[%s230 + $0x138] sm:$0xff] %v3288
      %3353 = vst [vmem:[%s230 + $0x140] sm:$0xff] %v3289
      %3354 = vst [vmem:[%s230 + $0x148] sm:$0xff] %v3290
      %3355 = vst [vmem:[%s230 + $0x150] sm:$0xff] %v3291
      %3356 = vst [vmem:[%s230 + $0x158] sm:$0xff] %v3292
      %3357 = vst [vmem:[%s230 + $0x160] sm:$0xff] %v3293
      %3358 = vst [vmem:[%s230 + $0x168] sm:$0xff] %v3294
      %3359 = vst [vmem:[%s230 + $0x170] sm:$0xff] %v3295
      %3360 = vst [vmem:[%s230 + $0x178] sm:$0xff] %v3296
      %3361 = vst [vmem:[%s230 + $0x180] sm:$0xff] %v3297
      %3362 = vst [vmem:[%s230 + $0x188] sm:$0xff] %v3298
      %3363 = vst [vmem:[%s230 + $0x190] sm:$0xff] %v3299
      %3364 = vst [vmem:[%s230 + $0x198] sm:$0xff] %v3300
      %3365 = vst [vmem:[%s230 + $0x1a0] sm:$0xff] %v3301
      %3366 = vst [vmem:[%s230 + $0x1a8] sm:$0xff] %v3302
      %3367 = vst [vmem:[%s230 + $0x1b0] sm:$0xff] %v3303
      %3368 = vst [vmem:[%s230 + $0x1b8] sm:$0xff] %v3304
      %3369 = vst [vmem:[%s230 + $0x1c0] sm:$0xff] %v3305
      %3370 = vst [vmem:[%s230 + $0x1c8] sm:$0xff] %v3306
      %3371 = vst [vmem:[%s230 + $0x1d0] sm:$0xff] %v3307
      %3372 = vst [vmem:[%s230 + $0x1d8] sm:$0xff] %v3308
      %3373 = vst [vmem:[%s230 + $0x1e0] sm:$0xff] %v3309
      %3374 = vst [vmem:[%s230 + $0x1e8] sm:$0xff] %v3310
      %3375 = vst [vmem:[%s230 + $0x1f0] sm:$0xff] %v3311
      %3376 = vst [vmem:[%s230 + $0x1f8] sm:$0xff] %v3312
      // Predicated region
      $region37: #{convnet_nin_forward.2} parent=31 // pred_check
        %p3377 = pneg %p232
      $region38: #{convnet_nin_forward.2} parent=31 // pred_check_branch
        %3379 = sbr.rel (%p3377) target = $region40
      $region39: #{convnet_nin_forward.2} parent=31 // pred_region
        %v3380 = vld [vmem:[%s2] ss:$8 sm:$0x3]
        %s3381 = scalar_lea.vmem %s2, 1
        %v3382 = vld [vmem:[%s3381] ss:$8 sm:$0x3]
        %s3383 = scalar_lea.vmem %s2, 2
        %v3384 = vld [vmem:[%s3383] ss:$8 sm:$0x3]
        %v3385 = vld [vmem:[%s230] sm:$0xff]
        %v3386 = vld [vmem:[%s230 + $0x8] sm:$0xff]
        %v3387 = vld [vmem:[%s230 + $0x10] sm:$0xff]
        %v3388 = vld [vmem:[%s230 + $0x18] sm:$0xff]
        %v3389 = vld [vmem:[%s230 + $0x20] sm:$0xff]
        %v3390 = vld [vmem:[%s230 + $0x28] sm:$0xff]
        %v3391 = vld [vmem:[%s230 + $0x30] sm:$0xff]
        %v3392 = vld [vmem:[%s230 + $0x38] sm:$0xff]
        %v3393 = vld [vmem:[%s230 + $0x40] sm:$0xff]
        %v3394 = vld [vmem:[%s230 + $0x48] sm:$0xff]
        %v3395 = vld [vmem:[%s230 + $0x50] sm:$0xff]
        %v3396 = vld [vmem:[%s230 + $0x58] sm:$0xff]
        %v3397 = vld [vmem:[%s230 + $0x60] sm:$0xff]
        %v3398 = vld [vmem:[%s230 + $0x68] sm:$0xff]
        %v3399 = vld [vmem:[%s230 + $0x70] sm:$0xff]
        %v3400 = vld [vmem:[%s230 + $0x78] sm:$0xff]
        %v3401 = vld [vmem:[%s230 + $0x80] sm:$0xff]
        %v3402 = vld [vmem:[%s230 + $0x88] sm:$0xff]
        %v3403 = vld [vmem:[%s230 + $0x90] sm:$0xff]
        %v3404 = vld [vmem:[%s230 + $0x98] sm:$0xff]
        %v3405 = vld [vmem:[%s230 + $0xa0] sm:$0xff]
        %v3406 = vld [vmem:[%s230 + $0xa8] sm:$0xff]
        %v3407 = vld [vmem:[%s230 + $0xb0] sm:$0xff]
        %v3408 = vld [vmem:[%s230 + $0xb8] sm:$0xff]
        %v3409 = vld [vmem:[%s230 + $0xc0] sm:$0xff]
        %v3410 = vld [vmem:[%s230 + $0xc8] sm:$0xff]
        %v3411 = vld [vmem:[%s230 + $0xd0] sm:$0xff]
        %v3412 = vld [vmem:[%s230 + $0xd8] sm:$0xff]
        %v3413 = vld [vmem:[%s230 + $0xe0] sm:$0xff]
        %v3414 = vld [vmem:[%s230 + $0xe8] sm:$0xff]
        %v3415 = vld [vmem:[%s230 + $0xf0] sm:$0xff]
        %v3416 = vld [vmem:[%s230 + $0xf8] sm:$0xff]
        %v3417 = vld [vmem:[%s230 + $0x100] sm:$0xff]
        %v3418 = vld [vmem:[%s230 + $0x108] sm:$0xff]
        %v3419 = vld [vmem:[%s230 + $0x110] sm:$0xff]
        %v3420 = vld [vmem:[%s230 + $0x118] sm:$0xff]
        %v3421 = vld [vmem:[%s230 + $0x120] sm:$0xff]
        %v3422 = vld [vmem:[%s230 + $0x128] sm:$0xff]
        %v3423 = vld [vmem:[%s230 + $0x130] sm:$0xff]
        %v3424 = vld [vmem:[%s230 + $0x138] sm:$0xff]
        %v3425 = vld [vmem:[%s230 + $0x140] sm:$0xff]
        %v3426 = vld [vmem:[%s230 + $0x148] sm:$0xff]
        %v3427 = vld [vmem:[%s230 + $0x150] sm:$0xff]
        %v3428 = vld [vmem:[%s230 + $0x158] sm:$0xff]
        %v3429 = vld [vmem:[%s230 + $0x160] sm:$0xff]
        %v3430 = vld [vmem:[%s230 + $0x168] sm:$0xff]
        %v3431 = vld [vmem:[%s230 + $0x170] sm:$0xff]
        %v3432 = vld [vmem:[%s230 + $0x178] sm:$0xff]
        %v3433 = vld [vmem:[%s230 + $0x180] sm:$0xff]
        %v3434 = vld [vmem:[%s230 + $0x188] sm:$0xff]
        %v3435 = vld [vmem:[%s230 + $0x190] sm:$0xff]
        %v3436 = vld [vmem:[%s230 + $0x198] sm:$0xff]
        %v3437 = vld [vmem:[%s230 + $0x1a0] sm:$0xff]
        %v3438 = vld [vmem:[%s230 + $0x1a8] sm:$0xff]
        %v3439 = vld [vmem:[%s230 + $0x1b0] sm:$0xff]
        %v3440 = vld [vmem:[%s230 + $0x1b8] sm:$0xff]
        %v3441 = vld [vmem:[%s230 + $0x1c0] sm:$0xff]
        %v3442 = vld [vmem:[%s230 + $0x1c8] sm:$0xff]
        %v3443 = vld [vmem:[%s230 + $0x1d0] sm:$0xff]
        %v3444 = vld [vmem:[%s230 + $0x1d8] sm:$0xff]
        %v3445 = vld [vmem:[%s230 + $0x1e0] sm:$0xff]
        %v3446 = vld [vmem:[%s230 + $0x1e8] sm:$0xff]
        %v3447 = vld [vmem:[%s230 + $0x1f0] sm:$0xff]
        %v3448 = vld [vmem:[%s230 + $0x1f8] sm:$0xff]
        %v3450 = vlaneseq
        %v3451 = vshrl.u32 %v3450, 7
        %v3452 = vsub.s32 0, %v3451
        %v3453 = vrot.slane %v3380, %v3452
        %v3454 = vlaneseq
        %v3455 = vshrl.u32 %v3454, 7
        %v3456 = vsub.s32 1, %v3455
        %v3457 = vrot.slane %v3380, %v3456
        %v3460 = vmul.f32 %v3385, %v3453
        %v3461 = vmul.f32 %v3386, %v3457
        %v3462 = vmul.f32 %v3387, %v3453
        %v3463 = vmul.f32 %v3388, %v3457
        %v3464 = vmul.f32 %v3389, %v3453
        %v3465 = vmul.f32 %v3390, %v3457
        %v3466 = vmul.f32 %v3391, %v3453
        %v3467 = vmul.f32 %v3392, %v3457
        %v3468 = vmul.f32 %v3393, %v3453
        %v3469 = vmul.f32 %v3394, %v3457
        %v3470 = vmul.f32 %v3395, %v3453
        %v3471 = vmul.f32 %v3396, %v3457
        %v3472 = vmul.f32 %v3397, %v3453
        %v3473 = vmul.f32 %v3398, %v3457
        %v3474 = vmul.f32 %v3399, %v3453
        %v3475 = vmul.f32 %v3400, %v3457
        %v3476 = vmul.f32 %v3401, %v3453
        %v3477 = vmul.f32 %v3402, %v3457
        %v3478 = vmul.f32 %v3403, %v3453
        %v3479 = vmul.f32 %v3404, %v3457
        %v3480 = vmul.f32 %v3405, %v3453
        %v3481 = vmul.f32 %v3406, %v3457
        %v3482 = vmul.f32 %v3407, %v3453
        %v3483 = vmul.f32 %v3408, %v3457
        %v3484 = vmul.f32 %v3409, %v3453
        %v3485 = vmul.f32 %v3410, %v3457
        %v3486 = vmul.f32 %v3411, %v3453
        %v3487 = vmul.f32 %v3412, %v3457
        %v3488 = vmul.f32 %v3413, %v3453
        %v3489 = vmul.f32 %v3414, %v3457
        %v3490 = vmul.f32 %v3415, %v3453
        %v3491 = vmul.f32 %v3416, %v3457
        %v3492 = vmul.f32 %v3417, %v3453
        %v3493 = vmul.f32 %v3418, %v3457
        %v3494 = vmul.f32 %v3419, %v3453
        %v3495 = vmul.f32 %v3420, %v3457
        %v3496 = vmul.f32 %v3421, %v3453
        %v3497 = vmul.f32 %v3422, %v3457
        %v3498 = vmul.f32 %v3423, %v3453
        %v3499 = vmul.f32 %v3424, %v3457
        %v3500 = vmul.f32 %v3425, %v3453
        %v3501 = vmul.f32 %v3426, %v3457
        %v3502 = vmul.f32 %v3427, %v3453
        %v3503 = vmul.f32 %v3428, %v3457
        %v3504 = vmul.f32 %v3429, %v3453
        %v3505 = vmul.f32 %v3430, %v3457
        %v3506 = vmul.f32 %v3431, %v3453
        %v3507 = vmul.f32 %v3432, %v3457
        %v3508 = vmul.f32 %v3433, %v3453
        %v3509 = vmul.f32 %v3434, %v3457
        %v3510 = vmul.f32 %v3435, %v3453
        %v3511 = vmul.f32 %v3436, %v3457
        %v3512 = vmul.f32 %v3437, %v3453
        %v3513 = vmul.f32 %v3438, %v3457
        %v3514 = vmul.f32 %v3439, %v3453
        %v3515 = vmul.f32 %v3440, %v3457
        %v3516 = vmul.f32 %v3441, %v3453
        %v3517 = vmul.f32 %v3442, %v3457
        %v3518 = vmul.f32 %v3443, %v3453
        %v3519 = vmul.f32 %v3444, %v3457
        %v3520 = vmul.f32 %v3445, %v3453
        %v3521 = vmul.f32 %v3446, %v3457
        %v3522 = vmul.f32 %v3447, %v3453
        %v3523 = vmul.f32 %v3448, %v3457
        %v3525 = vlaneseq
        %v3526 = vshrl.u32 %v3525, 7
        %v3527 = vsub.s32 0, %v3526
        %v3528 = vrot.slane %v3382, %v3527
        %v3529 = vlaneseq
        %v3530 = vshrl.u32 %v3529, 7
        %v3531 = vsub.s32 1, %v3530
        %v3532 = vrot.slane %v3382, %v3531
        %v3535 = vadd.f32 %v3460, %v3528
        %v3536 = vadd.f32 %v3461, %v3532
        %v3537 = vadd.f32 %v3462, %v3528
        %v3538 = vadd.f32 %v3463, %v3532
        %v3539 = vadd.f32 %v3464, %v3528
        %v3540 = vadd.f32 %v3465, %v3532
        %v3541 = vadd.f32 %v3466, %v3528
        %v3542 = vadd.f32 %v3467, %v3532
        %v3543 = vadd.f32 %v3468, %v3528
        %v3544 = vadd.f32 %v3469, %v3532
        %v3545 = vadd.f32 %v3470, %v3528
        %v3546 = vadd.f32 %v3471, %v3532
        %v3547 = vadd.f32 %v3472, %v3528
        %v3548 = vadd.f32 %v3473, %v3532
        %v3549 = vadd.f32 %v3474, %v3528
        %v3550 = vadd.f32 %v3475, %v3532
        %v3551 = vadd.f32 %v3476, %v3528
        %v3552 = vadd.f32 %v3477, %v3532
        %v3553 = vadd.f32 %v3478, %v3528
        %v3554 = vadd.f32 %v3479, %v3532
        %v3555 = vadd.f32 %v3480, %v3528
        %v3556 = vadd.f32 %v3481, %v3532
        %v3557 = vadd.f32 %v3482, %v3528
        %v3558 = vadd.f32 %v3483, %v3532
        %v3559 = vadd.f32 %v3484, %v3528
        %v3560 = vadd.f32 %v3485, %v3532
        %v3561 = vadd.f32 %v3486, %v3528
        %v3562 = vadd.f32 %v3487, %v3532
        %v3563 = vadd.f32 %v3488, %v3528
        %v3564 = vadd.f32 %v3489, %v3532
        %v3565 = vadd.f32 %v3490, %v3528
        %v3566 = vadd.f32 %v3491, %v3532
        %v3567 = vadd.f32 %v3492, %v3528
        %v3568 = vadd.f32 %v3493, %v3532
        %v3569 = vadd.f32 %v3494, %v3528
        %v3570 = vadd.f32 %v3495, %v3532
        %v3571 = vadd.f32 %v3496, %v3528
        %v3572 = vadd.f32 %v3497, %v3532
        %v3573 = vadd.f32 %v3498, %v3528
        %v3574 = vadd.f32 %v3499, %v3532
        %v3575 = vadd.f32 %v3500, %v3528
        %v3576 = vadd.f32 %v3501, %v3532
        %v3577 = vadd.f32 %v3502, %v3528
        %v3578 = vadd.f32 %v3503, %v3532
        %v3579 = vadd.f32 %v3504, %v3528
        %v3580 = vadd.f32 %v3505, %v3532
        %v3581 = vadd.f32 %v3506, %v3528
        %v3582 = vadd.f32 %v3507, %v3532
        %v3583 = vadd.f32 %v3508, %v3528
        %v3584 = vadd.f32 %v3509, %v3532
        %v3585 = vadd.f32 %v3510, %v3528
        %v3586 = vadd.f32 %v3511, %v3532
        %v3587 = vadd.f32 %v3512, %v3528
        %v3588 = vadd.f32 %v3513, %v3532
        %v3589 = vadd.f32 %v3514, %v3528
        %v3590 = vadd.f32 %v3515, %v3532
        %v3591 = vadd.f32 %v3516, %v3528
        %v3592 = vadd.f32 %v3517, %v3532
        %v3593 = vadd.f32 %v3518, %v3528
        %v3594 = vadd.f32 %v3519, %v3532
        %v3595 = vadd.f32 %v3520, %v3528
        %v3596 = vadd.f32 %v3521, %v3532
        %v3597 = vadd.f32 %v3522, %v3528
        %v3598 = vadd.f32 %v3523, %v3532
        %vm3599 = vcmp.ge.f32.partialorder %v3535, 0.0
        %vm3600 = vcmp.ge.f32.partialorder %v3536, 0.0
        %vm3601 = vcmp.ge.f32.partialorder %v3537, 0.0
        %vm3602 = vcmp.ge.f32.partialorder %v3538, 0.0
        %vm3603 = vcmp.ge.f32.partialorder %v3539, 0.0
        %vm3604 = vcmp.ge.f32.partialorder %v3540, 0.0
        %vm3605 = vcmp.ge.f32.partialorder %v3541, 0.0
        %vm3606 = vcmp.ge.f32.partialorder %v3542, 0.0
        %vm3607 = vcmp.ge.f32.partialorder %v3543, 0.0
        %vm3608 = vcmp.ge.f32.partialorder %v3544, 0.0
        %vm3609 = vcmp.ge.f32.partialorder %v3545, 0.0
        %vm3610 = vcmp.ge.f32.partialorder %v3546, 0.0
        %vm3611 = vcmp.ge.f32.partialorder %v3547, 0.0
        %vm3612 = vcmp.ge.f32.partialorder %v3548, 0.0
        %vm3613 = vcmp.ge.f32.partialorder %v3549, 0.0
        %vm3614 = vcmp.ge.f32.partialorder %v3550, 0.0
        %vm3615 = vcmp.ge.f32.partialorder %v3551, 0.0
        %vm3616 = vcmp.ge.f32.partialorder %v3552, 0.0
        %vm3617 = vcmp.ge.f32.partialorder %v3553, 0.0
        %vm3618 = vcmp.ge.f32.partialorder %v3554, 0.0
        %vm3619 = vcmp.ge.f32.partialorder %v3555, 0.0
        %vm3620 = vcmp.ge.f32.partialorder %v3556, 0.0
        %vm3621 = vcmp.ge.f32.partialorder %v3557, 0.0
        %vm3622 = vcmp.ge.f32.partialorder %v3558, 0.0
        %vm3623 = vcmp.ge.f32.partialorder %v3559, 0.0
        %vm3624 = vcmp.ge.f32.partialorder %v3560, 0.0
        %vm3625 = vcmp.ge.f32.partialorder %v3561, 0.0
        %vm3626 = vcmp.ge.f32.partialorder %v3562, 0.0
        %vm3627 = vcmp.ge.f32.partialorder %v3563, 0.0
        %vm3628 = vcmp.ge.f32.partialorder %v3564, 0.0
        %vm3629 = vcmp.ge.f32.partialorder %v3565, 0.0
        %vm3630 = vcmp.ge.f32.partialorder %v3566, 0.0
        %vm3631 = vcmp.ge.f32.partialorder %v3567, 0.0
        %vm3632 = vcmp.ge.f32.partialorder %v3568, 0.0
        %vm3633 = vcmp.ge.f32.partialorder %v3569, 0.0
        %vm3634 = vcmp.ge.f32.partialorder %v3570, 0.0
        %vm3635 = vcmp.ge.f32.partialorder %v3571, 0.0
        %vm3636 = vcmp.ge.f32.partialorder %v3572, 0.0
        %vm3637 = vcmp.ge.f32.partialorder %v3573, 0.0
        %vm3638 = vcmp.ge.f32.partialorder %v3574, 0.0
        %vm3639 = vcmp.ge.f32.partialorder %v3575, 0.0
        %vm3640 = vcmp.ge.f32.partialorder %v3576, 0.0
        %vm3641 = vcmp.ge.f32.partialorder %v3577, 0.0
        %vm3642 = vcmp.ge.f32.partialorder %v3578, 0.0
        %vm3643 = vcmp.ge.f32.partialorder %v3579, 0.0
        %vm3644 = vcmp.ge.f32.partialorder %v3580, 0.0
        %vm3645 = vcmp.ge.f32.partialorder %v3581, 0.0
        %vm3646 = vcmp.ge.f32.partialorder %v3582, 0.0
        %vm3647 = vcmp.ge.f32.partialorder %v3583, 0.0
        %vm3648 = vcmp.ge.f32.partialorder %v3584, 0.0
        %vm3649 = vcmp.ge.f32.partialorder %v3585, 0.0
        %vm3650 = vcmp.ge.f32.partialorder %v3586, 0.0
        %vm3651 = vcmp.ge.f32.partialorder %v3587, 0.0
        %vm3652 = vcmp.ge.f32.partialorder %v3588, 0.0
        %vm3653 = vcmp.ge.f32.partialorder %v3589, 0.0
        %vm3654 = vcmp.ge.f32.partialorder %v3590, 0.0
        %vm3655 = vcmp.ge.f32.partialorder %v3591, 0.0
        %vm3656 = vcmp.ge.f32.partialorder %v3592, 0.0
        %vm3657 = vcmp.ge.f32.partialorder %v3593, 0.0
        %vm3658 = vcmp.ge.f32.partialorder %v3594, 0.0
        %vm3659 = vcmp.ge.f32.partialorder %v3595, 0.0
        %vm3660 = vcmp.ge.f32.partialorder %v3596, 0.0
        %vm3661 = vcmp.ge.f32.partialorder %v3597, 0.0
        %vm3662 = vcmp.ge.f32.partialorder %v3598, 0.0
        %v3664 = vlaneseq
        %v3665 = vshrl.u32 %v3664, 7
        %v3666 = vsub.s32 0, %v3665
        %v3667 = vrot.slane %v3384, %v3666
        %v3668 = vlaneseq
        %v3669 = vshrl.u32 %v3668, 7
        %v3670 = vsub.s32 1, %v3669
        %v3671 = vrot.slane %v3384, %v3670
        %v3674 = vmul.f32 %v3667, %v3535
        %v3675 = vmul.f32 %v3671, %v3536
        %v3676 = vmul.f32 %v3667, %v3537
        %v3677 = vmul.f32 %v3671, %v3538
        %v3678 = vmul.f32 %v3667, %v3539
        %v3679 = vmul.f32 %v3671, %v3540
        %v3680 = vmul.f32 %v3667, %v3541
        %v3681 = vmul.f32 %v3671, %v3542
        %v3682 = vmul.f32 %v3667, %v3543
        %v3683 = vmul.f32 %v3671, %v3544
        %v3684 = vmul.f32 %v3667, %v3545
        %v3685 = vmul.f32 %v3671, %v3546
        %v3686 = vmul.f32 %v3667, %v3547
        %v3687 = vmul.f32 %v3671, %v3548
        %v3688 = vmul.f32 %v3667, %v3549
        %v3689 = vmul.f32 %v3671, %v3550
        %v3690 = vmul.f32 %v3667, %v3551
        %v3691 = vmul.f32 %v3671, %v3552
        %v3692 = vmul.f32 %v3667, %v3553
        %v3693 = vmul.f32 %v3671, %v3554
        %v3694 = vmul.f32 %v3667, %v3555
        %v3695 = vmul.f32 %v3671, %v3556
        %v3696 = vmul.f32 %v3667, %v3557
        %v3697 = vmul.f32 %v3671, %v3558
        %v3698 = vmul.f32 %v3667, %v3559
        %v3699 = vmul.f32 %v3671, %v3560
        %v3700 = vmul.f32 %v3667, %v3561
        %v3701 = vmul.f32 %v3671, %v3562
        %v3702 = vmul.f32 %v3667, %v3563
        %v3703 = vmul.f32 %v3671, %v3564
        %v3704 = vmul.f32 %v3667, %v3565
        %v3705 = vmul.f32 %v3671, %v3566
        %v3706 = vmul.f32 %v3667, %v3567
        %v3707 = vmul.f32 %v3671, %v3568
        %v3708 = vmul.f32 %v3667, %v3569
        %v3709 = vmul.f32 %v3671, %v3570
        %v3710 = vmul.f32 %v3667, %v3571
        %v3711 = vmul.f32 %v3671, %v3572
        %v3712 = vmul.f32 %v3667, %v3573
        %v3713 = vmul.f32 %v3671, %v3574
        %v3714 = vmul.f32 %v3667, %v3575
        %v3715 = vmul.f32 %v3671, %v3576
        %v3716 = vmul.f32 %v3667, %v3577
        %v3717 = vmul.f32 %v3671, %v3578
        %v3718 = vmul.f32 %v3667, %v3579
        %v3719 = vmul.f32 %v3671, %v3580
        %v3720 = vmul.f32 %v3667, %v3581
        %v3721 = vmul.f32 %v3671, %v3582
        %v3722 = vmul.f32 %v3667, %v3583
        %v3723 = vmul.f32 %v3671, %v3584
        %v3724 = vmul.f32 %v3667, %v3585
        %v3725 = vmul.f32 %v3671, %v3586
        %v3726 = vmul.f32 %v3667, %v3587
        %v3727 = vmul.f32 %v3671, %v3588
        %v3728 = vmul.f32 %v3667, %v3589
        %v3729 = vmul.f32 %v3671, %v3590
        %v3730 = vmul.f32 %v3667, %v3591
        %v3731 = vmul.f32 %v3671, %v3592
        %v3732 = vmul.f32 %v3667, %v3593
        %v3733 = vmul.f32 %v3671, %v3594
        %v3734 = vmul.f32 %v3667, %v3595
        %v3735 = vmul.f32 %v3671, %v3596
        %v3736 = vmul.f32 %v3667, %v3597
        %v3737 = vmul.f32 %v3671, %v3598
        %v3738 = vsel %vm3599, %v3535, %v3674
        %v3739 = vsel %vm3600, %v3536, %v3675
        %v3740 = vsel %vm3601, %v3537, %v3676
        %v3741 = vsel %vm3602, %v3538, %v3677
        %v3742 = vsel %vm3603, %v3539, %v3678
        %v3743 = vsel %vm3604, %v3540, %v3679
        %v3744 = vsel %vm3605, %v3541, %v3680
        %v3745 = vsel %vm3606, %v3542, %v3681
        %v3746 = vsel %vm3607, %v3543, %v3682
        %v3747 = vsel %vm3608, %v3544, %v3683
        %v3748 = vsel %vm3609, %v3545, %v3684
        %v3749 = vsel %vm3610, %v3546, %v3685
        %v3750 = vsel %vm3611, %v3547, %v3686
        %v3751 = vsel %vm3612, %v3548, %v3687
        %v3752 = vsel %vm3613, %v3549, %v3688
        %v3753 = vsel %vm3614, %v3550, %v3689
        %v3754 = vsel %vm3615, %v3551, %v3690
        %v3755 = vsel %vm3616, %v3552, %v3691
        %v3756 = vsel %vm3617, %v3553, %v3692
        %v3757 = vsel %vm3618, %v3554, %v3693
        %v3758 = vsel %vm3619, %v3555, %v3694
        %v3759 = vsel %vm3620, %v3556, %v3695
        %v3760 = vsel %vm3621, %v3557, %v3696
        %v3761 = vsel %vm3622, %v3558, %v3697
        %v3762 = vsel %vm3623, %v3559, %v3698
        %v3763 = vsel %vm3624, %v3560, %v3699
        %v3764 = vsel %vm3625, %v3561, %v3700
        %v3765 = vsel %vm3626, %v3562, %v3701
        %v3766 = vsel %vm3627, %v3563, %v3702
        %v3767 = vsel %vm3628, %v3564, %v3703
        %v3768 = vsel %vm3629, %v3565, %v3704
        %v3769 = vsel %vm3630, %v3566, %v3705
        %v3770 = vsel %vm3631, %v3567, %v3706
        %v3771 = vsel %vm3632, %v3568, %v3707
        %v3772 = vsel %vm3633, %v3569, %v3708
        %v3773 = vsel %vm3634, %v3570, %v3709
        %v3774 = vsel %vm3635, %v3571, %v3710
        %v3775 = vsel %vm3636, %v3572, %v3711
        %v3776 = vsel %vm3637, %v3573, %v3712
        %v3777 = vsel %vm3638, %v3574, %v3713
        %v3778 = vsel %vm3639, %v3575, %v3714
        %v3779 = vsel %vm3640, %v3576, %v3715
        %v3780 = vsel %vm3641, %v3577, %v3716
        %v3781 = vsel %vm3642, %v3578, %v3717
        %v3782 = vsel %vm3643, %v3579, %v3718
        %v3783 = vsel %vm3644, %v3580, %v3719
        %v3784 = vsel %vm3645, %v3581, %v3720
        %v3785 = vsel %vm3646, %v3582, %v3721
        %v3786 = vsel %vm3647, %v3583, %v3722
        %v3787 = vsel %vm3648, %v3584, %v3723
        %v3788 = vsel %vm3649, %v3585, %v3724
        %v3789 = vsel %vm3650, %v3586, %v3725
        %v3790 = vsel %vm3651, %v3587, %v3726
        %v3791 = vsel %vm3652, %v3588, %v3727
        %v3792 = vsel %vm3653, %v3589, %v3728
        %v3793 = vsel %vm3654, %v3590, %v3729
        %v3794 = vsel %vm3655, %v3591, %v3730
        %v3795 = vsel %vm3656, %v3592, %v3731
        %v3796 = vsel %vm3657, %v3593, %v3732
        %v3797 = vsel %vm3658, %v3594, %v3733
        %v3798 = vsel %vm3659, %v3595, %v3734
        %v3799 = vsel %vm3660, %v3596, %v3735
        %v3800 = vsel %vm3661, %v3597, %v3736
        %v3801 = vsel %vm3662, %v3598, %v3737
        %3802 = vst [vmem:[%s230] sm:$0xff] %v3738
        %3803 = vst [vmem:[%s230 + $0x8] sm:$0xff] %v3739
        %3804 = vst [vmem:[%s230 + $0x10] sm:$0xff] %v3740
        %3805 = vst [vmem:[%s230 + $0x18] sm:$0xff] %v3741
        %3806 = vst [vmem:[%s230 + $0x20] sm:$0xff] %v3742
        %3807 = vst [vmem:[%s230 + $0x28] sm:$0xff] %v3743
        %3808 = vst [vmem:[%s230 + $0x30] sm:$0xff] %v3744
        %3809 = vst [vmem:[%s230 + $0x38] sm:$0xff] %v3745
        %3810 = vst [vmem:[%s230 + $0x40] sm:$0xff] %v3746
        %3811 = vst [vmem:[%s230 + $0x48] sm:$0xff] %v3747
        %3812 = vst [vmem:[%s230 + $0x50] sm:$0xff] %v3748
        %3813 = vst [vmem:[%s230 + $0x58] sm:$0xff] %v3749
        %3814 = vst [vmem:[%s230 + $0x60] sm:$0xff] %v3750
        %3815 = vst [vmem:[%s230 + $0x68] sm:$0xff] %v3751
        %3816 = vst [vmem:[%s230 + $0x70] sm:$0xff] %v3752
        %3817 = vst [vmem:[%s230 + $0x78] sm:$0xff] %v3753
        %3818 = vst [vmem:[%s230 + $0x80] sm:$0xff] %v3754
        %3819 = vst [vmem:[%s230 + $0x88] sm:$0xff] %v3755
        %3820 = vst [vmem:[%s230 + $0x90] sm:$0xff] %v3756
        %3821 = vst [vmem:[%s230 + $0x98] sm:$0xff] %v3757
        %3822 = vst [vmem:[%s230 + $0xa0] sm:$0xff] %v3758
        %3823 = vst [vmem:[%s230 + $0xa8] sm:$0xff] %v3759
        %3824 = vst [vmem:[%s230 + $0xb0] sm:$0xff] %v3760
        %3825 = vst [vmem:[%s230 + $0xb8] sm:$0xff] %v3761
        %3826 = vst [vmem:[%s230 + $0xc0] sm:$0xff] %v3762
        %3827 = vst [vmem:[%s230 + $0xc8] sm:$0xff] %v3763
        %3828 = vst [vmem:[%s230 + $0xd0] sm:$0xff] %v3764
        %3829 = vst [vmem:[%s230 + $0xd8] sm:$0xff] %v3765
        %3830 = vst [vmem:[%s230 + $0xe0] sm:$0xff] %v3766
        %3831 = vst [vmem:[%s230 + $0xe8] sm:$0xff] %v3767
        %3832 = vst [vmem:[%s230 + $0xf0] sm:$0xff] %v3768
        %3833 = vst [vmem:[%s230 + $0xf8] sm:$0xff] %v3769
        %3834 = vst [vmem:[%s230 + $0x100] sm:$0xff] %v3770
        %3835 = vst [vmem:[%s230 + $0x108] sm:$0xff] %v3771
        %3836 = vst [vmem:[%s230 + $0x110] sm:$0xff] %v3772
        %3837 = vst [vmem:[%s230 + $0x118] sm:$0xff] %v3773
        %3838 = vst [vmem:[%s230 + $0x120] sm:$0xff] %v3774
        %3839 = vst [vmem:[%s230 + $0x128] sm:$0xff] %v3775
        %3840 = vst [vmem:[%s230 + $0x130] sm:$0xff] %v3776
        %3841 = vst [vmem:[%s230 + $0x138] sm:$0xff] %v3777
        %3842 = vst [vmem:[%s230 + $0x140] sm:$0xff] %v3778
        %3843 = vst [vmem:[%s230 + $0x148] sm:$0xff] %v3779
        %3844 = vst [vmem:[%s230 + $0x150] sm:$0xff] %v3780
        %3845 = vst [vmem:[%s230 + $0x158] sm:$0xff] %v3781
        %3846 = vst [vmem:[%s230 + $0x160] sm:$0xff] %v3782
        %3847 = vst [vmem:[%s230 + $0x168] sm:$0xff] %v3783
        %3848 = vst [vmem:[%s230 + $0x170] sm:$0xff] %v3784
        %3849 = vst [vmem:[%s230 + $0x178] sm:$0xff] %v3785
        %3850 = vst [vmem:[%s230 + $0x180] sm:$0xff] %v3786
        %3851 = vst [vmem:[%s230 + $0x188] sm:$0xff] %v3787
        %3852 = vst [vmem:[%s230 + $0x190] sm:$0xff] %v3788
        %3853 = vst [vmem:[%s230 + $0x198] sm:$0xff] %v3789
        %3854 = vst [vmem:[%s230 + $0x1a0] sm:$0xff] %v3790
        %3855 = vst [vmem:[%s230 + $0x1a8] sm:$0xff] %v3791
        %3856 = vst [vmem:[%s230 + $0x1b0] sm:$0xff] %v3792
        %3857 = vst [vmem:[%s230 + $0x1b8] sm:$0xff] %v3793
        %3858 = vst [vmem:[%s230 + $0x1c0] sm:$0xff] %v3794
        %3859 = vst [vmem:[%s230 + $0x1c8] sm:$0xff] %v3795
        %3860 = vst [vmem:[%s230 + $0x1d0] sm:$0xff] %v3796
        %3861 = vst [vmem:[%s230 + $0x1d8] sm:$0xff] %v3797
        %3862 = vst [vmem:[%s230 + $0x1e0] sm:$0xff] %v3798
        %3863 = vst [vmem:[%s230 + $0x1e8] sm:$0xff] %v3799
        %3864 = vst [vmem:[%s230 + $0x1f0] sm:$0xff] %v3800
        %3865 = vst [vmem:[%s230 + $0x1f8] sm:$0xff] %v3801
      $region40: #{convnet_nin_forward.2} parent=31 // pred_fallthru
        _
      %s3866 = smul.u32 32, %s18
      %p3867 = scmp.lt.s32.totalorder %s3866, 63
      %s3868 = scalar_select %p3867, %s3866, 63
      %s3869 = smul.addr %s3868, 2
      %s3870 = smul.addr %s3869, 8
      %s3871 = scalar_lea.vmem %s3, %s3870
      // Predicated region
      $region41: #{convnet_nin_forward.2} parent=31 // pred_check
        %p3872 = pneg %p119
      $region42: #{convnet_nin_forward.2} parent=31 // pred_check_branch
        %3874 = sbr.rel (%p3872) target = $region44
      $region43: #{convnet_nin_forward.2} parent=31 // pred_region
        %s3875 = smul.u32 32, %s18
      $region44: #{convnet_nin_forward.2} parent=31 // pred_fallthru
        _
    $region32: #{convnet_nin_forward.2} parent=5 // pred_fallthru
      _
    %p3876 = scmp.le.s32.totalorder 2, %s9
    // Predicated region
    $region45: #{convnet_nin_forward.2} parent=5 // pred_check
      %p3877 = pneg %p3876
    $region46: #{convnet_nin_forward.2} parent=5 // pred_check_branch
      %3879 = sbr.rel (%p3877) target = $region48
    $region47: #{convnet_nin_forward.2} parent=5 // pred_region
      %s3880 = ssub.s32 %s9, 2
      // Predicated region
      $region49: #{convnet_nin_forward.2} parent=47 // pred_check
        %p3881 = pneg %p125
      $region50: #{convnet_nin_forward.2} parent=47 // pred_check_branch
        %3883 = sbr.rel (%p3881) target = $region52
      $region51: #{convnet_nin_forward.2} parent=47 // pred_region
        %s3884 = smul.u32 32, %s20
        %p3885 = scmp.lt.s32.totalorder %s3884, 63
        %s3886 = scalar_select %p3885, %s3884, 63
        %s3887 = smul.addr %s3886, 2
        %s3888 = smul.addr %s3887, 8
        %s3889 = scalar_lea.vmem %s3, %s3888
      $region52: #{convnet_nin_forward.2} parent=47 // pred_fallthru
        _
    $region48: #{convnet_nin_forward.2} parent=5 // pred_fallthru
      _
  $region6: #{convnet_nin_forward.2} parent=0 // loop_footer
    %s13 = sadd.s32 1, %s9
  $region7: #{convnet_nin_forward.2} parent=0 // loop_footer_branch
    %8 = sbr.rel target = $region3
  $region8: #{convnet_nin_forward.2} parent=0 // loop_exit
    _

// kernel: convnet_nin_forward.3
$region0: #{convnet_nin_forward.3}
  #allocation0 [shape = 'u32[]', space=smem, size = 0x4, offset = 0x4, fixed_abs, tag = 'smem constant byte address 0x4 - core index']
  #allocation1 [shape = 'u32[144,128]{1,0:T(1,128)}', space=vmem, size = 0x12000, scoped, tag = 'internal scratch']
  %s0 = inlined_call_operand.vmem [shape: bf16[32,28672], index: 0, kind: input, shape index: {}]
  %s1 = inlined_call_operand.vmem [shape: bf16[28672,128], index: 1, kind: input, shape index: {}]
  %s2 = inlined_call_operand.vmem [shape: f32[8,128], index: 2, kind: input, shape index: {}]
  %s3 = inlined_call_operand.vmem [shape: f32[32,128], index: 3, kind: output, shape index: {}]
  %s4 = sld [smem:[#allocation0]]
  $region76: #{convnet_nin_forward.3} parent=0
    _
  %s6 = ssub.s32 1, %s4
  %s7 = scalar_select 0, %s6, %s4
  $region1: #{convnet_nin_forward.3} parent=0
    #allocation2 [shape = 'u8[524288]{0}', space=vmem, size = 0x80000, scoped, tag = 'input window, operand 0']
    loop: start=0, step=1, limit=9
    $region2: #{convnet_nin_forward.3} parent=1 // loop_pre_header
      _
    $region3: #{convnet_nin_forward.3} parent=1 // loop_header
      %s9 = sphi 0, %s13
      %p10 = scmp.ge.s32.totalorder %s9, 9
      %s16 = sphi 0, %s28
      %s17 = sphi 0, %s24
      %s18 = sphi 0, %s16
      %s19 = sphi 0, %s17
      %s20 = sphi 0, %s18
      %s21 = sphi 0, %s19
      %s33 = sphi 0, %s35
      %s36 = sphi 0, %s33
      %s37 = sphi 0, %s36
      %s53 = sphi 0, %s37
      %s59 = sphi 0, %s61
      %s62 = sphi 0, %s59
      %s63 = sphi 0, %s62
      %s79 = sphi 0, %s63
      %s83 = sphi 0, %s83
      %s85 = sphi 0, %s83
      %s86 = sphi 0, %s85
      %s100 = sphi 0, %s86
      %s106 = sphi 0, %s108
      %s109 = sphi 0, %s106
      %s110 = sphi 0, %s109
      %s126 = sphi 0, %s110
    $region4: #{convnet_nin_forward.3} parent=1 // loop_header_branch
      %12 = sbr.rel (%p10) target = $region8
    $region5: #{convnet_nin_forward.3} parent=1 // loop_body
      %s14 = ssub.s32 %s9, 1
      %s15 = ssub.s32 %s9, 2
      %s22 = sadd.s32 1, %s17
      %p23 = scmp.ge.s32.totalorder %s22, 7
      %s24 = scalar_select %p23, 0, %s22
      %s25 = sadd.s32 1, %s16
      %s26 = scalar_select %p23, %s25, %s16
      %p27 = scmp.ge.s32.totalorder %s26, 1
      %s28 = scalar_select %p27, 0, %s26
      %s29 = ssub.s32 %s16, %s28
      %s30 = ssub.s32 %s17, %s24
      %s31 = sor.u32 %s29, %s30
      %p32 = scmp.eq.s32.totalorder %s31, 0
      %s34 = sadd.s32 %s33, 1
      %s35 = scalar_select %p32, %s33, %s34
      %p38 = pneg %p32
      %p39 = scmp.eq.s32.totalorder %s9, 6
      %p40 = por %p38, %p39
      %p41 = scmp.ne.s32.totalorder %s33, %s36
      %p42 = scmp.eq.s32.totalorder %s9, 0
      %p43 = por %p41, %p42
      %p44 = scmp.ne.s32.totalorder %s33, %s36
      %p45 = scmp.eq.s32.totalorder %s14, 6
      %p46 = por %p44, %p45
      %p47 = scmp.ne.s32.totalorder %s36, %s37
      %p48 = scmp.eq.s32.totalorder %s14, 0
      %p49 = por %p47, %p48
      %p50 = scmp.ne.s32.totalorder %s36, %s37
      %p51 = scmp.eq.s32.totalorder %s15, 6
      %p52 = por %p50, %p51
      %p54 = scmp.ne.s32.totalorder %s37, %s53
      %p55 = scmp.eq.s32.totalorder %s15, 0
      %p56 = por %p54, %p55
      %s57 = ssub.s32 %s17, %s24
      %p58 = scmp.eq.s32.totalorder %s57, 0
      %s60 = sadd.s32 %s59, 1
      %s61 = scalar_select %p58, %s59, %s60
      %p64 = pneg %p58
      %p65 = scmp.eq.s32.totalorder %s9, 6
      %p66 = por %p64, %p65
      %p67 = scmp.ne.s32.totalorder %s59, %s62
      %p68 = scmp.eq.s32.totalorder %s9, 0
      %p69 = por %p67, %p68
      %p70 = scmp.ne.s32.totalorder %s59, %s62
      %p71 = scmp.eq.s32.totalorder %s14, 6
      %p72 = por %p70, %p71
      %p73 = scmp.ne.s32.totalorder %s62, %s63
      %p74 = scmp.eq.s32.totalorder %s14, 0
      %p75 = por %p73, %p74
      %p76 = scmp.ne.s32.totalorder %s62, %s63
      %p77 = scmp.eq.s32.totalorder %s15, 6
      %p78 = por %p76, %p77
      %p80 = scmp.ne.s32.totalorder %s63, %s79
      %p81 = scmp.eq.s32.totalorder %s15, 0
      %p82 = por %p80, %p81
      %s84 = sadd.s32 %s83, 1
      %p87 = scmp.eq.s32.totalorder %s9, 6
      %p88 = scmp.ne.s32.totalorder %s83, %s85
      %p89 = scmp.eq.s32.totalorder %s9, 0
      %p90 = por %p88, %p89
      %p91 = scmp.ne.s32.totalorder %s83, %s85
      %p92 = scmp.eq.s32.totalorder %s14, 6
      %p93 = por %p91, %p92
      %p94 = scmp.ne.s32.totalorder %s85, %s86
      %p95 = scmp.eq.s32.totalorder %s14, 0
      %p96 = por %p94, %p95
      %p97 = scmp.ne.s32.totalorder %s85, %s86
      %p98 = scmp.eq.s32.totalorder %s15, 6
      %p99 = por %p97, %p98
      %p101 = scmp.ne.s32.totalorder %s86, %s100
      %p102 = scmp.eq.s32.totalorder %s15, 0
      %p103 = por %p101, %p102
      %s104 = ssub.s32 %s16, %s28
      %p105 = scmp.eq.s32.totalorder %s104, 0
      %s107 = sadd.s32 %s106, 1
      %s108 = scalar_select %p105, %s106, %s107
      %p111 = pneg %p105
      %p112 = scmp.eq.s32.totalorder %s9, 6
      %p113 = por %p111, %p112
      %p114 = scmp.ne.s32.totalorder %s106, %s109
      %p115 = scmp.eq.s32.totalorder %s9, 0
      %p116 = por %p114, %p115
      %p117 = scmp.ne.s32.totalorder %s106, %s109
      %p118 = scmp.eq.s32.totalorder %s14, 6
      %p119 = por %p117, %p118
      %p120 = scmp.ne.s32.totalorder %s109, %s110
      %p121 = scmp.eq.s32.totalorder %s14, 0
      %p122 = por %p120, %p121
      %p123 = scmp.ne.s32.totalorder %s109, %s110
      %p124 = scmp.eq.s32.totalorder %s15, 6
      %p125 = por %p123, %p124
      %p127 = scmp.ne.s32.totalorder %s110, %s126
      %p128 = scmp.eq.s32.totalorder %s15, 0
      %p129 = por %p127, %p128
      %p130 = scmp.le.s32.totalorder 1, %s9
      %p131 = scmp.lt.s32.totalorder %s9, 8
      %p132 = pnand %p130, %p131
      %p133 = pneg %p132
      // Predicated region
      $region9: #{convnet_nin_forward.3} parent=5 // pred_check
        _
      $region10: #{convnet_nin_forward.3} parent=5 // pred_check_branch
        %135 = sbr.rel (%p132) target = $region12
      $region11: #{convnet_nin_forward.3} parent=5 // pred_region
        %s136 = ssub.s32 %s9, 1
        // Predicated region
        $region13: #{convnet_nin_forward.3} parent=11 // pred_check
          %p137 = pneg %p96
        $region14: #{convnet_nin_forward.3} parent=11 // pred_check_branch
          %139 = sbr.rel (%p137) target = $region16
        $region15: #{convnet_nin_forward.3} parent=11 // pred_region
          _
        $region16: #{convnet_nin_forward.3} parent=11 // pred_fallthru
          _
      $region12: #{convnet_nin_forward.3} parent=5 // pred_fallthru
        _
      %p140 = scmp.lt.s32.totalorder %s9, 7
      // Predicated region
      $region17: #{convnet_nin_forward.3} parent=5 // pred_check
        %p141 = pneg %p140
      $region18: #{convnet_nin_forward.3} parent=5 // pred_check_branch
        %143 = sbr.rel (%p141) target = $region20
      $region19: #{convnet_nin_forward.3} parent=5 // pred_region
        // Predicated region
        $region21: #{convnet_nin_forward.3} parent=19 // pred_check
          %p144 = pneg %p43
        $region22: #{convnet_nin_forward.3} parent=19 // pred_check_branch
          %146 = sbr.rel (%p144) target = $region24
        $region23: #{convnet_nin_forward.3} parent=19 // pred_region
          %s147 = sand.u32 %s33, 1
          %s148 = sand.u32 %s33, 1
          %s149 = smul.addr %s148, 512
          %s150 = scalar_lea.vmem [#allocation2], %s149
          %s151 = smul.u32 4, %s16
          %s152 = smul.u32 32, %s17
          %s153 = smul.addr %s151, 224
          %s154 = sadd.s32 %s152, %s153
          %s155 = smul.addr %s154, 4
          %s156 = scalar_lea.vmem %s0, %s155
          // Predicated region
          $region25: #{convnet_nin_forward.3} parent=23 // pred_check
            _
          $region26: #{convnet_nin_forward.3} parent=23 // pred_check_branch
            %158 = sbr.rel (0) target = $region28
          $region27: #{convnet_nin_forward.3} parent=23 // pred_region
            // Predicated region
            $region29: #{convnet_nin_forward.3} parent=27 // pred_check
              _
            $region30: #{convnet_nin_forward.3} parent=27 // pred_check_branch
              %160 = sbr.rel (0) target = $region32
            $region31: #{convnet_nin_forward.3} parent=27 // pred_region
              loop: start=0, step=1, limit=1
              $region33: #{convnet_nin_forward.3} parent=31 // loop_pre_header
                _
              $region34: #{convnet_nin_forward.3} parent=31 // loop_header
                %s162 = sphi 0, %s166
                %p163 = scmp.ge.s32.totalorder %s162, 1
                %s167 = sphi %s156, %s156
                %s168 = sphi %s150, %s150
              $region35: #{convnet_nin_forward.3} parent=31 // loop_header_branch
                %165 = sbr.rel (%p163) target = $region39
              $region36: #{convnet_nin_forward.3} parent=31 // loop_body
                %v169 = vld [vmem:[%s167] sm:$0xff]
                %170 = vst [vmem:[%s168] sm:$0xff] %v169
                %v171 = vld [vmem:[%s167 + $0x8] sm:$0xff]
                %172 = vst [vmem:[%s168 + $0x8] sm:$0xff] %v171
                %v173 = vld [vmem:[%s167 + $0x10] sm:$0xff]
                %174 = vst [vmem:[%s168 + $0x10] sm:$0xff] %v173
                %v175 = vld [vmem:[%s167 + $0x18] sm:$0xff]
                %176 = vst [vmem:[%s168 + $0x18] sm:$0xff] %v175
                %v177 = vld [vmem:[%s167 + $0x20] sm:$0xff]
                %178 = vst [vmem:[%s168 + $0x20] sm:$0xff] %v177
                %v179 = vld [vmem:[%s167 + $0x28] sm:$0xff]
                %180 = vst [vmem:[%s168 + $0x28] sm:$0xff] %v179
                %v181 = vld [vmem:[%s167 + $0x30] sm:$0xff]
                %182 = vst [vmem:[%s168 + $0x30] sm:$0xff] %v181
                %v183 = vld [vmem:[%s167 + $0x38] sm:$0xff]
                %184 = vst [vmem:[%s168 + $0x38] sm:$0xff] %v183
                %v185 = vld [vmem:[%s167 + $0x40] sm:$0xff]
                %186 = vst [vmem:[%s168 + $0x40] sm:$0xff] %v185
                %v187 = vld [vmem:[%s167 + $0x48] sm:$0xff]
                %188 = vst [vmem:[%s168 + $0x48] sm:$0xff] %v187
                %v189 = vld [vmem:[%s167 + $0x50] sm:$0xff]
                %190 = vst [vmem:[%s168 + $0x50] sm:$0xff] %v189
                %v191 = vld [vmem:[%s167 + $0x58] sm:$0xff]
                %192 = vst [vmem:[%s168 + $0x58] sm:$0xff] %v191
                %v193 = vld [vmem:[%s167 + $0x60] sm:$0xff]
                %194 = vst [vmem:[%s168 + $0x60] sm:$0xff] %v193
                %v195 = vld [vmem:[%s167 + $0x68] sm:$0xff]
                %196 = vst [vmem:[%s168 + $0x68] sm:$0xff] %v195
                %v197 = vld [vmem:[%s167 + $0x70] sm:$0xff]
                %198 = vst [vmem:[%s168 + $0x70] sm:$0xff] %v197
                %v199 = vld [vmem:[%s167 + $0x78] sm:$0xff]
                %200 = vst [vmem:[%s168 + $0x78] sm:$0xff] %v199
                %v201 = vld [vmem:[%s167 + $0x380] sm:$0xff]
                %202 = vst [vmem:[%s168 + $0x80] sm:$0xff] %v201
                %v203 = vld [vmem:[%s167 + $0x388] sm:$0xff]
                %204 = vst [vmem:[%s168 + $0x88] sm:$0xff] %v203
                %v205 = vld [vmem:[%s167 + $0x390] sm:$0xff]
                %206 = vst [vmem:[%s168 + $0x90] sm:$0xff] %v205
                %v207 = vld [vmem:[%s167 + $0x398] sm:$0xff]
                %208 = vst [vmem:[%s168 + $0x98] sm:$0xff] %v207
                %v209 = vld [vmem:[%s167 + $0x3a0] sm:$0xff]
                %210 = vst [vmem:[%s168 + $0xa0] sm:$0xff] %v209
                %v211 = vld [vmem:[%s167 + $0x3a8] sm:$0xff]
                %212 = vst [vmem:[%s168 + $0xa8] sm:$0xff] %v211
                %v213 = vld [vmem:[%s167 + $0x3b0] sm:$0xff]
                %214 = vst [vmem:[%s168 + $0xb0] sm:$0xff] %v213
                %v215 = vld [vmem:[%s167 + $0x3b8] sm:$0xff]
                %216 = vst [vmem:[%s168 + $0xb8] sm:$0xff] %v215
                %v217 = vld [vmem:[%s167 + $0x3c0] sm:$0xff]
                %218 = vst [vmem:[%s168 + $0xc0] sm:$0xff] %v217
                %v219 = vld [vmem:[%s167 + $0x3c8] sm:$0xff]
                %220 = vst [vmem:[%s168 + $0xc8] sm:$0xff] %v219
                %v221 = vld [vmem:[%s167 + $0x3d0] sm:$0xff]
                %222 = vst [vmem:[%s168 + $0xd0] sm:$0xff] %v221
                %v223 = vld [vmem:[%s167 + $0x3d8] sm:$0xff]
                %224 = vst [vmem:[%s168 + $0xd8] sm:$0xff] %v223
                %v225 = vld [vmem:[%s167 + $0x3e0] sm:$0xff]
                %226 = vst [vmem:[%s168 + $0xe0] sm:$0xff] %v225
                %v227 = vld [vmem:[%s167 + $0x3e8] sm:$0xff]
                %228 = vst [vmem:[%s168 + $0xe8] sm:$0xff] %v227
                %v229 = vld [vmem:[%s167 + $0x3f0] sm:$0xff]
                %230 = vst [vmem:[%s168 + $0xf0] sm:$0xff] %v229
                %v231 = vld [vmem:[%s167 + $0x3f8] sm:$0xff]
                %232 = vst [vmem:[%s168 + $0xf8] sm:$0xff] %v231
                %v233 = vld [vmem:[%s167 + $0x700] sm:$0xff]
                %234 = vst [vmem:[%s168 + $0x100] sm:$0xff] %v233
                %v235 = vld [vmem:[%s167 + $0x708] sm:$0xff]
                %236 = vst [vmem:[%s168 + $0x108] sm:$0xff] %v235
                %v237 = vld [vmem:[%s167 + $0x710] sm:$0xff]
                %238 = vst [vmem:[%s168 + $0x110] sm:$0xff] %v237
                %v239 = vld [vmem:[%s167 + $0x718] sm:$0xff]
                %240 = vst [vmem:[%s168 + $0x118] sm:$0xff] %v239
                %v241 = vld [vmem:[%s167 + $0x720] sm:$0xff]
                %242 = vst [vmem:[%s168 + $0x120] sm:$0xff] %v241
                %v243 = vld [vmem:[%s167 + $0x728] sm:$0xff]
                %244 = vst [vmem:[%s168 + $0x128] sm:$0xff] %v243
                %v245 = vld [vmem:[%s167 + $0x730] sm:$0xff]
                %246 = vst [vmem:[%s168 + $0x130] sm:$0xff] %v245
                %v247 = vld [vmem:[%s167 + $0x738] sm:$0xff]
                %248 = vst [vmem:[%s168 + $0x138] sm:$0xff] %v247
                %v249 = vld [vmem:[%s167 + $0x740] sm:$0xff]
                %250 = vst [vmem:[%s168 + $0x140] sm:$0xff] %v249
                %v251 = vld [vmem:[%s167 + $0x748] sm:$0xff]
                %252 = vst [vmem:[%s168 + $0x148] sm:$0xff] %v251
                %v253 = vld [vmem:[%s167 + $0x750] sm:$0xff]
                %254 = vst [vmem:[%s168 + $0x150] sm:$0xff] %v253
                %v255 = vld [vmem:[%s167 + $0x758] sm:$0xff]
                %256 = vst [vmem:[%s168 + $0x158] sm:$0xff] %v255
                %v257 = vld [vmem:[%s167 + $0x760] sm:$0xff]
                %258 = vst [vmem:[%s168 + $0x160] sm:$0xff] %v257
                %v259 = vld [vmem:[%s167 + $0x768] sm:$0xff]
                %260 = vst [vmem:[%s168 + $0x168] sm:$0xff] %v259
                %v261 = vld [vmem:[%s167 + $0x770] sm:$0xff]
                %262 = vst [vmem:[%s168 + $0x170] sm:$0xff] %v261
                %v263 = vld [vmem:[%s167 + $0x778] sm:$0xff]
                %264 = vst [vmem:[%s168 + $0x178] sm:$0xff] %v263
                %v265 = vld [vmem:[%s167 + $0xa80] sm:$0xff]
                %266 = vst [vmem:[%s168 + $0x180] sm:$0xff] %v265
                %v267 = vld [vmem:[%s167 + $0xa88] sm:$0xff]
                %268 = vst [vmem:[%s168 + $0x188] sm:$0xff] %v267
                %v269 = vld [vmem:[%s167 + $0xa90] sm:$0xff]
                %270 = vst [vmem:[%s168 + $0x190] sm:$0xff] %v269
                %v271 = vld [vmem:[%s167 + $0xa98] sm:$0xff]
                %272 = vst [vmem:[%s168 + $0x198] sm:$0xff] %v271
                %v273 = vld [vmem:[%s167 + $0xaa0] sm:$0xff]
                %274 = vst [vmem:[%s168 + $0x1a0] sm:$0xff] %v273
                %v275 = vld [vmem:[%s167 + $0xaa8] sm:$0xff]
                %276 = vst [vmem:[%s168 + $0x1a8] sm:$0xff] %v275
                %v277 = vld [vmem:[%s167 + $0xab0] sm:$0xff]
                %278 = vst [vmem:[%s168 + $0x1b0] sm:$0xff] %v277
                %v279 = vld [vmem:[%s167 + $0xab8] sm:$0xff]
                %280 = vst [vmem:[%s168 + $0x1b8] sm:$0xff] %v279
                %v281 = vld [vmem:[%s167 + $0xac0] sm:$0xff]
                %282 = vst [vmem:[%s168 + $0x1c0] sm:$0xff] %v281
                %v283 = vld [vmem:[%s167 + $0xac8] sm:$0xff]
                %284 = vst [vmem:[%s168 + $0x1c8] sm:$0xff] %v283
                %v285 = vld [vmem:[%s167 + $0xad0] sm:$0xff]
                %286 = vst [vmem:[%s168 + $0x1d0] sm:$0xff] %v285
                %v287 = vld [vmem:[%s167 + $0xad8] sm:$0xff]
                %288 = vst [vmem:[%s168 + $0x1d8] sm:$0xff] %v287
                %v289 = vld [vmem:[%s167 + $0xae0] sm:$0xff]
                %290 = vst [vmem:[%s168 + $0x1e0] sm:$0xff] %v289
                %v291 = vld [vmem:[%s167 + $0xae8] sm:$0xff]
                %292 = vst [vmem:[%s168 + $0x1e8] sm:$0xff] %v291
                %v293 = vld [vmem:[%s167 + $0xaf0] sm:$0xff]
                %294 = vst [vmem:[%s168 + $0x1f0] sm:$0xff] %v293
                %v295 = vld [vmem:[%s167 + $0xaf8] sm:$0xff]
                %296 = vst [vmem:[%s168 + $0x1f8] sm:$0xff] %v295
              $region37: #{convnet_nin_forward.3} parent=31 // loop_footer
                %s166 = sadd.s32 1, %s162
              $region38: #{convnet_nin_forward.3} parent=31 // loop_footer_branch
                %161 = sbr.rel target = $region34
              $region39: #{convnet_nin_forward.3} parent=31 // loop_exit
                _
            $region32: #{convnet_nin_forward.3} parent=27 // pred_fallthru
              _
            // Predicated region
            $region40: #{convnet_nin_forward.3} parent=27 // pred_check
              _
            $region41: #{convnet_nin_forward.3} parent=27 // pred_check_branch
              %298 = sbr.rel target = $region43
            $region42: #{convnet_nin_forward.3} parent=27 // pred_region
              _
            $region43: #{convnet_nin_forward.3} parent=27 // pred_fallthru
              _
          $region28: #{convnet_nin_forward.3} parent=23 // pred_fallthru
            _
          %299 = vnop
        $region24: #{convnet_nin_forward.3} parent=19 // pred_fallthru
          _
        // Predicated region
        $region44: #{convnet_nin_forward.3} parent=19 // pred_check
          %p300 = pneg %p69
        $region45: #{convnet_nin_forward.3} parent=19 // pred_check_branch
          %302 = sbr.rel (%p300) target = $region47
        $region46: #{convnet_nin_forward.3} parent=19 // pred_region
          %s303 = smul.u32 512, %s17
          %p304 = scmp.lt.s32.totalorder %s303, 3583
          %s305 = scalar_select %p304, %s303, 3583
          %s306 = smul.addr %s305, 4
          %s307 = scalar_lea.vmem %s1, %s306
          %s308 = smul.u32 512, %s17
        $region47: #{convnet_nin_forward.3} parent=19 // pred_fallthru
          _
      $region20: #{convnet_nin_forward.3} parent=5 // pred_fallthru
        _
      %p309 = scmp.le.s32.totalorder 1, %s9
      %p310 = scmp.lt.s32.totalorder %s9, 8
      %p311 = pnand %p309, %p310
      %p312 = pneg %p311
      // Predicated region
      $region48: #{convnet_nin_forward.3} parent=5 // pred_check
        _
      $region49: #{convnet_nin_forward.3} parent=5 // pred_check_branch
        %314 = sbr.rel (%p311) target = $region51
      $region50: #{convnet_nin_forward.3} parent=5 // pred_region
        %s315 = ssub.s32 %s9, 1
        %s316 = sand.u32 %s36, 1
        %s317 = sand.u32 %s36, 1
        %s318 = smul.addr %s317, 512
        %s319 = scalar_lea.vmem [#allocation2], %s318
        // Predicated region
        $region52: #{convnet_nin_forward.3} parent=50 // pred_check
          %p320 = pneg %p49
        $region53: #{convnet_nin_forward.3} parent=50 // pred_check_branch
          %322 = sbr.rel (%p320) target = $region55
        $region54: #{convnet_nin_forward.3} parent=50 // pred_region
          _
        $region55: #{convnet_nin_forward.3} parent=50 // pred_fallthru
          _
        %s323 = sand.u32 %s36, 1
        %s324 = sand.u32 %s36, 1
        %s325 = smul.addr %s324, 512
        %s326 = scalar_lea.vmem [#allocation2], %s325
        %p327 = pneg %p49
        %p328 = pneg %p46
        %s329 = smul.u32 512, %s19
        %p330 = scmp.lt.s32.totalorder %s329, 3583
        %s331 = scalar_select %p330, %s329, 3583
        %s332 = smul.addr %s331, 4
        %s333 = scalar_lea.vmem %s1, %s332
        %p334 = pneg %p75
        %p335 = pneg %p72
        %p336 = pneg %p96
        %p337 = pneg %p93
        %p338 = pneg %p122
        %p339 = pneg %p119
        %s340 = smul.u32 4, %s18
        %p341 = scmp.lt.s32.totalorder %s340, 3
        %s342 = scalar_select %p341, %s340, 3
        %s343 = smul.addr %s342, 8
        %s344 = scalar_lea.vmem %s3, %s343
        %s345 = smul.u32 4, %s18
        %s346 = smul.u32 32, %s19
        %s347 = smul.u32 512, %s19
        %p348 = scmp.lt.s32.totalorder %s347, 3583
        %s349 = scalar_select %p348, %s347, 3583
        %s350 = smul.addr %s349, 4
        %s351 = scalar_lea.vmem %s1, %s350
        %s352 = smul.u32 512, %s19
        %s353 = smul.u32 4, %s18
        %p354 = scmp.lt.s32.totalorder %s353, 3
        %s355 = scalar_select %p354, %s353, 3
        %s356 = smul.addr %s355, 8
        %s357 = scalar_lea.vmem %s3, %s356
        %s358 = smul.u32 4, %s18
        %p360 = scmp.eq.s32.totalorder %s19, 0
        // Predicated region
        $region56: #{convnet_nin_forward.3} parent=50 // pred_check
          %p361 = pneg %p360
        $region57: #{convnet_nin_forward.3} parent=50 // pred_check_branch
          %363 = sbr.rel (%p361) target = $region59
        $region58: #{convnet_nin_forward.3} parent=50 // pred_region
          %364 = vst [vmem:[%s357] sm:$0xff] 0.0
          %365 = vst [vmem:[%s357 + $0x8] sm:$0xff] 0.0
          %366 = vst [vmem:[%s357 + $0x10] sm:$0xff] 0.0
          %367 = vst [vmem:[%s357 + $0x18] sm:$0xff] 0.0
        $region59: #{convnet_nin_forward.3} parent=50 // pred_fallthru
          _
        %v368 = vld [vmem:[%s357] sm:$0xff]
        %v369 = vld [vmem:[%s357 + $0x8] sm:$0xff]
        %v370 = vld [vmem:[%s357 + $0x10] sm:$0xff]
        %v371 = vld [vmem:[%s357 + $0x18] sm:$0xff]
        %v372 = vld [vmem:[%s319] sm:$0xff]
        %v373 = vld [vmem:[%s319 + $0x8] sm:$0xff]
        %v374 = vld [vmem:[%s319 + $0x10] sm:$0xff]
        %v375 = vld [vmem:[%s319 + $0x18] sm:$0xff]
        %v376 = vld [vmem:[%s319 + $0x20] sm:$0xff]
        %v377 = vld [vmem:[%s319 + $0x28] sm:$0xff]
        %v378 = vld [vmem:[%s319 + $0x30] sm:$0xff]
        %v379 = vld [vmem:[%s319 + $0x38] sm:$0xff]
        %v380 = vld [vmem:[%s319 + $0x40] sm:$0xff]
        %v381 = vld [vmem:[%s319 + $0x48] sm:$0xff]
        %v382 = vld [vmem:[%s319 + $0x50] sm:$0xff]
        %v383 = vld [vmem:[%s319 + $0x58] sm:$0xff]
        %v384 = vld [vmem:[%s319 + $0x60] sm:$0xff]
        %v385 = vld [vmem:[%s319 + $0x68] sm:$0xff]
        %v386 = vld [vmem:[%s319 + $0x70] sm:$0xff]
        %v387 = vld [vmem:[%s319 + $0x78] sm:$0xff]
        %v388 = vld [vmem:[%s319 + $0x80] sm:$0xff]
        %v389 = vld [vmem:[%s319 + $0x88] sm:$0xff]
        %v390 = vld [vmem:[%s319 + $0x90] sm:$0xff]
        %v391 = vld [vmem:[%s319 + $0x98] sm:$0xff]
        %v392 = vld [vmem:[%s319 + $0xa0] sm:$0xff]
        %v393 = vld [vmem:[%s319 + $0xa8] sm:$0xff]
        %v394 = vld [vmem:[%s319 + $0xb0] sm:$0xff]
        %v395 = vld [vmem:[%s319 + $0xb8] sm:$0xff]
        %v396 = vld [vmem:[%s319 + $0xc0] sm:$0xff]
        %v397 = vld [vmem:[%s319 + $0xc8] sm:$0xff]
        %v398 = vld [vmem:[%s319 + $0xd0] sm:$0xff]
        %v399 = vld [vmem:[%s319 + $0xd8] sm:$0xff]
        %v400 = vld [vmem:[%s319 + $0xe0] sm:$0xff]
        %v401 = vld [vmem:[%s319 + $0xe8] sm:$0xff]
        %v402 = vld [vmem:[%s319 + $0xf0] sm:$0xff]
        %v403 = vld [vmem:[%s319 + $0xf8] sm:$0xff]
        %v404 = vld [vmem:[%s319 + $0x100] sm:$0xff]
        %v405 = vld [vmem:[%s319 + $0x108] sm:$0xff]
        %v406 = vld [vmem:[%s319 + $0x110] sm:$0xff]
        %v407 = vld [vmem:[%s319 + $0x118] sm:$0xff]
        %v408 = vld [vmem:[%s319 + $0x120] sm:$0xff]
        %v409 = vld [vmem:[%s319 + $0x128] sm:$0xff]
        %v410 = vld [vmem:[%s319 + $0x130] sm:$0xff]
        %v411 = vld [vmem:[%s319 + $0x138] sm:$0xff]
        %v412 = vld [vmem:[%s319 + $0x140] sm:$0xff]
        %v413 = vld [vmem:[%s319 + $0x148] sm:$0xff]
        %v414 = vld [vmem:[%s319 + $0x150] sm:$0xff]
        %v415 = vld [vmem:[%s319 + $0x158] sm:$0xff]
        %v416 = vld [vmem:[%s319 + $0x160] sm:$0xff]
        %v417 = vld [vmem:[%s319 + $0x168] sm:$0xff]
        %v418 = vld [vmem:[%s319 + $0x170] sm:$0xff]
        %v419 = vld [vmem:[%s319 + $0x178] sm:$0xff]
        %v420 = vld [vmem:[%s319 + $0x180] sm:$0xff]
        %v421 = vld [vmem:[%s319 + $0x188] sm:$0xff]
        %v422 = vld [vmem:[%s319 + $0x190] sm:$0xff]
        %v423 = vld [vmem:[%s319 + $0x198] sm:$0xff]
        %v424 = vld [vmem:[%s319 + $0x1a0] sm:$0xff]
        %v425 = vld [vmem:[%s319 + $0x1a8] sm:$0xff]
        %v426 = vld [vmem:[%s319 + $0x1b0] sm:$0xff]
        %v427 = vld [vmem:[%s319 + $0x1b8] sm:$0xff]
        %v428 = vld [vmem:[%s319 + $0x1c0] sm:$0xff]
        %v429 = vld [vmem:[%s319 + $0x1c8] sm:$0xff]
        %v430 = vld [vmem:[%s319 + $0x1d0] sm:$0xff]
        %v431 = vld [vmem:[%s319 + $0x1d8] sm:$0xff]
        %v432 = vld [vmem:[%s319 + $0x1e0] sm:$0xff]
        %v433 = vld [vmem:[%s319 + $0x1e8] sm:$0xff]
        %v434 = vld [vmem:[%s319 + $0x1f0] sm:$0xff]
        %v435 = vld [vmem:[%s319 + $0x1f8] sm:$0xff]
        %v436 = vld [vmem:[%s351] sm:$0xf]
        %v437 = vld [vmem:[%s351 + $0x4] sm:$0xf]
        %v438 = vld [vmem:[%s351 + $0x8] sm:$0xf]
        %v439 = vld [vmem:[%s351 + $0xc] sm:$0xf]
        %v440 = vld [vmem:[%s351 + $0x10] sm:$0xf]
        %v441 = vld [vmem:[%s351 + $0x14] sm:$0xf]
        %v442 = vld [vmem:[%s351 + $0x18] sm:$0xf]
        %v443 = vld [vmem:[%s351 + $0x1c] sm:$0xf]
        %v444 = vld [vmem:[%s351 + $0x20] sm:$0xf]
        %v445 = vld [vmem:[%s351 + $0x24] sm:$0xf]
        %v446 = vld [vmem:[%s351 + $0x28] sm:$0xf]
        %v447 = vld [vmem:[%s351 + $0x2c] sm:$0xf]
        %v448 = vld [vmem:[%s351 + $0x30] sm:$0xf]
        %v449 = vld [vmem:[%s351 + $0x34] sm:$0xf]
        %v450 = vld [vmem:[%s351 + $0x38] sm:$0xf]
        %v451 = vld [vmem:[%s351 + $0x3c] sm:$0xf]
        %v452 = vld [vmem:[%s351 + $0x40] sm:$0xf]
        %v453 = vld [vmem:[%s351 + $0x44] sm:$0xf]
        %v454 = vld [vmem:[%s351 + $0x48] sm:$0xf]
        %v455 = vld [vmem:[%s351 + $0x4c] sm:$0xf]
        %v456 = vld [vmem:[%s351 + $0x50] sm:$0xf]
        %v457 = vld [vmem:[%s351 + $0x54] sm:$0xf]
        %v458 = vld [vmem:[%s351 + $0x58] sm:$0xf]
        %v459 = vld [vmem:[%s351 + $0x5c] sm:$0xf]
        %v460 = vld [vmem:[%s351 + $0x60] sm:$0xf]
        %v461 = vld [vmem:[%s351 + $0x64] sm:$0xf]
        %v462 = vld [vmem:[%s351 + $0x68] sm:$0xf]
        %v463 = vld [vmem:[%s351 + $0x6c] sm:$0xf]
        %v464 = vld [vmem:[%s351 + $0x70] sm:$0xf]
        %v465 = vld [vmem:[%s351 + $0x74] sm:$0xf]
        %v466 = vld [vmem:[%s351 + $0x78] sm:$0xf]
        %v467 = vld [vmem:[%s351 + $0x7c] sm:$0xf]
        %v468 = vld [vmem:[%s351 + $0x80] sm:$0xf]
        %v469 = vld [vmem:[%s351 + $0x84] sm:$0xf]
        %v470 = vld [vmem:[%s351 + $0x88] sm:$0xf]
        %v471 = vld [vmem:[%s351 + $0x8c] sm:$0xf]
        %v472 = vld [vmem:[%s351 + $0x90] sm:$0xf]
        %v473 = vld [vmem:[%s351 + $0x94] sm:$0xf]
        %v474 = vld [vmem:[%s351 + $0x98] sm:$0xf]
        %v475 = vld [vmem:[%s351 + $0x9c] sm:$0xf]
        %v476 = vld [vmem:[%s351 + $0xa0] sm:$0xf]
        %v477 = vld [vmem:[%s351 + $0xa4] sm:$0xf]
        %v478 = vld [vmem:[%s351 + $0xa8] sm:$0xf]
        %v479 = vld [vmem:[%s351 + $0xac] sm:$0xf]
        %v480 = vld [vmem:[%s351 + $0xb0] sm:$0xf]
        %v481 = vld [vmem:[%s351 + $0xb4] sm:$0xf]
        %v482 = vld [vmem:[%s351 + $0xb8] sm:$0xf]
        %v483 = vld [vmem:[%s351 + $0xbc] sm:$0xf]
        %v484 = vld [vmem:[%s351 + $0xc0] sm:$0xf]
        %v485 = vld [vmem:[%s351 + $0xc4] sm:$0xf]
        %v486 = vld [vmem:[%s351 + $0xc8] sm:$0xf]
        %v487 = vld [vmem:[%s351 + $0xcc] sm:$0xf]
        %v488 = vld [vmem:[%s351 + $0xd0] sm:$0xf]
        %v489 = vld [vmem:[%s351 + $0xd4] sm:$0xf]
        %v490 = vld [vmem:[%s351 + $0xd8] sm:$0xf]
        %v491 = vld [vmem:[%s351 + $0xdc] sm:$0xf]
        %v492 = vld [vmem:[%s351 + $0xe0] sm:$0xf]
        %v493 = vld [vmem:[%s351 + $0xe4] sm:$0xf]
        %v494 = vld [vmem:[%s351 + $0xe8] sm:$0xf]
        %v495 = vld [vmem:[%s351 + $0xec] sm:$0xf]
        %v496 = vld [vmem:[%s351 + $0xf0] sm:$0xf]
        %v497 = vld [vmem:[%s351 + $0xf4] sm:$0xf]
        %v498 = vld [vmem:[%s351 + $0xf8] sm:$0xf]
        %v499 = vld [vmem:[%s351 + $0xfc] sm:$0xf]
        %v500 = vld [vmem:[%s351 + $0x100] sm:$0xf]
        %v501 = vld [vmem:[%s351 + $0x104] sm:$0xf]
        %v502 = vld [vmem:[%s351 + $0x108] sm:$0xf]
        %v503 = vld [vmem:[%s351 + $0x10c] sm:$0xf]
        %v504 = vld [vmem:[%s351 + $0x110] sm:$0xf]
        %v505 = vld [vmem:[%s351 + $0x114] sm:$0xf]
        %v506 = vld [vmem:[%s351 + $0x118] sm:$0xf]
        %v507 = vld [vmem:[%s351 + $0x11c] sm:$0xf]
        %v508 = vld [vmem:[%s351 + $0x120] sm:$0xf]
        %v509 = vld [vmem:[%s351 + $0x124] sm:$0xf]
        %v510 = vld [vmem:[%s351 + $0x128] sm:$0xf]
        %v511 = vld [vmem:[%s351 + $0x12c] sm:$0xf]
        %v512 = vld [vmem:[%s351 + $0x130] sm:$0xf]
        %v513 = vld [vmem:[%s351 + $0x134] sm:$0xf]
        %v514 = vld [vmem:[%s351 + $0x138] sm:$0xf]
        %v515 = vld [vmem:[%s351 + $0x13c] sm:$0xf]
        %v516 = vld [vmem:[%s351 + $0x140] sm:$0xf]
        %v517 = vld [vmem:[%s351 + $0x144] sm:$0xf]
        %v518 = vld [vmem:[%s351 + $0x148] sm:$0xf]
        %v519 = vld [vmem:[%s351 + $0x14c] sm:$0xf]
        %v520 = vld [vmem:[%s351 + $0x150] sm:$0xf]
        %v521 = vld [vmem:[%s351 + $0x154] sm:$0xf]
        %v522 = vld [vmem:[%s351 + $0x158] sm:$0xf]
        %v523 = vld [vmem:[%s351 + $0x15c] sm:$0xf]
        %v524 = vld [vmem:[%s351 + $0x160] sm:$0xf]
        %v525 = vld [vmem:[%s351 + $0x164] sm:$0xf]
        %v526 = vld [vmem:[%s351 + $0x168] sm:$0xf]
        %v527 = vld [vmem:[%s351 + $0x16c] sm:$0xf]
        %v528 = vld [vmem:[%s351 + $0x170] sm:$0xf]
        %v529 = vld [vmem:[%s351 + $0x174] sm:$0xf]
        %v530 = vld [vmem:[%s351 + $0x178] sm:$0xf]
        %v531 = vld [vmem:[%s351 + $0x17c] sm:$0xf]
        %v532 = vld [vmem:[%s351 + $0x180] sm:$0xf]
        %v533 = vld [vmem:[%s351 + $0x184] sm:$0xf]
        %v534 = vld [vmem:[%s351 + $0x188] sm:$0xf]
        %v535 = vld [vmem:[%s351 + $0x18c] sm:$0xf]
        %v536 = vld [vmem:[%s351 + $0x190] sm:$0xf]
        %v537 = vld [vmem:[%s351 + $0x194] sm:$0xf]
        %v538 = vld [vmem:[%s351 + $0x198] sm:$0xf]
        %v539 = vld [vmem:[%s351 + $0x19c] sm:$0xf]
        %v540 = vld [vmem:[%s351 + $0x1a0] sm:$0xf]
        %v541 = vld [vmem:[%s351 + $0x1a4] sm:$0xf]
        %v542 = vld [vmem:[%s351 + $0x1a8] sm:$0xf]
        %v543 = vld [vmem:[%s351 + $0x1ac] sm:$0xf]
        %v544 = vld [vmem:[%s351 + $0x1b0] sm:$0xf]
        %v545 = vld [vmem:[%s351 + $0x1b4] sm:$0xf]
        %v546 = vld [vmem:[%s351 + $0x1b8] sm:$0xf]
        %v547 = vld [vmem:[%s351 + $0x1bc] sm:$0xf]
        %v548 = vld [vmem:[%s351 + $0x1c0] sm:$0xf]
        %v549 = vld [vmem:[%s351 + $0x1c4] sm:$0xf]
        %v550 = vld [vmem:[%s351 + $0x1c8] sm:$0xf]
        %v551 = vld [vmem:[%s351 + $0x1cc] sm:$0xf]
        %v552 = vld [vmem:[%s351 + $0x1d0] sm:$0xf]
        %v553 = vld [vmem:[%s351 + $0x1d4] sm:$0xf]
        %v554 = vld [vmem:[%s351 + $0x1d8] sm:$0xf]
        %v555 = vld [vmem:[%s351 + $0x1dc] sm:$0xf]
        %v556 = vld [vmem:[%s351 + $0x1e0] sm:$0xf]
        %v557 = vld [vmem:[%s351 + $0x1e4] sm:$0xf]
        %v558 = vld [vmem:[%s351 + $0x1e8] sm:$0xf]
        %v559 = vld [vmem:[%s351 + $0x1ec] sm:$0xf]
        %v560 = vld [vmem:[%s351 + $0x1f0] sm:$0xf]
        %v561 = vld [vmem:[%s351 + $0x1f4] sm:$0xf]
        %v562 = vld [vmem:[%s351 + $0x1f8] sm:$0xf]
        %v563 = vld [vmem:[%s351 + $0x1fc] sm:$0xf]
        %v564 = vld [vmem:[%s351 + $0x200] sm:$0xf]
        %v565 = vld [vmem:[%s351 + $0x204] sm:$0xf]
        %v566 = vld [vmem:[%s351 + $0x208] sm:$0xf]
        %v567 = vld [vmem:[%s351 + $0x20c] sm:$0xf]
        %v568 = vld [vmem:[%s351 + $0x210] sm:$0xf]
        %v569 = vld [vmem:[%s351 + $0x214] sm:$0xf]
        %v570 = vld [vmem:[%s351 + $0x218] sm:$0xf]
        %v571 = vld [vmem:[%s351 + $0x21c] sm:$0xf]
        %v572 = vld [vmem:[%s351 + $0x220] sm:$0xf]
        %v573 = vld [vmem:[%s351 + $0x224] sm:$0xf]
        %v574 = vld [vmem:[%s351 + $0x228] sm:$0xf]
        %v575 = vld [vmem:[%s351 + $0x22c] sm:$0xf]
        %v576 = vld [vmem:[%s351 + $0x230] sm:$0xf]
        %v577 = vld [vmem:[%s351 + $0x234] sm:$0xf]
        %v578 = vld [vmem:[%s351 + $0x238] sm:$0xf]
        %v579 = vld [vmem:[%s351 + $0x23c] sm:$0xf]
        %v580 = vld [vmem:[%s351 + $0x240] sm:$0xf]
        %v581 = vld [vmem:[%s351 + $0x244] sm:$0xf]
        %v582 = vld [vmem:[%s351 + $0x248] sm:$0xf]
        %v583 = vld [vmem:[%s351 + $0x24c] sm:$0xf]
        %v584 = vld [vmem:[%s351 + $0x250] sm:$0xf]
        %v585 = vld [vmem:[%s351 + $0x254] sm:$0xf]
        %v586 = vld [vmem:[%s351 + $0x258] sm:$0xf]
        %v587 = vld [vmem:[%s351 + $0x25c] sm:$0xf]
        %v588 = vld [vmem:[%s351 + $0x260] sm:$0xf]
        %v589 = vld [vmem:[%s351 + $0x264] sm:$0xf]
        %v590 = vld [vmem:[%s351 + $0x268] sm:$0xf]
        %v591 = vld [vmem:[%s351 + $0x26c] sm:$0xf]
        %v592 = vld [vmem:[%s351 + $0x270] sm:$0xf]
        %v593 = vld [vmem:[%s351 + $0x274] sm:$0xf]
        %v594 = vld [vmem:[%s351 + $0x278] sm:$0xf]
        %v595 = vld [vmem:[%s351 + $0x27c] sm:$0xf]
        %v596 = vld [vmem:[%s351 + $0x280] sm:$0xf]
        %v597 = vld [vmem:[%s351 + $0x284] sm:$0xf]
        %v598 = vld [vmem:[%s351 + $0x288] sm:$0xf]
        %v599 = vld [vmem:[%s351 + $0x28c] sm:$0xf]
        %v600 = vld [vmem:[%s351 + $0x290] sm:$0xf]
        %v601 = vld [vmem:[%s351 + $0x294] sm:$0xf]
        %v602 = vld [vmem:[%s351 + $0x298] sm:$0xf]
        %v603 = vld [vmem:[%s351 + $0x29c] sm:$0xf]
        %v604 = vld [vmem:[%s351 + $0x2a0] sm:$0xf]
        %v605 = vld [vmem:[%s351 + $0x2a4] sm:$0xf]
        %v606 = vld [vmem:[%s351 + $0x2a8] sm:$0xf]
        %v607 = vld [vmem:[%s351 + $0x2ac] sm:$0xf]
        %v608 = vld [vmem:[%s351 + $0x2b0] sm:$0xf]
        %v609 = vld [vmem:[%s351 + $0x2b4] sm:$0xf]
        %v610 = vld [vmem:[%s351 + $0x2b8] sm:$0xf]
        %v611 = vld [vmem:[%s351 + $0x2bc] sm:$0xf]
        %v612 = vld [vmem:[%s351 + $0x2c0] sm:$0xf]
        %v613 = vld [vmem:[%s351 + $0x2c4] sm:$0xf]
        %v614 = vld [vmem:[%s351 + $0x2c8] sm:$0xf]
        %v615 = vld [vmem:[%s351 + $0x2cc] sm:$0xf]
        %v616 = vld [vmem:[%s351 + $0x2d0] sm:$0xf]
        %v617 = vld [vmem:[%s351 + $0x2d4] sm:$0xf]
        %v618 = vld [vmem:[%s351 + $0x2d8] sm:$0xf]
        %v619 = vld [vmem:[%s351 + $0x2dc] sm:$0xf]
        %v620 = vld [vmem:[%s351 + $0x2e0] sm:$0xf]
        %v621 = vld [vmem:[%s351 + $0x2e4] sm:$0xf]
        %v622 = vld [vmem:[%s351 + $0x2e8] sm:$0xf]
        %v623 = vld [vmem:[%s351 + $0x2ec] sm:$0xf]
        %v624 = vld [vmem:[%s351 + $0x2f0] sm:$0xf]
        %v625 = vld [vmem:[%s351 + $0x2f4] sm:$0xf]
        %v626 = vld [vmem:[%s351 + $0x2f8] sm:$0xf]
        %v627 = vld [vmem:[%s351 + $0x2fc] sm:$0xf]
        %v628 = vld [vmem:[%s351 + $0x300] sm:$0xf]
        %v629 = vld [vmem:[%s351 + $0x304] sm:$0xf]
        %v630 = vld [vmem:[%s351 + $0x308] sm:$0xf]
        %v631 = vld [vmem:[%s351 + $0x30c] sm:$0xf]
        %v632 = vld [vmem:[%s351 + $0x310] sm:$0xf]
        %v633 = vld [vmem:[%s351 + $0x314] sm:$0xf]
        %v634 = vld [vmem:[%s351 + $0x318] sm:$0xf]
        %v635 = vld [vmem:[%s351 + $0x31c] sm:$0xf]
        %v636 = vld [vmem:[%s351 + $0x320] sm:$0xf]
        %v637 = vld [vmem:[%s351 + $0x324] sm:$0xf]
        %v638 = vld [vmem:[%s351 + $0x328] sm:$0xf]
        %v639 = vld [vmem:[%s351 + $0x32c] sm:$0xf]
        %v640 = vld [vmem:[%s351 + $0x330] sm:$0xf]
        %v641 = vld [vmem:[%s351 + $0x334] sm:$0xf]
        %v642 = vld [vmem:[%s351 + $0x338] sm:$0xf]
        %v643 = vld [vmem:[%s351 + $0x33c] sm:$0xf]
        %v644 = vld [vmem:[%s351 + $0x340] sm:$0xf]
        %v645 = vld [vmem:[%s351 + $0x344] sm:$0xf]
        %v646 = vld [vmem:[%s351 + $0x348] sm:$0xf]
        %v647 = vld [vmem:[%s351 + $0x34c] sm:$0xf]
        %v648 = vld [vmem:[%s351 + $0x350] sm:$0xf]
        %v649 = vld [vmem:[%s351 + $0x354] sm:$0xf]
        %v650 = vld [vmem:[%s351 + $0x358] sm:$0xf]
        %v651 = vld [vmem:[%s351 + $0x35c] sm:$0xf]
        %v652 = vld [vmem:[%s351 + $0x360] sm:$0xf]
        %v653 = vld [vmem:[%s351 + $0x364] sm:$0xf]
        %v654 = vld [vmem:[%s351 + $0x368] sm:$0xf]
        %v655 = vld [vmem:[%s351 + $0x36c] sm:$0xf]
        %v656 = vld [vmem:[%s351 + $0x370] sm:$0xf]
        %v657 = vld [vmem:[%s351 + $0x374] sm:$0xf]
        %v658 = vld [vmem:[%s351 + $0x378] sm:$0xf]
        %v659 = vld [vmem:[%s351 + $0x37c] sm:$0xf]
        %v660 = vld [vmem:[%s351 + $0x380] sm:$0xf]
        %v661 = vld [vmem:[%s351 + $0x384] sm:$0xf]
        %v662 = vld [vmem:[%s351 + $0x388] sm:$0xf]
        %v663 = vld [vmem:[%s351 + $0x38c] sm:$0xf]
        %v664 = vld [vmem:[%s351 + $0x390] sm:$0xf]
        %v665 = vld [vmem:[%s351 + $0x394] sm:$0xf]
        %v666 = vld [vmem:[%s351 + $0x398] sm:$0xf]
        %v667 = vld [vmem:[%s351 + $0x39c] sm:$0xf]
        %v668 = vld [vmem:[%s351 + $0x3a0] sm:$0xf]
        %v669 = vld [vmem:[%s351 + $0x3a4] sm:$0xf]
        %v670 = vld [vmem:[%s351 + $0x3a8] sm:$0xf]
        %v671 = vld [vmem:[%s351 + $0x3ac] sm:$0xf]
        %v672 = vld [vmem:[%s351 + $0x3b0] sm:$0xf]
        %v673 = vld [vmem:[%s351 + $0x3b4] sm:$0xf]
        %v674 = vld [vmem:[%s351 + $0x3b8] sm:$0xf]
        %v675 = vld [vmem:[%s351 + $0x3bc] sm:$0xf]
        %v676 = vld [vmem:[%s351 + $0x3c0] sm:$0xf]
        %v677 = vld [vmem:[%s351 + $0x3c4] sm:$0xf]
        %v678 = vld [vmem:[%s351 + $0x3c8] sm:$0xf]
        %v679 = vld [vmem:[%s351 + $0x3cc] sm:$0xf]
        %v680 = vld [vmem:[%s351 + $0x3d0] sm:$0xf]
        %v681 = vld [vmem:[%s351 + $0x3d4] sm:$0xf]
        %v682 = vld [vmem:[%s351 + $0x3d8] sm:$0xf]
        %v683 = vld [vmem:[%s351 + $0x3dc] sm:$0xf]
        %v684 = vld [vmem:[%s351 + $0x3e0] sm:$0xf]
        %v685 = vld [vmem:[%s351 + $0x3e4] sm:$0xf]
        %v686 = vld [vmem:[%s351 + $0x3e8] sm:$0xf]
        %v687 = vld [vmem:[%s351 + $0x3ec] sm:$0xf]
        %v688 = vld [vmem:[%s351 + $0x3f0] sm:$0xf]
        %v689 = vld [vmem:[%s351 + $0x3f4] sm:$0xf]
        %v690 = vld [vmem:[%s351 + $0x3f8] sm:$0xf]
        %v691 = vld [vmem:[%s351 + $0x3fc] sm:$0xf]
        %v692 = vld [vmem:[%s351 + $0x400] sm:$0xf]
        %v693 = vld [vmem:[%s351 + $0x404] sm:$0xf]
        %v694 = vld [vmem:[%s351 + $0x408] sm:$0xf]
        %v695 = vld [vmem:[%s351 + $0x40c] sm:$0xf]
        %v696 = vld [vmem:[%s351 + $0x410] sm:$0xf]
        %v697 = vld [vmem:[%s351 + $0x414] sm:$0xf]
        %v698 = vld [vmem:[%s351 + $0x418] sm:$0xf]
        %v699 = vld [vmem:[%s351 + $0x41c] sm:$0xf]
        %v700 = vld [vmem:[%s351 + $0x420] sm:$0xf]
        %v701 = vld [vmem:[%s351 + $0x424] sm:$0xf]
        %v702 = vld [vmem:[%s351 + $0x428] sm:$0xf]
        %v703 = vld [vmem:[%s351 + $0x42c] sm:$0xf]
        %v704 = vld [vmem:[%s351 + $0x430] sm:$0xf]
        %v705 = vld [vmem:[%s351 + $0x434] sm:$0xf]
        %v706 = vld [vmem:[%s351 + $0x438] sm:$0xf]
        %v707 = vld [vmem:[%s351 + $0x43c] sm:$0xf]
        %v708 = vld [vmem:[%s351 + $0x440] sm:$0xf]
        %v709 = vld [vmem:[%s351 + $0x444] sm:$0xf]
        %v710 = vld [vmem:[%s351 + $0x448] sm:$0xf]
        %v711 = vld [vmem:[%s351 + $0x44c] sm:$0xf]
        %v712 = vld [vmem:[%s351 + $0x450] sm:$0xf]
        %v713 = vld [vmem:[%s351 + $0x454] sm:$0xf]
        %v714 = vld [vmem:[%s351 + $0x458] sm:$0xf]
        %v715 = vld [vmem:[%s351 + $0x45c] sm:$0xf]
        %v716 = vld [vmem:[%s351 + $0x460] sm:$0xf]
        %v717 = vld [vmem:[%s351 + $0x464] sm:$0xf]
        %v718 = vld [vmem:[%s351 + $0x468] sm:$0xf]
        %v719 = vld [vmem:[%s351 + $0x46c] sm:$0xf]
        %v720 = vld [vmem:[%s351 + $0x470] sm:$0xf]
        %v721 = vld [vmem:[%s351 + $0x474] sm:$0xf]
        %v722 = vld [vmem:[%s351 + $0x478] sm:$0xf]
        %v723 = vld [vmem:[%s351 + $0x47c] sm:$0xf]
        %v724 = vld [vmem:[%s351 + $0x480] sm:$0xf]
        %v725 = vld [vmem:[%s351 + $0x484] sm:$0xf]
        %v726 = vld [vmem:[%s351 + $0x488] sm:$0xf]
        %v727 = vld [vmem:[%s351 + $0x48c] sm:$0xf]
        %v728 = vld [vmem:[%s351 + $0x490] sm:$0xf]
        %v729 = vld [vmem:[%s351 + $0x494] sm:$0xf]
        %v730 = vld [vmem:[%s351 + $0x498] sm:$0xf]
        %v731 = vld [vmem:[%s351 + $0x49c] sm:$0xf]
        %v732 = vld [vmem:[%s351 + $0x4a0] sm:$0xf]
        %v733 = vld [vmem:[%s351 + $0x4a4] sm:$0xf]
        %v734 = vld [vmem:[%s351 + $0x4a8] sm:$0xf]
        %v735 = vld [vmem:[%s351 + $0x4ac] sm:$0xf]
        %v736 = vld [vmem:[%s351 + $0x4b0] sm:$0xf]
        %v737 = vld [vmem:[%s351 + $0x4b4] sm:$0xf]
        %v738 = vld [vmem:[%s351 + $0x4b8] sm:$0xf]
        %v739 = vld [vmem:[%s351 + $0x4bc] sm:$0xf]
        %v740 = vld [vmem:[%s351 + $0x4c0] sm:$0xf]
        %v741 = vld [vmem:[%s351 + $0x4c4] sm:$0xf]
        %v742 = vld [vmem:[%s351 + $0x4c8] sm:$0xf]
        %v743 = vld [vmem:[%s351 + $0x4cc] sm:$0xf]
        %v744 = vld [vmem:[%s351 + $0x4d0] sm:$0xf]
        %v745 = vld [vmem:[%s351 + $0x4d4] sm:$0xf]
        %v746 = vld [vmem:[%s351 + $0x4d8] sm:$0xf]
        %v747 = vld [vmem:[%s351 + $0x4dc] sm:$0xf]
        %v748 = vld [vmem:[%s351 + $0x4e0] sm:$0xf]
        %v749 = vld [vmem:[%s351 + $0x4e4] sm:$0xf]
        %v750 = vld [vmem:[%s351 + $0x4e8] sm:$0xf]
        %v751 = vld [vmem:[%s351 + $0x4ec] sm:$0xf]
        %v752 = vld [vmem:[%s351 + $0x4f0] sm:$0xf]
        %v753 = vld [vmem:[%s351 + $0x4f4] sm:$0xf]
        %v754 = vld [vmem:[%s351 + $0x4f8] sm:$0xf]
        %v755 = vld [vmem:[%s351 + $0x4fc] sm:$0xf]
        %v756 = vld [vmem:[%s351 + $0x500] sm:$0xf]
        %v757 = vld [vmem:[%s351 + $0x504] sm:$0xf]
        %v758 = vld [vmem:[%s351 + $0x508] sm:$0xf]
        %v759 = vld [vmem:[%s351 + $0x50c] sm:$0xf]
        %v760 = vld [vmem:[%s351 + $0x510] sm:$0xf]
        %v761 = vld [vmem:[%s351 + $0x514] sm:$0xf]
        %v762 = vld [vmem:[%s351 + $0x518] sm:$0xf]
        %v763 = vld [vmem:[%s351 + $0x51c] sm:$0xf]
        %v764 = vld [vmem:[%s351 + $0x520] sm:$0xf]
        %v765 = vld [vmem:[%s351 + $0x524] sm:$0xf]
        %v766 = vld [vmem:[%s351 + $0x528] sm:$0xf]
        %v767 = vld [vmem:[%s351 + $0x52c] sm:$0xf]
        %v768 = vld [vmem:[%s351 + $0x530] sm:$0xf]
        %v769 = vld [vmem:[%s351 + $0x534] sm:$0xf]
        %v770 = vld [vmem:[%s351 + $0x538] sm:$0xf]
        %v771 = vld [vmem:[%s351 + $0x53c] sm:$0xf]
        %v772 = vld [vmem:[%s351 + $0x540] sm:$0xf]
        %v773 = vld [vmem:[%s351 + $0x544] sm:$0xf]
        %v774 = vld [vmem:[%s351 + $0x548] sm:$0xf]
        %v775 = vld [vmem:[%s351 + $0x54c] sm:$0xf]
        %v776 = vld [vmem:[%s351 + $0x550] sm:$0xf]
        %v777 = vld [vmem:[%s351 + $0x554] sm:$0xf]
        %v778 = vld [vmem:[%s351 + $0x558] sm:$0xf]
        %v779 = vld [vmem:[%s351 + $0x55c] sm:$0xf]
        %v780 = vld [vmem:[%s351 + $0x560] sm:$0xf]
        %v781 = vld [vmem:[%s351 + $0x564] sm:$0xf]
        %v782 = vld [vmem:[%s351 + $0x568] sm:$0xf]
        %v783 = vld [vmem:[%s351 + $0x56c] sm:$0xf]
        %v784 = vld [vmem:[%s351 + $0x570] sm:$0xf]
        %v785 = vld [vmem:[%s351 + $0x574] sm:$0xf]
        %v786 = vld [vmem:[%s351 + $0x578] sm:$0xf]
        %v787 = vld [vmem:[%s351 + $0x57c] sm:$0xf]
        %v788 = vld [vmem:[%s351 + $0x580] sm:$0xf]
        %v789 = vld [vmem:[%s351 + $0x584] sm:$0xf]
        %v790 = vld [vmem:[%s351 + $0x588] sm:$0xf]
        %v791 = vld [vmem:[%s351 + $0x58c] sm:$0xf]
        %v792 = vld [vmem:[%s351 + $0x590] sm:$0xf]
        %v793 = vld [vmem:[%s351 + $0x594] sm:$0xf]
        %v794 = vld [vmem:[%s351 + $0x598] sm:$0xf]
        %v795 = vld [vmem:[%s351 + $0x59c] sm:$0xf]
        %v796 = vld [vmem:[%s351 + $0x5a0] sm:$0xf]
        %v797 = vld [vmem:[%s351 + $0x5a4] sm:$0xf]
        %v798 = vld [vmem:[%s351 + $0x5a8] sm:$0xf]
        %v799 = vld [vmem:[%s351 + $0x5ac] sm:$0xf]
        %v800 = vld [vmem:[%s351 + $0x5b0] sm:$0xf]
        %v801 = vld [vmem:[%s351 + $0x5b4] sm:$0xf]
        %v802 = vld [vmem:[%s351 + $0x5b8] sm:$0xf]
        %v803 = vld [vmem:[%s351 + $0x5bc] sm:$0xf]
        %v804 = vld [vmem:[%s351 + $0x5c0] sm:$0xf]
        %v805 = vld [vmem:[%s351 + $0x5c4] sm:$0xf]
        %v806 = vld [vmem:[%s351 + $0x5c8] sm:$0xf]
        %v807 = vld [vmem:[%s351 + $0x5cc] sm:$0xf]
        %v808 = vld [vmem:[%s351 + $0x5d0] sm:$0xf]
        %v809 = vld [vmem:[%s351 + $0x5d4] sm:$0xf]
        %v810 = vld [vmem:[%s351 + $0x5d8] sm:$0xf]
        %v811 = vld [vmem:[%s351 + $0x5dc] sm:$0xf]
        %v812 = vld [vmem:[%s351 + $0x5e0] sm:$0xf]
        %v813 = vld [vmem:[%s351 + $0x5e4] sm:$0xf]
        %v814 = vld [vmem:[%s351 + $0x5e8] sm:$0xf]
        %v815 = vld [vmem:[%s351 + $0x5ec] sm:$0xf]
        %v816 = vld [vmem:[%s351 + $0x5f0] sm:$0xf]
        %v817 = vld [vmem:[%s351 + $0x5f4] sm:$0xf]
        %v818 = vld [vmem:[%s351 + $0x5f8] sm:$0xf]
        %v819 = vld [vmem:[%s351 + $0x5fc] sm:$0xf]
        %v820 = vld [vmem:[%s351 + $0x600] sm:$0xf]
        %v821 = vld [vmem:[%s351 + $0x604] sm:$0xf]
        %v822 = vld [vmem:[%s351 + $0x608] sm:$0xf]
        %v823 = vld [vmem:[%s351 + $0x60c] sm:$0xf]
        %v824 = vld [vmem:[%s351 + $0x610] sm:$0xf]
        %v825 = vld [vmem:[%s351 + $0x614] sm:$0xf]
        %v826 = vld [vmem:[%s351 + $0x618] sm:$0xf]
        %v827 = vld [vmem:[%s351 + $0x61c] sm:$0xf]
        %v828 = vld [vmem:[%s351 + $0x620] sm:$0xf]
        %v829 = vld [vmem:[%s351 + $0x624] sm:$0xf]
        %v830 = vld [vmem:[%s351 + $0x628] sm:$0xf]
        %v831 = vld [vmem:[%s351 + $0x62c] sm:$0xf]
        %v832 = vld [vmem:[%s351 + $0x630] sm:$0xf]
        %v833 = vld [vmem:[%s351 + $0x634] sm:$0xf]
        %v834 = vld [vmem:[%s351 + $0x638] sm:$0xf]
        %v835 = vld [vmem:[%s351 + $0x63c] sm:$0xf]
        %v836 = vld [vmem:[%s351 + $0x640] sm:$0xf]
        %v837 = vld [vmem:[%s351 + $0x644] sm:$0xf]
        %v838 = vld [vmem:[%s351 + $0x648] sm:$0xf]
        %v839 = vld [vmem:[%s351 + $0x64c] sm:$0xf]
        %v840 = vld [vmem:[%s351 + $0x650] sm:$0xf]
        %v841 = vld [vmem:[%s351 + $0x654] sm:$0xf]
        %v842 = vld [vmem:[%s351 + $0x658] sm:$0xf]
        %v843 = vld [vmem:[%s351 + $0x65c] sm:$0xf]
        %v844 = vld [vmem:[%s351 + $0x660] sm:$0xf]
        %v845 = vld [vmem:[%s351 + $0x664] sm:$0xf]
        %v846 = vld [vmem:[%s351 + $0x668] sm:$0xf]
        %v847 = vld [vmem:[%s351 + $0x66c] sm:$0xf]
        %v848 = vld [vmem:[%s351 + $0x670] sm:$0xf]
        %v849 = vld [vmem:[%s351 + $0x674] sm:$0xf]
        %v850 = vld [vmem:[%s351 + $0x678] sm:$0xf]
        %v851 = vld [vmem:[%s351 + $0x67c] sm:$0xf]
        %v852 = vld [vmem:[%s351 + $0x680] sm:$0xf]
        %v853 = vld [vmem:[%s351 + $0x684] sm:$0xf]
        %v854 = vld [vmem:[%s351 + $0x688] sm:$0xf]
        %v855 = vld [vmem:[%s351 + $0x68c] sm:$0xf]
        %v856 = vld [vmem:[%s351 + $0x690] sm:$0xf]
        %v857 = vld [vmem:[%s351 + $0x694] sm:$0xf]
        %v858 = vld [vmem:[%s351 + $0x698] sm:$0xf]
        %v859 = vld [vmem:[%s351 + $0x69c] sm:$0xf]
        %v860 = vld [vmem:[%s351 + $0x6a0] sm:$0xf]
        %v861 = vld [vmem:[%s351 + $0x6a4] sm:$0xf]
        %v862 = vld [vmem:[%s351 + $0x6a8] sm:$0xf]
        %v863 = vld [vmem:[%s351 + $0x6ac] sm:$0xf]
        %v864 = vld [vmem:[%s351 + $0x6b0] sm:$0xf]
        %v865 = vld [vmem:[%s351 + $0x6b4] sm:$0xf]
        %v866 = vld [vmem:[%s351 + $0x6b8] sm:$0xf]
        %v867 = vld [vmem:[%s351 + $0x6bc] sm:$0xf]
        %v868 = vld [vmem:[%s351 + $0x6c0] sm:$0xf]
        %v869 = vld [vmem:[%s351 + $0x6c4] sm:$0xf]
        %v870 = vld [vmem:[%s351 + $0x6c8] sm:$0xf]
        %v871 = vld [vmem:[%s351 + $0x6cc] sm:$0xf]
        %v872 = vld [vmem:[%s351 + $0x6d0] sm:$0xf]
        %v873 = vld [vmem:[%s351 + $0x6d4] sm:$0xf]
        %v874 = vld [vmem:[%s351 + $0x6d8] sm:$0xf]
        %v875 = vld [vmem:[%s351 + $0x6dc] sm:$0xf]
        %v876 = vld [vmem:[%s351 + $0x6e0] sm:$0xf]
        %v877 = vld [vmem:[%s351 + $0x6e4] sm:$0xf]
        %v878 = vld [vmem:[%s351 + $0x6e8] sm:$0xf]
        %v879 = vld [vmem:[%s351 + $0x6ec] sm:$0xf]
        %v880 = vld [vmem:[%s351 + $0x6f0] sm:$0xf]
        %v881 = vld [vmem:[%s351 + $0x6f4] sm:$0xf]
        %v882 = vld [vmem:[%s351 + $0x6f8] sm:$0xf]
        %v883 = vld [vmem:[%s351 + $0x6fc] sm:$0xf]
        %v884 = vld [vmem:[%s351 + $0x700] sm:$0xf]
        %v885 = vld [vmem:[%s351 + $0x704] sm:$0xf]
        %v886 = vld [vmem:[%s351 + $0x708] sm:$0xf]
        %v887 = vld [vmem:[%s351 + $0x70c] sm:$0xf]
        %v888 = vld [vmem:[%s351 + $0x710] sm:$0xf]
        %v889 = vld [vmem:[%s351 + $0x714] sm:$0xf]
        %v890 = vld [vmem:[%s351 + $0x718] sm:$0xf]
        %v891 = vld [vmem:[%s351 + $0x71c] sm:$0xf]
        %v892 = vld [vmem:[%s351 + $0x720] sm:$0xf]
        %v893 = vld [vmem:[%s351 + $0x724] sm:$0xf]
        %v894 = vld [vmem:[%s351 + $0x728] sm:$0xf]
        %v895 = vld [vmem:[%s351 + $0x72c] sm:$0xf]
        %v896 = vld [vmem:[%s351 + $0x730] sm:$0xf]
        %v897 = vld [vmem:[%s351 + $0x734] sm:$0xf]
        %v898 = vld [vmem:[%s351 + $0x738] sm:$0xf]
        %v899 = vld [vmem:[%s351 + $0x73c] sm:$0xf]
        %v900 = vld [vmem:[%s351 + $0x740] sm:$0xf]
        %v901 = vld [vmem:[%s351 + $0x744] sm:$0xf]
        %v902 = vld [vmem:[%s351 + $0x748] sm:$0xf]
        %v903 = vld [vmem:[%s351 + $0x74c] sm:$0xf]
        %v904 = vld [vmem:[%s351 + $0x750] sm:$0xf]
        %v905 = vld [vmem:[%s351 + $0x754] sm:$0xf]
        %v906 = vld [vmem:[%s351 + $0x758] sm:$0xf]
        %v907 = vld [vmem:[%s351 + $0x75c] sm:$0xf]
        %v908 = vld [vmem:[%s351 + $0x760] sm:$0xf]
        %v909 = vld [vmem:[%s351 + $0x764] sm:$0xf]
        %v910 = vld [vmem:[%s351 + $0x768] sm:$0xf]
        %v911 = vld [vmem:[%s351 + $0x76c] sm:$0xf]
        %v912 = vld [vmem:[%s351 + $0x770] sm:$0xf]
        %v913 = vld [vmem:[%s351 + $0x774] sm:$0xf]
        %v914 = vld [vmem:[%s351 + $0x778] sm:$0xf]
        %v915 = vld [vmem:[%s351 + $0x77c] sm:$0xf]
        %v916 = vld [vmem:[%s351 + $0x780] sm:$0xf]
        %v917 = vld [vmem:[%s351 + $0x784] sm:$0xf]
        %v918 = vld [vmem:[%s351 + $0x788] sm:$0xf]
        %v919 = vld [vmem:[%s351 + $0x78c] sm:$0xf]
        %v920 = vld [vmem:[%s351 + $0x790] sm:$0xf]
        %v921 = vld [vmem:[%s351 + $0x794] sm:$0xf]
        %v922 = vld [vmem:[%s351 + $0x798] sm:$0xf]
        %v923 = vld [vmem:[%s351 + $0x79c] sm:$0xf]
        %v924 = vld [vmem:[%s351 + $0x7a0] sm:$0xf]
        %v925 = vld [vmem:[%s351 + $0x7a4] sm:$0xf]
        %v926 = vld [vmem:[%s351 + $0x7a8] sm:$0xf]
        %v927 = vld [vmem:[%s351 + $0x7ac] sm:$0xf]
        %v928 = vld [vmem:[%s351 + $0x7b0] sm:$0xf]
        %v929 = vld [vmem:[%s351 + $0x7b4] sm:$0xf]
        %v930 = vld [vmem:[%s351 + $0x7b8] sm:$0xf]
        %v931 = vld [vmem:[%s351 + $0x7bc] sm:$0xf]
        %v932 = vld [vmem:[%s351 + $0x7c0] sm:$0xf]
        %v933 = vld [vmem:[%s351 + $0x7c4] sm:$0xf]
        %v934 = vld [vmem:[%s351 + $0x7c8] sm:$0xf]
        %v935 = vld [vmem:[%s351 + $0x7cc] sm:$0xf]
        %v936 = vld [vmem:[%s351 + $0x7d0] sm:$0xf]
        %v937 = vld [vmem:[%s351 + $0x7d4] sm:$0xf]
        %v938 = vld [vmem:[%s351 + $0x7d8] sm:$0xf]
        %v939 = vld [vmem:[%s351 + $0x7dc] sm:$0xf]
        %v940 = vld [vmem:[%s351 + $0x7e0] sm:$0xf]
        %v941 = vld [vmem:[%s351 + $0x7e4] sm:$0xf]
        %v942 = vld [vmem:[%s351 + $0x7e8] sm:$0xf]
        %v943 = vld [vmem:[%s351 + $0x7ec] sm:$0xf]
        %v944 = vld [vmem:[%s351 + $0x7f0] sm:$0xf]
        %v945 = vld [vmem:[%s351 + $0x7f4] sm:$0xf]
        %v946 = vld [vmem:[%s351 + $0x7f8] sm:$0xf]
        %v947 = vld [vmem:[%s351 + $0x7fc] sm:$0xf]
        %v1012 = vunpack.c.l.b16 %v372
        %v1013 = vunpack.c.h.b16 %v372
        %v1014 = vunpack.c.l.b16 %v373
        %v1015 = vunpack.c.h.b16 %v373
        %v1016 = vunpack.c.l.b16 %v374
        %v1017 = vunpack.c.h.b16 %v374
        %v1018 = vunpack.c.l.b16 %v375
        %v1019 = vunpack.c.h.b16 %v375
        %v1020 = vunpack.c.l.b16 %v376
        %v1021 = vunpack.c.h.b16 %v376
        %v1022 = vunpack.c.l.b16 %v377
        %v1023 = vunpack.c.h.b16 %v377
        %v1024 = vunpack.c.l.b16 %v378
        %v1025 = vunpack.c.h.b16 %v378
        %v1026 = vunpack.c.l.b16 %v379
        %v1027 = vunpack.c.h.b16 %v379
        %v1028 = vunpack.c.l.b16 %v380
        %v1029 = vunpack.c.h.b16 %v380
        %v1030 = vunpack.c.l.b16 %v381
        %v1031 = vunpack.c.h.b16 %v381
        %v1032 = vunpack.c.l.b16 %v382
        %v1033 = vunpack.c.h.b16 %v382
        %v1034 = vunpack.c.l.b16 %v383
        %v1035 = vunpack.c.h.b16 %v383
        %v1036 = vunpack.c.l.b16 %v384
        %v1037 = vunpack.c.h.b16 %v384
        %v1038 = vunpack.c.l.b16 %v385
        %v1039 = vunpack.c.h.b16 %v385
        %v1040 = vunpack.c.l.b16 %v386
        %v1041 = vunpack.c.h.b16 %v386
        %v1042 = vunpack.c.l.b16 %v387
        %v1043 = vunpack.c.h.b16 %v387
        %v1044 = vunpack.c.l.b16 %v388
        %v1045 = vunpack.c.h.b16 %v388
        %v1046 = vunpack.c.l.b16 %v389
        %v1047 = vunpack.c.h.b16 %v389
        %v1048 = vunpack.c.l.b16 %v390
        %v1049 = vunpack.c.h.b16 %v390
        %v1050 = vunpack.c.l.b16 %v391
        %v1051 = vunpack.c.h.b16 %v391
        %v1052 = vunpack.c.l.b16 %v392
        %v1053 = vunpack.c.h.b16 %v392
        %v1054 = vunpack.c.l.b16 %v393
        %v1055 = vunpack.c.h.b16 %v393
        %v1056 = vunpack.c.l.b16 %v394
        %v1057 = vunpack.c.h.b16 %v394
        %v1058 = vunpack.c.l.b16 %v395
        %v1059 = vunpack.c.h.b16 %v395
        %v1060 = vunpack.c.l.b16 %v396
        %v1061 = vunpack.c.h.b16 %v396
        %v1062 = vunpack.c.l.b16 %v397
        %v1063 = vunpack.c.h.b16 %v397
        %v1064 = vunpack.c.l.b16 %v398
        %v1065 = vunpack.c.h.b16 %v398
        %v1066 = vunpack.c.l.b16 %v399
        %v1067 = vunpack.c.h.b16 %v399
        %v1068 = vunpack.c.l.b16 %v400
        %v1069 = vunpack.c.h.b16 %v400
        %v1070 = vunpack.c.l.b16 %v401
        %v1071 = vunpack.c.h.b16 %v401
        %v1072 = vunpack.c.l.b16 %v402
        %v1073 = vunpack.c.h.b16 %v402
        %v1074 = vunpack.c.l.b16 %v403
        %v1075 = vunpack.c.h.b16 %v403
        %v1076 = vunpack.c.l.b16 %v404
        %v1077 = vunpack.c.h.b16 %v404
        %v1078 = vunpack.c.l.b16 %v405
        %v1079 = vunpack.c.h.b16 %v405
        %v1080 = vunpack.c.l.b16 %v406
        %v1081 = vunpack.c.h.b16 %v406
        %v1082 = vunpack.c.l.b16 %v407
        %v1083 = vunpack.c.h.b16 %v407
        %v1084 = vunpack.c.l.b16 %v408
        %v1085 = vunpack.c.h.b16 %v408
        %v1086 = vunpack.c.l.b16 %v409
        %v1087 = vunpack.c.h.b16 %v409
        %v1088 = vunpack.c.l.b16 %v410
        %v1089 = vunpack.c.h.b16 %v410
        %v1090 = vunpack.c.l.b16 %v411
        %v1091 = vunpack.c.h.b16 %v411
        %v1092 = vunpack.c.l.b16 %v412
        %v1093 = vunpack.c.h.b16 %v412
        %v1094 = vunpack.c.l.b16 %v413
        %v1095 = vunpack.c.h.b16 %v413
        %v1096 = vunpack.c.l.b16 %v414
        %v1097 = vunpack.c.h.b16 %v414
        %v1098 = vunpack.c.l.b16 %v415
        %v1099 = vunpack.c.h.b16 %v415
        %v1100 = vunpack.c.l.b16 %v416
        %v1101 = vunpack.c.h.b16 %v416
        %v1102 = vunpack.c.l.b16 %v417
        %v1103 = vunpack.c.h.b16 %v417
        %v1104 = vunpack.c.l.b16 %v418
        %v1105 = vunpack.c.h.b16 %v418
        %v1106 = vunpack.c.l.b16 %v419
        %v1107 = vunpack.c.h.b16 %v419
        %v1108 = vunpack.c.l.b16 %v420
        %v1109 = vunpack.c.h.b16 %v420
        %v1110 = vunpack.c.l.b16 %v421
        %v1111 = vunpack.c.h.b16 %v421
        %v1112 = vunpack.c.l.b16 %v422
        %v1113 = vunpack.c.h.b16 %v422
        %v1114 = vunpack.c.l.b16 %v423
        %v1115 = vunpack.c.h.b16 %v423
        %v1116 = vunpack.c.l.b16 %v424
        %v1117 = vunpack.c.h.b16 %v424
        %v1118 = vunpack.c.l.b16 %v425
        %v1119 = vunpack.c.h.b16 %v425
        %v1120 = vunpack.c.l.b16 %v426
        %v1121 = vunpack.c.h.b16 %v426
        %v1122 = vunpack.c.l.b16 %v427
        %v1123 = vunpack.c.h.b16 %v427
        %v1124 = vunpack.c.l.b16 %v428
        %v1125 = vunpack.c.h.b16 %v428
        %v1126 = vunpack.c.l.b16 %v429
        %v1127 = vunpack.c.h.b16 %v429
        %v1128 = vunpack.c.l.b16 %v430
        %v1129 = vunpack.c.h.b16 %v430
        %v1130 = vunpack.c.l.b16 %v431
        %v1131 = vunpack.c.h.b16 %v431
        %v1132 = vunpack.c.l.b16 %v432
        %v1133 = vunpack.c.h.b16 %v432
        %v1134 = vunpack.c.l.b16 %v433
        %v1135 = vunpack.c.h.b16 %v433
        %v1136 = vunpack.c.l.b16 %v434
        %v1137 = vunpack.c.h.b16 %v434
        %v1138 = vunpack.c.l.b16 %v435
        %v1139 = vunpack.c.h.b16 %v435
        %v1140 = vpack.c.b16 %v1044, %v1012
        %v1141 = vpack.c.b16 %v1045, %v1013
        %v1142 = vpack.c.b16 %v1046, %v1014
        %v1143 = vpack.c.b16 %v1047, %v1015
        %v1144 = vpack.c.b16 %v1048, %v1016
        %v1145 = vpack.c.b16 %v1049, %v1017
        %v1146 = vpack.c.b16 %v1050, %v1018
        %v1147 = vpack.c.b16 %v1051, %v1019
        %v1148 = vpack.c.b16 %v1052, %v1020
        %v1149 = vpack.c.b16 %v1053, %v1021
        %v1150 = vpack.c.b16 %v1054, %v1022
        %v1151 = vpack.c.b16 %v1055, %v1023
        %v1152 = vpack.c.b16 %v1056, %v1024
        %v1153 = vpack.c.b16 %v1057, %v1025
        %v1154 = vpack.c.b16 %v1058, %v1026
        %v1155 = vpack.c.b16 %v1059, %v1027
        %v1156 = vpack.c.b16 %v1060, %v1028
        %v1157 = vpack.c.b16 %v1061, %v1029
        %v1158 = vpack.c.b16 %v1062, %v1030
        %v1159 = vpack.c.b16 %v1063, %v1031
        %v1160 = vpack.c.b16 %v1064, %v1032
        %v1161 = vpack.c.b16 %v1065, %v1033
        %v1162 = vpack.c.b16 %v1066, %v1034
        %v1163 = vpack.c.b16 %v1067, %v1035
        %v1164 = vpack.c.b16 %v1068, %v1036
        %v1165 = vpack.c.b16 %v1069, %v1037
        %v1166 = vpack.c.b16 %v1070, %v1038
        %v1167 = vpack.c.b16 %v1071, %v1039
        %v1168 = vpack.c.b16 %v1072, %v1040
        %v1169 = vpack.c.b16 %v1073, %v1041
        %v1170 = vpack.c.b16 %v1074, %v1042
        %v1171 = vpack.c.b16 %v1075, %v1043
        %v1172 = vpack.c.b16 %v1108, %v1076
        %v1173 = vpack.c.b16 %v1109, %v1077
        %v1174 = vpack.c.b16 %v1110, %v1078
        %v1175 = vpack.c.b16 %v1111, %v1079
        %v1176 = vpack.c.b16 %v1112, %v1080
        %v1177 = vpack.c.b16 %v1113, %v1081
        %v1178 = vpack.c.b16 %v1114, %v1082
        %v1179 = vpack.c.b16 %v1115, %v1083
        %v1180 = vpack.c.b16 %v1116, %v1084
        %v1181 = vpack.c.b16 %v1117, %v1085
        %v1182 = vpack.c.b16 %v1118, %v1086
        %v1183 = vpack.c.b16 %v1119, %v1087
        %v1184 = vpack.c.b16 %v1120, %v1088
        %v1185 = vpack.c.b16 %v1121, %v1089
        %v1186 = vpack.c.b16 %v1122, %v1090
        %v1187 = vpack.c.b16 %v1123, %v1091
        %v1188 = vpack.c.b16 %v1124, %v1092
        %v1189 = vpack.c.b16 %v1125, %v1093
        %v1190 = vpack.c.b16 %v1126, %v1094
        %v1191 = vpack.c.b16 %v1127, %v1095
        %v1192 = vpack.c.b16 %v1128, %v1096
        %v1193 = vpack.c.b16 %v1129, %v1097
        %v1194 = vpack.c.b16 %v1130, %v1098
        %v1195 = vpack.c.b16 %v1131, %v1099
        %v1196 = vpack.c.b16 %v1132, %v1100
        %v1197 = vpack.c.b16 %v1133, %v1101
        %v1198 = vpack.c.b16 %v1134, %v1102
        %v1199 = vpack.c.b16 %v1135, %v1103
        %v1200 = vpack.c.b16 %v1136, %v1104
        %v1201 = vpack.c.b16 %v1137, %v1105
        %v1202 = vpack.c.b16 %v1138, %v1106
        %v1203 = vpack.c.b16 %v1139, %v1107
        %v1780 = vunpack.c.l.b16 %v436
        %v1781 = vunpack.c.l.b16 %v437
        %v1782 = vunpack.c.l.b16 %v438
        %v1783 = vunpack.c.l.b16 %v439
        %v1784 = vunpack.c.l.b16 %v440
        %v1785 = vunpack.c.l.b16 %v441
        %v1786 = vunpack.c.l.b16 %v442
        %v1787 = vunpack.c.l.b16 %v443
        %v1788 = vunpack.c.l.b16 %v444
        %v1789 = vunpack.c.l.b16 %v445
        %v1790 = vunpack.c.l.b16 %v446
        %v1791 = vunpack.c.l.b16 %v447
        %v1792 = vunpack.c.l.b16 %v448
        %v1793 = vunpack.c.l.b16 %v449
        %v1794 = vunpack.c.l.b16 %v450
        %v1795 = vunpack.c.l.b16 %v451
        %v1796 = vunpack.c.l.b16 %v452
        %v1797 = vunpack.c.l.b16 %v453
        %v1798 = vunpack.c.l.b16 %v454
        %v1799 = vunpack.c.l.b16 %v455
        %v1800 = vunpack.c.l.b16 %v456
        %v1801 = vunpack.c.l.b16 %v457
        %v1802 = vunpack.c.l.b16 %v458
        %v1803 = vunpack.c.l.b16 %v459
        %v1804 = vunpack.c.l.b16 %v460
        %v1805 = vunpack.c.l.b16 %v461
        %v1806 = vunpack.c.l.b16 %v462
        %v1807 = vunpack.c.l.b16 %v463
        %v1808 = vunpack.c.l.b16 %v464
        %v1809 = vunpack.c.l.b16 %v465
        %v1810 = vunpack.c.l.b16 %v466
        %v1811 = vunpack.c.l.b16 %v467
        %v1812 = vunpack.c.l.b16 %v468
        %v1813 = vunpack.c.l.b16 %v469
        %v1814 = vunpack.c.l.b16 %v470
        %v1815 = vunpack.c.l.b16 %v471
        %v1816 = vunpack.c.l.b16 %v472
        %v1817 = vunpack.c.l.b16 %v473
        %v1818 = vunpack.c.l.b16 %v474
        %v1819 = vunpack.c.l.b16 %v475
        %v1820 = vunpack.c.l.b16 %v476
        %v1821 = vunpack.c.l.b16 %v477
        %v1822 = vunpack.c.l.b16 %v478
        %v1823 = vunpack.c.l.b16 %v479
        %v1824 = vunpack.c.l.b16 %v480
        %v1825 = vunpack.c.l.b16 %v481
        %v1826 = vunpack.c.l.b16 %v482
        %v1827 = vunpack.c.l.b16 %v483
        %v1828 = vunpack.c.l.b16 %v484
        %v1829 = vunpack.c.l.b16 %v485
        %v1830 = vunpack.c.l.b16 %v486
        %v1831 = vunpack.c.l.b16 %v487
        %v1832 = vunpack.c.l.b16 %v488
        %v1833 = vunpack.c.l.b16 %v489
        %v1834 = vunpack.c.l.b16 %v490
        %v1835 = vunpack.c.l.b16 %v491
        %v1836 = vunpack.c.l.b16 %v492
        %v1837 = vunpack.c.l.b16 %v493
        %v1838 = vunpack.c.l.b16 %v494
        %v1839 = vunpack.c.l.b16 %v495
        %v1840 = vunpack.c.l.b16 %v496
        %v1841 = vunpack.c.l.b16 %v497
        %v1842 = vunpack.c.l.b16 %v498
        %v1843 = vunpack.c.l.b16 %v499
        %v1844 = vunpack.c.l.b16 %v500
        %v1845 = vunpack.c.l.b16 %v501
        %v1846 = vunpack.c.l.b16 %v502
        %v1847 = vunpack.c.l.b16 %v503
        %v1848 = vunpack.c.l.b16 %v504
        %v1849 = vunpack.c.l.b16 %v505
        %v1850 = vunpack.c.l.b16 %v506
        %v1851 = vunpack.c.l.b16 %v507
        %v1852 = vunpack.c.l.b16 %v508
        %v1853 = vunpack.c.l.b16 %v509
        %v1854 = vunpack.c.l.b16 %v510
        %v1855 = vunpack.c.l.b16 %v511
        %v1856 = vunpack.c.l.b16 %v512
        %v1857 = vunpack.c.l.b16 %v513
        %v1858 = vunpack.c.l.b16 %v514
        %v1859 = vunpack.c.l.b16 %v515
        %v1860 = vunpack.c.l.b16 %v516
        %v1861 = vunpack.c.l.b16 %v517
        %v1862 = vunpack.c.l.b16 %v518
        %v1863 = vunpack.c.l.b16 %v519
        %v1864 = vunpack.c.l.b16 %v520
        %v1865 = vunpack.c.l.b16 %v521
        %v1866 = vunpack.c.l.b16 %v522
        %v1867 = vunpack.c.l.b16 %v523
        %v1868 = vunpack.c.l.b16 %v524
        %v1869 = vunpack.c.l.b16 %v525
        %v1870 = vunpack.c.l.b16 %v526
        %v1871 = vunpack.c.l.b16 %v527
        %v1872 = vunpack.c.l.b16 %v528
        %v1873 = vunpack.c.l.b16 %v529
        %v1874 = vunpack.c.l.b16 %v530
        %v1875 = vunpack.c.l.b16 %v531
        %v1876 = vunpack.c.l.b16 %v532
        %v1877 = vunpack.c.l.b16 %v533
        %v1878 = vunpack.c.l.b16 %v534
        %v1879 = vunpack.c.l.b16 %v535
        %v1880 = vunpack.c.l.b16 %v536
        %v1881 = vunpack.c.l.b16 %v537
        %v1882 = vunpack.c.l.b16 %v538
        %v1883 = vunpack.c.l.b16 %v539
        %v1884 = vunpack.c.l.b16 %v540
        %v1885 = vunpack.c.l.b16 %v541
        %v1886 = vunpack.c.l.b16 %v542
        %v1887 = vunpack.c.l.b16 %v543
        %v1888 = vunpack.c.l.b16 %v544
        %v1889 = vunpack.c.l.b16 %v545
        %v1890 = vunpack.c.l.b16 %v546
        %v1891 = vunpack.c.l.b16 %v547
        %v1892 = vunpack.c.l.b16 %v548
        %v1893 = vunpack.c.l.b16 %v549
        %v1894 = vunpack.c.l.b16 %v550
        %v1895 = vunpack.c.l.b16 %v551
        %v1896 = vunpack.c.l.b16 %v552
        %v1897 = vunpack.c.l.b16 %v553
        %v1898 = vunpack.c.l.b16 %v554
        %v1899 = vunpack.c.l.b16 %v555
        %v1900 = vunpack.c.l.b16 %v556
        %v1901 = vunpack.c.l.b16 %v557
        %v1902 = vunpack.c.l.b16 %v558
        %v1903 = vunpack.c.l.b16 %v559
        %v1904 = vunpack.c.l.b16 %v560
        %v1905 = vunpack.c.l.b16 %v561
        %v1906 = vunpack.c.l.b16 %v562
        %v1907 = vunpack.c.l.b16 %v563
        %v1908 = vunpack.c.l.b16 %v564
        %v1909 = vunpack.c.l.b16 %v565
        %v1910 = vunpack.c.l.b16 %v566
        %v1911 = vunpack.c.l.b16 %v567
        %v1912 = vunpack.c.l.b16 %v568
        %v1913 = vunpack.c.l.b16 %v569
        %v1914 = vunpack.c.l.b16 %v570
        %v1915 = vunpack.c.l.b16 %v571
        %v1916 = vunpack.c.l.b16 %v572
        %v1917 = vunpack.c.l.b16 %v573
        %v1918 = vunpack.c.l.b16 %v574
        %v1919 = vunpack.c.l.b16 %v575
        %v1920 = vunpack.c.l.b16 %v576
        %v1921 = vunpack.c.l.b16 %v577
        %v1922 = vunpack.c.l.b16 %v578
        %v1923 = vunpack.c.l.b16 %v579
        %v1924 = vunpack.c.l.b16 %v580
        %v1925 = vunpack.c.l.b16 %v581
        %v1926 = vunpack.c.l.b16 %v582
        %v1927 = vunpack.c.l.b16 %v583
        %v1928 = vunpack.c.l.b16 %v584
        %v1929 = vunpack.c.l.b16 %v585
        %v1930 = vunpack.c.l.b16 %v586
        %v1931 = vunpack.c.l.b16 %v587
        %v1932 = vunpack.c.l.b16 %v588
        %v1933 = vunpack.c.l.b16 %v589
        %v1934 = vunpack.c.l.b16 %v590
        %v1935 = vunpack.c.l.b16 %v591
        %v1936 = vunpack.c.l.b16 %v592
        %v1937 = vunpack.c.l.b16 %v593
        %v1938 = vunpack.c.l.b16 %v594
        %v1939 = vunpack.c.l.b16 %v595
        %v1940 = vunpack.c.l.b16 %v596
        %v1941 = vunpack.c.l.b16 %v597
        %v1942 = vunpack.c.l.b16 %v598
        %v1943 = vunpack.c.l.b16 %v599
        %v1944 = vunpack.c.l.b16 %v600
        %v1945 = vunpack.c.l.b16 %v601
        %v1946 = vunpack.c.l.b16 %v602
        %v1947 = vunpack.c.l.b16 %v603
        %v1948 = vunpack.c.l.b16 %v604
        %v1949 = vunpack.c.l.b16 %v605
        %v1950 = vunpack.c.l.b16 %v606
        %v1951 = vunpack.c.l.b16 %v607
        %v1952 = vunpack.c.l.b16 %v608
        %v1953 = vunpack.c.l.b16 %v609
        %v1954 = vunpack.c.l.b16 %v610
        %v1955 = vunpack.c.l.b16 %v611
        %v1956 = vunpack.c.l.b16 %v612
        %v1957 = vunpack.c.l.b16 %v613
        %v1958 = vunpack.c.l.b16 %v614
        %v1959 = vunpack.c.l.b16 %v615
        %v1960 = vunpack.c.l.b16 %v616
        %v1961 = vunpack.c.l.b16 %v617
        %v1962 = vunpack.c.l.b16 %v618
        %v1963 = vunpack.c.l.b16 %v619
        %v1964 = vunpack.c.l.b16 %v620
        %v1965 = vunpack.c.l.b16 %v621
        %v1966 = vunpack.c.l.b16 %v622
        %v1967 = vunpack.c.l.b16 %v623
        %v1968 = vunpack.c.l.b16 %v624
        %v1969 = vunpack.c.l.b16 %v625
        %v1970 = vunpack.c.l.b16 %v626
        %v1971 = vunpack.c.l.b16 %v627
        %v1972 = vunpack.c.l.b16 %v628
        %v1973 = vunpack.c.l.b16 %v629
        %v1974 = vunpack.c.l.b16 %v630
        %v1975 = vunpack.c.l.b16 %v631
        %v1976 = vunpack.c.l.b16 %v632
        %v1977 = vunpack.c.l.b16 %v633
        %v1978 = vunpack.c.l.b16 %v634
        %v1979 = vunpack.c.l.b16 %v635
        %v1980 = vunpack.c.l.b16 %v636
        %v1981 = vunpack.c.l.b16 %v637
        %v1982 = vunpack.c.l.b16 %v638
        %v1983 = vunpack.c.l.b16 %v639
        %v1984 = vunpack.c.l.b16 %v640
        %v1985 = vunpack.c.l.b16 %v641
        %v1986 = vunpack.c.l.b16 %v642
        %v1987 = vunpack.c.l.b16 %v643
        %v1988 = vunpack.c.l.b16 %v644
        %v1989 = vunpack.c.l.b16 %v645
        %v1990 = vunpack.c.l.b16 %v646
        %v1991 = vunpack.c.l.b16 %v647
        %v1992 = vunpack.c.l.b16 %v648
        %v1993 = vunpack.c.l.b16 %v649
        %v1994 = vunpack.c.l.b16 %v650
        %v1995 = vunpack.c.l.b16 %v651
        %v1996 = vunpack.c.l.b16 %v652
        %v1997 = vunpack.c.l.b16 %v653
        %v1998 = vunpack.c.l.b16 %v654
        %v1999 = vunpack.c.l.b16 %v655
        %v2000 = vunpack.c.l.b16 %v656
        %v2001 = vunpack.c.l.b16 %v657
        %v2002 = vunpack.c.l.b16 %v658
        %v2003 = vunpack.c.l.b16 %v659
        %v2004 = vunpack.c.l.b16 %v660
        %v2005 = vunpack.c.l.b16 %v661
        %v2006 = vunpack.c.l.b16 %v662
        %v2007 = vunpack.c.l.b16 %v663
        %v2008 = vunpack.c.l.b16 %v664
        %v2009 = vunpack.c.l.b16 %v665
        %v2010 = vunpack.c.l.b16 %v666
        %v2011 = vunpack.c.l.b16 %v667
        %v2012 = vunpack.c.l.b16 %v668
        %v2013 = vunpack.c.l.b16 %v669
        %v2014 = vunpack.c.l.b16 %v670
        %v2015 = vunpack.c.l.b16 %v671
        %v2016 = vunpack.c.l.b16 %v672
        %v2017 = vunpack.c.l.b16 %v673
        %v2018 = vunpack.c.l.b16 %v674
        %v2019 = vunpack.c.l.b16 %v675
        %v2020 = vunpack.c.l.b16 %v676
        %v2021 = vunpack.c.l.b16 %v677
        %v2022 = vunpack.c.l.b16 %v678
        %v2023 = vunpack.c.l.b16 %v679
        %v2024 = vunpack.c.l.b16 %v680
        %v2025 = vunpack.c.l.b16 %v681
        %v2026 = vunpack.c.l.b16 %v682
        %v2027 = vunpack.c.l.b16 %v683
        %v2028 = vunpack.c.l.b16 %v684
        %v2029 = vunpack.c.l.b16 %v685
        %v2030 = vunpack.c.l.b16 %v686
        %v2031 = vunpack.c.l.b16 %v687
        %v2032 = vunpack.c.l.b16 %v688
        %v2033 = vunpack.c.l.b16 %v689
        %v2034 = vunpack.c.l.b16 %v690
        %v2035 = vunpack.c.l.b16 %v691
        %v2036 = vunpack.c.l.b16 %v692
        %v2037 = vunpack.c.l.b16 %v693
        %v2038 = vunpack.c.l.b16 %v694
        %v2039 = vunpack.c.l.b16 %v695
        %v2040 = vunpack.c.l.b16 %v696
        %v2041 = vunpack.c.l.b16 %v697
        %v2042 = vunpack.c.l.b16 %v698
        %v2043 = vunpack.c.l.b16 %v699
        %v2044 = vunpack.c.l.b16 %v700
        %v2045 = vunpack.c.l.b16 %v701
        %v2046 = vunpack.c.l.b16 %v702
        %v2047 = vunpack.c.l.b16 %v703
        %v2048 = vunpack.c.l.b16 %v704
        %v2049 = vunpack.c.l.b16 %v705
        %v2050 = vunpack.c.l.b16 %v706
        %v2051 = vunpack.c.l.b16 %v707
        %v2052 = vunpack.c.l.b16 %v708
        %v2053 = vunpack.c.l.b16 %v709
        %v2054 = vunpack.c.l.b16 %v710
        %v2055 = vunpack.c.l.b16 %v711
        %v2056 = vunpack.c.l.b16 %v712
        %v2057 = vunpack.c.l.b16 %v713
        %v2058 = vunpack.c.l.b16 %v714
        %v2059 = vunpack.c.l.b16 %v715
        %v2060 = vunpack.c.l.b16 %v716
        %v2061 = vunpack.c.l.b16 %v717
        %v2062 = vunpack.c.l.b16 %v718
        %v2063 = vunpack.c.l.b16 %v719
        %v2064 = vunpack.c.l.b16 %v720
        %v2065 = vunpack.c.l.b16 %v721
        %v2066 = vunpack.c.l.b16 %v722
        %v2067 = vunpack.c.l.b16 %v723
        %v2068 = vunpack.c.l.b16 %v724
        %v2069 = vunpack.c.l.b16 %v725
        %v2070 = vunpack.c.l.b16 %v726
        %v2071 = vunpack.c.l.b16 %v727
        %v2072 = vunpack.c.l.b16 %v728
        %v2073 = vunpack.c.l.b16 %v729
        %v2074 = vunpack.c.l.b16 %v730
        %v2075 = vunpack.c.l.b16 %v731
        %v2076 = vunpack.c.l.b16 %v732
        %v2077 = vunpack.c.l.b16 %v733
        %v2078 = vunpack.c.l.b16 %v734
        %v2079 = vunpack.c.l.b16 %v735
        %v2080 = vunpack.c.l.b16 %v736
        %v2081 = vunpack.c.l.b16 %v737
        %v2082 = vunpack.c.l.b16 %v738
        %v2083 = vunpack.c.l.b16 %v739
        %v2084 = vunpack.c.l.b16 %v740
        %v2085 = vunpack.c.l.b16 %v741
        %v2086 = vunpack.c.l.b16 %v742
        %v2087 = vunpack.c.l.b16 %v743
        %v2088 = vunpack.c.l.b16 %v744
        %v2089 = vunpack.c.l.b16 %v745
        %v2090 = vunpack.c.l.b16 %v746
        %v2091 = vunpack.c.l.b16 %v747
        %v2092 = vunpack.c.l.b16 %v748
        %v2093 = vunpack.c.l.b16 %v749
        %v2094 = vunpack.c.l.b16 %v750
        %v2095 = vunpack.c.l.b16 %v751
        %v2096 = vunpack.c.l.b16 %v752
        %v2097 = vunpack.c.l.b16 %v753
        %v2098 = vunpack.c.l.b16 %v754
        %v2099 = vunpack.c.l.b16 %v755
        %v2100 = vunpack.c.l.b16 %v756
        %v2101 = vunpack.c.l.b16 %v757
        %v2102 = vunpack.c.l.b16 %v758
        %v2103 = vunpack.c.l.b16 %v759
        %v2104 = vunpack.c.l.b16 %v760
        %v2105 = vunpack.c.l.b16 %v761
        %v2106 = vunpack.c.l.b16 %v762
        %v2107 = vunpack.c.l.b16 %v763
        %v2108 = vunpack.c.l.b16 %v764
        %v2109 = vunpack.c.l.b16 %v765
        %v2110 = vunpack.c.l.b16 %v766
        %v2111 = vunpack.c.l.b16 %v767
        %v2112 = vunpack.c.l.b16 %v768
        %v2113 = vunpack.c.l.b16 %v769
        %v2114 = vunpack.c.l.b16 %v770
        %v2115 = vunpack.c.l.b16 %v771
        %v2116 = vunpack.c.l.b16 %v772
        %v2117 = vunpack.c.l.b16 %v773
        %v2118 = vunpack.c.l.b16 %v774
        %v2119 = vunpack.c.l.b16 %v775
        %v2120 = vunpack.c.l.b16 %v776
        %v2121 = vunpack.c.l.b16 %v777
        %v2122 = vunpack.c.l.b16 %v778
        %v2123 = vunpack.c.l.b16 %v779
        %v2124 = vunpack.c.l.b16 %v780
        %v2125 = vunpack.c.l.b16 %v781
        %v2126 = vunpack.c.l.b16 %v782
        %v2127 = vunpack.c.l.b16 %v783
        %v2128 = vunpack.c.l.b16 %v784
        %v2129 = vunpack.c.l.b16 %v785
        %v2130 = vunpack.c.l.b16 %v786
        %v2131 = vunpack.c.l.b16 %v787
        %v2132 = vunpack.c.l.b16 %v788
        %v2133 = vunpack.c.l.b16 %v789
        %v2134 = vunpack.c.l.b16 %v790
        %v2135 = vunpack.c.l.b16 %v791
        %v2136 = vunpack.c.l.b16 %v792
        %v2137 = vunpack.c.l.b16 %v793
        %v2138 = vunpack.c.l.b16 %v794
        %v2139 = vunpack.c.l.b16 %v795
        %v2140 = vunpack.c.l.b16 %v796
        %v2141 = vunpack.c.l.b16 %v797
        %v2142 = vunpack.c.l.b16 %v798
        %v2143 = vunpack.c.l.b16 %v799
        %v2144 = vunpack.c.l.b16 %v800
        %v2145 = vunpack.c.l.b16 %v801
        %v2146 = vunpack.c.l.b16 %v802
        %v2147 = vunpack.c.l.b16 %v803
        %v2148 = vunpack.c.l.b16 %v804
        %v2149 = vunpack.c.l.b16 %v805
        %v2150 = vunpack.c.l.b16 %v806
        %v2151 = vunpack.c.l.b16 %v807
        %v2152 = vunpack.c.l.b16 %v808
        %v2153 = vunpack.c.l.b16 %v809
        %v2154 = vunpack.c.l.b16 %v810
        %v2155 = vunpack.c.l.b16 %v811
        %v2156 = vunpack.c.l.b16 %v812
        %v2157 = vunpack.c.l.b16 %v813
        %v2158 = vunpack.c.l.b16 %v814
        %v2159 = vunpack.c.l.b16 %v815
        %v2160 = vunpack.c.l.b16 %v816
        %v2161 = vunpack.c.l.b16 %v817
        %v2162 = vunpack.c.l.b16 %v818
        %v2163 = vunpack.c.l.b16 %v819
        %v2164 = vunpack.c.l.b16 %v820
        %v2165 = vunpack.c.l.b16 %v821
        %v2166 = vunpack.c.l.b16 %v822
        %v2167 = vunpack.c.l.b16 %v823
        %v2168 = vunpack.c.l.b16 %v824
        %v2169 = vunpack.c.l.b16 %v825
        %v2170 = vunpack.c.l.b16 %v826
        %v2171 = vunpack.c.l.b16 %v827
        %v2172 = vunpack.c.l.b16 %v828
        %v2173 = vunpack.c.l.b16 %v829
        %v2174 = vunpack.c.l.b16 %v830
        %v2175 = vunpack.c.l.b16 %v831
        %v2176 = vunpack.c.l.b16 %v832
        %v2177 = vunpack.c.l.b16 %v833
        %v2178 = vunpack.c.l.b16 %v834
        %v2179 = vunpack.c.l.b16 %v835
        %v2180 = vunpack.c.l.b16 %v836
        %v2181 = vunpack.c.l.b16 %v837
        %v2182 = vunpack.c.l.b16 %v838
        %v2183 = vunpack.c.l.b16 %v839
        %v2184 = vunpack.c.l.b16 %v840
        %v2185 = vunpack.c.l.b16 %v841
        %v2186 = vunpack.c.l.b16 %v842
        %v2187 = vunpack.c.l.b16 %v843
        %v2188 = vunpack.c.l.b16 %v844
        %v2189 = vunpack.c.l.b16 %v845
        %v2190 = vunpack.c.l.b16 %v846
        %v2191 = vunpack.c.l.b16 %v847
        %v2192 = vunpack.c.l.b16 %v848
        %v2193 = vunpack.c.l.b16 %v849
        %v2194 = vunpack.c.l.b16 %v850
        %v2195 = vunpack.c.l.b16 %v851
        %v2196 = vunpack.c.l.b16 %v852
        %v2197 = vunpack.c.l.b16 %v853
        %v2198 = vunpack.c.l.b16 %v854
        %v2199 = vunpack.c.l.b16 %v855
        %v2200 = vunpack.c.l.b16 %v856
        %v2201 = vunpack.c.l.b16 %v857
        %v2202 = vunpack.c.l.b16 %v858
        %v2203 = vunpack.c.l.b16 %v859
        %v2204 = vunpack.c.l.b16 %v860
        %v2205 = vunpack.c.l.b16 %v861
        %v2206 = vunpack.c.l.b16 %v862
        %v2207 = vunpack.c.l.b16 %v863
        %v2208 = vunpack.c.l.b16 %v864
        %v2209 = vunpack.c.l.b16 %v865
        %v2210 = vunpack.c.l.b16 %v866
        %v2211 = vunpack.c.l.b16 %v867
        %v2212 = vunpack.c.l.b16 %v868
        %v2213 = vunpack.c.l.b16 %v869
        %v2214 = vunpack.c.l.b16 %v870
        %v2215 = vunpack.c.l.b16 %v871
        %v2216 = vunpack.c.l.b16 %v872
        %v2217 = vunpack.c.l.b16 %v873
        %v2218 = vunpack.c.l.b16 %v874
        %v2219 = vunpack.c.l.b16 %v875
        %v2220 = vunpack.c.l.b16 %v876
        %v2221 = vunpack.c.l.b16 %v877
        %v2222 = vunpack.c.l.b16 %v878
        %v2223 = vunpack.c.l.b16 %v879
        %v2224 = vunpack.c.l.b16 %v880
        %v2225 = vunpack.c.l.b16 %v881
        %v2226 = vunpack.c.l.b16 %v882
        %v2227 = vunpack.c.l.b16 %v883
        %v2228 = vunpack.c.l.b16 %v884
        %v2229 = vunpack.c.l.b16 %v885
        %v2230 = vunpack.c.l.b16 %v886
        %v2231 = vunpack.c.l.b16 %v887
        %v2232 = vunpack.c.l.b16 %v888
        %v2233 = vunpack.c.l.b16 %v889
        %v2234 = vunpack.c.l.b16 %v890
        %v2235 = vunpack.c.l.b16 %v891
        %v2236 = vunpack.c.l.b16 %v892
        %v2237 = vunpack.c.l.b16 %v893
        %v2238 = vunpack.c.l.b16 %v894
        %v2239 = vunpack.c.l.b16 %v895
        %v2240 = vunpack.c.l.b16 %v896
        %v2241 = vunpack.c.l.b16 %v897
        %v2242 = vunpack.c.l.b16 %v898
        %v2243 = vunpack.c.l.b16 %v899
        %v2244 = vunpack.c.l.b16 %v900
        %v2245 = vunpack.c.l.b16 %v901
        %v2246 = vunpack.c.l.b16 %v902
        %v2247 = vunpack.c.l.b16 %v903
        %v2248 = vunpack.c.l.b16 %v904
        %v2249 = vunpack.c.l.b16 %v905
        %v2250 = vunpack.c.l.b16 %v906
        %v2251 = vunpack.c.l.b16 %v907
        %v2252 = vunpack.c.l.b16 %v908
        %v2253 = vunpack.c.l.b16 %v909
        %v2254 = vunpack.c.l.b16 %v910
        %v2255 = vunpack.c.l.b16 %v911
        %v2256 = vunpack.c.l.b16 %v912
        %v2257 = vunpack.c.l.b16 %v913
        %v2258 = vunpack.c.l.b16 %v914
        %v2259 = vunpack.c.l.b16 %v915
        %v2260 = vunpack.c.l.b16 %v916
        %v2261 = vunpack.c.l.b16 %v917
        %v2262 = vunpack.c.l.b16 %v918
        %v2263 = vunpack.c.l.b16 %v919
        %v2264 = vunpack.c.l.b16 %v920
        %v2265 = vunpack.c.l.b16 %v921
        %v2266 = vunpack.c.l.b16 %v922
        %v2267 = vunpack.c.l.b16 %v923
        %v2268 = vunpack.c.l.b16 %v924
        %v2269 = vunpack.c.l.b16 %v925
        %v2270 = vunpack.c.l.b16 %v926
        %v2271 = vunpack.c.l.b16 %v927
        %v2272 = vunpack.c.l.b16 %v928
        %v2273 = vunpack.c.l.b16 %v929
        %v2274 = vunpack.c.l.b16 %v930
        %v2275 = vunpack.c.l.b16 %v931
        %v2276 = vunpack.c.l.b16 %v932
        %v2277 = vunpack.c.l.b16 %v933
        %v2278 = vunpack.c.l.b16 %v934
        %v2279 = vunpack.c.l.b16 %v935
        %v2280 = vunpack.c.l.b16 %v936
        %v2281 = vunpack.c.l.b16 %v937
        %v2282 = vunpack.c.l.b16 %v938
        %v2283 = vunpack.c.l.b16 %v939
        %v2284 = vunpack.c.l.b16 %v940
        %v2285 = vunpack.c.l.b16 %v941
        %v2286 = vunpack.c.l.b16 %v942
        %v2287 = vunpack.c.l.b16 %v943
        %v2288 = vunpack.c.l.b16 %v944
        %v2289 = vunpack.c.l.b16 %v945
        %v2290 = vunpack.c.l.b16 %v946
        %v2291 = vunpack.c.l.b16 %v947
        %v2292 = vpack.c.b16 %v1781, %v1780
        %v2293 = vpack.c.b16 %v1783, %v1782
        %v2294 = vpack.c.b16 %v1785, %v1784
        %v2295 = vpack.c.b16 %v1787, %v1786
        %v2296 = vpack.c.b16 %v1789, %v1788
        %v2297 = vpack.c.b16 %v1791, %v1790
        %v2298 = vpack.c.b16 %v1793, %v1792
        %v2299 = vpack.c.b16 %v1795, %v1794
        %v2300 = vpack.c.b16 %v1797, %v1796
        %v2301 = vpack.c.b16 %v1799, %v1798
        %v2302 = vpack.c.b16 %v1801, %v1800
        %v2303 = vpack.c.b16 %v1803, %v1802
        %v2304 = vpack.c.b16 %v1805, %v1804
        %v2305 = vpack.c.b16 %v1807, %v1806
        %v2306 = vpack.c.b16 %v1809, %v1808
        %v2307 = vpack.c.b16 %v1811, %v1810
        %v2308 = vpack.c.b16 %v1813, %v1812
        %v2309 = vpack.c.b16 %v1815, %v1814
        %v2310 = vpack.c.b16 %v1817, %v1816
        %v2311 = vpack.c.b16 %v1819, %v1818
        %v2312 = vpack.c.b16 %v1821, %v1820
        %v2313 = vpack.c.b16 %v1823, %v1822
        %v2314 = vpack.c.b16 %v1825, %v1824
        %v2315 = vpack.c.b16 %v1827, %v1826
        %v2316 = vpack.c.b16 %v1829, %v1828
        %v2317 = vpack.c.b16 %v1831, %v1830
        %v2318 = vpack.c.b16 %v1833, %v1832
        %v2319 = vpack.c.b16 %v1835, %v1834
        %v2320 = vpack.c.b16 %v1837, %v1836
        %v2321 = vpack.c.b16 %v1839, %v1838
        %v2322 = vpack.c.b16 %v1841, %v1840
        %v2323 = vpack.c.b16 %v1843, %v1842
        %v2324 = vpack.c.b16 %v1845, %v1844
        %v2325 = vpack.c.b16 %v1847, %v1846
        %v2326 = vpack.c.b16 %v1849, %v1848
        %v2327 = vpack.c.b16 %v1851, %v1850
        %v2328 = vpack.c.b16 %v1853, %v1852
        %v2329 = vpack.c.b16 %v1855, %v1854
        %v2330 = vpack.c.b16 %v1857, %v1856
        %v2331 = vpack.c.b16 %v1859, %v1858
        %v2332 = vpack.c.b16 %v1861, %v1860
        %v2333 = vpack.c.b16 %v1863, %v1862
        %v2334 = vpack.c.b16 %v1865, %v1864
        %v2335 = vpack.c.b16 %v1867, %v1866
        %v2336 = vpack.c.b16 %v1869, %v1868
        %v2337 = vpack.c.b16 %v1871, %v1870
        %v2338 = vpack.c.b16 %v1873, %v1872
        %v2339 = vpack.c.b16 %v1875, %v1874
        %v2340 = vpack.c.b16 %v1877, %v1876
        %v2341 = vpack.c.b16 %v1879, %v1878
        %v2342 = vpack.c.b16 %v1881, %v1880
        %v2343 = vpack.c.b16 %v1883, %v1882
        %v2344 = vpack.c.b16 %v1885, %v1884
        %v2345 = vpack.c.b16 %v1887, %v1886
        %v2346 = vpack.c.b16 %v1889, %v1888
        %v2347 = vpack.c.b16 %v1891, %v1890
        %v2348 = vpack.c.b16 %v1893, %v1892
        %v2349 = vpack.c.b16 %v1895, %v1894
        %v2350 = vpack.c.b16 %v1897, %v1896
        %v2351 = vpack.c.b16 %v1899, %v1898
        %v2352 = vpack.c.b16 %v1901, %v1900
        %v2353 = vpack.c.b16 %v1903, %v1902
        %v2354 = vpack.c.b16 %v1905, %v1904
        %v2355 = vpack.c.b16 %v1907, %v1906
        %v2356 = vpack.c.b16 %v1909, %v1908
        %v2357 = vpack.c.b16 %v1911, %v1910
        %v2358 = vpack.c.b16 %v1913, %v1912
        %v2359 = vpack.c.b16 %v1915, %v1914
        %v2360 = vpack.c.b16 %v1917, %v1916
        %v2361 = vpack.c.b16 %v1919, %v1918
        %v2362 = vpack.c.b16 %v1921, %v1920
        %v2363 = vpack.c.b16 %v1923, %v1922
        %v2364 = vpack.c.b16 %v1925, %v1924
        %v2365 = vpack.c.b16 %v1927, %v1926
        %v2366 = vpack.c.b16 %v1929, %v1928
        %v2367 = vpack.c.b16 %v1931, %v1930
        %v2368 = vpack.c.b16 %v1933, %v1932
        %v2369 = vpack.c.b16 %v1935, %v1934
        %v2370 = vpack.c.b16 %v1937, %v1936
        %v2371 = vpack.c.b16 %v1939, %v1938
        %v2372 = vpack.c.b16 %v1941, %v1940
        %v2373 = vpack.c.b16 %v1943, %v1942
        %v2374 = vpack.c.b16 %v1945, %v1944
        %v2375 = vpack.c.b16 %v1947, %v1946
        %v2376 = vpack.c.b16 %v1949, %v1948
        %v2377 = vpack.c.b16 %v1951, %v1950
        %v2378 = vpack.c.b16 %v1953, %v1952
        %v2379 = vpack.c.b16 %v1955, %v1954
        %v2380 = vpack.c.b16 %v1957, %v1956
        %v2381 = vpack.c.b16 %v1959, %v1958
        %v2382 = vpack.c.b16 %v1961, %v1960
        %v2383 = vpack.c.b16 %v1963, %v1962
        %v2384 = vpack.c.b16 %v1965, %v1964
        %v2385 = vpack.c.b16 %v1967, %v1966
        %v2386 = vpack.c.b16 %v1969, %v1968
        %v2387 = vpack.c.b16 %v1971, %v1970
        %v2388 = vpack.c.b16 %v1973, %v1972
        %v2389 = vpack.c.b16 %v1975, %v1974
        %v2390 = vpack.c.b16 %v1977, %v1976
        %v2391 = vpack.c.b16 %v1979, %v1978
        %v2392 = vpack.c.b16 %v1981, %v1980
        %v2393 = vpack.c.b16 %v1983, %v1982
        %v2394 = vpack.c.b16 %v1985, %v1984
        %v2395 = vpack.c.b16 %v1987, %v1986
        %v2396 = vpack.c.b16 %v1989, %v1988
        %v2397 = vpack.c.b16 %v1991, %v1990
        %v2398 = vpack.c.b16 %v1993, %v1992
        %v2399 = vpack.c.b16 %v1995, %v1994
        %v2400 = vpack.c.b16 %v1997, %v1996
        %v2401 = vpack.c.b16 %v1999, %v1998
        %v2402 = vpack.c.b16 %v2001, %v2000
        %v2403 = vpack.c.b16 %v2003, %v2002
        %v2404 = vpack.c.b16 %v2005, %v2004
        %v2405 = vpack.c.b16 %v2007, %v2006
        %v2406 = vpack.c.b16 %v2009, %v2008
        %v2407 = vpack.c.b16 %v2011, %v2010
        %v2408 = vpack.c.b16 %v2013, %v2012
        %v2409 = vpack.c.b16 %v2015, %v2014
        %v2410 = vpack.c.b16 %v2017, %v2016
        %v2411 = vpack.c.b16 %v2019, %v2018
        %v2412 = vpack.c.b16 %v2021, %v2020
        %v2413 = vpack.c.b16 %v2023, %v2022
        %v2414 = vpack.c.b16 %v2025, %v2024
        %v2415 = vpack.c.b16 %v2027, %v2026
        %v2416 = vpack.c.b16 %v2029, %v2028
        %v2417 = vpack.c.b16 %v2031, %v2030
        %v2418 = vpack.c.b16 %v2033, %v2032
        %v2419 = vpack.c.b16 %v2035, %v2034
        %v2420 = vpack.c.b16 %v2037, %v2036
        %v2421 = vpack.c.b16 %v2039, %v2038
        %v2422 = vpack.c.b16 %v2041, %v2040
        %v2423 = vpack.c.b16 %v2043, %v2042
        %v2424 = vpack.c.b16 %v2045, %v2044
        %v2425 = vpack.c.b16 %v2047, %v2046
        %v2426 = vpack.c.b16 %v2049, %v2048
        %v2427 = vpack.c.b16 %v2051, %v2050
        %v2428 = vpack.c.b16 %v2053, %v2052
        %v2429 = vpack.c.b16 %v2055, %v2054
        %v2430 = vpack.c.b16 %v2057, %v2056
        %v2431 = vpack.c.b16 %v2059, %v2058
        %v2432 = vpack.c.b16 %v2061, %v2060
        %v2433 = vpack.c.b16 %v2063, %v2062
        %v2434 = vpack.c.b16 %v2065, %v2064
        %v2435 = vpack.c.b16 %v2067, %v2066
        %v2436 = vpack.c.b16 %v2069, %v2068
        %v2437 = vpack.c.b16 %v2071, %v2070
        %v2438 = vpack.c.b16 %v2073, %v2072
        %v2439 = vpack.c.b16 %v2075, %v2074
        %v2440 = vpack.c.b16 %v2077, %v2076
        %v2441 = vpack.c.b16 %v2079, %v2078
        %v2442 = vpack.c.b16 %v2081, %v2080
        %v2443 = vpack.c.b16 %v2083, %v2082
        %v2444 = vpack.c.b16 %v2085, %v2084
        %v2445 = vpack.c.b16 %v2087, %v2086
        %v2446 = vpack.c.b16 %v2089, %v2088
        %v2447 = vpack.c.b16 %v2091, %v2090
        %v2448 = vpack.c.b16 %v2093, %v2092
        %v2449 = vpack.c.b16 %v2095, %v2094
        %v2450 = vpack.c.b16 %v2097, %v2096
        %v2451 = vpack.c.b16 %v2099, %v2098
        %v2452 = vpack.c.b16 %v2101, %v2100
        %v2453 = vpack.c.b16 %v2103, %v2102
        %v2454 = vpack.c.b16 %v2105, %v2104
        %v2455 = vpack.c.b16 %v2107, %v2106
        %v2456 = vpack.c.b16 %v2109, %v2108
        %v2457 = vpack.c.b16 %v2111, %v2110
        %v2458 = vpack.c.b16 %v2113, %v2112
        %v2459 = vpack.c.b16 %v2115, %v2114
        %v2460 = vpack.c.b16 %v2117, %v2116
        %v2461 = vpack.c.b16 %v2119, %v2118
        %v2462 = vpack.c.b16 %v2121, %v2120
        %v2463 = vpack.c.b16 %v2123, %v2122
        %v2464 = vpack.c.b16 %v2125, %v2124
        %v2465 = vpack.c.b16 %v2127, %v2126
        %v2466 = vpack.c.b16 %v2129, %v2128
        %v2467 = vpack.c.b16 %v2131, %v2130
        %v2468 = vpack.c.b16 %v2133, %v2132
        %v2469 = vpack.c.b16 %v2135, %v2134
        %v2470 = vpack.c.b16 %v2137, %v2136
        %v2471 = vpack.c.b16 %v2139, %v2138
        %v2472 = vpack.c.b16 %v2141, %v2140
        %v2473 = vpack.c.b16 %v2143, %v2142
        %v2474 = vpack.c.b16 %v2145, %v2144
        %v2475 = vpack.c.b16 %v2147, %v2146
        %v2476 = vpack.c.b16 %v2149, %v2148
        %v2477 = vpack.c.b16 %v2151, %v2150
        %v2478 = vpack.c.b16 %v2153, %v2152
        %v2479 = vpack.c.b16 %v2155, %v2154
        %v2480 = vpack.c.b16 %v2157, %v2156
        %v2481 = vpack.c.b16 %v2159, %v2158
        %v2482 = vpack.c.b16 %v2161, %v2160
        %v2483 = vpack.c.b16 %v2163, %v2162
        %v2484 = vpack.c.b16 %v2165, %v2164
        %v2485 = vpack.c.b16 %v2167, %v2166
        %v2486 = vpack.c.b16 %v2169, %v2168
        %v2487 = vpack.c.b16 %v2171, %v2170
        %v2488 = vpack.c.b16 %v2173, %v2172
        %v2489 = vpack.c.b16 %v2175, %v2174
        %v2490 = vpack.c.b16 %v2177, %v2176
        %v2491 = vpack.c.b16 %v2179, %v2178
        %v2492 = vpack.c.b16 %v2181, %v2180
        %v2493 = vpack.c.b16 %v2183, %v2182
        %v2494 = vpack.c.b16 %v2185, %v2184
        %v2495 = vpack.c.b16 %v2187, %v2186
        %v2496 = vpack.c.b16 %v2189, %v2188
        %v2497 = vpack.c.b16 %v2191, %v2190
        %v2498 = vpack.c.b16 %v2193, %v2192
        %v2499 = vpack.c.b16 %v2195, %v2194
        %v2500 = vpack.c.b16 %v2197, %v2196
        %v2501 = vpack.c.b16 %v2199, %v2198
        %v2502 = vpack.c.b16 %v2201, %v2200
        %v2503 = vpack.c.b16 %v2203, %v2202
        %v2504 = vpack.c.b16 %v2205, %v2204
        %v2505 = vpack.c.b16 %v2207, %v2206
        %v2506 = vpack.c.b16 %v2209, %v2208
        %v2507 = vpack.c.b16 %v2211, %v2210
        %v2508 = vpack.c.b16 %v2213, %v2212
        %v2509 = vpack.c.b16 %v2215, %v2214
        %v2510 = vpack.c.b16 %v2217, %v2216
        %v2511 = vpack.c.b16 %v2219, %v2218
        %v2512 = vpack.c.b16 %v2221, %v2220
        %v2513 = vpack.c.b16 %v2223, %v2222
        %v2514 = vpack.c.b16 %v2225, %v2224
        %v2515 = vpack.c.b16 %v2227, %v2226
        %v2516 = vpack.c.b16 %v2229, %v2228
        %v2517 = vpack.c.b16 %v2231, %v2230
        %v2518 = vpack.c.b16 %v2233, %v2232
        %v2519 = vpack.c.b16 %v2235, %v2234
        %v2520 = vpack.c.b16 %v2237, %v2236
        %v2521 = vpack.c.b16 %v2239, %v2238
        %v2522 = vpack.c.b16 %v2241, %v2240
        %v2523 = vpack.c.b16 %v2243, %v2242
        %v2524 = vpack.c.b16 %v2245, %v2244
        %v2525 = vpack.c.b16 %v2247, %v2246
        %v2526 = vpack.c.b16 %v2249, %v2248
        %v2527 = vpack.c.b16 %v2251, %v2250
        %v2528 = vpack.c.b16 %v2253, %v2252
        %v2529 = vpack.c.b16 %v2255, %v2254
        %v2530 = vpack.c.b16 %v2257, %v2256
        %v2531 = vpack.c.b16 %v2259, %v2258
        %v2532 = vpack.c.b16 %v2261, %v2260
        %v2533 = vpack.c.b16 %v2263, %v2262
        %v2534 = vpack.c.b16 %v2265, %v2264
        %v2535 = vpack.c.b16 %v2267, %v2266
        %v2536 = vpack.c.b16 %v2269, %v2268
        %v2537 = vpack.c.b16 %v2271, %v2270
        %v2538 = vpack.c.b16 %v2273, %v2272
        %v2539 = vpack.c.b16 %v2275, %v2274
        %v2540 = vpack.c.b16 %v2277, %v2276
        %v2541 = vpack.c.b16 %v2279, %v2278
        %v2542 = vpack.c.b16 %v2281, %v2280
        %v2543 = vpack.c.b16 %v2283, %v2282
        %v2544 = vpack.c.b16 %v2285, %v2284
        %v2545 = vpack.c.b16 %v2287, %v2286
        %v2546 = vpack.c.b16 %v2289, %v2288
        %v2547 = vpack.c.b16 %v2291, %v2290
        %2804 = vmatprep.subr.bf16.mxu0 0
        %2805 = vmatpush1.bf16.msra.mxu0 %v2292
        %2806 = vmatprep.subr.bf16.mxu0 0
        %2807 = vmatpush1.bf16.msra.mxu0 %v2293
        %2808 = vmatprep.subr.bf16.mxu0 0
        %2809 = vmatpush1.bf16.msra.mxu0 %v2294
        %2810 = vmatprep.subr.bf16.mxu0 0
        %2811 = vmatpush1.bf16.msra.mxu0 %v2295
        %2812 = vmatprep.subr.bf16.mxu0 0
        %2813 = vmatpush1.bf16.msra.mxu0 %v2296
        %2814 = vmatprep.subr.bf16.mxu0 0
        %2815 = vmatpush1.bf16.msra.mxu0 %v2297
        %2816 = vmatprep.subr.bf16.mxu0 0
        %2817 = vmatpush1.bf16.msra.mxu0 %v2298
        %2818 = vmatprep.subr.bf16.mxu0 0
        %2819 = vmatpush1.bf16.msra.mxu0 %v2299
        %2820 = vmatprep.subr.bf16.mxu0 0
        %2821 = vmatpush1.bf16.msra.mxu0 %v2300
        %2822 = vmatprep.subr.bf16.mxu0 0
        %2823 = vmatpush1.bf16.msra.mxu0 %v2301
        %2824 = vmatprep.subr.bf16.mxu0 0
        %2825 = vmatpush1.bf16.msra.mxu0 %v2302
        %2826 = vmatprep.subr.bf16.mxu0 0
        %2827 = vmatpush1.bf16.msra.mxu0 %v2303
        %2828 = vmatprep.subr.bf16.mxu0 0
        %2829 = vmatpush1.bf16.msra.mxu0 %v2304
        %2830 = vmatprep.subr.bf16.mxu0 0
        %2831 = vmatpush1.bf16.msra.mxu0 %v2305
        %2832 = vmatprep.subr.bf16.mxu0 0
        %2833 = vmatpush1.bf16.msra.mxu0 %v2306
        %2834 = vmatprep.subr.bf16.mxu0 0
        %2835 = vmatpush1.bf16.msra.mxu0 %v2307
        %2836 = vmatprep.mubr.bf16.mxu0 %v1141
        %2837 = vmatmul.mubr.bf16.gmra.mrb[0].mxu0 %v1140
        %v2838 = vpop.f32.mrb[0].mxu0
        %v2839 = vadd.f32 0.0, %v2838
        %v2840 = vpop.f32.mrb[0].mxu0
        %v2841 = vpop.f32.mrb[0].mxu0
        %v2842 = vadd.f32 0.0, %v2841
        %v2843 = vpop.f32.mrb[0].mxu0
        %2844 = vmatprep.mubr.bf16.mxu0 %v1173
        %2845 = vmatmul.mubr.bf16.gmra.mrb[0].mxu0 %v1172
        %v2846 = vpop.f32.mrb[0].mxu0
        %v2847 = vadd.f32 0.0, %v2846
        %v2848 = vpop.f32.mrb[0].mxu0
        %v2849 = vpop.f32.mrb[0].mxu0
        %v2850 = vadd.f32 0.0, %v2849
        %v2851 = vpop.f32.mrb[0].mxu0
        %2852 = vdwg.mxu0
        %2853 = vmatprep.subr.bf16.mxu0 0
        %2854 = vmatpush1.bf16.msra.mxu0 %v2308
        %2855 = vmatprep.subr.bf16.mxu0 0
        %2856 = vmatpush1.bf16.msra.mxu0 %v2309
        %2857 = vmatprep.subr.bf16.mxu0 0
        %2858 = vmatpush1.bf16.msra.mxu0 %v2310
        %2859 = vmatprep.subr.bf16.mxu0 0
        %2860 = vmatpush1.bf16.msra.mxu0 %v2311
        %2861 = vmatprep.subr.bf16.mxu0 0
        %2862 = vmatpush1.bf16.msra.mxu0 %v2312
        %2863 = vmatprep.subr.bf16.mxu0 0
        %2864 = vmatpush1.bf16.msra.mxu0 %v2313
        %2865 = vmatprep.subr.bf16.mxu0 0
        %2866 = vmatpush1.bf16.msra.mxu0 %v2314
        %2867 = vmatprep.subr.bf16.mxu0 0
        %2868 = vmatpush1.bf16.msra.mxu0 %v2315
        %2869 = vmatprep.subr.bf16.mxu0 0
        %2870 = vmatpush1.bf16.msra.mxu0 %v2316
        %2871 = vmatprep.subr.bf16.mxu0 0
        %2872 = vmatpush1.bf16.msra.mxu0 %v2317
        %2873 = vmatprep.subr.bf16.mxu0 0
        %2874 = vmatpush1.bf16.msra.mxu0 %v2318
        %2875 = vmatprep.subr.bf16.mxu0 0
        %2876 = vmatpush1.bf16.msra.mxu0 %v2319
        %2877 = vmatprep.subr.bf16.mxu0 0
        %2878 = vmatpush1.bf16.msra.mxu0 %v2320
        %2879 = vmatprep.subr.bf16.mxu0 0
        %2880 = vmatpush1.bf16.msra.mxu0 %v2321
        %2881 = vmatprep.subr.bf16.mxu0 0
        %2882 = vmatpush1.bf16.msra.mxu0 %v2322
        %2883 = vmatprep.subr.bf16.mxu0 0
        %2884 = vmatpush1.bf16.msra.mxu0 %v2323
        %2885 = vmatprep.mubr.bf16.mxu0 %v1143
        %2886 = vmatmul.mubr.bf16.gmra.mrb[0].mxu0 %v1142
        %v2887 = vpop.f32.mrb[0].mxu0
        %v2888 = vadd.f32 %v2839, %v2887
        %v2889 = vpop.f32.mrb[0].mxu0
        %v2890 = vpop.f32.mrb[0].mxu0
        %v2891 = vadd.f32 %v2842, %v2890
        %v2892 = vpop.f32.mrb[0].mxu0
        %2893 = vmatprep.mubr.bf16.mxu0 %v1175
        %2894 = vmatmul.mubr.bf16.gmra.mrb[0].mxu0 %v1174
        %v2895 = vpop.f32.mrb[0].mxu0
        %v2896 = vadd.f32 %v2847, %v2895
        %v2897 = vpop.f32.mrb[0].mxu0
        %v2898 = vpop.f32.mrb[0].mxu0
        %v2899 = vadd.f32 %v2850, %v2898
        %v2900 = vpop.f32.mrb[0].mxu0
        %2901 = vdwg.mxu0
        %2902 = vmatprep.subr.bf16.mxu0 0
        %2903 = vmatpush1.bf16.msra.mxu0 %v2324
        %2904 = vmatprep.subr.bf16.mxu0 0
        %2905 = vmatpush1.bf16.msra.mxu0 %v2325
        %2906 = vmatprep.subr.bf16.mxu0 0
        %2907 = vmatpush1.bf16.msra.mxu0 %v2326
        %2908 = vmatprep.subr.bf16.mxu0 0
        %2909 = vmatpush1.bf16.msra.mxu0 %v2327
        %2910 = vmatprep.subr.bf16.mxu0 0
        %2911 = vmatpush1.bf16.msra.mxu0 %v2328
        %2912 = vmatprep.subr.bf16.mxu0 0
        %2913 = vmatpush1.bf16.msra.mxu0 %v2329
        %2914 = vmatprep.subr.bf16.mxu0 0
        %2915 = vmatpush1.bf16.msra.mxu0 %v2330
        %2916 = vmatprep.subr.bf16.mxu0 0
        %2917 = vmatpush1.bf16.msra.mxu0 %v2331
        %2918 = vmatprep.subr.bf16.mxu0 0
        %2919 = vmatpush1.bf16.msra.mxu0 %v2332
        %2920 = vmatprep.subr.bf16.mxu0 0
        %2921 = vmatpush1.bf16.msra.mxu0 %v2333
        %2922 = vmatprep.subr.bf16.mxu0 0
        %2923 = vmatpush1.bf16.msra.mxu0 %v2334
        %2924 = vmatprep.subr.bf16.mxu0 0
        %2925 = vmatpush1.bf16.msra.mxu0 %v2335
        %2926 = vmatprep.subr.bf16.mxu0 0
        %2927 = vmatpush1.bf16.msra.mxu0 %v2336
        %2928 = vmatprep.subr.bf16.mxu0 0
        %2929 = vmatpush1.bf16.msra.mxu0 %v2337
        %2930 = vmatprep.subr.bf16.mxu0 0
        %2931 = vmatpush1.bf16.msra.mxu0 %v2338
        %2932 = vmatprep.subr.bf16.mxu0 0
        %2933 = vmatpush1.bf16.msra.mxu0 %v2339
        %2934 = vmatprep.mubr.bf16.mxu0 %v1145
        %2935 = vmatmul.mubr.bf16.gmra.mrb[0].mxu0 %v1144
        %v2936 = vpop.f32.mrb[0].mxu0
        %v2937 = vadd.f32 %v2888, %v2936
        %v2938 = vpop.f32.mrb[0].mxu0
        %v2939 = vpop.f32.mrb[0].mxu0
        %v2940 = vadd.f32 %v2891, %v2939
        %v2941 = vpop.f32.mrb[0].mxu0
        %2942 = vmatprep.mubr.bf16.mxu0 %v1177
        %2943 = vmatmul.mubr.bf16.gmra.mrb[0].mxu0 %v1176
        %v2944 = vpop.f32.mrb[0].mxu0
        %v2945 = vadd.f32 %v2896, %v2944
        %v2946 = vpop.f32.mrb[0].mxu0
        %v2947 = vpop.f32.mrb[0].mxu0
        %v2948 = vadd.f32 %v2899, %v2947
        %v2949 = vpop.f32.mrb[0].mxu0
        %2950 = vdwg.mxu0
        %2951 = vmatprep.subr.bf16.mxu0 0
        %2952 = vmatpush1.bf16.msra.mxu0 %v2340
        %2953 = vmatprep.subr.bf16.mxu0 0
        %2954 = vmatpush1.bf16.msra.mxu0 %v2341
        %2955 = vmatprep.subr.bf16.mxu0 0
        %2956 = vmatpush1.bf16.msra.mxu0 %v2342
        %2957 = vmatprep.subr.bf16.mxu0 0
        %2958 = vmatpush1.bf16.msra.mxu0 %v2343
        %2959 = vmatprep.subr.bf16.mxu0 0
        %2960 = vmatpush1.bf16.msra.mxu0 %v2344
        %2961 = vmatprep.subr.bf16.mxu0 0
        %2962 = vmatpush1.bf16.msra.mxu0 %v2345
        %2963 = vmatprep.subr.bf16.mxu0 0
        %2964 = vmatpush1.bf16.msra.mxu0 %v2346
        %2965 = vmatprep.subr.bf16.mxu0 0
        %2966 = vmatpush1.bf16.msra.mxu0 %v2347
        %2967 = vmatprep.subr.bf16.mxu0 0
        %2968 = vmatpush1.bf16.msra.mxu0 %v2348
        %2969 = vmatprep.subr.bf16.mxu0 0
        %2970 = vmatpush1.bf16.msra.mxu0 %v2349
        %2971 = vmatprep.subr.bf16.mxu0 0
        %2972 = vmatpush1.bf16.msra.mxu0 %v2350
        %2973 = vmatprep.subr.bf16.mxu0 0
        %2974 = vmatpush1.bf16.msra.mxu0 %v2351
        %2975 = vmatprep.subr.bf16.mxu0 0
        %2976 = vmatpush1.bf16.msra.mxu0 %v2352
        %2977 = vmatprep.subr.bf16.mxu0 0
        %2978 = vmatpush1.bf16.msra.mxu0 %v2353
        %2979 = vmatprep.subr.bf16.mxu0 0
        %2980 = vmatpush1.bf16.msra.mxu0 %v2354
        %2981 = vmatprep.subr.bf16.mxu0 0
        %2982 = vmatpush1.bf16.msra.mxu0 %v2355
        %2983 = vmatprep.mubr.bf16.mxu0 %v1147
        %2984 = vmatmul.mubr.bf16.gmra.mrb[0].mxu0 %v1146
        %v2985 = vpop.f32.mrb[0].mxu0
        %v2986 = vadd.f32 %v2937, %v2985
        %v2987 = vpop.f32.mrb[0].mxu0
        %v2988 = vpop.f32.mrb[0].mxu0
        %v2989 = vadd.f32 %v2940, %v2988
        %v2990 = vpop.f32.mrb[0].mxu0
        %2991 = vmatprep.mubr.bf16.mxu0 %v1179
        %2992 = vmatmul.mubr.bf16.gmra.mrb[0].mxu0 %v1178
        %v2993 = vpop.f32.mrb[0].mxu0
        %v2994 = vadd.f32 %v2945, %v2993
        %v2995 = vpop.f32.mrb[0].mxu0
        %v2996 = vpop.f32.mrb[0].mxu0
        %v2997 = vadd.f32 %v2948, %v2996
        %v2998 = vpop.f32.mrb[0].mxu0
        %2999 = vdwg.mxu0
        %3000 = vmatprep.subr.bf16.mxu0 0
        %3001 = vmatpush1.bf16.msra.mxu0 %v2356
        %3002 = vmatprep.subr.bf16.mxu0 0
        %3003 = vmatpush1.bf16.msra.mxu0 %v2357
        %3004 = vmatprep.subr.bf16.mxu0 0
        %3005 = vmatpush1.bf16.msra.mxu0 %v2358
        %3006 = vmatprep.subr.bf16.mxu0 0
        %3007 = vmatpush1.bf16.msra.mxu0 %v2359
        %3008 = vmatprep.subr.bf16.mxu0 0
        %3009 = vmatpush1.bf16.msra.mxu0 %v2360
        %3010 = vmatprep.subr.bf16.mxu0 0
        %3011 = vmatpush1.bf16.msra.mxu0 %v2361
        %3012 = vmatprep.subr.bf16.mxu0 0
        %3013 = vmatpush1.bf16.msra.mxu0 %v2362
        %3014 = vmatprep.subr.bf16.mxu0 0
        %3015 = vmatpush1.bf16.msra.mxu0 %v2363
        %3016 = vmatprep.subr.bf16.mxu0 0
        %3017 = vmatpush1.bf16.msra.mxu0 %v2364
        %3018 = vmatprep.subr.bf16.mxu0 0
        %3019 = vmatpush1.bf16.msra.mxu0 %v2365
        %3020 = vmatprep.subr.bf16.mxu0 0
        %3021 = vmatpush1.bf16.msra.mxu0 %v2366
        %3022 = vmatprep.subr.bf16.mxu0 0
        %3023 = vmatpush1.bf16.msra.mxu0 %v2367
        %3024 = vmatprep.subr.bf16.mxu0 0
        %3025 = vmatpush1.bf16.msra.mxu0 %v2368
        %3026 = vmatprep.subr.bf16.mxu0 0
        %3027 = vmatpush1.bf16.msra.mxu0 %v2369
        %3028 = vmatprep.subr.bf16.mxu0 0
        %3029 = vmatpush1.bf16.msra.mxu0 %v2370
        %3030 = vmatprep.subr.bf16.mxu0 0
        %3031 = vmatpush1.bf16.msra.mxu0 %v2371
        %3032 = vmatprep.mubr.bf16.mxu0 %v1149
        %3033 = vmatmul.mubr.bf16.gmra.mrb[0].mxu0 %v1148
        %v3034 = vpop.f32.mrb[0].mxu0
        %v3035 = vadd.f32 %v2986, %v3034
        %v3036 = vpop.f32.mrb[0].mxu0
        %v3037 = vpop.f32.mrb[0].mxu0
        %v3038 = vadd.f32 %v2989, %v3037
        %v3039 = vpop.f32.mrb[0].mxu0
        %3040 = vmatprep.mubr.bf16.mxu0 %v1181
        %3041 = vmatmul.mubr.bf16.gmra.mrb[0].mxu0 %v1180
        %v3042 = vpop.f32.mrb[0].mxu0
        %v3043 = vadd.f32 %v2994, %v3042
        %v3044 = vpop.f32.mrb[0].mxu0
        %v3045 = vpop.f32.mrb[0].mxu0
        %v3046 = vadd.f32 %v2997, %v3045
        %v3047 = vpop.f32.mrb[0].mxu0
        %3048 = vdwg.mxu0
        %3049 = vmatprep.subr.bf16.mxu0 0
        %3050 = vmatpush1.bf16.msra.mxu0 %v2372
        %3051 = vmatprep.subr.bf16.mxu0 0
        %3052 = vmatpush1.bf16.msra.mxu0 %v2373
        %3053 = vmatprep.subr.bf16.mxu0 0
        %3054 = vmatpush1.bf16.msra.mxu0 %v2374
        %3055 = vmatprep.subr.bf16.mxu0 0
        %3056 = vmatpush1.bf16.msra.mxu0 %v2375
        %3057 = vmatprep.subr.bf16.mxu0 0
        %3058 = vmatpush1.bf16.msra.mxu0 %v2376
        %3059 = vmatprep.subr.bf16.mxu0 0
        %3060 = vmatpush1.bf16.msra.mxu0 %v2377
        %3061 = vmatprep.subr.bf16.mxu0 0
        %3062 = vmatpush1.bf16.msra.mxu0 %v2378
        %3063 = vmatprep.subr.bf16.mxu0 0
        %3064 = vmatpush1.bf16.msra.mxu0 %v2379
        %3065 = vmatprep.subr.bf16.mxu0 0
        %3066 = vmatpush1.bf16.msra.mxu0 %v2380
        %3067 = vmatprep.subr.bf16.mxu0 0
        %3068 = vmatpush1.bf16.msra.mxu0 %v2381
        %3069 = vmatprep.subr.bf16.mxu0 0
        %3070 = vmatpush1.bf16.msra.mxu0 %v2382
        %3071 = vmatprep.subr.bf16.mxu0 0
        %3072 = vmatpush1.bf16.msra.mxu0 %v2383
        %3073 = vmatprep.subr.bf16.mxu0 0
        %3074 = vmatpush1.bf16.msra.mxu0 %v2384
        %3075 = vmatprep.subr.bf16.mxu0 0
        %3076 = vmatpush1.bf16.msra.mxu0 %v2385
        %3077 = vmatprep.subr.bf16.mxu0 0
        %3078 = vmatpush1.bf16.msra.mxu0 %v2386
        %3079 = vmatprep.subr.bf16.mxu0 0
        %3080 = vmatpush1.bf16.msra.mxu0 %v2387
        %3081 = vmatprep.mubr.bf16.mxu0 %v1151
        %3082 = vmatmul.mubr.bf16.gmra.mrb[0].mxu0 %v1150
        %v3083 = vpop.f32.mrb[0].mxu0
        %v3084 = vadd.f32 %v3035, %v3083
        %v3085 = vpop.f32.mrb[0].mxu0
        %v3086 = vpop.f32.mrb[0].mxu0
        %v3087 = vadd.f32 %v3038, %v3086
        %v3088 = vpop.f32.mrb[0].mxu0
        %3089 = vmatprep.mubr.bf16.mxu0 %v1183
        %3090 = vmatmul.mubr.bf16.gmra.mrb[0].mxu0 %v1182
        %v3091 = vpop.f32.mrb[0].mxu0
        %v3092 = vadd.f32 %v3043, %v3091
        %v3093 = vpop.f32.mrb[0].mxu0
        %v3094 = vpop.f32.mrb[0].mxu0
        %v3095 = vadd.f32 %v3046, %v3094
        %v3096 = vpop.f32.mrb[0].mxu0
        %3097 = vdwg.mxu0
        %3098 = vmatprep.subr.bf16.mxu0 0
        %3099 = vmatpush1.bf16.msra.mxu0 %v2388
        %3100 = vmatprep.subr.bf16.mxu0 0
        %3101 = vmatpush1.bf16.msra.mxu0 %v2389
        %3102 = vmatprep.subr.bf16.mxu0 0
        %3103 = vmatpush1.bf16.msra.mxu0 %v2390
        %3104 = vmatprep.subr.bf16.mxu0 0
        %3105 = vmatpush1.bf16.msra.mxu0 %v2391
        %3106 = vmatprep.subr.bf16.mxu0 0
        %3107 = vmatpush1.bf16.msra.mxu0 %v2392
        %3108 = vmatprep.subr.bf16.mxu0 0
        %3109 = vmatpush1.bf16.msra.mxu0 %v2393
        %3110 = vmatprep.subr.bf16.mxu0 0
        %3111 = vmatpush1.bf16.msra.mxu0 %v2394
        %3112 = vmatprep.subr.bf16.mxu0 0
        %3113 = vmatpush1.bf16.msra.mxu0 %v2395
        %3114 = vmatprep.subr.bf16.mxu0 0
        %3115 = vmatpush1.bf16.msra.mxu0 %v2396
        %3116 = vmatprep.subr.bf16.mxu0 0
        %3117 = vmatpush1.bf16.msra.mxu0 %v2397
        %3118 = vmatprep.subr.bf16.mxu0 0
        %3119 = vmatpush1.bf16.msra.mxu0 %v2398
        %3120 = vmatprep.subr.bf16.mxu0 0
        %3121 = vmatpush1.bf16.msra.mxu0 %v2399
        %3122 = vmatprep.subr.bf16.mxu0 0
        %3123 = vmatpush1.bf16.msra.mxu0 %v2400
        %3124 = vmatprep.subr.bf16.mxu0 0
        %3125 = vmatpush1.bf16.msra.mxu0 %v2401
        %3126 = vmatprep.subr.bf16.mxu0 0
        %3127 = vmatpush1.bf16.msra.mxu0 %v2402
        %3128 = vmatprep.subr.bf16.mxu0 0
        %3129 = vmatpush1.bf16.msra.mxu0 %v2403
        %3130 = vmatprep.mubr.bf16.mxu0 %v1153
        %3131 = vmatmul.mubr.bf16.gmra.mrb[0].mxu0 %v1152
        %v3132 = vpop.f32.mrb[0].mxu0
        %v3133 = vadd.f32 %v3084, %v3132
        %v3134 = vpop.f32.mrb[0].mxu0
        %v3135 = vpop.f32.mrb[0].mxu0
        %v3136 = vadd.f32 %v3087, %v3135
        %v3137 = vpop.f32.mrb[0].mxu0
        %3138 = vmatprep.mubr.bf16.mxu0 %v1185
        %3139 = vmatmul.mubr.bf16.gmra.mrb[0].mxu0 %v1184
        %v3140 = vpop.f32.mrb[0].mxu0
        %v3141 = vadd.f32 %v3092, %v3140
        %v3142 = vpop.f32.mrb[0].mxu0
        %v3143 = vpop.f32.mrb[0].mxu0
        %v3144 = vadd.f32 %v3095, %v3143
        %v3145 = vpop.f32.mrb[0].mxu0
        %3146 = vdwg.mxu0
        %3147 = vmatprep.subr.bf16.mxu0 0
        %3148 = vmatpush1.bf16.msra.mxu0 %v2404
        %3149 = vmatprep.subr.bf16.mxu0 0
        %3150 = vmatpush1.bf16.msra.mxu0 %v2405
        %3151 = vmatprep.subr.bf16.mxu0 0
        %3152 = vmatpush1.bf16.msra.mxu0 %v2406
        %3153 = vmatprep.subr.bf16.mxu0 0
        %3154 = vmatpush1.bf16.msra.mxu0 %v2407
        %3155 = vmatprep.subr.bf16.mxu0 0
        %3156 = vmatpush1.bf16.msra.mxu0 %v2408
        %3157 = vmatprep.subr.bf16.mxu0 0
        %3158 = vmatpush1.bf16.msra.mxu0 %v2409
        %3159 = vmatprep.subr.bf16.mxu0 0
        %3160 = vmatpush1.bf16.msra.mxu0 %v2410
        %3161 = vmatprep.subr.bf16.mxu0 0
        %3162 = vmatpush1.bf16.msra.mxu0 %v2411
        %3163 = vmatprep.subr.bf16.mxu0 0
        %3164 = vmatpush1.bf16.msra.mxu0 %v2412
        %3165 = vmatprep.subr.bf16.mxu0 0
        %3166 = vmatpush1.bf16.msra.mxu0 %v2413
        %3167 = vmatprep.subr.bf16.mxu0 0
        %3168 = vmatpush1.bf16.msra.mxu0 %v2414
        %3169 = vmatprep.subr.bf16.mxu0 0
        %3170 = vmatpush1.bf16.msra.mxu0 %v2415
        %3171 = vmatprep.subr.bf16.mxu0 0
        %3172 = vmatpush1.bf16.msra.mxu0 %v2416
        %3173 = vmatprep.subr.bf16.mxu0 0
        %3174 = vmatpush1.bf16.msra.mxu0 %v2417
        %3175 = vmatprep.subr.bf16.mxu0 0
        %3176 = vmatpush1.bf16.msra.mxu0 %v2418
        %3177 = vmatprep.subr.bf16.mxu0 0
        %3178 = vmatpush1.bf16.msra.mxu0 %v2419
        %3179 = vmatprep.mubr.bf16.mxu0 %v1155
        %3180 = vmatmul.mubr.bf16.gmra.mrb[0].mxu0 %v1154
        %v3181 = vpop.f32.mrb[0].mxu0
        %v3182 = vadd.f32 %v3133, %v3181
        %v3183 = vpop.f32.mrb[0].mxu0
        %v3184 = vpop.f32.mrb[0].mxu0
        %v3185 = vadd.f32 %v3136, %v3184
        %v3186 = vpop.f32.mrb[0].mxu0
        %3187 = vmatprep.mubr.bf16.mxu0 %v1187
        %3188 = vmatmul.mubr.bf16.gmra.mrb[0].mxu0 %v1186
        %v3189 = vpop.f32.mrb[0].mxu0
        %v3190 = vadd.f32 %v3141, %v3189
        %v3191 = vpop.f32.mrb[0].mxu0
        %v3192 = vpop.f32.mrb[0].mxu0
        %v3193 = vadd.f32 %v3144, %v3192
        %v3194 = vpop.f32.mrb[0].mxu0
        %3195 = vdwg.mxu0
        %3196 = vmatprep.subr.bf16.mxu0 0
        %3197 = vmatpush1.bf16.msra.mxu0 %v2420
        %3198 = vmatprep.subr.bf16.mxu0 0
        %3199 = vmatpush1.bf16.msra.mxu0 %v2421
        %3200 = vmatprep.subr.bf16.mxu0 0
        %3201 = vmatpush1.bf16.msra.mxu0 %v2422
        %3202 = vmatprep.subr.bf16.mxu0 0
        %3203 = vmatpush1.bf16.msra.mxu0 %v2423
        %3204 = vmatprep.subr.bf16.mxu0 0
        %3205 = vmatpush1.bf16.msra.mxu0 %v2424
        %3206 = vmatprep.subr.bf16.mxu0 0
        %3207 = vmatpush1.bf16.msra.mxu0 %v2425
        %3208 = vmatprep.subr.bf16.mxu0 0
        %3209 = vmatpush1.bf16.msra.mxu0 %v2426
        %3210 = vmatprep.subr.bf16.mxu0 0
        %3211 = vmatpush1.bf16.msra.mxu0 %v2427
        %3212 = vmatprep.subr.bf16.mxu0 0
        %3213 = vmatpush1.bf16.msra.mxu0 %v2428
        %3214 = vmatprep.subr.bf16.mxu0 0
        %3215 = vmatpush1.bf16.msra.mxu0 %v2429
        %3216 = vmatprep.subr.bf16.mxu0 0
        %3217 = vmatpush1.bf16.msra.mxu0 %v2430
        %3218 = vmatprep.subr.bf16.mxu0 0
        %3219 = vmatpush1.bf16.msra.mxu0 %v2431
        %3220 = vmatprep.subr.bf16.mxu0 0
        %3221 = vmatpush1.bf16.msra.mxu0 %v2432
        %3222 = vmatprep.subr.bf16.mxu0 0
        %3223 = vmatpush1.bf16.msra.mxu0 %v2433
        %3224 = vmatprep.subr.bf16.mxu0 0
        %3225 = vmatpush1.bf16.msra.mxu0 %v2434
        %3226 = vmatprep.subr.bf16.mxu0 0
        %3227 = vmatpush1.bf16.msra.mxu0 %v2435
        %3228 = vmatprep.mubr.bf16.mxu0 %v1157
        %3229 = vmatmul.mubr.bf16.gmra.mrb[0].mxu0 %v1156
        %v3230 = vpop.f32.mrb[0].mxu0
        %v3231 = vadd.f32 %v3182, %v3230
        %v3232 = vpop.f32.mrb[0].mxu0
        %v3233 = vpop.f32.mrb[0].mxu0
        %v3234 = vadd.f32 %v3185, %v3233
        %v3235 = vpop.f32.mrb[0].mxu0
        %3236 = vmatprep.mubr.bf16.mxu0 %v1189
        %3237 = vmatmul.mubr.bf16.gmra.mrb[0].mxu0 %v1188
        %v3238 = vpop.f32.mrb[0].mxu0
        %v3239 = vadd.f32 %v3190, %v3238
        %v3240 = vpop.f32.mrb[0].mxu0
        %v3241 = vpop.f32.mrb[0].mxu0
        %v3242 = vadd.f32 %v3193, %v3241
        %v3243 = vpop.f32.mrb[0].mxu0
        %3244 = vdwg.mxu0
        %3245 = vmatprep.subr.bf16.mxu0 0
        %3246 = vmatpush1.bf16.msra.mxu0 %v2436
        %3247 = vmatprep.subr.bf16.mxu0 0
        %3248 = vmatpush1.bf16.msra.mxu0 %v2437
        %3249 = vmatprep.subr.bf16.mxu0 0
        %3250 = vmatpush1.bf16.msra.mxu0 %v2438
        %3251 = vmatprep.subr.bf16.mxu0 0
        %3252 = vmatpush1.bf16.msra.mxu0 %v2439
        %3253 = vmatprep.subr.bf16.mxu0 0
        %3254 = vmatpush1.bf16.msra.mxu0 %v2440
        %3255 = vmatprep.subr.bf16.mxu0 0
        %3256 = vmatpush1.bf16.msra.mxu0 %v2441
        %3257 = vmatprep.subr.bf16.mxu0 0
        %3258 = vmatpush1.bf16.msra.mxu0 %v2442
        %3259 = vmatprep.subr.bf16.mxu0 0
        %3260 = vmatpush1.bf16.msra.mxu0 %v2443
        %3261 = vmatprep.subr.bf16.mxu0 0
        %3262 = vmatpush1.bf16.msra.mxu0 %v2444
        %3263 = vmatprep.subr.bf16.mxu0 0
        %3264 = vmatpush1.bf16.msra.mxu0 %v2445
        %3265 = vmatprep.subr.bf16.mxu0 0
        %3266 = vmatpush1.bf16.msra.mxu0 %v2446
        %3267 = vmatprep.subr.bf16.mxu0 0
        %3268 = vmatpush1.bf16.msra.mxu0 %v2447
        %3269 = vmatprep.subr.bf16.mxu0 0
        %3270 = vmatpush1.bf16.msra.mxu0 %v2448
        %3271 = vmatprep.subr.bf16.mxu0 0
        %3272 = vmatpush1.bf16.msra.mxu0 %v2449
        %3273 = vmatprep.subr.bf16.mxu0 0
        %3274 = vmatpush1.bf16.msra.mxu0 %v2450
        %3275 = vmatprep.subr.bf16.mxu0 0
        %3276 = vmatpush1.bf16.msra.mxu0 %v2451
        %3277 = vmatprep.mubr.bf16.mxu0 %v1159
        %3278 = vmatmul.mubr.bf16.gmra.mrb[0].mxu0 %v1158
        %v3279 = vpop.f32.mrb[0].mxu0
        %v3280 = vadd.f32 %v3231, %v3279
        %v3281 = vpop.f32.mrb[0].mxu0
        %v3282 = vpop.f32.mrb[0].mxu0
        %v3283 = vadd.f32 %v3234, %v3282
        %v3284 = vpop.f32.mrb[0].mxu0
        %3285 = vmatprep.mubr.bf16.mxu0 %v1191
        %3286 = vmatmul.mubr.bf16.gmra.mrb[0].mxu0 %v1190
        %v3287 = vpop.f32.mrb[0].mxu0
        %v3288 = vadd.f32 %v3239, %v3287
        %v3289 = vpop.f32.mrb[0].mxu0
        %v3290 = vpop.f32.mrb[0].mxu0
        %v3291 = vadd.f32 %v3242, %v3290
        %v3292 = vpop.f32.mrb[0].mxu0
        %3293 = vdwg.mxu0
        %3294 = vmatprep.subr.bf16.mxu0 0
        %3295 = vmatpush1.bf16.msra.mxu0 %v2452
        %3296 = vmatprep.subr.bf16.mxu0 0
        %3297 = vmatpush1.bf16.msra.mxu0 %v2453
        %3298 = vmatprep.subr.bf16.mxu0 0
        %3299 = vmatpush1.bf16.msra.mxu0 %v2454
        %3300 = vmatprep.subr.bf16.mxu0 0
        %3301 = vmatpush1.bf16.msra.mxu0 %v2455
        %3302 = vmatprep.subr.bf16.mxu0 0
        %3303 = vmatpush1.bf16.msra.mxu0 %v2456
        %3304 = vmatprep.subr.bf16.mxu0 0
        %3305 = vmatpush1.bf16.msra.mxu0 %v2457
        %3306 = vmatprep.subr.bf16.mxu0 0
        %3307 = vmatpush1.bf16.msra.mxu0 %v2458
        %3308 = vmatprep.subr.bf16.mxu0 0
        %3309 = vmatpush1.bf16.msra.mxu0 %v2459
        %3310 = vmatprep.subr.bf16.mxu0 0
        %3311 = vmatpush1.bf16.msra.mxu0 %v2460
        %3312 = vmatprep.subr.bf16.mxu0 0
        %3313 = vmatpush1.bf16.msra.mxu0 %v2461
        %3314 = vmatprep.subr.bf16.mxu0 0
        %3315 = vmatpush1.bf16.msra.mxu0 %v2462
        %3316 = vmatprep.subr.bf16.mxu0 0
        %3317 = vmatpush1.bf16.msra.mxu0 %v2463
        %3318 = vmatprep.subr.bf16.mxu0 0
        %3319 = vmatpush1.bf16.msra.mxu0 %v2464
        %3320 = vmatprep.subr.bf16.mxu0 0
        %3321 = vmatpush1.bf16.msra.mxu0 %v2465
        %3322 = vmatprep.subr.bf16.mxu0 0
        %3323 = vmatpush1.bf16.msra.mxu0 %v2466
        %3324 = vmatprep.subr.bf16.mxu0 0
        %3325 = vmatpush1.bf16.msra.mxu0 %v2467
        %3326 = vmatprep.mubr.bf16.mxu0 %v1161
        %3327 = vmatmul.mubr.bf16.gmra.mrb[0].mxu0 %v1160
        %v3328 = vpop.f32.mrb[0].mxu0
        %v3329 = vadd.f32 %v3280, %v3328
        %v3330 = vpop.f32.mrb[0].mxu0
        %v3331 = vpop.f32.mrb[0].mxu0
        %v3332 = vadd.f32 %v3283, %v3331
        %v3333 = vpop.f32.mrb[0].mxu0
        %3334 = vmatprep.mubr.bf16.mxu0 %v1193
        %3335 = vmatmul.mubr.bf16.gmra.mrb[0].mxu0 %v1192
        %v3336 = vpop.f32.mrb[0].mxu0
        %v3337 = vadd.f32 %v3288, %v3336
        %v3338 = vpop.f32.mrb[0].mxu0
        %v3339 = vpop.f32.mrb[0].mxu0
        %v3340 = vadd.f32 %v3291, %v3339
        %v3341 = vpop.f32.mrb[0].mxu0
        %3342 = vdwg.mxu0
        %3343 = vmatprep.subr.bf16.mxu0 0
        %3344 = vmatpush1.bf16.msra.mxu0 %v2468
        %3345 = vmatprep.subr.bf16.mxu0 0
        %3346 = vmatpush1.bf16.msra.mxu0 %v2469
        %3347 = vmatprep.subr.bf16.mxu0 0
        %3348 = vmatpush1.bf16.msra.mxu0 %v2470
        %3349 = vmatprep.subr.bf16.mxu0 0
        %3350 = vmatpush1.bf16.msra.mxu0 %v2471
        %3351 = vmatprep.subr.bf16.mxu0 0
        %3352 = vmatpush1.bf16.msra.mxu0 %v2472
        %3353 = vmatprep.subr.bf16.mxu0 0
        %3354 = vmatpush1.bf16.msra.mxu0 %v2473
        %3355 = vmatprep.subr.bf16.mxu0 0
        %3356 = vmatpush1.bf16.msra.mxu0 %v2474
        %3357 = vmatprep.subr.bf16.mxu0 0
        %3358 = vmatpush1.bf16.msra.mxu0 %v2475
        %3359 = vmatprep.subr.bf16.mxu0 0
        %3360 = vmatpush1.bf16.msra.mxu0 %v2476
        %3361 = vmatprep.subr.bf16.mxu0 0
        %3362 = vmatpush1.bf16.msra.mxu0 %v2477
        %3363 = vmatprep.subr.bf16.mxu0 0
        %3364 = vmatpush1.bf16.msra.mxu0 %v2478
        %3365 = vmatprep.subr.bf16.mxu0 0
        %3366 = vmatpush1.bf16.msra.mxu0 %v2479
        %3367 = vmatprep.subr.bf16.mxu0 0
        %3368 = vmatpush1.bf16.msra.mxu0 %v2480
        %3369 = vmatprep.subr.bf16.mxu0 0
        %3370 = vmatpush1.bf16.msra.mxu0 %v2481
        %3371 = vmatprep.subr.bf16.mxu0 0
        %3372 = vmatpush1.bf16.msra.mxu0 %v2482
        %3373 = vmatprep.subr.bf16.mxu0 0
        %3374 = vmatpush1.bf16.msra.mxu0 %v2483
        %3375 = vmatprep.mubr.bf16.mxu0 %v1163
        %3376 = vmatmul.mubr.bf16.gmra.mrb[0].mxu0 %v1162
        %v3377 = vpop.f32.mrb[0].mxu0
        %v3378 = vadd.f32 %v3329, %v3377
        %v3379 = vpop.f32.mrb[0].mxu0
        %v3380 = vpop.f32.mrb[0].mxu0
        %v3381 = vadd.f32 %v3332, %v3380
        %v3382 = vpop.f32.mrb[0].mxu0
        %3383 = vmatprep.mubr.bf16.mxu0 %v1195
        %3384 = vmatmul.mubr.bf16.gmra.mrb[0].mxu0 %v1194
        %v3385 = vpop.f32.mrb[0].mxu0
        %v3386 = vadd.f32 %v3337, %v3385
        %v3387 = vpop.f32.mrb[0].mxu0
        %v3388 = vpop.f32.mrb[0].mxu0
        %v3389 = vadd.f32 %v3340, %v3388
        %v3390 = vpop.f32.mrb[0].mxu0
        %3391 = vdwg.mxu0
        %3392 = vmatprep.subr.bf16.mxu0 0
        %3393 = vmatpush1.bf16.msra.mxu0 %v2484
        %3394 = vmatprep.subr.bf16.mxu0 0
        %3395 = vmatpush1.bf16.msra.mxu0 %v2485
        %3396 = vmatprep.subr.bf16.mxu0 0
        %3397 = vmatpush1.bf16.msra.mxu0 %v2486
        %3398 = vmatprep.subr.bf16.mxu0 0
        %3399 = vmatpush1.bf16.msra.mxu0 %v2487
        %3400 = vmatprep.subr.bf16.mxu0 0
        %3401 = vmatpush1.bf16.msra.mxu0 %v2488
        %3402 = vmatprep.subr.bf16.mxu0 0
        %3403 = vmatpush1.bf16.msra.mxu0 %v2489
        %3404 = vmatprep.subr.bf16.mxu0 0
        %3405 = vmatpush1.bf16.msra.mxu0 %v2490
        %3406 = vmatprep.subr.bf16.mxu0 0
        %3407 = vmatpush1.bf16.msra.mxu0 %v2491
        %3408 = vmatprep.subr.bf16.mxu0 0
        %3409 = vmatpush1.bf16.msra.mxu0 %v2492
        %3410 = vmatprep.subr.bf16.mxu0 0
        %3411 = vmatpush1.bf16.msra.mxu0 %v2493
        %3412 = vmatprep.subr.bf16.mxu0 0
        %3413 = vmatpush1.bf16.msra.mxu0 %v2494
        %3414 = vmatprep.subr.bf16.mxu0 0
        %3415 = vmatpush1.bf16.msra.mxu0 %v2495
        %3416 = vmatprep.subr.bf16.mxu0 0
        %3417 = vmatpush1.bf16.msra.mxu0 %v2496
        %3418 = vmatprep.subr.bf16.mxu0 0
        %3419 = vmatpush1.bf16.msra.mxu0 %v2497
        %3420 = vmatprep.subr.bf16.mxu0 0
        %3421 = vmatpush1.bf16.msra.mxu0 %v2498
        %3422 = vmatprep.subr.bf16.mxu0 0
        %3423 = vmatpush1.bf16.msra.mxu0 %v2499
        %3424 = vmatprep.mubr.bf16.mxu0 %v1165
        %3425 = vmatmul.mubr.bf16.gmra.mrb[0].mxu0 %v1164
        %v3426 = vpop.f32.mrb[0].mxu0
        %v3427 = vadd.f32 %v3378, %v3426
        %v3428 = vpop.f32.mrb[0].mxu0
        %v3429 = vpop.f32.mrb[0].mxu0
        %v3430 = vadd.f32 %v3381, %v3429
        %v3431 = vpop.f32.mrb[0].mxu0
        %3432 = vmatprep.mubr.bf16.mxu0 %v1197
        %3433 = vmatmul.mubr.bf16.gmra.mrb[0].mxu0 %v1196
        %v3434 = vpop.f32.mrb[0].mxu0
        %v3435 = vadd.f32 %v3386, %v3434
        %v3436 = vpop.f32.mrb[0].mxu0
        %v3437 = vpop.f32.mrb[0].mxu0
        %v3438 = vadd.f32 %v3389, %v3437
        %v3439 = vpop.f32.mrb[0].mxu0
        %3440 = vdwg.mxu0
        %3441 = vmatprep.subr.bf16.mxu0 0
        %3442 = vmatpush1.bf16.msra.mxu0 %v2500
        %3443 = vmatprep.subr.bf16.mxu0 0
        %3444 = vmatpush1.bf16.msra.mxu0 %v2501
        %3445 = vmatprep.subr.bf16.mxu0 0
        %3446 = vmatpush1.bf16.msra.mxu0 %v2502
        %3447 = vmatprep.subr.bf16.mxu0 0
        %3448 = vmatpush1.bf16.msra.mxu0 %v2503
        %3449 = vmatprep.subr.bf16.mxu0 0
        %3450 = vmatpush1.bf16.msra.mxu0 %v2504
        %3451 = vmatprep.subr.bf16.mxu0 0
        %3452 = vmatpush1.bf16.msra.mxu0 %v2505
        %3453 = vmatprep.subr.bf16.mxu0 0
        %3454 = vmatpush1.bf16.msra.mxu0 %v2506
        %3455 = vmatprep.subr.bf16.mxu0 0
        %3456 = vmatpush1.bf16.msra.mxu0 %v2507
        %3457 = vmatprep.subr.bf16.mxu0 0
        %3458 = vmatpush1.bf16.msra.mxu0 %v2508
        %3459 = vmatprep.subr.bf16.mxu0 0
        %3460 = vmatpush1.bf16.msra.mxu0 %v2509
        %3461 = vmatprep.subr.bf16.mxu0 0
        %3462 = vmatpush1.bf16.msra.mxu0 %v2510
        %3463 = vmatprep.subr.bf16.mxu0 0
        %3464 = vmatpush1.bf16.msra.mxu0 %v2511
        %3465 = vmatprep.subr.bf16.mxu0 0
        %3466 = vmatpush1.bf16.msra.mxu0 %v2512
        %3467 = vmatprep.subr.bf16.mxu0 0
        %3468 = vmatpush1.bf16.msra.mxu0 %v2513
        %3469 = vmatprep.subr.bf16.mxu0 0
        %3470 = vmatpush1.bf16.msra.mxu0 %v2514
        %3471 = vmatprep.subr.bf16.mxu0 0
        %3472 = vmatpush1.bf16.msra.mxu0 %v2515
        %3473 = vmatprep.mubr.bf16.mxu0 %v1167
        %3474 = vmatmul.mubr.bf16.gmra.mrb[0].mxu0 %v1166
        %v3475 = vpop.f32.mrb[0].mxu0
        %v3476 = vadd.f32 %v3427, %v3475
        %v3477 = vpop.f32.mrb[0].mxu0
        %v3478 = vpop.f32.mrb[0].mxu0
        %v3479 = vadd.f32 %v3430, %v3478
        %v3480 = vpop.f32.mrb[0].mxu0
        %3481 = vmatprep.mubr.bf16.mxu0 %v1199
        %3482 = vmatmul.mubr.bf16.gmra.mrb[0].mxu0 %v1198
        %v3483 = vpop.f32.mrb[0].mxu0
        %v3484 = vadd.f32 %v3435, %v3483
        %v3485 = vpop.f32.mrb[0].mxu0
        %v3486 = vpop.f32.mrb[0].mxu0
        %v3487 = vadd.f32 %v3438, %v3486
        %v3488 = vpop.f32.mrb[0].mxu0
        %3489 = vdwg.mxu0
        %3490 = vmatprep.subr.bf16.mxu0 0
        %3491 = vmatpush1.bf16.msra.mxu0 %v2516
        %3492 = vmatprep.subr.bf16.mxu0 0
        %3493 = vmatpush1.bf16.msra.mxu0 %v2517
        %3494 = vmatprep.subr.bf16.mxu0 0
        %3495 = vmatpush1.bf16.msra.mxu0 %v2518
        %3496 = vmatprep.subr.bf16.mxu0 0
        %3497 = vmatpush1.bf16.msra.mxu0 %v2519
        %3498 = vmatprep.subr.bf16.mxu0 0
        %3499 = vmatpush1.bf16.msra.mxu0 %v2520
        %3500 = vmatprep.subr.bf16.mxu0 0
        %3501 = vmatpush1.bf16.msra.mxu0 %v2521
        %3502 = vmatprep.subr.bf16.mxu0 0
        %3503 = vmatpush1.bf16.msra.mxu0 %v2522
        %3504 = vmatprep.subr.bf16.mxu0 0
        %3505 = vmatpush1.bf16.msra.mxu0 %v2523
        %3506 = vmatprep.subr.bf16.mxu0 0
        %3507 = vmatpush1.bf16.msra.mxu0 %v2524
        %3508 = vmatprep.subr.bf16.mxu0 0
        %3509 = vmatpush1.bf16.msra.mxu0 %v2525
        %3510 = vmatprep.subr.bf16.mxu0 0
        %3511 = vmatpush1.bf16.msra.mxu0 %v2526
        %3512 = vmatprep.subr.bf16.mxu0 0
        %3513 = vmatpush1.bf16.msra.mxu0 %v2527
        %3514 = vmatprep.subr.bf16.mxu0 0
        %3515 = vmatpush1.bf16.msra.mxu0 %v2528
        %3516 = vmatprep.subr.bf16.mxu0 0
        %3517 = vmatpush1.bf16.msra.mxu0 %v2529
        %3518 = vmatprep.subr.bf16.mxu0 0
        %3519 = vmatpush1.bf16.msra.mxu0 %v2530
        %3520 = vmatprep.subr.bf16.mxu0 0
        %3521 = vmatpush1.bf16.msra.mxu0 %v2531
        %3522 = vmatprep.mubr.bf16.mxu0 %v1169
        %3523 = vmatmul.mubr.bf16.gmra.mrb[0].mxu0 %v1168
        %v3524 = vpop.f32.mrb[0].mxu0
        %v3525 = vadd.f32 %v3476, %v3524
        %v3526 = vpop.f32.mrb[0].mxu0
        %v3527 = vpop.f32.mrb[0].mxu0
        %v3528 = vadd.f32 %v3479, %v3527
        %v3529 = vpop.f32.mrb[0].mxu0
        %3530 = vmatprep.mubr.bf16.mxu0 %v1201
        %3531 = vmatmul.mubr.bf16.gmra.mrb[0].mxu0 %v1200
        %v3532 = vpop.f32.mrb[0].mxu0
        %v3533 = vadd.f32 %v3484, %v3532
        %v3534 = vpop.f32.mrb[0].mxu0
        %v3535 = vpop.f32.mrb[0].mxu0
        %v3536 = vadd.f32 %v3487, %v3535
        %v3537 = vpop.f32.mrb[0].mxu0
        %3538 = vdwg.mxu0
        %3539 = vmatprep.subr.bf16.mxu0 0
        %3540 = vmatpush1.bf16.msra.mxu0 %v2532
        %3541 = vmatprep.subr.bf16.mxu0 0
        %3542 = vmatpush1.bf16.msra.mxu0 %v2533
        %3543 = vmatprep.subr.bf16.mxu0 0
        %3544 = vmatpush1.bf16.msra.mxu0 %v2534
        %3545 = vmatprep.subr.bf16.mxu0 0
        %3546 = vmatpush1.bf16.msra.mxu0 %v2535
        %3547 = vmatprep.subr.bf16.mxu0 0
        %3548 = vmatpush1.bf16.msra.mxu0 %v2536
        %3549 = vmatprep.subr.bf16.mxu0 0
        %3550 = vmatpush1.bf16.msra.mxu0 %v2537
        %3551 = vmatprep.subr.bf16.mxu0 0
        %3552 = vmatpush1.bf16.msra.mxu0 %v2538
        %3553 = vmatprep.subr.bf16.mxu0 0
        %3554 = vmatpush1.bf16.msra.mxu0 %v2539
        %3555 = vmatprep.subr.bf16.mxu0 0
        %3556 = vmatpush1.bf16.msra.mxu0 %v2540
        %3557 = vmatprep.subr.bf16.mxu0 0
        %3558 = vmatpush1.bf16.msra.mxu0 %v2541
        %3559 = vmatprep.subr.bf16.mxu0 0
        %3560 = vmatpush1.bf16.msra.mxu0 %v2542
        %3561 = vmatprep.subr.bf16.mxu0 0
        %3562 = vmatpush1.bf16.msra.mxu0 %v2543
        %3563 = vmatprep.subr.bf16.mxu0 0
        %3564 = vmatpush1.bf16.msra.mxu0 %v2544
        %3565 = vmatprep.subr.bf16.mxu0 0
        %3566 = vmatpush1.bf16.msra.mxu0 %v2545
        %3567 = vmatprep.subr.bf16.mxu0 0
        %3568 = vmatpush1.bf16.msra.mxu0 %v2546
        %3569 = vmatprep.subr.bf16.mxu0 0
        %3570 = vmatpush1.bf16.msra.mxu0 %v2547
        %3571 = vmatprep.mubr.bf16.mxu0 %v1171
        %3572 = vmatmul.mubr.bf16.gmra.mrb[0].mxu0 %v1170
        %v3573 = vpop.f32.mrb[0].mxu0
        %v3574 = vadd.f32 %v3525, %v3573
        %v3575 = vpop.f32.mrb[0].mxu0
        %v3576 = vpop.f32.mrb[0].mxu0
        %v3577 = vadd.f32 %v3528, %v3576
        %v3578 = vpop.f32.mrb[0].mxu0
        %3579 = vmatprep.mubr.bf16.mxu0 %v1203
        %3580 = vmatmul.mubr.bf16.gmra.mrb[0].mxu0 %v1202
        %v3581 = vpop.f32.mrb[0].mxu0
        %v3582 = vadd.f32 %v3533, %v3581
        %v3583 = vpop.f32.mrb[0].mxu0
        %v3584 = vpop.f32.mrb[0].mxu0
        %v3585 = vadd.f32 %v3536, %v3584
        %v3586 = vpop.f32.mrb[0].mxu0
        %3587 = vdwg.mxu0
        %v3588 = vadd.f32 %v368, %v3574
        %v3589 = vadd.f32 %v369, %v3577
        %v3590 = vadd.f32 %v370, %v3582
        %v3591 = vadd.f32 %v371, %v3585
        %3592 = vst [vmem:[%s357] sm:$0xff] %v3588
        %3593 = vst [vmem:[%s357 + $0x8] sm:$0xff] %v3589
        %3594 = vst [vmem:[%s357 + $0x10] sm:$0xff] %v3590
        %3595 = vst [vmem:[%s357 + $0x18] sm:$0xff] %v3591
        %p3596 = scmp.eq.s32.totalorder %s19, 6
        // Predicated region
        $region60: #{convnet_nin_forward.3} parent=50 // pred_check
          %p3597 = pneg %p3596
        $region61: #{convnet_nin_forward.3} parent=50 // pred_check_branch
          %3599 = sbr.rel (%p3597) target = $region63
        $region62: #{convnet_nin_forward.3} parent=50 // pred_region
          %v3600 = vld [vmem:[%s2] sm:$0x1]
          %v3601 = vld [vmem:[%s2 + $0x1] sm:$0x1]
          %v3602 = vld [vmem:[%s2 + $0x2] sm:$0x1]
          %v3603 = vld [vmem:[%s357] sm:$0xff]
          %v3604 = vld [vmem:[%s357 + $0x8] sm:$0xff]
          %v3605 = vld [vmem:[%s357 + $0x10] sm:$0xff]
          %v3606 = vld [vmem:[%s357 + $0x18] sm:$0xff]
          %v3607 = vlaneseq
          %v3608 = vshrl.u32 %v3607, 7
          %v3609 = vsub.s32 0, %v3608
          %v3610 = vrot.slane %v3600, %v3609
          %v3611 = vmul.f32 %v3603, %v3610
          %v3612 = vmul.f32 %v3604, %v3610
          %v3613 = vmul.f32 %v3605, %v3610
          %v3614 = vmul.f32 %v3606, %v3610
          %v3615 = vlaneseq
          %v3616 = vshrl.u32 %v3615, 7
          %v3617 = vsub.s32 0, %v3616
          %v3618 = vrot.slane %v3601, %v3617
          %v3619 = vadd.f32 %v3611, %v3618
          %v3620 = vadd.f32 %v3612, %v3618
          %v3621 = vadd.f32 %v3613, %v3618
          %v3622 = vadd.f32 %v3614, %v3618
          %vm3623 = vcmp.ge.f32.partialorder %v3619, 0.0
          %vm3624 = vcmp.ge.f32.partialorder %v3620, 0.0
          %vm3625 = vcmp.ge.f32.partialorder %v3621, 0.0
          %vm3626 = vcmp.ge.f32.partialorder %v3622, 0.0
          %v3627 = vlaneseq
          %v3628 = vshrl.u32 %v3627, 7
          %v3629 = vsub.s32 0, %v3628
          %v3630 = vrot.slane %v3602, %v3629
          %v3631 = vmul.f32 %v3630, %v3619
          %v3632 = vmul.f32 %v3630, %v3620
          %v3633 = vmul.f32 %v3630, %v3621
          %v3634 = vmul.f32 %v3630, %v3622
          %v3635 = vsel %vm3623, %v3619, %v3631
          %v3636 = vsel %vm3624, %v3620, %v3632
          %v3637 = vsel %vm3625, %v3621, %v3633
          %v3638 = vsel %vm3626, %v3622, %v3634
          %3639 = vst [vmem:[%s357] sm:$0xff] %v3635
          %3640 = vst [vmem:[%s357 + $0x8] sm:$0xff] %v3636
          %3641 = vst [vmem:[%s357 + $0x10] sm:$0xff] %v3637
          %3642 = vst [vmem:[%s357 + $0x18] sm:$0xff] %v3638
        $region63: #{convnet_nin_forward.3} parent=50 // pred_fallthru
          _
        %s3643 = smul.u32 4, %s18
        %p3644 = scmp.lt.s32.totalorder %s3643, 3
        %s3645 = scalar_select %p3644, %s3643, 3
        %s3646 = smul.addr %s3645, 8
        %s3647 = scalar_lea.vmem %s3, %s3646
        // Predicated region
        $region64: #{convnet_nin_forward.3} parent=50 // pred_check
          %p3648 = pneg %p119
        $region65: #{convnet_nin_forward.3} parent=50 // pred_check_branch
          %3650 = sbr.rel (%p3648) target = $region67
        $region66: #{convnet_nin_forward.3} parent=50 // pred_region
          %s3651 = smul.u32 4, %s18
        $region67: #{convnet_nin_forward.3} parent=50 // pred_fallthru
          _
        // Predicated region
        $region68: #{convnet_nin_forward.3} parent=50 // pred_check
          %p3652 = pneg %p119
        $region69: #{convnet_nin_forward.3} parent=50 // pred_check_branch
          %3654 = sbr.rel (%p3652) target = $region71
        $region70: #{convnet_nin_forward.3} parent=50 // pred_region
          %s3655 = smul.u32 4, %s18
          %p3656 = scmp.lt.s32.totalorder %s3655, 3
          %s3657 = scalar_select %p3656, %s3655, 3
          %s3658 = smul.addr %s3657, 8
          %s3659 = scalar_lea.vmem %s3, %s3658
        $region71: #{convnet_nin_forward.3} parent=50 // pred_fallthru
          _
      $region51: #{convnet_nin_forward.3} parent=5 // pred_fallthru
        _
      %p3660 = scmp.le.s32.totalorder 2, %s9
      // Predicated region
      $region72: #{convnet_nin_forward.3} parent=5 // pred_check
        %p3661 = pneg %p3660
      $region73: #{convnet_nin_forward.3} parent=5 // pred_check_branch
        %3663 = sbr.rel (%p3661) target = $region75
      $region74: #{convnet_nin_forward.3} parent=5 // pred_region
        %s3664 = ssub.s32 %s9, 2
      $region75: #{convnet_nin_forward.3} parent=5 // pred_fallthru
        _
    $region6: #{convnet_nin_forward.3} parent=1 // loop_footer
      %s13 = sadd.s32 1, %s9
    $region7: #{convnet_nin_forward.3} parent=1 // loop_footer_branch
      %8 = sbr.rel target = $region3
    $region8: #{convnet_nin_forward.3} parent=1 // loop_exit
      _

</llo_original>
